<compile_context>
chip_gen: v5e
topology: v5e:2x2
jax: 0.10.0
libtpu: 0.0.40
codegen_flags: <defaults>
</compile_context>

<pallas_src>
import numpy as np

import jax
import jax.numpy as jnp
from jax.experimental import pallas as pl
from jax.experimental.pallas import tpu as pltpu

EPS = 1e-5      # nn.BatchNorm2d default eps
KSIZE = 5
STRIDE = 2


def _conv_out(s, k=KSIZE, stride=STRIDE):
    return (s - (k - 1) - 1) // stride + 1


# ---------------------------------------------------------------------------
# In-kernel helpers (pure jnp, traced into the single Pallas kernel)
# ---------------------------------------------------------------------------
def _bn_relu(z, gamma, beta):
    """Train-mode BatchNorm (batch stats over rows) + ReLU.

    Rows of z are exactly BatchNorm2d's (N, H, W) reduction set; columns are
    channels.  The conv bias is intentionally absent -- a per-channel bias is
    cancelled exactly by the mean subtraction below.
    """
    mu = jnp.mean(z, axis=0, keepdims=True)
    var = jnp.mean(jnp.square(z - mu), axis=0, keepdims=True)  # biased var, as PyTorch BN
    return jnp.maximum((z - mu) * jax.lax.rsqrt(var + EPS) * gamma + beta, 0.0)


def _tap_conv(sel_ref, w_ref, src_ref):
    """Conv as 25 unrolled tap-matmuls with in-kernel im2col.

    sel_ref: (25, M_out, M_in) 0/1 gather matrices (one per kernel tap); the
    row gather becomes an MXU matmul, so no strided slicing or dynamic gather
    is needed inside the kernel.
    w_ref:   (25, Cin, Cout) per-tap conv weights.
    src_ref: (M_in, Cin) previous-layer activation resident in VMEM scratch.
    """
    taps, m_out, _ = sel_ref.shape
    cout = w_ref.shape[2]
    acc = jnp.zeros((m_out, cout), jnp.float32)
    for t in range(taps):  # static unroll (25 taps)
        rows = jnp.dot(sel_ref[t], src_ref[...], preferred_element_type=jnp.float32)
        acc = acc + jnp.dot(rows, w_ref[t], preferred_element_type=jnp.float32)
    return acc


def _fused_kernel(p1_ref, w1_ref, g1_ref, b1_ref,
                  sel2_ref, w2_ref, g2_ref, b2_ref,
                  sel3_ref, w3_ref, g3_ref, b3_ref,
                  fsel_ref, wh_ref, bh_ref,
                  out_ref,
                  act1_ref, act2_ref):
    # ---- layer 1: (host-im2col patches) @ flattened conv1 weights + BN + ReLU
    z1 = jnp.dot(p1_ref[...], w1_ref[...], preferred_element_type=jnp.float32)
    act1_ref[...] = _bn_relu(z1, g1_ref[...], b1_ref[...])

    # ---- layers 2 & 3: im2col in-kernel; activations stay in VMEM scratch
    act2_ref[...] = _bn_relu(_tap_conv(sel2_ref, w2_ref, act1_ref),
                             g2_ref[...], b2_ref[...])
    a3 = _bn_relu(_tap_conv(sel3_ref, w3_ref, act2_ref),
                  g3_ref[...], b3_ref[...])

    # ---- head: PyTorch's NCHW flatten order is folded into per-spatial-
    # position head weights at init, so this is just (a sum of) plain matmuls.
    nrows = fsel_ref.shape[1]
    n_out = wh_ref.shape[2]
    head = jnp.zeros((nrows, n_out), jnp.float32)
    for s in range(fsel_ref.shape[0]):  # conv output is 1x1 here -> one iteration
        rows = jnp.dot(fsel_ref[s], a3, preferred_element_type=jnp.float32)
        head = head + jnp.dot(rows, wh_ref[s], preferred_element_type=jnp.float32)
    out_ref[...] = head + bh_ref[...]


# ---------------------------------------------------------------------------
# Wrapper: one pallas_call for the whole network
# ---------------------------------------------------------------------------
def _full_spec(shape):
    ndim = len(shape)
    return pl.BlockSpec(shape, lambda i: (0,) * ndim)


def _fused_forward(params, p1):
    assert params["gather2"].shape[2] == p1.shape[0], "batch mismatch vs. init"
    inputs = (p1, params["w1_2d"], params["g1"], params["beta1"],
              params["gather2"], params["w2_taps"], params["g2"], params["beta2"],
              params["gather3"], params["w3_taps"], params["g3"], params["beta3"],
              params["fsel"], params["head_w"], params["head_b"])

    m1, k1 = p1.shape
    c1 = params["w1_2d"].shape[1]
    t2, m2, _ = params["gather2"].shape
    c2 = params["w2_taps"].shape[2]
    t3, m3, _ = params["gather3"].shape
    c3 = params["w3_taps"].shape[2]
    s3, batch, _ = params["fsel"].shape
    n_out = params["head_w"].shape[2]

    flops = 2 * (m1 * k1 * c1
                 + t2 * (m2 * m1 * c1 + m2 * c1 * c2)
                 + t3 * (m3 * m2 * c2 + m3 * c2 * c3)
                 + s3 * (batch * batch * s3 * c3 + batch * c3 * n_out))
    bytes_accessed = sum(int(np.prod(a.shape)) * 4 for a in inputs) + batch * n_out * 4

    return pl.pallas_call(
        _fused_kernel,
        out_shape=jax.ShapeDtypeStruct((batch, n_out), jnp.float32),
        grid=(1,),
        in_specs=[_full_spec(a.shape) for a in inputs],
        out_specs=_full_spec((batch, n_out)),
        scratch_shapes=[pltpu.VMEM((m1, c1), jnp.float32),   # layer-1 activation
                        pltpu.VMEM((m2, c2), jnp.float32)],  # layer-2 activation
        compiler_params=pltpu.CompilerParams(dimension_semantics=("arbitrary",)),
        cost_estimate=pl.CostEstimate(flops=int(flops),
                                      transcendentals=int(c1 + c2 + c3),
                                      bytes_accessed=int(bytes_accessed)),
    )(*inputs)


# ---------------------------------------------------------------------------
# Host-side glue: layer-1 im2col, parameter / gather-matrix construction
# ---------------------------------------------------------------------------
def _im2col(x_nhwc, k, stride):
    n, h, w, c = x_nhwc.shape
    oh = (h - k) // stride + 1
    ow = (w - k) // stride + 1
    taps = []
    for i in range(k):
        for j in range(k):
            taps.append(x_nhwc[:, i:i + stride * oh:stride, j:j + stride * ow:stride, :])
    col = jnp.stack(taps, axis=3)                       # (n, oh, ow, k*k, c)
    return col.reshape(n * oh * ow, k * k * c)


@jax.jit
def imgconvnet_forward(params, x_nchw):
    x = jnp.transpose(x_nchw, (0, 2, 3, 1))             # NCHW -> NHWC (tiny; fused by XLA)
    p1 = _im2col(x, KSIZE, STRIDE)                       # (N*OH1*OW1, 25*Cin)
    return _fused_forward(params, p1)


def _build_tap_gather(batch, ih, iw, oh, ow, k=KSIZE, stride=STRIDE):
    """(k*k, batch*oh*ow, batch*ih*iw) 0/1 matrices: G[t] @ act gathers, for each
    output row (n, y, x), the input activation row (n, stride*y+ki, stride*x+kj)."""
    m_out = batch * oh * ow
    n_i, y_i, x_i = np.meshgrid(np.arange(batch), np.arange(oh), np.arange(ow),
                                indexing="ij")
    n_i, y_i, x_i = n_i.ravel(), y_i.ravel(), x_i.ravel()
    mats = np.zeros((k * k, m_out, batch * ih * iw), dtype=np.float32)
    rows = np.arange(m_out)
    for ki in range(k):
        for kj in range(k):
            src = n_i * (ih * iw) + (stride * y_i + ki) * iw + (stride * x_i + kj)
            mats[ki * k + kj, rows, src] = 1.0
    return jnp.asarray(mats)


def _build_flatten_select(batch, s):
    """(s, batch, batch*s) 0/1 matrices selecting, per spatial position p, the
    activation rows {n*s + p}.  Identity when the final conv output is 1x1."""
    f = np.zeros((s, batch, batch * s), dtype=np.float32)
    for p in range(s):
        f[p, np.arange(batch), np.arange(batch) * s + p] = 1.0
    return jnp.asarray(f)


def init_params(key, h, w, n_out, batch):
    chans = [3, 16, 32, 32]
    hs, ws = [h], [w]
    for _ in range(3):
        hs.append(_conv_out(hs[-1]))
        ws.append(_conv_out(ws[-1]))
    assert hs[3] >= 1 and ws[3] >= 1, "input too small for three stride-2 convs"

    keys = jax.random.split(key, 12)
    params = {}
    kk = 0
    for layer in range(3):
        cin, cout = chans[layer], chans[layer + 1]
        wgt = 0.05 * jax.random.normal(keys[kk], (KSIZE, KSIZE, cin, cout), jnp.float32)
        if layer == 0:
            params["w1_2d"] = wgt.reshape(KSIZE * KSIZE * cin, cout)   # im2col (tap, cin) order
        else:
            params[f"w{layer + 1}_taps"] = wgt.reshape(KSIZE * KSIZE, cin, cout)
        # NOTE: no conv bias -- exactly cancelled by train-mode BatchNorm.
        params[f"g{layer + 1}"] = 1.0 + 0.01 * jax.random.normal(
            keys[kk + 1], (1, cout), jnp.float32)
        params[f"beta{layer + 1}"] = 0.01 * jax.random.normal(
            keys[kk + 2], (1, cout), jnp.float32)
        kk += 3

    params["gather2"] = _build_tap_gather(batch, hs[1], ws[1], hs[2], ws[2])
    params["gather3"] = _build_tap_gather(batch, hs[2], ws[2], hs[3], ws[3])

    s3 = hs[3] * ws[3]
    params["fsel"] = _build_flatten_select(batch, s3)
    # Head weight stored in (spatial, channel, out) layout, i.e. the PyTorch
    # (C*H*W, out) weight with its rows permuted once at init (flatten order
    # folded in, free at runtime).
    params["head_w"] = 0.05 * jax.random.normal(keys[kk], (s3, chans[-1], n_out), jnp.float32)
    params["head_b"] = 0.01 * jax.random.normal(keys[kk + 1], (1, n_out), jnp.float32)
    return params


if __name__ == "__main__":
    B, C, H, W = 2, 3, 32, 32        # conv spatial path: 32 -> 14 -> 5 -> 1
    N_OUT = 10

    key = jax.random.PRNGKey(0)
    kp, kx = jax.random.split(key)
    params = init_params(kp, H, W, N_OUT, batch=B)
    x = jax.random.normal(kx, (B, C, H, W), jnp.float32)

    out = imgconvnet_forward(params, x)
    jax.block_until_ready(out)
    assert out.shape == (B, N_OUT), out.shape
    print("KERNEL_OK")
</pallas_src>

<mosaic_0001>
module attributes {stable_mosaic.version = 11 : i64} {
  func.func @_fused_kernel(%arg0: i32, %arg1: memref<392x75xf32, #tpu.memory_space<vmem>>, %arg2: memref<75x16xf32, #tpu.memory_space<vmem>>, %arg3: memref<1x16xf32, #tpu.memory_space<vmem>>, %arg4: memref<1x16xf32, #tpu.memory_space<vmem>>, %arg5: memref<25x50x392xf32, #tpu.memory_space<vmem>>, %arg6: memref<25x16x32xf32, #tpu.memory_space<vmem>>, %arg7: memref<1x32xf32, #tpu.memory_space<vmem>>, %arg8: memref<1x32xf32, #tpu.memory_space<vmem>>, %arg9: memref<25x2x50xf32, #tpu.memory_space<vmem>>, %arg10: memref<25x32x32xf32, #tpu.memory_space<vmem>>, %arg11: memref<1x32xf32, #tpu.memory_space<vmem>>, %arg12: memref<1x32xf32, #tpu.memory_space<vmem>>, %arg13: memref<1x2x2xf32, #tpu.memory_space<vmem>>, %arg14: memref<1x32x10xf32, #tpu.memory_space<vmem>>, %arg15: memref<1x10xf32, #tpu.memory_space<vmem>>, %arg16: memref<2x10xf32, #tpu.memory_space<vmem>>, %arg17: memref<392x16xf32, #tpu.memory_space<vmem>>, %arg18: memref<50x32xf32, #tpu.memory_space<vmem>>) attributes {dimension_semantics = [#tpu.dimension_semantics<arbitrary>], iteration_bounds = array<i64: 1>, scalar_prefetch = 0 : i64, scratch_operands = 2 : i64, tpu.core_type = #tpu.core_type<tc>, window_params = [{pipeline_mode = #tpu.pipeline_mode<synchronous>, transform_indices = @transform_0, window_bounds = array<i64: 392, 75>}, {pipeline_mode = #tpu.pipeline_mode<synchronous>, transform_indices = @transform_1, window_bounds = array<i64: 75, 16>}, {pipeline_mode = #tpu.pipeline_mode<synchronous>, transform_indices = @transform_2, window_bounds = array<i64: 1, 16>}, {pipeline_mode = #tpu.pipeline_mode<synchronous>, transform_indices = @transform_3, window_bounds = array<i64: 1, 16>}, {pipeline_mode = #tpu.pipeline_mode<synchronous>, transform_indices = @transform_4, window_bounds = array<i64: 25, 50, 392>}, {pipeline_mode = #tpu.pipeline_mode<synchronous>, transform_indices = @transform_5, window_bounds = array<i64: 25, 16, 32>}, {pipeline_mode = #tpu.pipeline_mode<synchronous>, transform_indices = @transform_6, window_bounds = array<i64: 1, 32>}, {pipeline_mode = #tpu.pipeline_mode<synchronous>, transform_indices = @transform_7, window_bounds = array<i64: 1, 32>}, {pipeline_mode = #tpu.pipeline_mode<synchronous>, transform_indices = @transform_8, window_bounds = array<i64: 25, 2, 50>}, {pipeline_mode = #tpu.pipeline_mode<synchronous>, transform_indices = @transform_9, window_bounds = array<i64: 25, 32, 32>}, {pipeline_mode = #tpu.pipeline_mode<synchronous>, transform_indices = @transform_10, window_bounds = array<i64: 1, 32>}, {pipeline_mode = #tpu.pipeline_mode<synchronous>, transform_indices = @transform_11, window_bounds = array<i64: 1, 32>}, {pipeline_mode = #tpu.pipeline_mode<synchronous>, transform_indices = @transform_12, window_bounds = array<i64: 1, 2, 2>}, {pipeline_mode = #tpu.pipeline_mode<synchronous>, transform_indices = @transform_13, window_bounds = array<i64: 1, 32, 10>}, {pipeline_mode = #tpu.pipeline_mode<synchronous>, transform_indices = @transform_14, window_bounds = array<i64: 1, 10>}, {pipeline_mode = #tpu.pipeline_mode<synchronous>, transform_indices = @transform_15, window_bounds = array<i64: 2, 10>}]} {
    %c0 = arith.constant 0 : index
    %c0_0 = arith.constant 0 : index
    %0 = vector.load %arg1[%c0, %c0_0] : memref<392x75xf32, #tpu.memory_space<vmem>>, vector<392x75xf32>
    %c0_1 = arith.constant 0 : index
    %c0_2 = arith.constant 0 : index
    %1 = vector.load %arg2[%c0_1, %c0_2] : memref<75x16xf32, #tpu.memory_space<vmem>>, vector<75x16xf32>
    %cst = arith.constant dense<0.000000e+00> : vector<392x16xf32>
    %2 = tpu.matmul %0, %1, %cst {dimension_numbers = #tpu.dot_dimension_numbers<[1], [0], [0], [1], [0, 0, 1, 1], [], []>} : vector<392x75xf32>, vector<75x16xf32>, vector<392x16xf32> -> vector<392x16xf32>
    %c0_3 = arith.constant 0 : index
    %c0_4 = arith.constant 0 : index
    %3 = vector.load %arg3[%c0_3, %c0_4] : memref<1x16xf32, #tpu.memory_space<vmem>>, vector<1x16xf32>
    %c0_5 = arith.constant 0 : index
    %c0_6 = arith.constant 0 : index
    %4 = vector.load %arg4[%c0_5, %c0_6] : memref<1x16xf32, #tpu.memory_space<vmem>>, vector<1x16xf32>
    %cst_7 = arith.constant dense<0.000000e+00> : vector<16xf32>
    %5 = vector.multi_reduction <add>, %2, %cst_7 [0] : vector<392x16xf32> to vector<16xf32>
    %6 = vector.shape_cast %5 : vector<16xf32> to vector<1x16xf32>
    %cst_8 = arith.constant 3.920000e+02 : f32
    %7 = vector.broadcast %cst_8 : f32 to vector<1x16xf32>
    %8 = arith.divf %6, %7 : vector<1x16xf32>
    %9 = vector.broadcast %8 : vector<1x16xf32> to vector<392x16xf32>
    %10 = arith.subf %2, %9 : vector<392x16xf32>
    %11 = arith.mulf %10, %10 : vector<392x16xf32>
    %cst_9 = arith.constant dense<0.000000e+00> : vector<16xf32>
    %12 = vector.multi_reduction <add>, %11, %cst_9 [0] : vector<392x16xf32> to vector<16xf32>
    %13 = vector.shape_cast %12 : vector<16xf32> to vector<1x16xf32>
    %cst_10 = arith.constant 3.920000e+02 : f32
    %14 = vector.broadcast %cst_10 : f32 to vector<1x16xf32>
    %15 = arith.divf %13, %14 : vector<1x16xf32>
    %16 = vector.broadcast %8 : vector<1x16xf32> to vector<392x16xf32>
    %17 = arith.subf %2, %16 : vector<392x16xf32>
    %cst_11 = arith.constant 9.99999974E-6 : f32
    %18 = vector.broadcast %cst_11 : f32 to vector<1x16xf32>
    %19 = arith.addf %15, %18 : vector<1x16xf32>
    %20 = math.rsqrt %19 : vector<1x16xf32>
    %21 = vector.broadcast %20 : vector<1x16xf32> to vector<392x16xf32>
    %22 = arith.mulf %17, %21 : vector<392x16xf32>
    %23 = vector.broadcast %3 : vector<1x16xf32> to vector<392x16xf32>
    %24 = arith.mulf %22, %23 : vector<392x16xf32>
    %25 = vector.broadcast %4 : vector<1x16xf32> to vector<392x16xf32>
    %26 = arith.addf %24, %25 : vector<392x16xf32>
    %cst_12 = arith.constant 0.000000e+00 : f32
    %27 = vector.broadcast %cst_12 : f32 to vector<392x16xf32>
    %28 = arith.maximumf %26, %27 : vector<392x16xf32>
    %c0_13 = arith.constant 0 : index
    %c0_14 = arith.constant 0 : index
    %29 = vector.load %arg17[%c0_13, %c0_14] : memref<392x16xf32, #tpu.memory_space<vmem>>, vector<392x16xf32>
    tpu.vector_store %arg17[%c0_13, %c0_14], %28 {strides = array<i32>} : memref<392x16xf32, #tpu.memory_space<vmem>>, vector<392x16xf32>,
    %cst_15 = arith.constant 0.000000e+00 : f32
    %30 = vector.broadcast %cst_15 : f32 to vector<50x32xf32>
    %c0_16 = arith.constant 0 : index
    %c0_17 = arith.constant 0 : index
    %c0_18 = arith.constant 0 : index
    %31 = vector.load %arg5[%c0_16, %c0_17, %c0_18] : memref<25x50x392xf32, #tpu.memory_space<vmem>>, vector<1x50x392xf32>
    %32 = vector.shape_cast %31 : vector<1x50x392xf32> to vector<50x392xf32>
    %c0_19 = arith.constant 0 : index
    %c0_20 = arith.constant 0 : index
    %33 = vector.load %arg17[%c0_19, %c0_20] : memref<392x16xf32, #tpu.memory_space<vmem>>, vector<392x16xf32>
    %cst_21 = arith.constant dense<0.000000e+00> : vector<50x16xf32>
    %34 = tpu.matmul %32, %33, %cst_21 {dimension_numbers = #tpu.dot_dimension_numbers<[1], [0], [0], [1], [0, 0, 1, 1], [], []>} : vector<50x392xf32>, vector<392x16xf32>, vector<50x16xf32> -> vector<50x16xf32>
    %c0_22 = arith.constant 0 : index
    %c0_23 = arith.constant 0 : index
    %c0_24 = arith.constant 0 : index
    %35 = vector.load %arg6[%c0_22, %c0_23, %c0_24] : memref<25x16x32xf32, #tpu.memory_space<vmem>>, vector<1x16x32xf32>
    %36 = vector.shape_cast %35 : vector<1x16x32xf32> to vector<16x32xf32>
    %cst_25 = arith.constant dense<0.000000e+00> : vector<50x32xf32>
    %37 = tpu.matmul %34, %36, %cst_25 {dimension_numbers = #tpu.dot_dimension_numbers<[1], [0], [0], [1], [0, 0, 1, 1], [], []>} : vector<50x16xf32>, vector<16x32xf32>, vector<50x32xf32> -> vector<50x32xf32>
    %38 = arith.addf %30, %37 : vector<50x32xf32>
    %c1 = arith.constant 1 : index
    %c0_26 = arith.constant 0 : index
    %c0_27 = arith.constant 0 : index
    %39 = vector.load %arg5[%c1, %c0_26, %c0_27] : memref<25x50x392xf32, #tpu.memory_space<vmem>>, vector<1x50x392xf32>
    %40 = vector.shape_cast %39 : vector<1x50x392xf32> to vector<50x392xf32>
    %c0_28 = arith.constant 0 : index
    %c0_29 = arith.constant 0 : index
    %41 = vector.load %arg17[%c0_28, %c0_29] : memref<392x16xf32, #tpu.memory_space<vmem>>, vector<392x16xf32>
    %cst_30 = arith.constant dense<0.000000e+00> : vector<50x16xf32>
    %42 = tpu.matmul %40, %41, %cst_30 {dimension_numbers = #tpu.dot_dimension_numbers<[1], [0], [0], [1], [0, 0, 1, 1], [], []>} : vector<50x392xf32>, vector<392x16xf32>, vector<50x16xf32> -> vector<50x16xf32>
    %c1_31 = arith.constant 1 : index
    %c0_32 = arith.constant 0 : index
    %c0_33 = arith.constant 0 : index
    %43 = vector.load %arg6[%c1_31, %c0_32, %c0_33] : memref<25x16x32xf32, #tpu.memory_space<vmem>>, vector<1x16x32xf32>
    %44 = vector.shape_cast %43 : vector<1x16x32xf32> to vector<16x32xf32>
    %cst_34 = arith.constant dense<0.000000e+00> : vector<50x32xf32>
    %45 = tpu.matmul %42, %44, %cst_34 {dimension_numbers = #tpu.dot_dimension_numbers<[1], [0], [0], [1], [0, 0, 1, 1], [], []>} : vector<50x16xf32>, vector<16x32xf32>, vector<50x32xf32> -> vector<50x32xf32>
    %46 = arith.addf %38, %45 : vector<50x32xf32>
    %c2 = arith.constant 2 : index
    %c0_35 = arith.constant 0 : index
    %c0_36 = arith.constant 0 : index
    %47 = vector.load %arg5[%c2, %c0_35, %c0_36] : memref<25x50x392xf32, #tpu.memory_space<vmem>>, vector<1x50x392xf32>
    %48 = vector.shape_cast %47 : vector<1x50x392xf32> to vector<50x392xf32>
    %c0_37 = arith.constant 0 : index
    %c0_38 = arith.constant 0 : index
    %49 = vector.load %arg17[%c0_37, %c0_38] : memref<392x16xf32, #tpu.memory_space<vmem>>, vector<392x16xf32>
    %cst_39 = arith.constant dense<0.000000e+00> : vector<50x16xf32>
    %50 = tpu.matmul %48, %49, %cst_39 {dimension_numbers = #tpu.dot_dimension_numbers<[1], [0], [0], [1], [0, 0, 1, 1], [], []>} : vector<50x392xf32>, vector<392x16xf32>, vector<50x16xf32> -> vector<50x16xf32>
    %c2_40 = arith.constant 2 : index
    %c0_41 = arith.constant 0 : index
    %c0_42 = arith.constant 0 : index
    %51 = vector.load %arg6[%c2_40, %c0_41, %c0_42] : memref<25x16x32xf32, #tpu.memory_space<vmem>>, vector<1x16x32xf32>
    %52 = vector.shape_cast %51 : vector<1x16x32xf32> to vector<16x32xf32>
    %cst_43 = arith.constant dense<0.000000e+00> : vector<50x32xf32>
    %53 = tpu.matmul %50, %52, %cst_43 {dimension_numbers = #tpu.dot_dimension_numbers<[1], [0], [0], [1], [0, 0, 1, 1], [], []>} : vector<50x16xf32>, vector<16x32xf32>, vector<50x32xf32> -> vector<50x32xf32>
    %54 = arith.addf %46, %53 : vector<50x32xf32>
    %c3 = arith.constant 3 : index
    %c0_44 = arith.constant 0 : index
    %c0_45 = arith.constant 0 : index
    %55 = vector.load %arg5[%c3, %c0_44, %c0_45] : memref<25x50x392xf32, #tpu.memory_space<vmem>>, vector<1x50x392xf32>
    %56 = vector.shape_cast %55 : vector<1x50x392xf32> to vector<50x392xf32>
    %c0_46 = arith.constant 0 : index
    %c0_47 = arith.constant 0 : index
    %57 = vector.load %arg17[%c0_46, %c0_47] : memref<392x16xf32, #tpu.memory_space<vmem>>, vector<392x16xf32>
    %cst_48 = arith.constant dense<0.000000e+00> : vector<50x16xf32>
    %58 = tpu.matmul %56, %57, %cst_48 {dimension_numbers = #tpu.dot_dimension_numbers<[1], [0], [0], [1], [0, 0, 1, 1], [], []>} : vector<50x392xf32>, vector<392x16xf32>, vector<50x16xf32> -> vector<50x16xf32>
    %c3_49 = arith.constant 3 : index
    %c0_50 = arith.constant 0 : index
    %c0_51 = arith.constant 0 : index
    %59 = vector.load %arg6[%c3_49, %c0_50, %c0_51] : memref<25x16x32xf32, #tpu.memory_space<vmem>>, vector<1x16x32xf32>
    %60 = vector.shape_cast %59 : vector<1x16x32xf32> to vector<16x32xf32>
    %cst_52 = arith.constant dense<0.000000e+00> : vector<50x32xf32>
    %61 = tpu.matmul %58, %60, %cst_52 {dimension_numbers = #tpu.dot_dimension_numbers<[1], [0], [0], [1], [0, 0, 1, 1], [], []>} : vector<50x16xf32>, vector<16x32xf32>, vector<50x32xf32> -> vector<50x32xf32>
    %62 = arith.addf %54, %61 : vector<50x32xf32>
    %c4 = arith.constant 4 : index
    %c0_53 = arith.constant 0 : index
    %c0_54 = arith.constant 0 : index
    %63 = vector.load %arg5[%c4, %c0_53, %c0_54] : memref<25x50x392xf32, #tpu.memory_space<vmem>>, vector<1x50x392xf32>
    %64 = vector.shape_cast %63 : vector<1x50x392xf32> to vector<50x392xf32>
    %c0_55 = arith.constant 0 : index
    %c0_56 = arith.constant 0 : index
    %65 = vector.load %arg17[%c0_55, %c0_56] : memref<392x16xf32, #tpu.memory_space<vmem>>, vector<392x16xf32>
    %cst_57 = arith.constant dense<0.000000e+00> : vector<50x16xf32>
    %66 = tpu.matmul %64, %65, %cst_57 {dimension_numbers = #tpu.dot_dimension_numbers<[1], [0], [0], [1], [0, 0, 1, 1], [], []>} : vector<50x392xf32>, vector<392x16xf32>, vector<50x16xf32> -> vector<50x16xf32>
    %c4_58 = arith.constant 4 : index
    %c0_59 = arith.constant 0 : index
    %c0_60 = arith.constant 0 : index
    %67 = vector.load %arg6[%c4_58, %c0_59, %c0_60] : memref<25x16x32xf32, #tpu.memory_space<vmem>>, vector<1x16x32xf32>
    %68 = vector.shape_cast %67 : vector<1x16x32xf32> to vector<16x32xf32>
    %cst_61 = arith.constant dense<0.000000e+00> : vector<50x32xf32>
    %69 = tpu.matmul %66, %68, %cst_61 {dimension_numbers = #tpu.dot_dimension_numbers<[1], [0], [0], [1], [0, 0, 1, 1], [], []>} : vector<50x16xf32>, vector<16x32xf32>, vector<50x32xf32> -> vector<50x32xf32>
    %70 = arith.addf %62, %69 : vector<50x32xf32>
    %c5 = arith.constant 5 : index
    %c0_62 = arith.constant 0 : index
    %c0_63 = arith.constant 0 : index
    %71 = vector.load %arg5[%c5, %c0_62, %c0_63] : memref<25x50x392xf32, #tpu.memory_space<vmem>>, vector<1x50x392xf32>
    %72 = vector.shape_cast %71 : vector<1x50x392xf32> to vector<50x392xf32>
    %c0_64 = arith.constant 0 : index
    %c0_65 = arith.constant 0 : index
    %73 = vector.load %arg17[%c0_64, %c0_65] : memref<392x16xf32, #tpu.memory_space<vmem>>, vector<392x16xf32>
    %cst_66 = arith.constant dense<0.000000e+00> : vector<50x16xf32>
    %74 = tpu.matmul %72, %73, %cst_66 {dimension_numbers = #tpu.dot_dimension_numbers<[1], [0], [0], [1], [0, 0, 1, 1], [], []>} : vector<50x392xf32>, vector<392x16xf32>, vector<50x16xf32> -> vector<50x16xf32>
    %c5_67 = arith.constant 5 : index
    %c0_68 = arith.constant 0 : index
    %c0_69 = arith.constant 0 : index
    %75 = vector.load %arg6[%c5_67, %c0_68, %c0_69] : memref<25x16x32xf32, #tpu.memory_space<vmem>>, vector<1x16x32xf32>
    %76 = vector.shape_cast %75 : vector<1x16x32xf32> to vector<16x32xf32>
    %cst_70 = arith.constant dense<0.000000e+00> : vector<50x32xf32>
    %77 = tpu.matmul %74, %76, %cst_70 {dimension_numbers = #tpu.dot_dimension_numbers<[1], [0], [0], [1], [0, 0, 1, 1], [], []>} : vector<50x16xf32>, vector<16x32xf32>, vector<50x32xf32> -> vector<50x32xf32>
    %78 = arith.addf %70, %77 : vector<50x32xf32>
    %c6 = arith.constant 6 : index
    %c0_71 = arith.constant 0 : index
    %c0_72 = arith.constant 0 : index
    %79 = vector.load %arg5[%c6, %c0_71, %c0_72] : memref<25x50x392xf32, #tpu.memory_space<vmem>>, vector<1x50x392xf32>
    %80 = vector.shape_cast %79 : vector<1x50x392xf32> to vector<50x392xf32>
    %c0_73 = arith.constant 0 : index
    %c0_74 = arith.constant 0 : index
    %81 = vector.load %arg17[%c0_73, %c0_74] : memref<392x16xf32, #tpu.memory_space<vmem>>, vector<392x16xf32>
    %cst_75 = arith.constant dense<0.000000e+00> : vector<50x16xf32>
    %82 = tpu.matmul %80, %81, %cst_75 {dimension_numbers = #tpu.dot_dimension_numbers<[1], [0], [0], [1], [0, 0, 1, 1], [], []>} : vector<50x392xf32>, vector<392x16xf32>, vector<50x16xf32> -> vector<50x16xf32>
    %c6_76 = arith.constant 6 : index
    %c0_77 = arith.constant 0 : index
    %c0_78 = arith.constant 0 : index
    %83 = vector.load %arg6[%c6_76, %c0_77, %c0_78] : memref<25x16x32xf32, #tpu.memory_space<vmem>>, vector<1x16x32xf32>
    %84 = vector.shape_cast %83 : vector<1x16x32xf32> to vector<16x32xf32>
    %cst_79 = arith.constant dense<0.000000e+00> : vector<50x32xf32>
    %85 = tpu.matmul %82, %84, %cst_79 {dimension_numbers = #tpu.dot_dimension_numbers<[1], [0], [0], [1], [0, 0, 1, 1], [], []>} : vector<50x16xf32>, vector<16x32xf32>, vector<50x32xf32> -> vector<50x32xf32>
    %86 = arith.addf %78, %85 : vector<50x32xf32>
    %c7 = arith.constant 7 : index
    %c0_80 = arith.constant 0 : index
    %c0_81 = arith.constant 0 : index
    %87 = vector.load %arg5[%c7, %c0_80, %c0_81] : memref<25x50x392xf32, #tpu.memory_space<vmem>>, vector<1x50x392xf32>
    %88 = vector.shape_cast %87 : vector<1x50x392xf32> to vector<50x392xf32>
    %c0_82 = arith.constant 0 : index
    %c0_83 = arith.constant 0 : index
    %89 = vector.load %arg17[%c0_82, %c0_83] : memref<392x16xf32, #tpu.memory_space<vmem>>, vector<392x16xf32>
    %cst_84 = arith.constant dense<0.000000e+00> : vector<50x16xf32>
    %90 = tpu.matmul %88, %89, %cst_84 {dimension_numbers = #tpu.dot_dimension_numbers<[1], [0], [0], [1], [0, 0, 1, 1], [], []>} : vector<50x392xf32>, vector<392x16xf32>, vector<50x16xf32> -> vector<50x16xf32>
    %c7_85 = arith.constant 7 : index
    %c0_86 = arith.constant 0 : index
    %c0_87 = arith.constant 0 : index
    %91 = vector.load %arg6[%c7_85, %c0_86, %c0_87] : memref<25x16x32xf32, #tpu.memory_space<vmem>>, vector<1x16x32xf32>
    %92 = vector.shape_cast %91 : vector<1x16x32xf32> to vector<16x32xf32>
    %cst_88 = arith.constant dense<0.000000e+00> : vector<50x32xf32>
    %93 = tpu.matmul %90, %92, %cst_88 {dimension_numbers = #tpu.dot_dimension_numbers<[1], [0], [0], [1], [0, 0, 1, 1], [], []>} : vector<50x16xf32>, vector<16x32xf32>, vector<50x32xf32> -> vector<50x32xf32>
    %94 = arith.addf %86, %93 : vector<50x32xf32>
    %c8 = arith.constant 8 : index
    %c0_89 = arith.constant 0 : index
    %c0_90 = arith.constant 0 : index
    %95 = vector.load %arg5[%c8, %c0_89, %c0_90] : memref<25x50x392xf32, #tpu.memory_space<vmem>>, vector<1x50x392xf32>
    %96 = vector.shape_cast %95 : vector<1x50x392xf32> to vector<50x392xf32>
    %c0_91 = arith.constant 0 : index
    %c0_92 = arith.constant 0 : index
    %97 = vector.load %arg17[%c0_91, %c0_92] : memref<392x16xf32, #tpu.memory_space<vmem>>, vector<392x16xf32>
    %cst_93 = arith.constant dense<0.000000e+00> : vector<50x16xf32>
    %98 = tpu.matmul %96, %97, %cst_93 {dimension_numbers = #tpu.dot_dimension_numbers<[1], [0], [0], [1], [0, 0, 1, 1], [], []>} : vector<50x392xf32>, vector<392x16xf32>, vector<50x16xf32> -> vector<50x16xf32>
    %c8_94 = arith.constant 8 : index
    %c0_95 = arith.constant 0 : index
    %c0_96 = arith.constant 0 : index
    %99 = vector.load %arg6[%c8_94, %c0_95, %c0_96] : memref<25x16x32xf32, #tpu.memory_space<vmem>>, vector<1x16x32xf32>
    %100 = vector.shape_cast %99 : vector<1x16x32xf32> to vector<16x32xf32>
    %cst_97 = arith.constant dense<0.000000e+00> : vector<50x32xf32>
    %101 = tpu.matmul %98, %100, %cst_97 {dimension_numbers = #tpu.dot_dimension_numbers<[1], [0], [0], [1], [0, 0, 1, 1], [], []>} : vector<50x16xf32>, vector<16x32xf32>, vector<50x32xf32> -> vector<50x32xf32>
    %102 = arith.addf %94, %101 : vector<50x32xf32>
    %c9 = arith.constant 9 : index
    %c0_98 = arith.constant 0 : index
    %c0_99 = arith.constant 0 : index
    %103 = vector.load %arg5[%c9, %c0_98, %c0_99] : memref<25x50x392xf32, #tpu.memory_space<vmem>>, vector<1x50x392xf32>
    %104 = vector.shape_cast %103 : vector<1x50x392xf32> to vector<50x392xf32>
    %c0_100 = arith.constant 0 : index
    %c0_101 = arith.constant 0 : index
    %105 = vector.load %arg17[%c0_100, %c0_101] : memref<392x16xf32, #tpu.memory_space<vmem>>, vector<392x16xf32>
    %cst_102 = arith.constant dense<0.000000e+00> : vector<50x16xf32>
    %106 = tpu.matmul %104, %105, %cst_102 {dimension_numbers = #tpu.dot_dimension_numbers<[1], [0], [0], [1], [0, 0, 1, 1], [], []>} : vector<50x392xf32>, vector<392x16xf32>, vector<50x16xf32> -> vector<50x16xf32>
    %c9_103 = arith.constant 9 : index
    %c0_104 = arith.constant 0 : index
    %c0_105 = arith.constant 0 : index
    %107 = vector.load %arg6[%c9_103, %c0_104, %c0_105] : memref<25x16x32xf32, #tpu.memory_space<vmem>>, vector<1x16x32xf32>
    %108 = vector.shape_cast %107 : vector<1x16x32xf32> to vector<16x32xf32>
    %cst_106 = arith.constant dense<0.000000e+00> : vector<50x32xf32>
    %109 = tpu.matmul %106, %108, %cst_106 {dimension_numbers = #tpu.dot_dimension_numbers<[1], [0], [0], [1], [0, 0, 1, 1], [], []>} : vector<50x16xf32>, vector<16x32xf32>, vector<50x32xf32> -> vector<50x32xf32>
    %110 = arith.addf %102, %109 : vector<50x32xf32>
    %c10 = arith.constant 10 : index
    %c0_107 = arith.constant 0 : index
    %c0_108 = arith.constant 0 : index
    %111 = vector.load %arg5[%c10, %c0_107, %c0_108] : memref<25x50x392xf32, #tpu.memory_space<vmem>>, vector<1x50x392xf32>
    %112 = vector.shape_cast %111 : vector<1x50x392xf32> to vector<50x392xf32>
    %c0_109 = arith.constant 0 : index
    %c0_110 = arith.constant 0 : index
    %113 = vector.load %arg17[%c0_109, %c0_110] : memref<392x16xf32, #tpu.memory_space<vmem>>, vector<392x16xf32>
    %cst_111 = arith.constant dense<0.000000e+00> : vector<50x16xf32>
    %114 = tpu.matmul %112, %113, %cst_111 {dimension_numbers = #tpu.dot_dimension_numbers<[1], [0], [0], [1], [0, 0, 1, 1], [], []>} : vector<50x392xf32>, vector<392x16xf32>, vector<50x16xf32> -> vector<50x16xf32>
    %c10_112 = arith.constant 10 : index
    %c0_113 = arith.constant 0 : index
    %c0_114 = arith.constant 0 : index
    %115 = vector.load %arg6[%c10_112, %c0_113, %c0_114] : memref<25x16x32xf32, #tpu.memory_space<vmem>>, vector<1x16x32xf32>
    %116 = vector.shape_cast %115 : vector<1x16x32xf32> to vector<16x32xf32>
    %cst_115 = arith.constant dense<0.000000e+00> : vector<50x32xf32>
    %117 = tpu.matmul %114, %116, %cst_115 {dimension_numbers = #tpu.dot_dimension_numbers<[1], [0], [0], [1], [0, 0, 1, 1], [], []>} : vector<50x16xf32>, vector<16x32xf32>, vector<50x32xf32> -> vector<50x32xf32>
    %118 = arith.addf %110, %117 : vector<50x32xf32>
    %c11 = arith.constant 11 : index
    %c0_116 = arith.constant 0 : index
    %c0_117 = arith.constant 0 : index
    %119 = vector.load %arg5[%c11, %c0_116, %c0_117] : memref<25x50x392xf32, #tpu.memory_space<vmem>>, vector<1x50x392xf32>
    %120 = vector.shape_cast %119 : vector<1x50x392xf32> to vector<50x392xf32>
    %c0_118 = arith.constant 0 : index
    %c0_119 = arith.constant 0 : index
    %121 = vector.load %arg17[%c0_118, %c0_119] : memref<392x16xf32, #tpu.memory_space<vmem>>, vector<392x16xf32>
    %cst_120 = arith.constant dense<0.000000e+00> : vector<50x16xf32>
    %122 = tpu.matmul %120, %121, %cst_120 {dimension_numbers = #tpu.dot_dimension_numbers<[1], [0], [0], [1], [0, 0, 1, 1], [], []>} : vector<50x392xf32>, vector<392x16xf32>, vector<50x16xf32> -> vector<50x16xf32>
    %c11_121 = arith.constant 11 : index
    %c0_122 = arith.constant 0 : index
    %c0_123 = arith.constant 0 : index
    %123 = vector.load %arg6[%c11_121, %c0_122, %c0_123] : memref<25x16x32xf32, #tpu.memory_space<vmem>>, vector<1x16x32xf32>
    %124 = vector.shape_cast %123 : vector<1x16x32xf32> to vector<16x32xf32>
    %cst_124 = arith.constant dense<0.000000e+00> : vector<50x32xf32>
    %125 = tpu.matmul %122, %124, %cst_124 {dimension_numbers = #tpu.dot_dimension_numbers<[1], [0], [0], [1], [0, 0, 1, 1], [], []>} : vector<50x16xf32>, vector<16x32xf32>, vector<50x32xf32> -> vector<50x32xf32>
    %126 = arith.addf %118, %125 : vector<50x32xf32>
    %c12 = arith.constant 12 : index
    %c0_125 = arith.constant 0 : index
    %c0_126 = arith.constant 0 : index
    %127 = vector.load %arg5[%c12, %c0_125, %c0_126] : memref<25x50x392xf32, #tpu.memory_space<vmem>>, vector<1x50x392xf32>
    %128 = vector.shape_cast %127 : vector<1x50x392xf32> to vector<50x392xf32>
    %c0_127 = arith.constant 0 : index
    %c0_128 = arith.constant 0 : index
    %129 = vector.load %arg17[%c0_127, %c0_128] : memref<392x16xf32, #tpu.memory_space<vmem>>, vector<392x16xf32>
    %cst_129 = arith.constant dense<0.000000e+00> : vector<50x16xf32>
    %130 = tpu.matmul %128, %129, %cst_129 {dimension_numbers = #tpu.dot_dimension_numbers<[1], [0], [0], [1], [0, 0, 1, 1], [], []>} : vector<50x392xf32>, vector<392x16xf32>, vector<50x16xf32> -> vector<50x16xf32>
    %c12_130 = arith.constant 12 : index
    %c0_131 = arith.constant 0 : index
    %c0_132 = arith.constant 0 : index
    %131 = vector.load %arg6[%c12_130, %c0_131, %c0_132] : memref<25x16x32xf32, #tpu.memory_space<vmem>>, vector<1x16x32xf32>
    %132 = vector.shape_cast %131 : vector<1x16x32xf32> to vector<16x32xf32>
    %cst_133 = arith.constant dense<0.000000e+00> : vector<50x32xf32>
    %133 = tpu.matmul %130, %132, %cst_133 {dimension_numbers = #tpu.dot_dimension_numbers<[1], [0], [0], [1], [0, 0, 1, 1], [], []>} : vector<50x16xf32>, vector<16x32xf32>, vector<50x32xf32> -> vector<50x32xf32>
    %134 = arith.addf %126, %133 : vector<50x32xf32>
    %c13 = arith.constant 13 : index
    %c0_134 = arith.constant 0 : index
    %c0_135 = arith.constant 0 : index
    %135 = vector.load %arg5[%c13, %c0_134, %c0_135] : memref<25x50x392xf32, #tpu.memory_space<vmem>>, vector<1x50x392xf32>
    %136 = vector.shape_cast %135 : vector<1x50x392xf32> to vector<50x392xf32>
    %c0_136 = arith.constant 0 : index
    %c0_137 = arith.constant 0 : index
    %137 = vector.load %arg17[%c0_136, %c0_137] : memref<392x16xf32, #tpu.memory_space<vmem>>, vector<392x16xf32>
    %cst_138 = arith.constant dense<0.000000e+00> : vector<50x16xf32>
    %138 = tpu.matmul %136, %137, %cst_138 {dimension_numbers = #tpu.dot_dimension_numbers<[1], [0], [0], [1], [0, 0, 1, 1], [], []>} : vector<50x392xf32>, vector<392x16xf32>, vector<50x16xf32> -> vector<50x16xf32>
    %c13_139 = arith.constant 13 : index
    %c0_140 = arith.constant 0 : index
    %c0_141 = arith.constant 0 : index
    %139 = vector.load %arg6[%c13_139, %c0_140, %c0_141] : memref<25x16x32xf32, #tpu.memory_space<vmem>>, vector<1x16x32xf32>
    %140 = vector.shape_cast %139 : vector<1x16x32xf32> to vector<16x32xf32>
    %cst_142 = arith.constant dense<0.000000e+00> : vector<50x32xf32>
    %141 = tpu.matmul %138, %140, %cst_142 {dimension_numbers = #tpu.dot_dimension_numbers<[1], [0], [0], [1], [0, 0, 1, 1], [], []>} : vector<50x16xf32>, vector<16x32xf32>, vector<50x32xf32> -> vector<50x32xf32>
    %142 = arith.addf %134, %141 : vector<50x32xf32>
    %c14 = arith.constant 14 : index
    %c0_143 = arith.constant 0 : index
    %c0_144 = arith.constant 0 : index
    %143 = vector.load %arg5[%c14, %c0_143, %c0_144] : memref<25x50x392xf32, #tpu.memory_space<vmem>>, vector<1x50x392xf32>
    %144 = vector.shape_cast %143 : vector<1x50x392xf32> to vector<50x392xf32>
    %c0_145 = arith.constant 0 : index
    %c0_146 = arith.constant 0 : index
    %145 = vector.load %arg17[%c0_145, %c0_146] : memref<392x16xf32, #tpu.memory_space<vmem>>, vector<392x16xf32>
    %cst_147 = arith.constant dense<0.000000e+00> : vector<50x16xf32>
    %146 = tpu.matmul %144, %145, %cst_147 {dimension_numbers = #tpu.dot_dimension_numbers<[1], [0], [0], [1], [0, 0, 1, 1], [], []>} : vector<50x392xf32>, vector<392x16xf32>, vector<50x16xf32> -> vector<50x16xf32>
    %c14_148 = arith.constant 14 : index
    %c0_149 = arith.constant 0 : index
    %c0_150 = arith.constant 0 : index
    %147 = vector.load %arg6[%c14_148, %c0_149, %c0_150] : memref<25x16x32xf32, #tpu.memory_space<vmem>>, vector<1x16x32xf32>
    %148 = vector.shape_cast %147 : vector<1x16x32xf32> to vector<16x32xf32>
    %cst_151 = arith.constant dense<0.000000e+00> : vector<50x32xf32>
    %149 = tpu.matmul %146, %148, %cst_151 {dimension_numbers = #tpu.dot_dimension_numbers<[1], [0], [0], [1], [0, 0, 1, 1], [], []>} : vector<50x16xf32>, vector<16x32xf32>, vector<50x32xf32> -> vector<50x32xf32>
    %150 = arith.addf %142, %149 : vector<50x32xf32>
    %c15 = arith.constant 15 : index
    %c0_152 = arith.constant 0 : index
    %c0_153 = arith.constant 0 : index
    %151 = vector.load %arg5[%c15, %c0_152, %c0_153] : memref<25x50x392xf32, #tpu.memory_space<vmem>>, vector<1x50x392xf32>
    %152 = vector.shape_cast %151 : vector<1x50x392xf32> to vector<50x392xf32>
    %c0_154 = arith.constant 0 : index
    %c0_155 = arith.constant 0 : index
    %153 = vector.load %arg17[%c0_154, %c0_155] : memref<392x16xf32, #tpu.memory_space<vmem>>, vector<392x16xf32>
    %cst_156 = arith.constant dense<0.000000e+00> : vector<50x16xf32>
    %154 = tpu.matmul %152, %153, %cst_156 {dimension_numbers = #tpu.dot_dimension_numbers<[1], [0], [0], [1], [0, 0, 1, 1], [], []>} : vector<50x392xf32>, vector<392x16xf32>, vector<50x16xf32> -> vector<50x16xf32>
    %c15_157 = arith.constant 15 : index
    %c0_158 = arith.constant 0 : index
    %c0_159 = arith.constant 0 : index
    %155 = vector.load %arg6[%c15_157, %c0_158, %c0_159] : memref<25x16x32xf32, #tpu.memory_space<vmem>>, vector<1x16x32xf32>
    %156 = vector.shape_cast %155 : vector<1x16x32xf32> to vector<16x32xf32>
    %cst_160 = arith.constant dense<0.000000e+00> : vector<50x32xf32>
    %157 = tpu.matmul %154, %156, %cst_160 {dimension_numbers = #tpu.dot_dimension_numbers<[1], [0], [0], [1], [0, 0, 1, 1], [], []>} : vector<50x16xf32>, vector<16x32xf32>, vector<50x32xf32> -> vector<50x32xf32>
    %158 = arith.addf %150, %157 : vector<50x32xf32>
    %c16 = arith.constant 16 : index
    %c0_161 = arith.constant 0 : index
    %c0_162 = arith.constant 0 : index
    %159 = vector.load %arg5[%c16, %c0_161, %c0_162] : memref<25x50x392xf32, #tpu.memory_space<vmem>>, vector<1x50x392xf32>
    %160 = vector.shape_cast %159 : vector<1x50x392xf32> to vector<50x392xf32>
    %c0_163 = arith.constant 0 : index
    %c0_164 = arith.constant 0 : index
    %161 = vector.load %arg17[%c0_163, %c0_164] : memref<392x16xf32, #tpu.memory_space<vmem>>, vector<392x16xf32>
    %cst_165 = arith.constant dense<0.000000e+00> : vector<50x16xf32>
    %162 = tpu.matmul %160, %161, %cst_165 {dimension_numbers = #tpu.dot_dimension_numbers<[1], [0], [0], [1], [0, 0, 1, 1], [], []>} : vector<50x392xf32>, vector<392x16xf32>, vector<50x16xf32> -> vector<50x16xf32>
    %c16_166 = arith.constant 16 : index
    %c0_167 = arith.constant 0 : index
    %c0_168 = arith.constant 0 : index
    %163 = vector.load %arg6[%c16_166, %c0_167, %c0_168] : memref<25x16x32xf32, #tpu.memory_space<vmem>>, vector<1x16x32xf32>
    %164 = vector.shape_cast %163 : vector<1x16x32xf32> to vector<16x32xf32>
    %cst_169 = arith.constant dense<0.000000e+00> : vector<50x32xf32>
    %165 = tpu.matmul %162, %164, %cst_169 {dimension_numbers = #tpu.dot_dimension_numbers<[1], [0], [0], [1], [0, 0, 1, 1], [], []>} : vector<50x16xf32>, vector<16x32xf32>, vector<50x32xf32> -> vector<50x32xf32>
    %166 = arith.addf %158, %165 : vector<50x32xf32>
    %c17 = arith.constant 17 : index
    %c0_170 = arith.constant 0 : index
    %c0_171 = arith.constant 0 : index
    %167 = vector.load %arg5[%c17, %c0_170, %c0_171] : memref<25x50x392xf32, #tpu.memory_space<vmem>>, vector<1x50x392xf32>
    %168 = vector.shape_cast %167 : vector<1x50x392xf32> to vector<50x392xf32>
    %c0_172 = arith.constant 0 : index
    %c0_173 = arith.constant 0 : index
    %169 = vector.load %arg17[%c0_172, %c0_173] : memref<392x16xf32, #tpu.memory_space<vmem>>, vector<392x16xf32>
    %cst_174 = arith.constant dense<0.000000e+00> : vector<50x16xf32>
    %170 = tpu.matmul %168, %169, %cst_174 {dimension_numbers = #tpu.dot_dimension_numbers<[1], [0], [0], [1], [0, 0, 1, 1], [], []>} : vector<50x392xf32>, vector<392x16xf32>, vector<50x16xf32> -> vector<50x16xf32>
    %c17_175 = arith.constant 17 : index
    %c0_176 = arith.constant 0 : index
    %c0_177 = arith.constant 0 : index
    %171 = vector.load %arg6[%c17_175, %c0_176, %c0_177] : memref<25x16x32xf32, #tpu.memory_space<vmem>>, vector<1x16x32xf32>
    %172 = vector.shape_cast %171 : vector<1x16x32xf32> to vector<16x32xf32>
    %cst_178 = arith.constant dense<0.000000e+00> : vector<50x32xf32>
    %173 = tpu.matmul %170, %172, %cst_178 {dimension_numbers = #tpu.dot_dimension_numbers<[1], [0], [0], [1], [0, 0, 1, 1], [], []>} : vector<50x16xf32>, vector<16x32xf32>, vector<50x32xf32> -> vector<50x32xf32>
    %174 = arith.addf %166, %173 : vector<50x32xf32>
    %c18 = arith.constant 18 : index
    %c0_179 = arith.constant 0 : index
    %c0_180 = arith.constant 0 : index
    %175 = vector.load %arg5[%c18, %c0_179, %c0_180] : memref<25x50x392xf32, #tpu.memory_space<vmem>>, vector<1x50x392xf32>
    %176 = vector.shape_cast %175 : vector<1x50x392xf32> to vector<50x392xf32>
    %c0_181 = arith.constant 0 : index
    %c0_182 = arith.constant 0 : index
    %177 = vector.load %arg17[%c0_181, %c0_182] : memref<392x16xf32, #tpu.memory_space<vmem>>, vector<392x16xf32>
    %cst_183 = arith.constant dense<0.000000e+00> : vector<50x16xf32>
    %178 = tpu.matmul %176, %177, %cst_183 {dimension_numbers = #tpu.dot_dimension_numbers<[1], [0], [0], [1], [0, 0, 1, 1], [], []>} : vector<50x392xf32>, vector<392x16xf32>, vector<50x16xf32> -> vector<50x16xf32>
    %c18_184 = arith.constant 18 : index
    %c0_185 = arith.constant 0 : index
    %c0_186 = arith.constant 0 : index
    %179 = vector.load %arg6[%c18_184, %c0_185, %c0_186] : memref<25x16x32xf32, #tpu.memory_space<vmem>>, vector<1x16x32xf32>
    %180 = vector.shape_cast %179 : vector<1x16x32xf32> to vector<16x32xf32>
    %cst_187 = arith.constant dense<0.000000e+00> : vector<50x32xf32>
    %181 = tpu.matmul %178, %180, %cst_187 {dimension_numbers = #tpu.dot_dimension_numbers<[1], [0], [0], [1], [0, 0, 1, 1], [], []>} : vector<50x16xf32>, vector<16x32xf32>, vector<50x32xf32> -> vector<50x32xf32>
    %182 = arith.addf %174, %181 : vector<50x32xf32>
    %c19 = arith.constant 19 : index
    %c0_188 = arith.constant 0 : index
    %c0_189 = arith.constant 0 : index
    %183 = vector.load %arg5[%c19, %c0_188, %c0_189] : memref<25x50x392xf32, #tpu.memory_space<vmem>>, vector<1x50x392xf32>
    %184 = vector.shape_cast %183 : vector<1x50x392xf32> to vector<50x392xf32>
    %c0_190 = arith.constant 0 : index
    %c0_191 = arith.constant 0 : index
    %185 = vector.load %arg17[%c0_190, %c0_191] : memref<392x16xf32, #tpu.memory_space<vmem>>, vector<392x16xf32>
    %cst_192 = arith.constant dense<0.000000e+00> : vector<50x16xf32>
    %186 = tpu.matmul %184, %185, %cst_192 {dimension_numbers = #tpu.dot_dimension_numbers<[1], [0], [0], [1], [0, 0, 1, 1], [], []>} : vector<50x392xf32>, vector<392x16xf32>, vector<50x16xf32> -> vector<50x16xf32>
    %c19_193 = arith.constant 19 : index
    %c0_194 = arith.constant 0 : index
    %c0_195 = arith.constant 0 : index
    %187 = vector.load %arg6[%c19_193, %c0_194, %c0_195] : memref<25x16x32xf32, #tpu.memory_space<vmem>>, vector<1x16x32xf32>
    %188 = vector.shape_cast %187 : vector<1x16x32xf32> to vector<16x32xf32>
    %cst_196 = arith.constant dense<0.000000e+00> : vector<50x32xf32>
    %189 = tpu.matmul %186, %188, %cst_196 {dimension_numbers = #tpu.dot_dimension_numbers<[1], [0], [0], [1], [0, 0, 1, 1], [], []>} : vector<50x16xf32>, vector<16x32xf32>, vector<50x32xf32> -> vector<50x32xf32>
    %190 = arith.addf %182, %189 : vector<50x32xf32>
    %c20 = arith.constant 20 : index
    %c0_197 = arith.constant 0 : index
    %c0_198 = arith.constant 0 : index
    %191 = vector.load %arg5[%c20, %c0_197, %c0_198] : memref<25x50x392xf32, #tpu.memory_space<vmem>>, vector<1x50x392xf32>
    %192 = vector.shape_cast %191 : vector<1x50x392xf32> to vector<50x392xf32>
    %c0_199 = arith.constant 0 : index
    %c0_200 = arith.constant 0 : index
    %193 = vector.load %arg17[%c0_199, %c0_200] : memref<392x16xf32, #tpu.memory_space<vmem>>, vector<392x16xf32>
    %cst_201 = arith.constant dense<0.000000e+00> : vector<50x16xf32>
    %194 = tpu.matmul %192, %193, %cst_201 {dimension_numbers = #tpu.dot_dimension_numbers<[1], [0], [0], [1], [0, 0, 1, 1], [], []>} : vector<50x392xf32>, vector<392x16xf32>, vector<50x16xf32> -> vector<50x16xf32>
    %c20_202 = arith.constant 20 : index
    %c0_203 = arith.constant 0 : index
    %c0_204 = arith.constant 0 : index
    %195 = vector.load %arg6[%c20_202, %c0_203, %c0_204] : memref<25x16x32xf32, #tpu.memory_space<vmem>>, vector<1x16x32xf32>
    %196 = vector.shape_cast %195 : vector<1x16x32xf32> to vector<16x32xf32>
    %cst_205 = arith.constant dense<0.000000e+00> : vector<50x32xf32>
    %197 = tpu.matmul %194, %196, %cst_205 {dimension_numbers = #tpu.dot_dimension_numbers<[1], [0], [0], [1], [0, 0, 1, 1], [], []>} : vector<50x16xf32>, vector<16x32xf32>, vector<50x32xf32> -> vector<50x32xf32>
    %198 = arith.addf %190, %197 : vector<50x32xf32>
    %c21 = arith.constant 21 : index
    %c0_206 = arith.constant 0 : index
    %c0_207 = arith.constant 0 : index
    %199 = vector.load %arg5[%c21, %c0_206, %c0_207] : memref<25x50x392xf32, #tpu.memory_space<vmem>>, vector<1x50x392xf32>
    %200 = vector.shape_cast %199 : vector<1x50x392xf32> to vector<50x392xf32>
    %c0_208 = arith.constant 0 : index
    %c0_209 = arith.constant 0 : index
    %201 = vector.load %arg17[%c0_208, %c0_209] : memref<392x16xf32, #tpu.memory_space<vmem>>, vector<392x16xf32>
    %cst_210 = arith.constant dense<0.000000e+00> : vector<50x16xf32>
    %202 = tpu.matmul %200, %201, %cst_210 {dimension_numbers = #tpu.dot_dimension_numbers<[1], [0], [0], [1], [0, 0, 1, 1], [], []>} : vector<50x392xf32>, vector<392x16xf32>, vector<50x16xf32> -> vector<50x16xf32>
    %c21_211 = arith.constant 21 : index
    %c0_212 = arith.constant 0 : index
    %c0_213 = arith.constant 0 : index
    %203 = vector.load %arg6[%c21_211, %c0_212, %c0_213] : memref<25x16x32xf32, #tpu.memory_space<vmem>>, vector<1x16x32xf32>
    %204 = vector.shape_cast %203 : vector<1x16x32xf32> to vector<16x32xf32>
    %cst_214 = arith.constant dense<0.000000e+00> : vector<50x32xf32>
    %205 = tpu.matmul %202, %204, %cst_214 {dimension_numbers = #tpu.dot_dimension_numbers<[1], [0], [0], [1], [0, 0, 1, 1], [], []>} : vector<50x16xf32>, vector<16x32xf32>, vector<50x32xf32> -> vector<50x32xf32>
    %206 = arith.addf %198, %205 : vector<50x32xf32>
    %c22 = arith.constant 22 : index
    %c0_215 = arith.constant 0 : index
    %c0_216 = arith.constant 0 : index
    %207 = vector.load %arg5[%c22, %c0_215, %c0_216] : memref<25x50x392xf32, #tpu.memory_space<vmem>>, vector<1x50x392xf32>
    %208 = vector.shape_cast %207 : vector<1x50x392xf32> to vector<50x392xf32>
    %c0_217 = arith.constant 0 : index
    %c0_218 = arith.constant 0 : index
    %209 = vector.load %arg17[%c0_217, %c0_218] : memref<392x16xf32, #tpu.memory_space<vmem>>, vector<392x16xf32>
    %cst_219 = arith.constant dense<0.000000e+00> : vector<50x16xf32>
    %210 = tpu.matmul %208, %209, %cst_219 {dimension_numbers = #tpu.dot_dimension_numbers<[1], [0], [0], [1], [0, 0, 1, 1], [], []>} : vector<50x392xf32>, vector<392x16xf32>, vector<50x16xf32> -> vector<50x16xf32>
    %c22_220 = arith.constant 22 : index
    %c0_221 = arith.constant 0 : index
    %c0_222 = arith.constant 0 : index
    %211 = vector.load %arg6[%c22_220, %c0_221, %c0_222] : memref<25x16x32xf32, #tpu.memory_space<vmem>>, vector<1x16x32xf32>
    %212 = vector.shape_cast %211 : vector<1x16x32xf32> to vector<16x32xf32>
    %cst_223 = arith.constant dense<0.000000e+00> : vector<50x32xf32>
    %213 = tpu.matmul %210, %212, %cst_223 {dimension_numbers = #tpu.dot_dimension_numbers<[1], [0], [0], [1], [0, 0, 1, 1], [], []>} : vector<50x16xf32>, vector<16x32xf32>, vector<50x32xf32> -> vector<50x32xf32>
    %214 = arith.addf %206, %213 : vector<50x32xf32>
    %c23 = arith.constant 23 : index
    %c0_224 = arith.constant 0 : index
    %c0_225 = arith.constant 0 : index
    %215 = vector.load %arg5[%c23, %c0_224, %c0_225] : memref<25x50x392xf32, #tpu.memory_space<vmem>>, vector<1x50x392xf32>
    %216 = vector.shape_cast %215 : vector<1x50x392xf32> to vector<50x392xf32>
    %c0_226 = arith.constant 0 : index
    %c0_227 = arith.constant 0 : index
    %217 = vector.load %arg17[%c0_226, %c0_227] : memref<392x16xf32, #tpu.memory_space<vmem>>, vector<392x16xf32>
    %cst_228 = arith.constant dense<0.000000e+00> : vector<50x16xf32>
    %218 = tpu.matmul %216, %217, %cst_228 {dimension_numbers = #tpu.dot_dimension_numbers<[1], [0], [0], [1], [0, 0, 1, 1], [], []>} : vector<50x392xf32>, vector<392x16xf32>, vector<50x16xf32> -> vector<50x16xf32>
    %c23_229 = arith.constant 23 : index
    %c0_230 = arith.constant 0 : index
    %c0_231 = arith.constant 0 : index
    %219 = vector.load %arg6[%c23_229, %c0_230, %c0_231] : memref<25x16x32xf32, #tpu.memory_space<vmem>>, vector<1x16x32xf32>
    %220 = vector.shape_cast %219 : vector<1x16x32xf32> to vector<16x32xf32>
    %cst_232 = arith.constant dense<0.000000e+00> : vector<50x32xf32>
    %221 = tpu.matmul %218, %220, %cst_232 {dimension_numbers = #tpu.dot_dimension_numbers<[1], [0], [0], [1], [0, 0, 1, 1], [], []>} : vector<50x16xf32>, vector<16x32xf32>, vector<50x32xf32> -> vector<50x32xf32>
    %222 = arith.addf %214, %221 : vector<50x32xf32>
    %c24 = arith.constant 24 : index
    %c0_233 = arith.constant 0 : index
    %c0_234 = arith.constant 0 : index
    %223 = vector.load %arg5[%c24, %c0_233, %c0_234] : memref<25x50x392xf32, #tpu.memory_space<vmem>>, vector<1x50x392xf32>
    %224 = vector.shape_cast %223 : vector<1x50x392xf32> to vector<50x392xf32>
    %c0_235 = arith.constant 0 : index
    %c0_236 = arith.constant 0 : index
    %225 = vector.load %arg17[%c0_235, %c0_236] : memref<392x16xf32, #tpu.memory_space<vmem>>, vector<392x16xf32>
    %cst_237 = arith.constant dense<0.000000e+00> : vector<50x16xf32>
    %226 = tpu.matmul %224, %225, %cst_237 {dimension_numbers = #tpu.dot_dimension_numbers<[1], [0], [0], [1], [0, 0, 1, 1], [], []>} : vector<50x392xf32>, vector<392x16xf32>, vector<50x16xf32> -> vector<50x16xf32>
    %c24_238 = arith.constant 24 : index
    %c0_239 = arith.constant 0 : index
    %c0_240 = arith.constant 0 : index
    %227 = vector.load %arg6[%c24_238, %c0_239, %c0_240] : memref<25x16x32xf32, #tpu.memory_space<vmem>>, vector<1x16x32xf32>
    %228 = vector.shape_cast %227 : vector<1x16x32xf32> to vector<16x32xf32>
    %cst_241 = arith.constant dense<0.000000e+00> : vector<50x32xf32>
    %229 = tpu.matmul %226, %228, %cst_241 {dimension_numbers = #tpu.dot_dimension_numbers<[1], [0], [0], [1], [0, 0, 1, 1], [], []>} : vector<50x16xf32>, vector<16x32xf32>, vector<50x32xf32> -> vector<50x32xf32>
    %230 = arith.addf %222, %229 : vector<50x32xf32>
    %c0_242 = arith.constant 0 : index
    %c0_243 = arith.constant 0 : index
    %231 = vector.load %arg7[%c0_242, %c0_243] : memref<1x32xf32, #tpu.memory_space<vmem>>, vector<1x32xf32>
    %c0_244 = arith.constant 0 : index
    %c0_245 = arith.constant 0 : index
    %232 = vector.load %arg8[%c0_244, %c0_245] : memref<1x32xf32, #tpu.memory_space<vmem>>, vector<1x32xf32>
    %cst_246 = arith.constant dense<0.000000e+00> : vector<32xf32>
    %233 = vector.multi_reduction <add>, %230, %cst_246 [0] : vector<50x32xf32> to vector<32xf32>
    %234 = vector.shape_cast %233 : vector<32xf32> to vector<1x32xf32>
    %cst_247 = arith.constant 5.000000e+01 : f32
    %235 = vector.broadcast %cst_247 : f32 to vector<1x32xf32>
    %236 = arith.divf %234, %235 : vector<1x32xf32>
    %237 = vector.broadcast %236 : vector<1x32xf32> to vector<50x32xf32>
    %238 = arith.subf %230, %237 : vector<50x32xf32>
    %239 = arith.mulf %238, %238 : vector<50x32xf32>
    %cst_248 = arith.constant dense<0.000000e+00> : vector<32xf32>
    %240 = vector.multi_reduction <add>, %239, %cst_248 [0] : vector<50x32xf32> to vector<32xf32>
    %241 = vector.shape_cast %240 : vector<32xf32> to vector<1x32xf32>
    %cst_249 = arith.constant 5.000000e+01 : f32
    %242 = vector.broadcast %cst_249 : f32 to vector<1x32xf32>
    %243 = arith.divf %241, %242 : vector<1x32xf32>
    %244 = vector.broadcast %236 : vector<1x32xf32> to vector<50x32xf32>
    %245 = arith.subf %230, %244 : vector<50x32xf32>
    %cst_250 = arith.constant 9.99999974E-6 : f32
    %246 = vector.broadcast %cst_250 : f32 to vector<1x32xf32>
    %247 = arith.addf %243, %246 : vector<1x32xf32>
    %248 = math.rsqrt %247 : vector<1x32xf32>
    %249 = vector.broadcast %248 : vector<1x32xf32> to vector<50x32xf32>
    %250 = arith.mulf %245, %249 : vector<50x32xf32>
    %251 = vector.broadcast %231 : vector<1x32xf32> to vector<50x32xf32>
    %252 = arith.mulf %250, %251 : vector<50x32xf32>
    %253 = vector.broadcast %232 : vector<1x32xf32> to vector<50x32xf32>
    %254 = arith.addf %252, %253 : vector<50x32xf32>
    %cst_251 = arith.constant 0.000000e+00 : f32
    %255 = vector.broadcast %cst_251 : f32 to vector<50x32xf32>
    %256 = arith.maximumf %254, %255 : vector<50x32xf32>
    %c0_252 = arith.constant 0 : index
    %c0_253 = arith.constant 0 : index
    %257 = vector.load %arg18[%c0_252, %c0_253] : memref<50x32xf32, #tpu.memory_space<vmem>>, vector<50x32xf32>
    tpu.vector_store %arg18[%c0_252, %c0_253], %256 {strides = array<i32>} : memref<50x32xf32, #tpu.memory_space<vmem>>, vector<50x32xf32>,
    %cst_254 = arith.constant 0.000000e+00 : f32
    %258 = vector.broadcast %cst_254 : f32 to vector<2x32xf32>
    %c0_255 = arith.constant 0 : index
    %c0_256 = arith.constant 0 : index
    %c0_257 = arith.constant 0 : index
    %259 = vector.load %arg9[%c0_255, %c0_256, %c0_257] : memref<25x2x50xf32, #tpu.memory_space<vmem>>, vector<1x2x50xf32>
    %260 = vector.shape_cast %259 : vector<1x2x50xf32> to vector<2x50xf32>
    %c0_258 = arith.constant 0 : index
    %c0_259 = arith.constant 0 : index
    %261 = vector.load %arg18[%c0_258, %c0_259] : memref<50x32xf32, #tpu.memory_space<vmem>>, vector<50x32xf32>
    %cst_260 = arith.constant dense<0.000000e+00> : vector<2x32xf32>
    %262 = tpu.matmul %260, %261, %cst_260 {dimension_numbers = #tpu.dot_dimension_numbers<[1], [0], [0], [1], [0, 0, 1, 1], [], []>} : vector<2x50xf32>, vector<50x32xf32>, vector<2x32xf32> -> vector<2x32xf32>
    %c0_261 = arith.constant 0 : index
    %c0_262 = arith.constant 0 : index
    %c0_263 = arith.constant 0 : index
    %263 = vector.load %arg10[%c0_261, %c0_262, %c0_263] : memref<25x32x32xf32, #tpu.memory_space<vmem>>, vector<1x32x32xf32>
    %264 = vector.shape_cast %263 : vector<1x32x32xf32> to vector<32x32xf32>
    %cst_264 = arith.constant dense<0.000000e+00> : vector<2x32xf32>
    %265 = tpu.matmul %262, %264, %cst_264 {dimension_numbers = #tpu.dot_dimension_numbers<[1], [0], [0], [1], [0, 0, 1, 1], [], []>} : vector<2x32xf32>, vector<32x32xf32>, vector<2x32xf32> -> vector<2x32xf32>
    %266 = arith.addf %258, %265 : vector<2x32xf32>
    %c1_265 = arith.constant 1 : index
    %c0_266 = arith.constant 0 : index
    %c0_267 = arith.constant 0 : index
    %267 = vector.load %arg9[%c1_265, %c0_266, %c0_267] : memref<25x2x50xf32, #tpu.memory_space<vmem>>, vector<1x2x50xf32>
    %268 = vector.shape_cast %267 : vector<1x2x50xf32> to vector<2x50xf32>
    %c0_268 = arith.constant 0 : index
    %c0_269 = arith.constant 0 : index
    %269 = vector.load %arg18[%c0_268, %c0_269] : memref<50x32xf32, #tpu.memory_space<vmem>>, vector<50x32xf32>
    %cst_270 = arith.constant dense<0.000000e+00> : vector<2x32xf32>
    %270 = tpu.matmul %268, %269, %cst_270 {dimension_numbers = #tpu.dot_dimension_numbers<[1], [0], [0], [1], [0, 0, 1, 1], [], []>} : vector<2x50xf32>, vector<50x32xf32>, vector<2x32xf32> -> vector<2x32xf32>
    %c1_271 = arith.constant 1 : index
    %c0_272 = arith.constant 0 : index
    %c0_273 = arith.constant 0 : index
    %271 = vector.load %arg10[%c1_271, %c0_272, %c0_273] : memref<25x32x32xf32, #tpu.memory_space<vmem>>, vector<1x32x32xf32>
    %272 = vector.shape_cast %271 : vector<1x32x32xf32> to vector<32x32xf32>
    %cst_274 = arith.constant dense<0.000000e+00> : vector<2x32xf32>
    %273 = tpu.matmul %270, %272, %cst_274 {dimension_numbers = #tpu.dot_dimension_numbers<[1], [0], [0], [1], [0, 0, 1, 1], [], []>} : vector<2x32xf32>, vector<32x32xf32>, vector<2x32xf32> -> vector<2x32xf32>
    %274 = arith.addf %266, %273 : vector<2x32xf32>
    %c2_275 = arith.constant 2 : index
    %c0_276 = arith.constant 0 : index
    %c0_277 = arith.constant 0 : index
    %275 = vector.load %arg9[%c2_275, %c0_276, %c0_277] : memref<25x2x50xf32, #tpu.memory_space<vmem>>, vector<1x2x50xf32>
    %276 = vector.shape_cast %275 : vector<1x2x50xf32> to vector<2x50xf32>
    %c0_278 = arith.constant 0 : index
    %c0_279 = arith.constant 0 : index
    %277 = vector.load %arg18[%c0_278, %c0_279] : memref<50x32xf32, #tpu.memory_space<vmem>>, vector<50x32xf32>
    %cst_280 = arith.constant dense<0.000000e+00> : vector<2x32xf32>
    %278 = tpu.matmul %276, %277, %cst_280 {dimension_numbers = #tpu.dot_dimension_numbers<[1], [0], [0], [1], [0, 0, 1, 1], [], []>} : vector<2x50xf32>, vector<50x32xf32>, vector<2x32xf32> -> vector<2x32xf32>
    %c2_281 = arith.constant 2 : index
    %c0_282 = arith.constant 0 : index
    %c0_283 = arith.constant 0 : index
    %279 = vector.load %arg10[%c2_281, %c0_282, %c0_283] : memref<25x32x32xf32, #tpu.memory_space<vmem>>, vector<1x32x32xf32>
    %280 = vector.shape_cast %279 : vector<1x32x32xf32> to vector<32x32xf32>
    %cst_284 = arith.constant dense<0.000000e+00> : vector<2x32xf32>
    %281 = tpu.matmul %278, %280, %cst_284 {dimension_numbers = #tpu.dot_dimension_numbers<[1], [0], [0], [1], [0, 0, 1, 1], [], []>} : vector<2x32xf32>, vector<32x32xf32>, vector<2x32xf32> -> vector<2x32xf32>
    %282 = arith.addf %274, %281 : vector<2x32xf32>
    %c3_285 = arith.constant 3 : index
    %c0_286 = arith.constant 0 : index
    %c0_287 = arith.constant 0 : index
    %283 = vector.load %arg9[%c3_285, %c0_286, %c0_287] : memref<25x2x50xf32, #tpu.memory_space<vmem>>, vector<1x2x50xf32>
    %284 = vector.shape_cast %283 : vector<1x2x50xf32> to vector<2x50xf32>
    %c0_288 = arith.constant 0 : index
    %c0_289 = arith.constant 0 : index
    %285 = vector.load %arg18[%c0_288, %c0_289] : memref<50x32xf32, #tpu.memory_space<vmem>>, vector<50x32xf32>
    %cst_290 = arith.constant dense<0.000000e+00> : vector<2x32xf32>
    %286 = tpu.matmul %284, %285, %cst_290 {dimension_numbers = #tpu.dot_dimension_numbers<[1], [0], [0], [1], [0, 0, 1, 1], [], []>} : vector<2x50xf32>, vector<50x32xf32>, vector<2x32xf32> -> vector<2x32xf32>
    %c3_291 = arith.constant 3 : index
    %c0_292 = arith.constant 0 : index
    %c0_293 = arith.constant 0 : index
    %287 = vector.load %arg10[%c3_291, %c0_292, %c0_293] : memref<25x32x32xf32, #tpu.memory_space<vmem>>, vector<1x32x32xf32>
    %288 = vector.shape_cast %287 : vector<1x32x32xf32> to vector<32x32xf32>
    %cst_294 = arith.constant dense<0.000000e+00> : vector<2x32xf32>
    %289 = tpu.matmul %286, %288, %cst_294 {dimension_numbers = #tpu.dot_dimension_numbers<[1], [0], [0], [1], [0, 0, 1, 1], [], []>} : vector<2x32xf32>, vector<32x32xf32>, vector<2x32xf32> -> vector<2x32xf32>
    %290 = arith.addf %282, %289 : vector<2x32xf32>
    %c4_295 = arith.constant 4 : index
    %c0_296 = arith.constant 0 : index
    %c0_297 = arith.constant 0 : index
    %291 = vector.load %arg9[%c4_295, %c0_296, %c0_297] : memref<25x2x50xf32, #tpu.memory_space<vmem>>, vector<1x2x50xf32>
    %292 = vector.shape_cast %291 : vector<1x2x50xf32> to vector<2x50xf32>
    %c0_298 = arith.constant 0 : index
    %c0_299 = arith.constant 0 : index
    %293 = vector.load %arg18[%c0_298, %c0_299] : memref<50x32xf32, #tpu.memory_space<vmem>>, vector<50x32xf32>
    %cst_300 = arith.constant dense<0.000000e+00> : vector<2x32xf32>
    %294 = tpu.matmul %292, %293, %cst_300 {dimension_numbers = #tpu.dot_dimension_numbers<[1], [0], [0], [1], [0, 0, 1, 1], [], []>} : vector<2x50xf32>, vector<50x32xf32>, vector<2x32xf32> -> vector<2x32xf32>
    %c4_301 = arith.constant 4 : index
    %c0_302 = arith.constant 0 : index
    %c0_303 = arith.constant 0 : index
    %295 = vector.load %arg10[%c4_301, %c0_302, %c0_303] : memref<25x32x32xf32, #tpu.memory_space<vmem>>, vector<1x32x32xf32>
    %296 = vector.shape_cast %295 : vector<1x32x32xf32> to vector<32x32xf32>
    %cst_304 = arith.constant dense<0.000000e+00> : vector<2x32xf32>
    %297 = tpu.matmul %294, %296, %cst_304 {dimension_numbers = #tpu.dot_dimension_numbers<[1], [0], [0], [1], [0, 0, 1, 1], [], []>} : vector<2x32xf32>, vector<32x32xf32>, vector<2x32xf32> -> vector<2x32xf32>
    %298 = arith.addf %290, %297 : vector<2x32xf32>
    %c5_305 = arith.constant 5 : index
    %c0_306 = arith.constant 0 : index
    %c0_307 = arith.constant 0 : index
    %299 = vector.load %arg9[%c5_305, %c0_306, %c0_307] : memref<25x2x50xf32, #tpu.memory_space<vmem>>, vector<1x2x50xf32>
    %300 = vector.shape_cast %299 : vector<1x2x50xf32> to vector<2x50xf32>
    %c0_308 = arith.constant 0 : index
    %c0_309 = arith.constant 0 : index
    %301 = vector.load %arg18[%c0_308, %c0_309] : memref<50x32xf32, #tpu.memory_space<vmem>>, vector<50x32xf32>
    %cst_310 = arith.constant dense<0.000000e+00> : vector<2x32xf32>
    %302 = tpu.matmul %300, %301, %cst_310 {dimension_numbers = #tpu.dot_dimension_numbers<[1], [0], [0], [1], [0, 0, 1, 1], [], []>} : vector<2x50xf32>, vector<50x32xf32>, vector<2x32xf32> -> vector<2x32xf32>
    %c5_311 = arith.constant 5 : index
    %c0_312 = arith.constant 0 : index
    %c0_313 = arith.constant 0 : index
    %303 = vector.load %arg10[%c5_311, %c0_312, %c0_313] : memref<25x32x32xf32, #tpu.memory_space<vmem>>, vector<1x32x32xf32>
    %304 = vector.shape_cast %303 : vector<1x32x32xf32> to vector<32x32xf32>
    %cst_314 = arith.constant dense<0.000000e+00> : vector<2x32xf32>
    %305 = tpu.matmul %302, %304, %cst_314 {dimension_numbers = #tpu.dot_dimension_numbers<[1], [0], [0], [1], [0, 0, 1, 1], [], []>} : vector<2x32xf32>, vector<32x32xf32>, vector<2x32xf32> -> vector<2x32xf32>
    %306 = arith.addf %298, %305 : vector<2x32xf32>
    %c6_315 = arith.constant 6 : index
    %c0_316 = arith.constant 0 : index
    %c0_317 = arith.constant 0 : index
    %307 = vector.load %arg9[%c6_315, %c0_316, %c0_317] : memref<25x2x50xf32, #tpu.memory_space<vmem>>, vector<1x2x50xf32>
    %308 = vector.shape_cast %307 : vector<1x2x50xf32> to vector<2x50xf32>
    %c0_318 = arith.constant 0 : index
    %c0_319 = arith.constant 0 : index
    %309 = vector.load %arg18[%c0_318, %c0_319] : memref<50x32xf32, #tpu.memory_space<vmem>>, vector<50x32xf32>
    %cst_320 = arith.constant dense<0.000000e+00> : vector<2x32xf32>
    %310 = tpu.matmul %308, %309, %cst_320 {dimension_numbers = #tpu.dot_dimension_numbers<[1], [0], [0], [1], [0, 0, 1, 1], [], []>} : vector<2x50xf32>, vector<50x32xf32>, vector<2x32xf32> -> vector<2x32xf32>
    %c6_321 = arith.constant 6 : index
    %c0_322 = arith.constant 0 : index
    %c0_323 = arith.constant 0 : index
    %311 = vector.load %arg10[%c6_321, %c0_322, %c0_323] : memref<25x32x32xf32, #tpu.memory_space<vmem>>, vector<1x32x32xf32>
    %312 = vector.shape_cast %311 : vector<1x32x32xf32> to vector<32x32xf32>
    %cst_324 = arith.constant dense<0.000000e+00> : vector<2x32xf32>
    %313 = tpu.matmul %310, %312, %cst_324 {dimension_numbers = #tpu.dot_dimension_numbers<[1], [0], [0], [1], [0, 0, 1, 1], [], []>} : vector<2x32xf32>, vector<32x32xf32>, vector<2x32xf32> -> vector<2x32xf32>
    %314 = arith.addf %306, %313 : vector<2x32xf32>
    %c7_325 = arith.constant 7 : index
    %c0_326 = arith.constant 0 : index
    %c0_327 = arith.constant 0 : index
    %315 = vector.load %arg9[%c7_325, %c0_326, %c0_327] : memref<25x2x50xf32, #tpu.memory_space<vmem>>, vector<1x2x50xf32>
    %316 = vector.shape_cast %315 : vector<1x2x50xf32> to vector<2x50xf32>
    %c0_328 = arith.constant 0 : index
    %c0_329 = arith.constant 0 : index
    %317 = vector.load %arg18[%c0_328, %c0_329] : memref<50x32xf32, #tpu.memory_space<vmem>>, vector<50x32xf32>
    %cst_330 = arith.constant dense<0.000000e+00> : vector<2x32xf32>
    %318 = tpu.matmul %316, %317, %cst_330 {dimension_numbers = #tpu.dot_dimension_numbers<[1], [0], [0], [1], [0, 0, 1, 1], [], []>} : vector<2x50xf32>, vector<50x32xf32>, vector<2x32xf32> -> vector<2x32xf32>
    %c7_331 = arith.constant 7 : index
    %c0_332 = arith.constant 0 : index
    %c0_333 = arith.constant 0 : index
    %319 = vector.load %arg10[%c7_331, %c0_332, %c0_333] : memref<25x32x32xf32, #tpu.memory_space<vmem>>, vector<1x32x32xf32>
    %320 = vector.shape_cast %319 : vector<1x32x32xf32> to vector<32x32xf32>
    %cst_334 = arith.constant dense<0.000000e+00> : vector<2x32xf32>
    %321 = tpu.matmul %318, %320, %cst_334 {dimension_numbers = #tpu.dot_dimension_numbers<[1], [0], [0], [1], [0, 0, 1, 1], [], []>} : vector<2x32xf32>, vector<32x32xf32>, vector<2x32xf32> -> vector<2x32xf32>
    %322 = arith.addf %314, %321 : vector<2x32xf32>
    %c8_335 = arith.constant 8 : index
    %c0_336 = arith.constant 0 : index
    %c0_337 = arith.constant 0 : index
    %323 = vector.load %arg9[%c8_335, %c0_336, %c0_337] : memref<25x2x50xf32, #tpu.memory_space<vmem>>, vector<1x2x50xf32>
    %324 = vector.shape_cast %323 : vector<1x2x50xf32> to vector<2x50xf32>
    %c0_338 = arith.constant 0 : index
    %c0_339 = arith.constant 0 : index
    %325 = vector.load %arg18[%c0_338, %c0_339] : memref<50x32xf32, #tpu.memory_space<vmem>>, vector<50x32xf32>
    %cst_340 = arith.constant dense<0.000000e+00> : vector<2x32xf32>
    %326 = tpu.matmul %324, %325, %cst_340 {dimension_numbers = #tpu.dot_dimension_numbers<[1], [0], [0], [1], [0, 0, 1, 1], [], []>} : vector<2x50xf32>, vector<50x32xf32>, vector<2x32xf32> -> vector<2x32xf32>
    %c8_341 = arith.constant 8 : index
    %c0_342 = arith.constant 0 : index
    %c0_343 = arith.constant 0 : index
    %327 = vector.load %arg10[%c8_341, %c0_342, %c0_343] : memref<25x32x32xf32, #tpu.memory_space<vmem>>, vector<1x32x32xf32>
    %328 = vector.shape_cast %327 : vector<1x32x32xf32> to vector<32x32xf32>
    %cst_344 = arith.constant dense<0.000000e+00> : vector<2x32xf32>
    %329 = tpu.matmul %326, %328, %cst_344 {dimension_numbers = #tpu.dot_dimension_numbers<[1], [0], [0], [1], [0, 0, 1, 1], [], []>} : vector<2x32xf32>, vector<32x32xf32>, vector<2x32xf32> -> vector<2x32xf32>
    %330 = arith.addf %322, %329 : vector<2x32xf32>
    %c9_345 = arith.constant 9 : index
    %c0_346 = arith.constant 0 : index
    %c0_347 = arith.constant 0 : index
    %331 = vector.load %arg9[%c9_345, %c0_346, %c0_347] : memref<25x2x50xf32, #tpu.memory_space<vmem>>, vector<1x2x50xf32>
    %332 = vector.shape_cast %331 : vector<1x2x50xf32> to vector<2x50xf32>
    %c0_348 = arith.constant 0 : index
    %c0_349 = arith.constant 0 : index
    %333 = vector.load %arg18[%c0_348, %c0_349] : memref<50x32xf32, #tpu.memory_space<vmem>>, vector<50x32xf32>
    %cst_350 = arith.constant dense<0.000000e+00> : vector<2x32xf32>
    %334 = tpu.matmul %332, %333, %cst_350 {dimension_numbers = #tpu.dot_dimension_numbers<[1], [0], [0], [1], [0, 0, 1, 1], [], []>} : vector<2x50xf32>, vector<50x32xf32>, vector<2x32xf32> -> vector<2x32xf32>
    %c9_351 = arith.constant 9 : index
    %c0_352 = arith.constant 0 : index
    %c0_353 = arith.constant 0 : index
    %335 = vector.load %arg10[%c9_351, %c0_352, %c0_353] : memref<25x32x32xf32, #tpu.memory_space<vmem>>, vector<1x32x32xf32>
    %336 = vector.shape_cast %335 : vector<1x32x32xf32> to vector<32x32xf32>
    %cst_354 = arith.constant dense<0.000000e+00> : vector<2x32xf32>
    %337 = tpu.matmul %334, %336, %cst_354 {dimension_numbers = #tpu.dot_dimension_numbers<[1], [0], [0], [1], [0, 0, 1, 1], [], []>} : vector<2x32xf32>, vector<32x32xf32>, vector<2x32xf32> -> vector<2x32xf32>
    %338 = arith.addf %330, %337 : vector<2x32xf32>
    %c10_355 = arith.constant 10 : index
    %c0_356 = arith.constant 0 : index
    %c0_357 = arith.constant 0 : index
    %339 = vector.load %arg9[%c10_355, %c0_356, %c0_357] : memref<25x2x50xf32, #tpu.memory_space<vmem>>, vector<1x2x50xf32>
    %340 = vector.shape_cast %339 : vector<1x2x50xf32> to vector<2x50xf32>
    %c0_358 = arith.constant 0 : index
    %c0_359 = arith.constant 0 : index
    %341 = vector.load %arg18[%c0_358, %c0_359] : memref<50x32xf32, #tpu.memory_space<vmem>>, vector<50x32xf32>
    %cst_360 = arith.constant dense<0.000000e+00> : vector<2x32xf32>
    %342 = tpu.matmul %340, %341, %cst_360 {dimension_numbers = #tpu.dot_dimension_numbers<[1], [0], [0], [1], [0, 0, 1, 1], [], []>} : vector<2x50xf32>, vector<50x32xf32>, vector<2x32xf32> -> vector<2x32xf32>
    %c10_361 = arith.constant 10 : index
    %c0_362 = arith.constant 0 : index
    %c0_363 = arith.constant 0 : index
    %343 = vector.load %arg10[%c10_361, %c0_362, %c0_363] : memref<25x32x32xf32, #tpu.memory_space<vmem>>, vector<1x32x32xf32>
    %344 = vector.shape_cast %343 : vector<1x32x32xf32> to vector<32x32xf32>
    %cst_364 = arith.constant dense<0.000000e+00> : vector<2x32xf32>
    %345 = tpu.matmul %342, %344, %cst_364 {dimension_numbers = #tpu.dot_dimension_numbers<[1], [0], [0], [1], [0, 0, 1, 1], [], []>} : vector<2x32xf32>, vector<32x32xf32>, vector<2x32xf32> -> vector<2x32xf32>
    %346 = arith.addf %338, %345 : vector<2x32xf32>
    %c11_365 = arith.constant 11 : index
    %c0_366 = arith.constant 0 : index
    %c0_367 = arith.constant 0 : index
    %347 = vector.load %arg9[%c11_365, %c0_366, %c0_367] : memref<25x2x50xf32, #tpu.memory_space<vmem>>, vector<1x2x50xf32>
    %348 = vector.shape_cast %347 : vector<1x2x50xf32> to vector<2x50xf32>
    %c0_368 = arith.constant 0 : index
    %c0_369 = arith.constant 0 : index
    %349 = vector.load %arg18[%c0_368, %c0_369] : memref<50x32xf32, #tpu.memory_space<vmem>>, vector<50x32xf32>
    %cst_370 = arith.constant dense<0.000000e+00> : vector<2x32xf32>
    %350 = tpu.matmul %348, %349, %cst_370 {dimension_numbers = #tpu.dot_dimension_numbers<[1], [0], [0], [1], [0, 0, 1, 1], [], []>} : vector<2x50xf32>, vector<50x32xf32>, vector<2x32xf32> -> vector<2x32xf32>
    %c11_371 = arith.constant 11 : index
    %c0_372 = arith.constant 0 : index
    %c0_373 = arith.constant 0 : index
    %351 = vector.load %arg10[%c11_371, %c0_372, %c0_373] : memref<25x32x32xf32, #tpu.memory_space<vmem>>, vector<1x32x32xf32>
    %352 = vector.shape_cast %351 : vector<1x32x32xf32> to vector<32x32xf32>
    %cst_374 = arith.constant dense<0.000000e+00> : vector<2x32xf32>
    %353 = tpu.matmul %350, %352, %cst_374 {dimension_numbers = #tpu.dot_dimension_numbers<[1], [0], [0], [1], [0, 0, 1, 1], [], []>} : vector<2x32xf32>, vector<32x32xf32>, vector<2x32xf32> -> vector<2x32xf32>
    %354 = arith.addf %346, %353 : vector<2x32xf32>
    %c12_375 = arith.constant 12 : index
    %c0_376 = arith.constant 0 : index
    %c0_377 = arith.constant 0 : index
    %355 = vector.load %arg9[%c12_375, %c0_376, %c0_377] : memref<25x2x50xf32, #tpu.memory_space<vmem>>, vector<1x2x50xf32>
    %356 = vector.shape_cast %355 : vector<1x2x50xf32> to vector<2x50xf32>
    %c0_378 = arith.constant 0 : index
    %c0_379 = arith.constant 0 : index
    %357 = vector.load %arg18[%c0_378, %c0_379] : memref<50x32xf32, #tpu.memory_space<vmem>>, vector<50x32xf32>
    %cst_380 = arith.constant dense<0.000000e+00> : vector<2x32xf32>
    %358 = tpu.matmul %356, %357, %cst_380 {dimension_numbers = #tpu.dot_dimension_numbers<[1], [0], [0], [1], [0, 0, 1, 1], [], []>} : vector<2x50xf32>, vector<50x32xf32>, vector<2x32xf32> -> vector<2x32xf32>
    %c12_381 = arith.constant 12 : index
    %c0_382 = arith.constant 0 : index
    %c0_383 = arith.constant 0 : index
    %359 = vector.load %arg10[%c12_381, %c0_382, %c0_383] : memref<25x32x32xf32, #tpu.memory_space<vmem>>, vector<1x32x32xf32>
    %360 = vector.shape_cast %359 : vector<1x32x32xf32> to vector<32x32xf32>
    %cst_384 = arith.constant dense<0.000000e+00> : vector<2x32xf32>
    %361 = tpu.matmul %358, %360, %cst_384 {dimension_numbers = #tpu.dot_dimension_numbers<[1], [0], [0], [1], [0, 0, 1, 1], [], []>} : vector<2x32xf32>, vector<32x32xf32>, vector<2x32xf32> -> vector<2x32xf32>
    %362 = arith.addf %354, %361 : vector<2x32xf32>
    %c13_385 = arith.constant 13 : index
    %c0_386 = arith.constant 0 : index
    %c0_387 = arith.constant 0 : index
    %363 = vector.load %arg9[%c13_385, %c0_386, %c0_387] : memref<25x2x50xf32, #tpu.memory_space<vmem>>, vector<1x2x50xf32>
    %364 = vector.shape_cast %363 : vector<1x2x50xf32> to vector<2x50xf32>
    %c0_388 = arith.constant 0 : index
    %c0_389 = arith.constant 0 : index
    %365 = vector.load %arg18[%c0_388, %c0_389] : memref<50x32xf32, #tpu.memory_space<vmem>>, vector<50x32xf32>
    %cst_390 = arith.constant dense<0.000000e+00> : vector<2x32xf32>
    %366 = tpu.matmul %364, %365, %cst_390 {dimension_numbers = #tpu.dot_dimension_numbers<[1], [0], [0], [1], [0, 0, 1, 1], [], []>} : vector<2x50xf32>, vector<50x32xf32>, vector<2x32xf32> -> vector<2x32xf32>
    %c13_391 = arith.constant 13 : index
    %c0_392 = arith.constant 0 : index
    %c0_393 = arith.constant 0 : index
    %367 = vector.load %arg10[%c13_391, %c0_392, %c0_393] : memref<25x32x32xf32, #tpu.memory_space<vmem>>, vector<1x32x32xf32>
    %368 = vector.shape_cast %367 : vector<1x32x32xf32> to vector<32x32xf32>
    %cst_394 = arith.constant dense<0.000000e+00> : vector<2x32xf32>
    %369 = tpu.matmul %366, %368, %cst_394 {dimension_numbers = #tpu.dot_dimension_numbers<[1], [0], [0], [1], [0, 0, 1, 1], [], []>} : vector<2x32xf32>, vector<32x32xf32>, vector<2x32xf32> -> vector<2x32xf32>
    %370 = arith.addf %362, %369 : vector<2x32xf32>
    %c14_395 = arith.constant 14 : index
    %c0_396 = arith.constant 0 : index
    %c0_397 = arith.constant 0 : index
    %371 = vector.load %arg9[%c14_395, %c0_396, %c0_397] : memref<25x2x50xf32, #tpu.memory_space<vmem>>, vector<1x2x50xf32>
    %372 = vector.shape_cast %371 : vector<1x2x50xf32> to vector<2x50xf32>
    %c0_398 = arith.constant 0 : index
    %c0_399 = arith.constant 0 : index
    %373 = vector.load %arg18[%c0_398, %c0_399] : memref<50x32xf32, #tpu.memory_space<vmem>>, vector<50x32xf32>
    %cst_400 = arith.constant dense<0.000000e+00> : vector<2x32xf32>
    %374 = tpu.matmul %372, %373, %cst_400 {dimension_numbers = #tpu.dot_dimension_numbers<[1], [0], [0], [1], [0, 0, 1, 1], [], []>} : vector<2x50xf32>, vector<50x32xf32>, vector<2x32xf32> -> vector<2x32xf32>
    %c14_401 = arith.constant 14 : index
    %c0_402 = arith.constant 0 : index
    %c0_403 = arith.constant 0 : index
    %375 = vector.load %arg10[%c14_401, %c0_402, %c0_403] : memref<25x32x32xf32, #tpu.memory_space<vmem>>, vector<1x32x32xf32>
    %376 = vector.shape_cast %375 : vector<1x32x32xf32> to vector<32x32xf32>
    %cst_404 = arith.constant dense<0.000000e+00> : vector<2x32xf32>
    %377 = tpu.matmul %374, %376, %cst_404 {dimension_numbers = #tpu.dot_dimension_numbers<[1], [0], [0], [1], [0, 0, 1, 1], [], []>} : vector<2x32xf32>, vector<32x32xf32>, vector<2x32xf32> -> vector<2x32xf32>
    %378 = arith.addf %370, %377 : vector<2x32xf32>
    %c15_405 = arith.constant 15 : index
    %c0_406 = arith.constant 0 : index
    %c0_407 = arith.constant 0 : index
    %379 = vector.load %arg9[%c15_405, %c0_406, %c0_407] : memref<25x2x50xf32, #tpu.memory_space<vmem>>, vector<1x2x50xf32>
    %380 = vector.shape_cast %379 : vector<1x2x50xf32> to vector<2x50xf32>
    %c0_408 = arith.constant 0 : index
    %c0_409 = arith.constant 0 : index
    %381 = vector.load %arg18[%c0_408, %c0_409] : memref<50x32xf32, #tpu.memory_space<vmem>>, vector<50x32xf32>
    %cst_410 = arith.constant dense<0.000000e+00> : vector<2x32xf32>
    %382 = tpu.matmul %380, %381, %cst_410 {dimension_numbers = #tpu.dot_dimension_numbers<[1], [0], [0], [1], [0, 0, 1, 1], [], []>} : vector<2x50xf32>, vector<50x32xf32>, vector<2x32xf32> -> vector<2x32xf32>
    %c15_411 = arith.constant 15 : index
    %c0_412 = arith.constant 0 : index
    %c0_413 = arith.constant 0 : index
    %383 = vector.load %arg10[%c15_411, %c0_412, %c0_413] : memref<25x32x32xf32, #tpu.memory_space<vmem>>, vector<1x32x32xf32>
    %384 = vector.shape_cast %383 : vector<1x32x32xf32> to vector<32x32xf32>
    %cst_414 = arith.constant dense<0.000000e+00> : vector<2x32xf32>
    %385 = tpu.matmul %382, %384, %cst_414 {dimension_numbers = #tpu.dot_dimension_numbers<[1], [0], [0], [1], [0, 0, 1, 1], [], []>} : vector<2x32xf32>, vector<32x32xf32>, vector<2x32xf32> -> vector<2x32xf32>
    %386 = arith.addf %378, %385 : vector<2x32xf32>
    %c16_415 = arith.constant 16 : index
    %c0_416 = arith.constant 0 : index
    %c0_417 = arith.constant 0 : index
    %387 = vector.load %arg9[%c16_415, %c0_416, %c0_417] : memref<25x2x50xf32, #tpu.memory_space<vmem>>, vector<1x2x50xf32>
    %388 = vector.shape_cast %387 : vector<1x2x50xf32> to vector<2x50xf32>
    %c0_418 = arith.constant 0 : index
    %c0_419 = arith.constant 0 : index
    %389 = vector.load %arg18[%c0_418, %c0_419] : memref<50x32xf32, #tpu.memory_space<vmem>>, vector<50x32xf32>
    %cst_420 = arith.constant dense<0.000000e+00> : vector<2x32xf32>
    %390 = tpu.matmul %388, %389, %cst_420 {dimension_numbers = #tpu.dot_dimension_numbers<[1], [0], [0], [1], [0, 0, 1, 1], [], []>} : vector<2x50xf32>, vector<50x32xf32>, vector<2x32xf32> -> vector<2x32xf32>
    %c16_421 = arith.constant 16 : index
    %c0_422 = arith.constant 0 : index
    %c0_423 = arith.constant 0 : index
    %391 = vector.load %arg10[%c16_421, %c0_422, %c0_423] : memref<25x32x32xf32, #tpu.memory_space<vmem>>, vector<1x32x32xf32>
    %392 = vector.shape_cast %391 : vector<1x32x32xf32> to vector<32x32xf32>
    %cst_424 = arith.constant dense<0.000000e+00> : vector<2x32xf32>
    %393 = tpu.matmul %390, %392, %cst_424 {dimension_numbers = #tpu.dot_dimension_numbers<[1], [0], [0], [1], [0, 0, 1, 1], [], []>} : vector<2x32xf32>, vector<32x32xf32>, vector<2x32xf32> -> vector<2x32xf32>
    %394 = arith.addf %386, %393 : vector<2x32xf32>
    %c17_425 = arith.constant 17 : index
    %c0_426 = arith.constant 0 : index
    %c0_427 = arith.constant 0 : index
    %395 = vector.load %arg9[%c17_425, %c0_426, %c0_427] : memref<25x2x50xf32, #tpu.memory_space<vmem>>, vector<1x2x50xf32>
    %396 = vector.shape_cast %395 : vector<1x2x50xf32> to vector<2x50xf32>
    %c0_428 = arith.constant 0 : index
    %c0_429 = arith.constant 0 : index
    %397 = vector.load %arg18[%c0_428, %c0_429] : memref<50x32xf32, #tpu.memory_space<vmem>>, vector<50x32xf32>
    %cst_430 = arith.constant dense<0.000000e+00> : vector<2x32xf32>
    %398 = tpu.matmul %396, %397, %cst_430 {dimension_numbers = #tpu.dot_dimension_numbers<[1], [0], [0], [1], [0, 0, 1, 1], [], []>} : vector<2x50xf32>, vector<50x32xf32>, vector<2x32xf32> -> vector<2x32xf32>
    %c17_431 = arith.constant 17 : index
    %c0_432 = arith.constant 0 : index
    %c0_433 = arith.constant 0 : index
    %399 = vector.load %arg10[%c17_431, %c0_432, %c0_433] : memref<25x32x32xf32, #tpu.memory_space<vmem>>, vector<1x32x32xf32>
    %400 = vector.shape_cast %399 : vector<1x32x32xf32> to vector<32x32xf32>
    %cst_434 = arith.constant dense<0.000000e+00> : vector<2x32xf32>
    %401 = tpu.matmul %398, %400, %cst_434 {dimension_numbers = #tpu.dot_dimension_numbers<[1], [0], [0], [1], [0, 0, 1, 1], [], []>} : vector<2x32xf32>, vector<32x32xf32>, vector<2x32xf32> -> vector<2x32xf32>
    %402 = arith.addf %394, %401 : vector<2x32xf32>
    %c18_435 = arith.constant 18 : index
    %c0_436 = arith.constant 0 : index
    %c0_437 = arith.constant 0 : index
    %403 = vector.load %arg9[%c18_435, %c0_436, %c0_437] : memref<25x2x50xf32, #tpu.memory_space<vmem>>, vector<1x2x50xf32>
    %404 = vector.shape_cast %403 : vector<1x2x50xf32> to vector<2x50xf32>
    %c0_438 = arith.constant 0 : index
    %c0_439 = arith.constant 0 : index
    %405 = vector.load %arg18[%c0_438, %c0_439] : memref<50x32xf32, #tpu.memory_space<vmem>>, vector<50x32xf32>
    %cst_440 = arith.constant dense<0.000000e+00> : vector<2x32xf32>
    %406 = tpu.matmul %404, %405, %cst_440 {dimension_numbers = #tpu.dot_dimension_numbers<[1], [0], [0], [1], [0, 0, 1, 1], [], []>} : vector<2x50xf32>, vector<50x32xf32>, vector<2x32xf32> -> vector<2x32xf32>
    %c18_441 = arith.constant 18 : index
    %c0_442 = arith.constant 0 : index
    %c0_443 = arith.constant 0 : index
    %407 = vector.load %arg10[%c18_441, %c0_442, %c0_443] : memref<25x32x32xf32, #tpu.memory_space<vmem>>, vector<1x32x32xf32>
    %408 = vector.shape_cast %407 : vector<1x32x32xf32> to vector<32x32xf32>
    %cst_444 = arith.constant dense<0.000000e+00> : vector<2x32xf32>
    %409 = tpu.matmul %406, %408, %cst_444 {dimension_numbers = #tpu.dot_dimension_numbers<[1], [0], [0], [1], [0, 0, 1, 1], [], []>} : vector<2x32xf32>, vector<32x32xf32>, vector<2x32xf32> -> vector<2x32xf32>
    %410 = arith.addf %402, %409 : vector<2x32xf32>
    %c19_445 = arith.constant 19 : index
    %c0_446 = arith.constant 0 : index
    %c0_447 = arith.constant 0 : index
    %411 = vector.load %arg9[%c19_445, %c0_446, %c0_447] : memref<25x2x50xf32, #tpu.memory_space<vmem>>, vector<1x2x50xf32>
    %412 = vector.shape_cast %411 : vector<1x2x50xf32> to vector<2x50xf32>
    %c0_448 = arith.constant 0 : index
    %c0_449 = arith.constant 0 : index
    %413 = vector.load %arg18[%c0_448, %c0_449] : memref<50x32xf32, #tpu.memory_space<vmem>>, vector<50x32xf32>
    %cst_450 = arith.constant dense<0.000000e+00> : vector<2x32xf32>
    %414 = tpu.matmul %412, %413, %cst_450 {dimension_numbers = #tpu.dot_dimension_numbers<[1], [0], [0], [1], [0, 0, 1, 1], [], []>} : vector<2x50xf32>, vector<50x32xf32>, vector<2x32xf32> -> vector<2x32xf32>
    %c19_451 = arith.constant 19 : index
    %c0_452 = arith.constant 0 : index
    %c0_453 = arith.constant 0 : index
    %415 = vector.load %arg10[%c19_451, %c0_452, %c0_453] : memref<25x32x32xf32, #tpu.memory_space<vmem>>, vector<1x32x32xf32>
    %416 = vector.shape_cast %415 : vector<1x32x32xf32> to vector<32x32xf32>
    %cst_454 = arith.constant dense<0.000000e+00> : vector<2x32xf32>
    %417 = tpu.matmul %414, %416, %cst_454 {dimension_numbers = #tpu.dot_dimension_numbers<[1], [0], [0], [1], [0, 0, 1, 1], [], []>} : vector<2x32xf32>, vector<32x32xf32>, vector<2x32xf32> -> vector<2x32xf32>
    %418 = arith.addf %410, %417 : vector<2x32xf32>
    %c20_455 = arith.constant 20 : index
    %c0_456 = arith.constant 0 : index
    %c0_457 = arith.constant 0 : index
    %419 = vector.load %arg9[%c20_455, %c0_456, %c0_457] : memref<25x2x50xf32, #tpu.memory_space<vmem>>, vector<1x2x50xf32>
    %420 = vector.shape_cast %419 : vector<1x2x50xf32> to vector<2x50xf32>
    %c0_458 = arith.constant 0 : index
    %c0_459 = arith.constant 0 : index
    %421 = vector.load %arg18[%c0_458, %c0_459] : memref<50x32xf32, #tpu.memory_space<vmem>>, vector<50x32xf32>
    %cst_460 = arith.constant dense<0.000000e+00> : vector<2x32xf32>
    %422 = tpu.matmul %420, %421, %cst_460 {dimension_numbers = #tpu.dot_dimension_numbers<[1], [0], [0], [1], [0, 0, 1, 1], [], []>} : vector<2x50xf32>, vector<50x32xf32>, vector<2x32xf32> -> vector<2x32xf32>
    %c20_461 = arith.constant 20 : index
    %c0_462 = arith.constant 0 : index
    %c0_463 = arith.constant 0 : index
    %423 = vector.load %arg10[%c20_461, %c0_462, %c0_463] : memref<25x32x32xf32, #tpu.memory_space<vmem>>, vector<1x32x32xf32>
    %424 = vector.shape_cast %423 : vector<1x32x32xf32> to vector<32x32xf32>
    %cst_464 = arith.constant dense<0.000000e+00> : vector<2x32xf32>
    %425 = tpu.matmul %422, %424, %cst_464 {dimension_numbers = #tpu.dot_dimension_numbers<[1], [0], [0], [1], [0, 0, 1, 1], [], []>} : vector<2x32xf32>, vector<32x32xf32>, vector<2x32xf32> -> vector<2x32xf32>
    %426 = arith.addf %418, %425 : vector<2x32xf32>
    %c21_465 = arith.constant 21 : index
    %c0_466 = arith.constant 0 : index
    %c0_467 = arith.constant 0 : index
    %427 = vector.load %arg9[%c21_465, %c0_466, %c0_467] : memref<25x2x50xf32, #tpu.memory_space<vmem>>, vector<1x2x50xf32>
    %428 = vector.shape_cast %427 : vector<1x2x50xf32> to vector<2x50xf32>
    %c0_468 = arith.constant 0 : index
    %c0_469 = arith.constant 0 : index
    %429 = vector.load %arg18[%c0_468, %c0_469] : memref<50x32xf32, #tpu.memory_space<vmem>>, vector<50x32xf32>
    %cst_470 = arith.constant dense<0.000000e+00> : vector<2x32xf32>
    %430 = tpu.matmul %428, %429, %cst_470 {dimension_numbers = #tpu.dot_dimension_numbers<[1], [0], [0], [1], [0, 0, 1, 1], [], []>} : vector<2x50xf32>, vector<50x32xf32>, vector<2x32xf32> -> vector<2x32xf32>
    %c21_471 = arith.constant 21 : index
    %c0_472 = arith.constant 0 : index
    %c0_473 = arith.constant 0 : index
    %431 = vector.load %arg10[%c21_471, %c0_472, %c0_473] : memref<25x32x32xf32, #tpu.memory_space<vmem>>, vector<1x32x32xf32>
    %432 = vector.shape_cast %431 : vector<1x32x32xf32> to vector<32x32xf32>
    %cst_474 = arith.constant dense<0.000000e+00> : vector<2x32xf32>
    %433 = tpu.matmul %430, %432, %cst_474 {dimension_numbers = #tpu.dot_dimension_numbers<[1], [0], [0], [1], [0, 0, 1, 1], [], []>} : vector<2x32xf32>, vector<32x32xf32>, vector<2x32xf32> -> vector<2x32xf32>
    %434 = arith.addf %426, %433 : vector<2x32xf32>
    %c22_475 = arith.constant 22 : index
    %c0_476 = arith.constant 0 : index
    %c0_477 = arith.constant 0 : index
    %435 = vector.load %arg9[%c22_475, %c0_476, %c0_477] : memref<25x2x50xf32, #tpu.memory_space<vmem>>, vector<1x2x50xf32>
    %436 = vector.shape_cast %435 : vector<1x2x50xf32> to vector<2x50xf32>
    %c0_478 = arith.constant 0 : index
    %c0_479 = arith.constant 0 : index
    %437 = vector.load %arg18[%c0_478, %c0_479] : memref<50x32xf32, #tpu.memory_space<vmem>>, vector<50x32xf32>
    %cst_480 = arith.constant dense<0.000000e+00> : vector<2x32xf32>
    %438 = tpu.matmul %436, %437, %cst_480 {dimension_numbers = #tpu.dot_dimension_numbers<[1], [0], [0], [1], [0, 0, 1, 1], [], []>} : vector<2x50xf32>, vector<50x32xf32>, vector<2x32xf32> -> vector<2x32xf32>
    %c22_481 = arith.constant 22 : index
    %c0_482 = arith.constant 0 : index
    %c0_483 = arith.constant 0 : index
    %439 = vector.load %arg10[%c22_481, %c0_482, %c0_483] : memref<25x32x32xf32, #tpu.memory_space<vmem>>, vector<1x32x32xf32>
    %440 = vector.shape_cast %439 : vector<1x32x32xf32> to vector<32x32xf32>
    %cst_484 = arith.constant dense<0.000000e+00> : vector<2x32xf32>
    %441 = tpu.matmul %438, %440, %cst_484 {dimension_numbers = #tpu.dot_dimension_numbers<[1], [0], [0], [1], [0, 0, 1, 1], [], []>} : vector<2x32xf32>, vector<32x32xf32>, vector<2x32xf32> -> vector<2x32xf32>
    %442 = arith.addf %434, %441 : vector<2x32xf32>
    %c23_485 = arith.constant 23 : index
    %c0_486 = arith.constant 0 : index
    %c0_487 = arith.constant 0 : index
    %443 = vector.load %arg9[%c23_485, %c0_486, %c0_487] : memref<25x2x50xf32, #tpu.memory_space<vmem>>, vector<1x2x50xf32>
    %444 = vector.shape_cast %443 : vector<1x2x50xf32> to vector<2x50xf32>
    %c0_488 = arith.constant 0 : index
    %c0_489 = arith.constant 0 : index
    %445 = vector.load %arg18[%c0_488, %c0_489] : memref<50x32xf32, #tpu.memory_space<vmem>>, vector<50x32xf32>
    %cst_490 = arith.constant dense<0.000000e+00> : vector<2x32xf32>
    %446 = tpu.matmul %444, %445, %cst_490 {dimension_numbers = #tpu.dot_dimension_numbers<[1], [0], [0], [1], [0, 0, 1, 1], [], []>} : vector<2x50xf32>, vector<50x32xf32>, vector<2x32xf32> -> vector<2x32xf32>
    %c23_491 = arith.constant 23 : index
    %c0_492 = arith.constant 0 : index
    %c0_493 = arith.constant 0 : index
    %447 = vector.load %arg10[%c23_491, %c0_492, %c0_493] : memref<25x32x32xf32, #tpu.memory_space<vmem>>, vector<1x32x32xf32>
    %448 = vector.shape_cast %447 : vector<1x32x32xf32> to vector<32x32xf32>
    %cst_494 = arith.constant dense<0.000000e+00> : vector<2x32xf32>
    %449 = tpu.matmul %446, %448, %cst_494 {dimension_numbers = #tpu.dot_dimension_numbers<[1], [0], [0], [1], [0, 0, 1, 1], [], []>} : vector<2x32xf32>, vector<32x32xf32>, vector<2x32xf32> -> vector<2x32xf32>
    %450 = arith.addf %442, %449 : vector<2x32xf32>
    %c24_495 = arith.constant 24 : index
    %c0_496 = arith.constant 0 : index
    %c0_497 = arith.constant 0 : index
    %451 = vector.load %arg9[%c24_495, %c0_496, %c0_497] : memref<25x2x50xf32, #tpu.memory_space<vmem>>, vector<1x2x50xf32>
    %452 = vector.shape_cast %451 : vector<1x2x50xf32> to vector<2x50xf32>
    %c0_498 = arith.constant 0 : index
    %c0_499 = arith.constant 0 : index
    %453 = vector.load %arg18[%c0_498, %c0_499] : memref<50x32xf32, #tpu.memory_space<vmem>>, vector<50x32xf32>
    %cst_500 = arith.constant dense<0.000000e+00> : vector<2x32xf32>
    %454 = tpu.matmul %452, %453, %cst_500 {dimension_numbers = #tpu.dot_dimension_numbers<[1], [0], [0], [1], [0, 0, 1, 1], [], []>} : vector<2x50xf32>, vector<50x32xf32>, vector<2x32xf32> -> vector<2x32xf32>
    %c24_501 = arith.constant 24 : index
    %c0_502 = arith.constant 0 : index
    %c0_503 = arith.constant 0 : index
    %455 = vector.load %arg10[%c24_501, %c0_502, %c0_503] : memref<25x32x32xf32, #tpu.memory_space<vmem>>, vector<1x32x32xf32>
    %456 = vector.shape_cast %455 : vector<1x32x32xf32> to vector<32x32xf32>
    %cst_504 = arith.constant dense<0.000000e+00> : vector<2x32xf32>
    %457 = tpu.matmul %454, %456, %cst_504 {dimension_numbers = #tpu.dot_dimension_numbers<[1], [0], [0], [1], [0, 0, 1, 1], [], []>} : vector<2x32xf32>, vector<32x32xf32>, vector<2x32xf32> -> vector<2x32xf32>
    %458 = arith.addf %450, %457 : vector<2x32xf32>
    %c0_505 = arith.constant 0 : index
    %c0_506 = arith.constant 0 : index
    %459 = vector.load %arg11[%c0_505, %c0_506] : memref<1x32xf32, #tpu.memory_space<vmem>>, vector<1x32xf32>
    %c0_507 = arith.constant 0 : index
    %c0_508 = arith.constant 0 : index
    %460 = vector.load %arg12[%c0_507, %c0_508] : memref<1x32xf32, #tpu.memory_space<vmem>>, vector<1x32xf32>
    %cst_509 = arith.constant dense<0.000000e+00> : vector<32xf32>
    %461 = vector.multi_reduction <add>, %458, %cst_509 [0] : vector<2x32xf32> to vector<32xf32>
    %462 = vector.shape_cast %461 : vector<32xf32> to vector<1x32xf32>
    %cst_510 = arith.constant 2.000000e+00 : f32
    %463 = vector.broadcast %cst_510 : f32 to vector<1x32xf32>
    %464 = arith.divf %462, %463 : vector<1x32xf32>
    %465 = vector.broadcast %464 : vector<1x32xf32> to vector<2x32xf32>
    %466 = arith.subf %458, %465 : vector<2x32xf32>
    %467 = arith.mulf %466, %466 : vector<2x32xf32>
    %cst_511 = arith.constant dense<0.000000e+00> : vector<32xf32>
    %468 = vector.multi_reduction <add>, %467, %cst_511 [0] : vector<2x32xf32> to vector<32xf32>
    %469 = vector.shape_cast %468 : vector<32xf32> to vector<1x32xf32>
    %cst_512 = arith.constant 2.000000e+00 : f32
    %470 = vector.broadcast %cst_512 : f32 to vector<1x32xf32>
    %471 = arith.divf %469, %470 : vector<1x32xf32>
    %472 = vector.broadcast %464 : vector<1x32xf32> to vector<2x32xf32>
    %473 = arith.subf %458, %472 : vector<2x32xf32>
    %cst_513 = arith.constant 9.99999974E-6 : f32
    %474 = vector.broadcast %cst_513 : f32 to vector<1x32xf32>
    %475 = arith.addf %471, %474 : vector<1x32xf32>
    %476 = math.rsqrt %475 : vector<1x32xf32>
    %477 = vector.broadcast %476 : vector<1x32xf32> to vector<2x32xf32>
    %478 = arith.mulf %473, %477 : vector<2x32xf32>
    %479 = vector.broadcast %459 : vector<1x32xf32> to vector<2x32xf32>
    %480 = arith.mulf %478, %479 : vector<2x32xf32>
    %481 = vector.broadcast %460 : vector<1x32xf32> to vector<2x32xf32>
    %482 = arith.addf %480, %481 : vector<2x32xf32>
    %cst_514 = arith.constant 0.000000e+00 : f32
    %483 = vector.broadcast %cst_514 : f32 to vector<2x32xf32>
    %484 = arith.maximumf %482, %483 : vector<2x32xf32>
    %cst_515 = arith.constant 0.000000e+00 : f32
    %485 = vector.broadcast %cst_515 : f32 to vector<2x10xf32>
    %c0_516 = arith.constant 0 : index
    %c0_517 = arith.constant 0 : index
    %c0_518 = arith.constant 0 : index
    %486 = vector.load %arg13[%c0_516, %c0_517, %c0_518] : memref<1x2x2xf32, #tpu.memory_space<vmem>>, vector<1x2x2xf32>
    %487 = vector.shape_cast %486 : vector<1x2x2xf32> to vector<2x2xf32>
    %cst_519 = arith.constant dense<0.000000e+00> : vector<2x32xf32>
    %488 = tpu.matmul %487, %484, %cst_519 {dimension_numbers = #tpu.dot_dimension_numbers<[1], [0], [0], [1], [0, 0, 1, 1], [], []>} : vector<2x2xf32>, vector<2x32xf32>, vector<2x32xf32> -> vector<2x32xf32>
    %c0_520 = arith.constant 0 : index
    %c0_521 = arith.constant 0 : index
    %c0_522 = arith.constant 0 : index
    %489 = vector.load %arg14[%c0_520, %c0_521, %c0_522] : memref<1x32x10xf32, #tpu.memory_space<vmem>>, vector<1x32x10xf32>
    %490 = vector.shape_cast %489 : vector<1x32x10xf32> to vector<32x10xf32>
    %cst_523 = arith.constant dense<0.000000e+00> : vector<2x10xf32>
    %491 = tpu.matmul %488, %490, %cst_523 {dimension_numbers = #tpu.dot_dimension_numbers<[1], [0], [0], [1], [0, 0, 1, 1], [], []>} : vector<2x32xf32>, vector<32x10xf32>, vector<2x10xf32> -> vector<2x10xf32>
    %492 = arith.addf %485, %491 : vector<2x10xf32>
    %c0_524 = arith.constant 0 : index
    %c0_525 = arith.constant 0 : index
    %493 = vector.load %arg15[%c0_524, %c0_525] : memref<1x10xf32, #tpu.memory_space<vmem>>, vector<1x10xf32>
    %494 = vector.broadcast %493 : vector<1x10xf32> to vector<2x10xf32>
    %495 = arith.addf %492, %494 : vector<2x10xf32>
    %c0_526 = arith.constant 0 : index
    %c0_527 = arith.constant 0 : index
    %496 = vector.load %arg16[%c0_526, %c0_527] : memref<2x10xf32, #tpu.memory_space<vmem>>, vector<2x10xf32>
    tpu.vector_store %arg16[%c0_526, %c0_527], %495 {strides = array<i32>} : memref<2x10xf32, #tpu.memory_space<vmem>>, vector<2x10xf32>,
    return
  }
  func.func @transform_0(%arg0: i32) -> (i32, i32) {
    %c0_i32 = arith.constant 0 : i32
    %c0_i32_0 = arith.constant 0 : i32
    %c0_i32_1 = arith.constant 0 : i32
    return %c0_i32, %c0_i32_0 : i32, i32
  }
  func.func @transform_1(%arg0: i32) -> (i32, i32) {
    %c0_i32 = arith.constant 0 : i32
    %c0_i32_0 = arith.constant 0 : i32
    %c0_i32_1 = arith.constant 0 : i32
    return %c0_i32, %c0_i32_0 : i32, i32
  }
  func.func @transform_2(%arg0: i32) -> (i32, i32) {
    %c0_i32 = arith.constant 0 : i32
    %c0_i32_0 = arith.constant 0 : i32
    %c0_i32_1 = arith.constant 0 : i32
    return %c0_i32, %c0_i32_0 : i32, i32
  }
  func.func @transform_3(%arg0: i32) -> (i32, i32) {
    %c0_i32 = arith.constant 0 : i32
    %c0_i32_0 = arith.constant 0 : i32
    %c0_i32_1 = arith.constant 0 : i32
    return %c0_i32, %c0_i32_0 : i32, i32
  }
  func.func @transform_4(%arg0: i32) -> (i32, i32, i32) {
    %c0_i32 = arith.constant 0 : i32
    %c0_i32_0 = arith.constant 0 : i32
    %c0_i32_1 = arith.constant 0 : i32
    %c0_i32_2 = arith.constant 0 : i32
    return %c0_i32, %c0_i32_0, %c0_i32_1 : i32, i32, i32
  }
  func.func @transform_5(%arg0: i32) -> (i32, i32, i32) {
    %c0_i32 = arith.constant 0 : i32
    %c0_i32_0 = arith.constant 0 : i32
    %c0_i32_1 = arith.constant 0 : i32
    %c0_i32_2 = arith.constant 0 : i32
    return %c0_i32, %c0_i32_0, %c0_i32_1 : i32, i32, i32
  }
  func.func @transform_6(%arg0: i32) -> (i32, i32) {
    %c0_i32 = arith.constant 0 : i32
    %c0_i32_0 = arith.constant 0 : i32
    %c0_i32_1 = arith.constant 0 : i32
    return %c0_i32, %c0_i32_0 : i32, i32
  }
  func.func @transform_7(%arg0: i32) -> (i32, i32) {
    %c0_i32 = arith.constant 0 : i32
    %c0_i32_0 = arith.constant 0 : i32
    %c0_i32_1 = arith.constant 0 : i32
    return %c0_i32, %c0_i32_0 : i32, i32
  }
  func.func @transform_8(%arg0: i32) -> (i32, i32, i32) {
    %c0_i32 = arith.constant 0 : i32
    %c0_i32_0 = arith.constant 0 : i32
    %c0_i32_1 = arith.constant 0 : i32
    %c0_i32_2 = arith.constant 0 : i32
    return %c0_i32, %c0_i32_0, %c0_i32_1 : i32, i32, i32
  }
  func.func @transform_9(%arg0: i32) -> (i32, i32, i32) {
    %c0_i32 = arith.constant 0 : i32
    %c0_i32_0 = arith.constant 0 : i32
    %c0_i32_1 = arith.constant 0 : i32
    %c0_i32_2 = arith.constant 0 : i32
    return %c0_i32, %c0_i32_0, %c0_i32_1 : i32, i32, i32
  }
  func.func @transform_10(%arg0: i32) -> (i32, i32) {
    %c0_i32 = arith.constant 0 : i32
    %c0_i32_0 = arith.constant 0 : i32
    %c0_i32_1 = arith.constant 0 : i32
    return %c0_i32, %c0_i32_0 : i32, i32
  }
  func.func @transform_11(%arg0: i32) -> (i32, i32) {
    %c0_i32 = arith.constant 0 : i32
    %c0_i32_0 = arith.constant 0 : i32
    %c0_i32_1 = arith.constant 0 : i32
    return %c0_i32, %c0_i32_0 : i32, i32
  }
  func.func @transform_12(%arg0: i32) -> (i32, i32, i32) {
    %c0_i32 = arith.constant 0 : i32
    %c0_i32_0 = arith.constant 0 : i32
    %c0_i32_1 = arith.constant 0 : i32
    %c0_i32_2 = arith.constant 0 : i32
    return %c0_i32, %c0_i32_0, %c0_i32_1 : i32, i32, i32
  }
  func.func @transform_13(%arg0: i32) -> (i32, i32, i32) {
    %c0_i32 = arith.constant 0 : i32
    %c0_i32_0 = arith.constant 0 : i32
    %c0_i32_1 = arith.constant 0 : i32
    %c0_i32_2 = arith.constant 0 : i32
    return %c0_i32, %c0_i32_0, %c0_i32_1 : i32, i32, i32
  }
  func.func @transform_14(%arg0: i32) -> (i32, i32) {
    %c0_i32 = arith.constant 0 : i32
    %c0_i32_0 = arith.constant 0 : i32
    %c0_i32_1 = arith.constant 0 : i32
    return %c0_i32, %c0_i32_0 : i32, i32
  }
  func.func @transform_15(%arg0: i32) -> (i32, i32) {
    %c0_i32 = arith.constant 0 : i32
    %c0_i32_0 = arith.constant 0 : i32
    %c0_i32_1 = arith.constant 0 : i32
    return %c0_i32, %c0_i32_0 : i32, i32
  }
}

</mosaic_0001>

<llo_original>
// kernel: imgconvnet_forward.1
$region0: #{imgconvnet_forward.1}
  #allocation0 [shape = 'u32[]', space=smem, size = 0x4, offset = 0x4, fixed_abs, tag = 'smem constant byte address 0x4 - core index']
  #allocation1 [shape = 'u32[72,128]{1,0:T(1,128)}', space=vmem, size = 0x9000, scoped, tag = 'internal scratch']
  #allocation2 [shape = 'f32[392,16]{1,0:T(8,128)}', space=vmem, size = 0x31000, scoped, tag = 'scratch operand']
  #allocation3 [shape = 'f32[50,32]{1,0:T(8,128)}', space=vmem, size = 0x7000, scoped, tag = 'scratch operand']
  %s0 = inlined_call_operand.vmem [shape: f32[392,75], index: 0, kind: input, shape index: {}]
  %s1 = inlined_call_operand.vmem [shape: f32[75,16], index: 1, kind: input, shape index: {}]
  %s2 = inlined_call_operand.vmem [shape: f32[1,16], index: 2, kind: input, shape index: {}]
  %s3 = inlined_call_operand.vmem [shape: f32[1,16], index: 3, kind: input, shape index: {}]
  %s4 = inlined_call_operand.vmem [shape: f32[25,50,392], index: 4, kind: input, shape index: {}]
  %s5 = inlined_call_operand.vmem [shape: f32[25,16,32], index: 5, kind: input, shape index: {}]
  %s6 = inlined_call_operand.vmem [shape: f32[1,32], index: 6, kind: input, shape index: {}]
  %s7 = inlined_call_operand.vmem [shape: f32[1,32], index: 7, kind: input, shape index: {}]
  %s8 = inlined_call_operand.vmem [shape: f32[25,2,50], index: 8, kind: input, shape index: {}]
  %s9 = inlined_call_operand.vmem [shape: f32[25,32,32], index: 9, kind: input, shape index: {}]
  %s10 = inlined_call_operand.vmem [shape: f32[1,32], index: 10, kind: input, shape index: {}]
  %s11 = inlined_call_operand.vmem [shape: f32[1,32], index: 11, kind: input, shape index: {}]
  %s12 = inlined_call_operand.vmem [shape: f32[1,2,2], index: 12, kind: input, shape index: {}]
  %s13 = inlined_call_operand.vmem [shape: f32[1,32,10], index: 13, kind: input, shape index: {}]
  %s14 = inlined_call_operand.vmem [shape: f32[1,10], index: 14, kind: input, shape index: {}]
  %s15 = inlined_call_operand.hbm [shape: f32[2,10], index: 15, kind: output, shape index: {}]
  %s16 = sld [smem:[#allocation0]]
  $region70: #{imgconvnet_forward.1} parent=0
    _
  %s18 = ssub.s32 1, %s16
  %s19 = scalar_select 0, %s18, %s16
  $region1: #{imgconvnet_forward.1} parent=0
    #allocation4 [shape = 'u8[1024]{0}', space=vmem, size = 0x400, scoped, tag = 'output window, operand 0, single buffered']
    #allocation5 [shape = 's32[1]{0}', space=sflag, size = 0x4, scoped, tag = 'scoped memory for imgconvnet_forward.1']
    %20 = vsyncpa [#allocation5], 0
    // Predicated region
    $region2: #{imgconvnet_forward.1} parent=1 // pred_check
      _
    $region3: #{imgconvnet_forward.1} parent=1 // pred_check_branch
      %22 = sbr.rel (0) target = $region5
    $region4: #{imgconvnet_forward.1} parent=1 // pred_region
      _
    $region5: #{imgconvnet_forward.1} parent=1 // pred_fallthru
      _
    // Predicated region
    $region6: #{imgconvnet_forward.1} parent=1 // pred_check
      _
    $region7: #{imgconvnet_forward.1} parent=1 // pred_check_branch
      %24 = sbr.rel (0) target = $region9
    $region8: #{imgconvnet_forward.1} parent=1 // pred_region
      _
    $region9: #{imgconvnet_forward.1} parent=1 // pred_fallthru
      _
    // Predicated region
    $region10: #{imgconvnet_forward.1} parent=1 // pred_check
      _
    $region11: #{imgconvnet_forward.1} parent=1 // pred_check_branch
      %26 = sbr.rel (0) target = $region13
    $region12: #{imgconvnet_forward.1} parent=1 // pred_region
      _
    $region13: #{imgconvnet_forward.1} parent=1 // pred_fallthru
      _
    // Predicated region
    $region14: #{imgconvnet_forward.1} parent=1 // pred_check
      _
    $region15: #{imgconvnet_forward.1} parent=1 // pred_check_branch
      %28 = sbr.rel (0) target = $region17
    $region16: #{imgconvnet_forward.1} parent=1 // pred_region
      _
    $region17: #{imgconvnet_forward.1} parent=1 // pred_fallthru
      _
    // Predicated region
    $region18: #{imgconvnet_forward.1} parent=1 // pred_check
      _
    $region19: #{imgconvnet_forward.1} parent=1 // pred_check_branch
      %30 = sbr.rel (0) target = $region21
    $region20: #{imgconvnet_forward.1} parent=1 // pred_region
      _
    $region21: #{imgconvnet_forward.1} parent=1 // pred_fallthru
      _
    // Predicated region
    $region22: #{imgconvnet_forward.1} parent=1 // pred_check
      _
    $region23: #{imgconvnet_forward.1} parent=1 // pred_check_branch
      %32 = sbr.rel (0) target = $region25
    $region24: #{imgconvnet_forward.1} parent=1 // pred_region
      _
    $region25: #{imgconvnet_forward.1} parent=1 // pred_fallthru
      _
    // Predicated region
    $region26: #{imgconvnet_forward.1} parent=1 // pred_check
      _
    $region27: #{imgconvnet_forward.1} parent=1 // pred_check_branch
      %34 = sbr.rel (0) target = $region29
    $region28: #{imgconvnet_forward.1} parent=1 // pred_region
      _
    $region29: #{imgconvnet_forward.1} parent=1 // pred_fallthru
      _
    // Predicated region
    $region30: #{imgconvnet_forward.1} parent=1 // pred_check
      _
    $region31: #{imgconvnet_forward.1} parent=1 // pred_check_branch
      %36 = sbr.rel (0) target = $region33
    $region32: #{imgconvnet_forward.1} parent=1 // pred_region
      _
    $region33: #{imgconvnet_forward.1} parent=1 // pred_fallthru
      _
    // Predicated region
    $region34: #{imgconvnet_forward.1} parent=1 // pred_check
      _
    $region35: #{imgconvnet_forward.1} parent=1 // pred_check_branch
      %38 = sbr.rel (0) target = $region37
    $region36: #{imgconvnet_forward.1} parent=1 // pred_region
      _
    $region37: #{imgconvnet_forward.1} parent=1 // pred_fallthru
      _
    // Predicated region
    $region38: #{imgconvnet_forward.1} parent=1 // pred_check
      _
    $region39: #{imgconvnet_forward.1} parent=1 // pred_check_branch
      %40 = sbr.rel (0) target = $region41
    $region40: #{imgconvnet_forward.1} parent=1 // pred_region
      _
    $region41: #{imgconvnet_forward.1} parent=1 // pred_fallthru
      _
    // Predicated region
    $region42: #{imgconvnet_forward.1} parent=1 // pred_check
      _
    $region43: #{imgconvnet_forward.1} parent=1 // pred_check_branch
      %42 = sbr.rel (0) target = $region45
    $region44: #{imgconvnet_forward.1} parent=1 // pred_region
      _
    $region45: #{imgconvnet_forward.1} parent=1 // pred_fallthru
      _
    // Predicated region
    $region46: #{imgconvnet_forward.1} parent=1 // pred_check
      _
    $region47: #{imgconvnet_forward.1} parent=1 // pred_check_branch
      %44 = sbr.rel (0) target = $region49
    $region48: #{imgconvnet_forward.1} parent=1 // pred_region
      _
    $region49: #{imgconvnet_forward.1} parent=1 // pred_fallthru
      _
    // Predicated region
    $region50: #{imgconvnet_forward.1} parent=1 // pred_check
      _
    $region51: #{imgconvnet_forward.1} parent=1 // pred_check_branch
      %46 = sbr.rel (0) target = $region53
    $region52: #{imgconvnet_forward.1} parent=1 // pred_region
      _
    $region53: #{imgconvnet_forward.1} parent=1 // pred_fallthru
      _
    // Predicated region
    $region54: #{imgconvnet_forward.1} parent=1 // pred_check
      _
    $region55: #{imgconvnet_forward.1} parent=1 // pred_check_branch
      %48 = sbr.rel (0) target = $region57
    $region56: #{imgconvnet_forward.1} parent=1 // pred_region
      _
    $region57: #{imgconvnet_forward.1} parent=1 // pred_fallthru
      _
    // Predicated region
    $region58: #{imgconvnet_forward.1} parent=1 // pred_check
      _
    $region59: #{imgconvnet_forward.1} parent=1 // pred_check_branch
      %50 = sbr.rel (0) target = $region61
    $region60: #{imgconvnet_forward.1} parent=1 // pred_region
      _
    $region61: #{imgconvnet_forward.1} parent=1 // pred_fallthru
      _
    %v51 = vld [vmem:[%s0] sm:$0xff]
    %v52 = vld [vmem:[%s0 + $0x8] sm:$0xff]
    %v53 = vld [vmem:[%s0 + $0x10] sm:$0xff]
    %v54 = vld [vmem:[%s0 + $0x18] sm:$0xff]
    %v55 = vld [vmem:[%s0 + $0x20] sm:$0xff]
    %v56 = vld [vmem:[%s0 + $0x28] sm:$0xff]
    %v57 = vld [vmem:[%s0 + $0x30] sm:$0xff]
    %v58 = vld [vmem:[%s0 + $0x38] sm:$0xff]
    %v59 = vld [vmem:[%s0 + $0x40] sm:$0xff]
    %v60 = vld [vmem:[%s0 + $0x48] sm:$0xff]
    %v61 = vld [vmem:[%s0 + $0x50] sm:$0xff]
    %v62 = vld [vmem:[%s0 + $0x58] sm:$0xff]
    %v63 = vld [vmem:[%s0 + $0x60] sm:$0xff]
    %v64 = vld [vmem:[%s0 + $0x68] sm:$0xff]
    %v65 = vld [vmem:[%s0 + $0x70] sm:$0xff]
    %v66 = vld [vmem:[%s0 + $0x78] sm:$0xff]
    %v67 = vld [vmem:[%s0 + $0x80] sm:$0xff]
    %v68 = vld [vmem:[%s0 + $0x88] sm:$0xff]
    %v69 = vld [vmem:[%s0 + $0x90] sm:$0xff]
    %v70 = vld [vmem:[%s0 + $0x98] sm:$0xff]
    %v71 = vld [vmem:[%s0 + $0xa0] sm:$0xff]
    %v72 = vld [vmem:[%s0 + $0xa8] sm:$0xff]
    %v73 = vld [vmem:[%s0 + $0xb0] sm:$0xff]
    %v74 = vld [vmem:[%s0 + $0xb8] sm:$0xff]
    %v75 = vld [vmem:[%s0 + $0xc0] sm:$0xff]
    %v76 = vld [vmem:[%s0 + $0xc8] sm:$0xff]
    %v77 = vld [vmem:[%s0 + $0xd0] sm:$0xff]
    %v78 = vld [vmem:[%s0 + $0xd8] sm:$0xff]
    %v79 = vld [vmem:[%s0 + $0xe0] sm:$0xff]
    %v80 = vld [vmem:[%s0 + $0xe8] sm:$0xff]
    %v81 = vld [vmem:[%s0 + $0xf0] sm:$0xff]
    %v82 = vld [vmem:[%s0 + $0xf8] sm:$0xff]
    %v83 = vld [vmem:[%s0 + $0x100] sm:$0xff]
    %v84 = vld [vmem:[%s0 + $0x108] sm:$0xff]
    %v85 = vld [vmem:[%s0 + $0x110] sm:$0xff]
    %v86 = vld [vmem:[%s0 + $0x118] sm:$0xff]
    %v87 = vld [vmem:[%s0 + $0x120] sm:$0xff]
    %v88 = vld [vmem:[%s0 + $0x128] sm:$0xff]
    %v89 = vld [vmem:[%s0 + $0x130] sm:$0xff]
    %v90 = vld [vmem:[%s0 + $0x138] sm:$0xff]
    %v91 = vld [vmem:[%s0 + $0x140] sm:$0xff]
    %v92 = vld [vmem:[%s0 + $0x148] sm:$0xff]
    %v93 = vld [vmem:[%s0 + $0x150] sm:$0xff]
    %v94 = vld [vmem:[%s0 + $0x158] sm:$0xff]
    %v95 = vld [vmem:[%s0 + $0x160] sm:$0xff]
    %v96 = vld [vmem:[%s0 + $0x168] sm:$0xff]
    %v97 = vld [vmem:[%s0 + $0x170] sm:$0xff]
    %v98 = vld [vmem:[%s0 + $0x178] sm:$0xff]
    %v99 = vld [vmem:[%s0 + $0x180] sm:$0xff]
    %v100 = vld [vmem:[%s1] sm:$0xff]
    %v101 = vld [vmem:[%s1 + $0x8] sm:$0xff]
    %v102 = vld [vmem:[%s1 + $0x10] sm:$0xff]
    %v103 = vld [vmem:[%s1 + $0x18] sm:$0xff]
    %v104 = vld [vmem:[%s1 + $0x20] sm:$0xff]
    %v105 = vld [vmem:[%s1 + $0x28] sm:$0xff]
    %v106 = vld [vmem:[%s1 + $0x30] sm:$0xff]
    %v107 = vld [vmem:[%s1 + $0x38] sm:$0xff]
    %v108 = vld [vmem:[%s1 + $0x40] sm:$0xff]
    %v109 = vld [vmem:[%s1 + $0x48] sm:$0x7]
    %vm110 = vcmask 613376
    %v112 = vsel %vm110, %v51, 0
    %v115 = vsel %vm110, %v52, 0
    %v118 = vsel %vm110, %v53, 0
    %v121 = vsel %vm110, %v54, 0
    %v124 = vsel %vm110, %v55, 0
    %v127 = vsel %vm110, %v56, 0
    %v130 = vsel %vm110, %v57, 0
    %v133 = vsel %vm110, %v58, 0
    %v136 = vsel %vm110, %v59, 0
    %v139 = vsel %vm110, %v60, 0
    %v142 = vsel %vm110, %v61, 0
    %v145 = vsel %vm110, %v62, 0
    %v148 = vsel %vm110, %v63, 0
    %v151 = vsel %vm110, %v64, 0
    %v154 = vsel %vm110, %v65, 0
    %v157 = vsel %vm110, %v66, 0
    %v160 = vsel %vm110, %v67, 0
    %v163 = vsel %vm110, %v68, 0
    %v166 = vsel %vm110, %v69, 0
    %v169 = vsel %vm110, %v70, 0
    %v172 = vsel %vm110, %v71, 0
    %v175 = vsel %vm110, %v72, 0
    %v178 = vsel %vm110, %v73, 0
    %v181 = vsel %vm110, %v74, 0
    %v184 = vsel %vm110, %v75, 0
    %v187 = vsel %vm110, %v76, 0
    %v190 = vsel %vm110, %v77, 0
    %v193 = vsel %vm110, %v78, 0
    %v196 = vsel %vm110, %v79, 0
    %v199 = vsel %vm110, %v80, 0
    %v202 = vsel %vm110, %v81, 0
    %v205 = vsel %vm110, %v82, 0
    %v208 = vsel %vm110, %v83, 0
    %v211 = vsel %vm110, %v84, 0
    %v214 = vsel %vm110, %v85, 0
    %v217 = vsel %vm110, %v86, 0
    %v220 = vsel %vm110, %v87, 0
    %v223 = vsel %vm110, %v88, 0
    %v226 = vsel %vm110, %v89, 0
    %v229 = vsel %vm110, %v90, 0
    %v232 = vsel %vm110, %v91, 0
    %v235 = vsel %vm110, %v92, 0
    %v238 = vsel %vm110, %v93, 0
    %v241 = vsel %vm110, %v94, 0
    %v244 = vsel %vm110, %v95, 0
    %v247 = vsel %vm110, %v96, 0
    %v250 = vsel %vm110, %v97, 0
    %v253 = vsel %vm110, %v98, 0
    %v256 = vsel %vm110, %v99, 0
    %vm258 = vcmask 1042432
    %v260 = vsel %vm258, %v109, 0
    %262 = vmatpush.msra.mxu0 0.0
    %263 = vmatpush.msra.mxu0 0.0
    %264 = vmatpush.msra.mxu0 0.0
    %265 = vmatpush.msra.mxu0 0.0
    %266 = vmatpush.msra.mxu0 0.0
    %267 = vmatpush.msra.mxu0 0.0
    %268 = vmatpush.msra.mxu0 %v260
    %269 = vmatpush.msra.mxu0 %v108
    %270 = vmatpush.msra.mxu0 %v107
    %271 = vmatpush.msra.mxu0 %v106
    %272 = vmatpush.msra.mxu0 %v105
    %273 = vmatpush.msra.mxu0 %v104
    %274 = vmatpush.msra.mxu0 %v103
    %275 = vmatpush.msra.mxu0 %v102
    %276 = vmatpush.msra.mxu0 %v101
    %277 = vmatpush.msra.mxu0 %v100
    %278 = vmatmul.f32.gmra.mxu0 %v112
    %v279 = vpop.f32.mrf.mxu0
    %v280 = vadd.f32 0.0, %v279
    %281 = vmatmul.f32.gmra.mxu0 %v115
    %v282 = vpop.f32.mrf.mxu0
    %v283 = vadd.f32 0.0, %v282
    %284 = vmatmul.f32.gmra.mxu0 %v118
    %v285 = vpop.f32.mrf.mxu0
    %v286 = vadd.f32 0.0, %v285
    %287 = vmatmul.f32.gmra.mxu0 %v121
    %v288 = vpop.f32.mrf.mxu0
    %v289 = vadd.f32 0.0, %v288
    %290 = vmatmul.f32.gmra.mxu0 %v124
    %v291 = vpop.f32.mrf.mxu0
    %v292 = vadd.f32 0.0, %v291
    %293 = vmatmul.f32.gmra.mxu0 %v127
    %v294 = vpop.f32.mrf.mxu0
    %v295 = vadd.f32 0.0, %v294
    %296 = vmatmul.f32.gmra.mxu0 %v130
    %v297 = vpop.f32.mrf.mxu0
    %v298 = vadd.f32 0.0, %v297
    %299 = vmatmul.f32.gmra.mxu0 %v133
    %v300 = vpop.f32.mrf.mxu0
    %v301 = vadd.f32 0.0, %v300
    %302 = vmatmul.f32.gmra.mxu0 %v136
    %v303 = vpop.f32.mrf.mxu0
    %v304 = vadd.f32 0.0, %v303
    %305 = vmatmul.f32.gmra.mxu0 %v139
    %v306 = vpop.f32.mrf.mxu0
    %v307 = vadd.f32 0.0, %v306
    %308 = vmatmul.f32.gmra.mxu0 %v142
    %v309 = vpop.f32.mrf.mxu0
    %v310 = vadd.f32 0.0, %v309
    %311 = vmatmul.f32.gmra.mxu0 %v145
    %v312 = vpop.f32.mrf.mxu0
    %v313 = vadd.f32 0.0, %v312
    %314 = vmatmul.f32.gmra.mxu0 %v148
    %v315 = vpop.f32.mrf.mxu0
    %v316 = vadd.f32 0.0, %v315
    %317 = vmatmul.f32.gmra.mxu0 %v151
    %v318 = vpop.f32.mrf.mxu0
    %v319 = vadd.f32 0.0, %v318
    %320 = vmatmul.f32.gmra.mxu0 %v154
    %v321 = vpop.f32.mrf.mxu0
    %v322 = vadd.f32 0.0, %v321
    %323 = vmatmul.f32.gmra.mxu0 %v157
    %v324 = vpop.f32.mrf.mxu0
    %v325 = vadd.f32 0.0, %v324
    %326 = vmatmul.f32.gmra.mxu0 %v160
    %v327 = vpop.f32.mrf.mxu0
    %v328 = vadd.f32 0.0, %v327
    %329 = vmatmul.f32.gmra.mxu0 %v163
    %v330 = vpop.f32.mrf.mxu0
    %v331 = vadd.f32 0.0, %v330
    %332 = vmatmul.f32.gmra.mxu0 %v166
    %v333 = vpop.f32.mrf.mxu0
    %v334 = vadd.f32 0.0, %v333
    %335 = vmatmul.f32.gmra.mxu0 %v169
    %v336 = vpop.f32.mrf.mxu0
    %v337 = vadd.f32 0.0, %v336
    %338 = vmatmul.f32.gmra.mxu0 %v172
    %v339 = vpop.f32.mrf.mxu0
    %v340 = vadd.f32 0.0, %v339
    %341 = vmatmul.f32.gmra.mxu0 %v175
    %v342 = vpop.f32.mrf.mxu0
    %v343 = vadd.f32 0.0, %v342
    %344 = vmatmul.f32.gmra.mxu0 %v178
    %v345 = vpop.f32.mrf.mxu0
    %v346 = vadd.f32 0.0, %v345
    %347 = vmatmul.f32.gmra.mxu0 %v181
    %v348 = vpop.f32.mrf.mxu0
    %v349 = vadd.f32 0.0, %v348
    %350 = vmatmul.f32.gmra.mxu0 %v184
    %v351 = vpop.f32.mrf.mxu0
    %v352 = vadd.f32 0.0, %v351
    %353 = vmatmul.f32.gmra.mxu0 %v187
    %v354 = vpop.f32.mrf.mxu0
    %v355 = vadd.f32 0.0, %v354
    %356 = vmatmul.f32.gmra.mxu0 %v190
    %v357 = vpop.f32.mrf.mxu0
    %v358 = vadd.f32 0.0, %v357
    %359 = vmatmul.f32.gmra.mxu0 %v193
    %v360 = vpop.f32.mrf.mxu0
    %v361 = vadd.f32 0.0, %v360
    %362 = vmatmul.f32.gmra.mxu0 %v196
    %v363 = vpop.f32.mrf.mxu0
    %v364 = vadd.f32 0.0, %v363
    %365 = vmatmul.f32.gmra.mxu0 %v199
    %v366 = vpop.f32.mrf.mxu0
    %v367 = vadd.f32 0.0, %v366
    %368 = vmatmul.f32.gmra.mxu0 %v202
    %v369 = vpop.f32.mrf.mxu0
    %v370 = vadd.f32 0.0, %v369
    %371 = vmatmul.f32.gmra.mxu0 %v205
    %v372 = vpop.f32.mrf.mxu0
    %v373 = vadd.f32 0.0, %v372
    %374 = vmatmul.f32.gmra.mxu0 %v208
    %v375 = vpop.f32.mrf.mxu0
    %v376 = vadd.f32 0.0, %v375
    %377 = vmatmul.f32.gmra.mxu0 %v211
    %v378 = vpop.f32.mrf.mxu0
    %v379 = vadd.f32 0.0, %v378
    %380 = vmatmul.f32.gmra.mxu0 %v214
    %v381 = vpop.f32.mrf.mxu0
    %v382 = vadd.f32 0.0, %v381
    %383 = vmatmul.f32.gmra.mxu0 %v217
    %v384 = vpop.f32.mrf.mxu0
    %v385 = vadd.f32 0.0, %v384
    %386 = vmatmul.f32.gmra.mxu0 %v220
    %v387 = vpop.f32.mrf.mxu0
    %v388 = vadd.f32 0.0, %v387
    %389 = vmatmul.f32.gmra.mxu0 %v223
    %v390 = vpop.f32.mrf.mxu0
    %v391 = vadd.f32 0.0, %v390
    %392 = vmatmul.f32.gmra.mxu0 %v226
    %v393 = vpop.f32.mrf.mxu0
    %v394 = vadd.f32 0.0, %v393
    %395 = vmatmul.f32.gmra.mxu0 %v229
    %v396 = vpop.f32.mrf.mxu0
    %v397 = vadd.f32 0.0, %v396
    %398 = vmatmul.f32.gmra.mxu0 %v232
    %v399 = vpop.f32.mrf.mxu0
    %v400 = vadd.f32 0.0, %v399
    %401 = vmatmul.f32.gmra.mxu0 %v235
    %v402 = vpop.f32.mrf.mxu0
    %v403 = vadd.f32 0.0, %v402
    %404 = vmatmul.f32.gmra.mxu0 %v238
    %v405 = vpop.f32.mrf.mxu0
    %v406 = vadd.f32 0.0, %v405
    %407 = vmatmul.f32.gmra.mxu0 %v241
    %v408 = vpop.f32.mrf.mxu0
    %v409 = vadd.f32 0.0, %v408
    %410 = vmatmul.f32.gmra.mxu0 %v244
    %v411 = vpop.f32.mrf.mxu0
    %v412 = vadd.f32 0.0, %v411
    %413 = vmatmul.f32.gmra.mxu0 %v247
    %v414 = vpop.f32.mrf.mxu0
    %v415 = vadd.f32 0.0, %v414
    %416 = vmatmul.f32.gmra.mxu0 %v250
    %v417 = vpop.f32.mrf.mxu0
    %v418 = vadd.f32 0.0, %v417
    %419 = vmatmul.f32.gmra.mxu0 %v253
    %v420 = vpop.f32.mrf.mxu0
    %v421 = vadd.f32 0.0, %v420
    %422 = vmatmul.f32.gmra.mxu0 %v256
    %v423 = vpop.f32.mrf.mxu0
    %v424 = vadd.f32 0.0, %v423
    %425 = vdwg.mxu0
    %v426 = vld [vmem:[%s2] sm:$0x1]
    %v427 = vld [vmem:[%s3] sm:$0x1]
    %vm428 = vcmask 130048
    %v429 = vsel %vm428, %v280, 0.0
    %v430 = vsel %vm428, %v283, 0.0
    %v431 = vadd.f32 %v429, %v430
    %v432 = vsel %vm428, %v286, 0.0
    %v433 = vadd.f32 %v431, %v432
    %v434 = vsel %vm428, %v289, 0.0
    %v435 = vadd.f32 %v433, %v434
    %v436 = vsel %vm428, %v292, 0.0
    %v437 = vadd.f32 %v435, %v436
    %v438 = vsel %vm428, %v295, 0.0
    %v439 = vadd.f32 %v437, %v438
    %v440 = vsel %vm428, %v298, 0.0
    %v441 = vadd.f32 %v439, %v440
    %v442 = vsel %vm428, %v301, 0.0
    %v443 = vadd.f32 %v441, %v442
    %v444 = vsel %vm428, %v304, 0.0
    %v445 = vadd.f32 %v443, %v444
    %v446 = vsel %vm428, %v307, 0.0
    %v447 = vadd.f32 %v445, %v446
    %v448 = vsel %vm428, %v310, 0.0
    %v449 = vadd.f32 %v447, %v448
    %v450 = vsel %vm428, %v313, 0.0
    %v451 = vadd.f32 %v449, %v450
    %v452 = vsel %vm428, %v316, 0.0
    %v453 = vadd.f32 %v451, %v452
    %v454 = vsel %vm428, %v319, 0.0
    %v455 = vadd.f32 %v453, %v454
    %v456 = vsel %vm428, %v322, 0.0
    %v457 = vadd.f32 %v455, %v456
    %v458 = vsel %vm428, %v325, 0.0
    %v459 = vadd.f32 %v457, %v458
    %v460 = vsel %vm428, %v328, 0.0
    %v461 = vadd.f32 %v459, %v460
    %v462 = vsel %vm428, %v331, 0.0
    %v463 = vadd.f32 %v461, %v462
    %v464 = vsel %vm428, %v334, 0.0
    %v465 = vadd.f32 %v463, %v464
    %v466 = vsel %vm428, %v337, 0.0
    %v467 = vadd.f32 %v465, %v466
    %v468 = vsel %vm428, %v340, 0.0
    %v469 = vadd.f32 %v467, %v468
    %v470 = vsel %vm428, %v343, 0.0
    %v471 = vadd.f32 %v469, %v470
    %v472 = vsel %vm428, %v346, 0.0
    %v473 = vadd.f32 %v471, %v472
    %v474 = vsel %vm428, %v349, 0.0
    %v475 = vadd.f32 %v473, %v474
    %v476 = vsel %vm428, %v352, 0.0
    %v477 = vadd.f32 %v475, %v476
    %v478 = vsel %vm428, %v355, 0.0
    %v479 = vadd.f32 %v477, %v478
    %v480 = vsel %vm428, %v358, 0.0
    %v481 = vadd.f32 %v479, %v480
    %v482 = vsel %vm428, %v361, 0.0
    %v483 = vadd.f32 %v481, %v482
    %v484 = vsel %vm428, %v364, 0.0
    %v485 = vadd.f32 %v483, %v484
    %v486 = vsel %vm428, %v367, 0.0
    %v487 = vadd.f32 %v485, %v486
    %v488 = vsel %vm428, %v370, 0.0
    %v489 = vadd.f32 %v487, %v488
    %v490 = vsel %vm428, %v373, 0.0
    %v491 = vadd.f32 %v489, %v490
    %v492 = vsel %vm428, %v376, 0.0
    %v493 = vadd.f32 %v491, %v492
    %v494 = vsel %vm428, %v379, 0.0
    %v495 = vadd.f32 %v493, %v494
    %v496 = vsel %vm428, %v382, 0.0
    %v497 = vadd.f32 %v495, %v496
    %v498 = vsel %vm428, %v385, 0.0
    %v499 = vadd.f32 %v497, %v498
    %v500 = vsel %vm428, %v388, 0.0
    %v501 = vadd.f32 %v499, %v500
    %v502 = vsel %vm428, %v391, 0.0
    %v503 = vadd.f32 %v501, %v502
    %v504 = vsel %vm428, %v394, 0.0
    %v505 = vadd.f32 %v503, %v504
    %v506 = vsel %vm428, %v397, 0.0
    %v507 = vadd.f32 %v505, %v506
    %v508 = vsel %vm428, %v400, 0.0
    %v509 = vadd.f32 %v507, %v508
    %v510 = vsel %vm428, %v403, 0.0
    %v511 = vadd.f32 %v509, %v510
    %v512 = vsel %vm428, %v406, 0.0
    %v513 = vadd.f32 %v511, %v512
    %v514 = vsel %vm428, %v409, 0.0
    %v515 = vadd.f32 %v513, %v514
    %v516 = vsel %vm428, %v412, 0.0
    %v517 = vadd.f32 %v515, %v516
    %v518 = vsel %vm428, %v415, 0.0
    %v519 = vadd.f32 %v517, %v518
    %v520 = vsel %vm428, %v418, 0.0
    %v521 = vadd.f32 %v519, %v520
    %v522 = vsel %vm428, %v421, 0.0
    %v523 = vadd.f32 %v521, %v522
    %v524 = vsel %vm428, %v424, 0.0
    %v525 = vadd.f32 %v523, %v524
    %v526 = vrot.slane %v525, 4
    %v527 = vadd.f32 %v525, %v526
    %v528 = vrot.slane %v527, 2
    %v529 = vadd.f32 %v527, %v528
    %v530 = vrot.slane %v529, 1
    %v531 = vadd.f32 %v529, %v530
    %v532 = vrcp.pop 392.0
    %v533 = vmul.f32 392.0, %v532
    %v534 = vsub.f32 1.0, %v533
    %v535 = vmul.f32 %v532, %v534
    %v536 = vadd.f32 %v532, %v535
    %vm537 = vweird.f32 %v532
    %v538 = vsel %vm537, %v532, %v536
    %v539 = vmul.f32 %v531, %v538
    %v540 = vsub.f32 %v280, %v539
    %v541 = vsub.f32 %v283, %v539
    %v542 = vsub.f32 %v286, %v539
    %v543 = vsub.f32 %v289, %v539
    %v544 = vsub.f32 %v292, %v539
    %v545 = vsub.f32 %v295, %v539
    %v546 = vsub.f32 %v298, %v539
    %v547 = vsub.f32 %v301, %v539
    %v548 = vsub.f32 %v304, %v539
    %v549 = vsub.f32 %v307, %v539
    %v550 = vsub.f32 %v310, %v539
    %v551 = vsub.f32 %v313, %v539
    %v552 = vsub.f32 %v316, %v539
    %v553 = vsub.f32 %v319, %v539
    %v554 = vsub.f32 %v322, %v539
    %v555 = vsub.f32 %v325, %v539
    %v556 = vsub.f32 %v328, %v539
    %v557 = vsub.f32 %v331, %v539
    %v558 = vsub.f32 %v334, %v539
    %v559 = vsub.f32 %v337, %v539
    %v560 = vsub.f32 %v340, %v539
    %v561 = vsub.f32 %v343, %v539
    %v562 = vsub.f32 %v346, %v539
    %v563 = vsub.f32 %v349, %v539
    %v564 = vsub.f32 %v352, %v539
    %v565 = vsub.f32 %v355, %v539
    %v566 = vsub.f32 %v358, %v539
    %v567 = vsub.f32 %v361, %v539
    %v568 = vsub.f32 %v364, %v539
    %v569 = vsub.f32 %v367, %v539
    %v570 = vsub.f32 %v370, %v539
    %v571 = vsub.f32 %v373, %v539
    %v572 = vsub.f32 %v376, %v539
    %v573 = vsub.f32 %v379, %v539
    %v574 = vsub.f32 %v382, %v539
    %v575 = vsub.f32 %v385, %v539
    %v576 = vsub.f32 %v388, %v539
    %v577 = vsub.f32 %v391, %v539
    %v578 = vsub.f32 %v394, %v539
    %v579 = vsub.f32 %v397, %v539
    %v580 = vsub.f32 %v400, %v539
    %v581 = vsub.f32 %v403, %v539
    %v582 = vsub.f32 %v406, %v539
    %v583 = vsub.f32 %v409, %v539
    %v584 = vsub.f32 %v412, %v539
    %v585 = vsub.f32 %v415, %v539
    %v586 = vsub.f32 %v418, %v539
    %v587 = vsub.f32 %v421, %v539
    %v588 = vsub.f32 %v424, %v539
    %v589 = vmul.f32 %v540, %v540
    %v590 = vmul.f32 %v541, %v541
    %v591 = vmul.f32 %v542, %v542
    %v592 = vmul.f32 %v543, %v543
    %v593 = vmul.f32 %v544, %v544
    %v594 = vmul.f32 %v545, %v545
    %v595 = vmul.f32 %v546, %v546
    %v596 = vmul.f32 %v547, %v547
    %v597 = vmul.f32 %v548, %v548
    %v598 = vmul.f32 %v549, %v549
    %v599 = vmul.f32 %v550, %v550
    %v600 = vmul.f32 %v551, %v551
    %v601 = vmul.f32 %v552, %v552
    %v602 = vmul.f32 %v553, %v553
    %v603 = vmul.f32 %v554, %v554
    %v604 = vmul.f32 %v555, %v555
    %v605 = vmul.f32 %v556, %v556
    %v606 = vmul.f32 %v557, %v557
    %v607 = vmul.f32 %v558, %v558
    %v608 = vmul.f32 %v559, %v559
    %v609 = vmul.f32 %v560, %v560
    %v610 = vmul.f32 %v561, %v561
    %v611 = vmul.f32 %v562, %v562
    %v612 = vmul.f32 %v563, %v563
    %v613 = vmul.f32 %v564, %v564
    %v614 = vmul.f32 %v565, %v565
    %v615 = vmul.f32 %v566, %v566
    %v616 = vmul.f32 %v567, %v567
    %v617 = vmul.f32 %v568, %v568
    %v618 = vmul.f32 %v569, %v569
    %v619 = vmul.f32 %v570, %v570
    %v620 = vmul.f32 %v571, %v571
    %v621 = vmul.f32 %v572, %v572
    %v622 = vmul.f32 %v573, %v573
    %v623 = vmul.f32 %v574, %v574
    %v624 = vmul.f32 %v575, %v575
    %v625 = vmul.f32 %v576, %v576
    %v626 = vmul.f32 %v577, %v577
    %v627 = vmul.f32 %v578, %v578
    %v628 = vmul.f32 %v579, %v579
    %v629 = vmul.f32 %v580, %v580
    %v630 = vmul.f32 %v581, %v581
    %v631 = vmul.f32 %v582, %v582
    %v632 = vmul.f32 %v583, %v583
    %v633 = vmul.f32 %v584, %v584
    %v634 = vmul.f32 %v585, %v585
    %v635 = vmul.f32 %v586, %v586
    %v636 = vmul.f32 %v587, %v587
    %v637 = vmul.f32 %v588, %v588
    %v638 = vsel %vm428, %v589, 0.0
    %v639 = vsel %vm428, %v590, 0.0
    %v640 = vadd.f32 %v638, %v639
    %v641 = vsel %vm428, %v591, 0.0
    %v642 = vadd.f32 %v640, %v641
    %v643 = vsel %vm428, %v592, 0.0
    %v644 = vadd.f32 %v642, %v643
    %v645 = vsel %vm428, %v593, 0.0
    %v646 = vadd.f32 %v644, %v645
    %v647 = vsel %vm428, %v594, 0.0
    %v648 = vadd.f32 %v646, %v647
    %v649 = vsel %vm428, %v595, 0.0
    %v650 = vadd.f32 %v648, %v649
    %v651 = vsel %vm428, %v596, 0.0
    %v652 = vadd.f32 %v650, %v651
    %v653 = vsel %vm428, %v597, 0.0
    %v654 = vadd.f32 %v652, %v653
    %v655 = vsel %vm428, %v598, 0.0
    %v656 = vadd.f32 %v654, %v655
    %v657 = vsel %vm428, %v599, 0.0
    %v658 = vadd.f32 %v656, %v657
    %v659 = vsel %vm428, %v600, 0.0
    %v660 = vadd.f32 %v658, %v659
    %v661 = vsel %vm428, %v601, 0.0
    %v662 = vadd.f32 %v660, %v661
    %v663 = vsel %vm428, %v602, 0.0
    %v664 = vadd.f32 %v662, %v663
    %v665 = vsel %vm428, %v603, 0.0
    %v666 = vadd.f32 %v664, %v665
    %v667 = vsel %vm428, %v604, 0.0
    %v668 = vadd.f32 %v666, %v667
    %v669 = vsel %vm428, %v605, 0.0
    %v670 = vadd.f32 %v668, %v669
    %v671 = vsel %vm428, %v606, 0.0
    %v672 = vadd.f32 %v670, %v671
    %v673 = vsel %vm428, %v607, 0.0
    %v674 = vadd.f32 %v672, %v673
    %v675 = vsel %vm428, %v608, 0.0
    %v676 = vadd.f32 %v674, %v675
    %v677 = vsel %vm428, %v609, 0.0
    %v678 = vadd.f32 %v676, %v677
    %v679 = vsel %vm428, %v610, 0.0
    %v680 = vadd.f32 %v678, %v679
    %v681 = vsel %vm428, %v611, 0.0
    %v682 = vadd.f32 %v680, %v681
    %v683 = vsel %vm428, %v612, 0.0
    %v684 = vadd.f32 %v682, %v683
    %v685 = vsel %vm428, %v613, 0.0
    %v686 = vadd.f32 %v684, %v685
    %v687 = vsel %vm428, %v614, 0.0
    %v688 = vadd.f32 %v686, %v687
    %v689 = vsel %vm428, %v615, 0.0
    %v690 = vadd.f32 %v688, %v689
    %v691 = vsel %vm428, %v616, 0.0
    %v692 = vadd.f32 %v690, %v691
    %v693 = vsel %vm428, %v617, 0.0
    %v694 = vadd.f32 %v692, %v693
    %v695 = vsel %vm428, %v618, 0.0
    %v696 = vadd.f32 %v694, %v695
    %v697 = vsel %vm428, %v619, 0.0
    %v698 = vadd.f32 %v696, %v697
    %v699 = vsel %vm428, %v620, 0.0
    %v700 = vadd.f32 %v698, %v699
    %v701 = vsel %vm428, %v621, 0.0
    %v702 = vadd.f32 %v700, %v701
    %v703 = vsel %vm428, %v622, 0.0
    %v704 = vadd.f32 %v702, %v703
    %v705 = vsel %vm428, %v623, 0.0
    %v706 = vadd.f32 %v704, %v705
    %v707 = vsel %vm428, %v624, 0.0
    %v708 = vadd.f32 %v706, %v707
    %v709 = vsel %vm428, %v625, 0.0
    %v710 = vadd.f32 %v708, %v709
    %v711 = vsel %vm428, %v626, 0.0
    %v712 = vadd.f32 %v710, %v711
    %v713 = vsel %vm428, %v627, 0.0
    %v714 = vadd.f32 %v712, %v713
    %v715 = vsel %vm428, %v628, 0.0
    %v716 = vadd.f32 %v714, %v715
    %v717 = vsel %vm428, %v629, 0.0
    %v718 = vadd.f32 %v716, %v717
    %v719 = vsel %vm428, %v630, 0.0
    %v720 = vadd.f32 %v718, %v719
    %v721 = vsel %vm428, %v631, 0.0
    %v722 = vadd.f32 %v720, %v721
    %v723 = vsel %vm428, %v632, 0.0
    %v724 = vadd.f32 %v722, %v723
    %v725 = vsel %vm428, %v633, 0.0
    %v726 = vadd.f32 %v724, %v725
    %v727 = vsel %vm428, %v634, 0.0
    %v728 = vadd.f32 %v726, %v727
    %v729 = vsel %vm428, %v635, 0.0
    %v730 = vadd.f32 %v728, %v729
    %v731 = vsel %vm428, %v636, 0.0
    %v732 = vadd.f32 %v730, %v731
    %v733 = vsel %vm428, %v637, 0.0
    %v734 = vadd.f32 %v732, %v733
    %v735 = vrot.slane %v734, 4
    %v736 = vadd.f32 %v734, %v735
    %v737 = vrot.slane %v736, 2
    %v738 = vadd.f32 %v736, %v737
    %v739 = vrot.slane %v738, 1
    %v740 = vadd.f32 %v738, %v739
    %v741 = vmul.f32 %v740, %v538
    %v742 = vadd.f32 %v741, 1e-05
    %v743 = vrsqrt.pop %v742
    %v744 = vmul.f32 %v743, %v742
    %v745 = vmul.f32 %v744, %v743
    %v746 = vmul.f32 0.5, %v745
    %v747 = vsub.f32 1.5, %v746
    %v748 = vmul.f32 %v743, %v747
    %vm749 = vweird.f32 %v742
    %vm750 = vweird.f32 %v743
    %vm751 = vmor %vm749, %vm750
    %v752 = vsel %vm751, %v743, %v748
    %v753 = vmul.f32 %v540, %v752
    %v754 = vmul.f32 %v541, %v752
    %v755 = vmul.f32 %v542, %v752
    %v756 = vmul.f32 %v543, %v752
    %v757 = vmul.f32 %v544, %v752
    %v758 = vmul.f32 %v545, %v752
    %v759 = vmul.f32 %v546, %v752
    %v760 = vmul.f32 %v547, %v752
    %v761 = vmul.f32 %v548, %v752
    %v762 = vmul.f32 %v549, %v752
    %v763 = vmul.f32 %v550, %v752
    %v764 = vmul.f32 %v551, %v752
    %v765 = vmul.f32 %v552, %v752
    %v766 = vmul.f32 %v553, %v752
    %v767 = vmul.f32 %v554, %v752
    %v768 = vmul.f32 %v555, %v752
    %v769 = vmul.f32 %v556, %v752
    %v770 = vmul.f32 %v557, %v752
    %v771 = vmul.f32 %v558, %v752
    %v772 = vmul.f32 %v559, %v752
    %v773 = vmul.f32 %v560, %v752
    %v774 = vmul.f32 %v561, %v752
    %v775 = vmul.f32 %v562, %v752
    %v776 = vmul.f32 %v563, %v752
    %v777 = vmul.f32 %v564, %v752
    %v778 = vmul.f32 %v565, %v752
    %v779 = vmul.f32 %v566, %v752
    %v780 = vmul.f32 %v567, %v752
    %v781 = vmul.f32 %v568, %v752
    %v782 = vmul.f32 %v569, %v752
    %v783 = vmul.f32 %v570, %v752
    %v784 = vmul.f32 %v571, %v752
    %v785 = vmul.f32 %v572, %v752
    %v786 = vmul.f32 %v573, %v752
    %v787 = vmul.f32 %v574, %v752
    %v788 = vmul.f32 %v575, %v752
    %v789 = vmul.f32 %v576, %v752
    %v790 = vmul.f32 %v577, %v752
    %v791 = vmul.f32 %v578, %v752
    %v792 = vmul.f32 %v579, %v752
    %v793 = vmul.f32 %v580, %v752
    %v794 = vmul.f32 %v581, %v752
    %v795 = vmul.f32 %v582, %v752
    %v796 = vmul.f32 %v583, %v752
    %v797 = vmul.f32 %v584, %v752
    %v798 = vmul.f32 %v585, %v752
    %v799 = vmul.f32 %v586, %v752
    %v800 = vmul.f32 %v587, %v752
    %v801 = vmul.f32 %v588, %v752
    %v803 = vperm.slane %v426, 0
    %v805 = vmul.f32 %v753, %v803
    %v806 = vmul.f32 %v754, %v803
    %v807 = vmul.f32 %v755, %v803
    %v808 = vmul.f32 %v756, %v803
    %v809 = vmul.f32 %v757, %v803
    %v810 = vmul.f32 %v758, %v803
    %v811 = vmul.f32 %v759, %v803
    %v812 = vmul.f32 %v760, %v803
    %v813 = vmul.f32 %v761, %v803
    %v814 = vmul.f32 %v762, %v803
    %v815 = vmul.f32 %v763, %v803
    %v816 = vmul.f32 %v764, %v803
    %v817 = vmul.f32 %v765, %v803
    %v818 = vmul.f32 %v766, %v803
    %v819 = vmul.f32 %v767, %v803
    %v820 = vmul.f32 %v768, %v803
    %v821 = vmul.f32 %v769, %v803
    %v822 = vmul.f32 %v770, %v803
    %v823 = vmul.f32 %v771, %v803
    %v824 = vmul.f32 %v772, %v803
    %v825 = vmul.f32 %v773, %v803
    %v826 = vmul.f32 %v774, %v803
    %v827 = vmul.f32 %v775, %v803
    %v828 = vmul.f32 %v776, %v803
    %v829 = vmul.f32 %v777, %v803
    %v830 = vmul.f32 %v778, %v803
    %v831 = vmul.f32 %v779, %v803
    %v832 = vmul.f32 %v780, %v803
    %v833 = vmul.f32 %v781, %v803
    %v834 = vmul.f32 %v782, %v803
    %v835 = vmul.f32 %v783, %v803
    %v836 = vmul.f32 %v784, %v803
    %v837 = vmul.f32 %v785, %v803
    %v838 = vmul.f32 %v786, %v803
    %v839 = vmul.f32 %v787, %v803
    %v840 = vmul.f32 %v788, %v803
    %v841 = vmul.f32 %v789, %v803
    %v842 = vmul.f32 %v790, %v803
    %v843 = vmul.f32 %v791, %v803
    %v844 = vmul.f32 %v792, %v803
    %v845 = vmul.f32 %v793, %v803
    %v846 = vmul.f32 %v794, %v803
    %v847 = vmul.f32 %v795, %v803
    %v848 = vmul.f32 %v796, %v803
    %v849 = vmul.f32 %v797, %v803
    %v850 = vmul.f32 %v798, %v803
    %v851 = vmul.f32 %v799, %v803
    %v852 = vmul.f32 %v800, %v803
    %v853 = vmul.f32 %v801, %v803
    %v855 = vperm.slane %v427, 0
    %v857 = vadd.f32 %v805, %v855
    %v858 = vadd.f32 %v806, %v855
    %v859 = vadd.f32 %v807, %v855
    %v860 = vadd.f32 %v808, %v855
    %v861 = vadd.f32 %v809, %v855
    %v862 = vadd.f32 %v810, %v855
    %v863 = vadd.f32 %v811, %v855
    %v864 = vadd.f32 %v812, %v855
    %v865 = vadd.f32 %v813, %v855
    %v866 = vadd.f32 %v814, %v855
    %v867 = vadd.f32 %v815, %v855
    %v868 = vadd.f32 %v816, %v855
    %v869 = vadd.f32 %v817, %v855
    %v870 = vadd.f32 %v818, %v855
    %v871 = vadd.f32 %v819, %v855
    %v872 = vadd.f32 %v820, %v855
    %v873 = vadd.f32 %v821, %v855
    %v874 = vadd.f32 %v822, %v855
    %v875 = vadd.f32 %v823, %v855
    %v876 = vadd.f32 %v824, %v855
    %v877 = vadd.f32 %v825, %v855
    %v878 = vadd.f32 %v826, %v855
    %v879 = vadd.f32 %v827, %v855
    %v880 = vadd.f32 %v828, %v855
    %v881 = vadd.f32 %v829, %v855
    %v882 = vadd.f32 %v830, %v855
    %v883 = vadd.f32 %v831, %v855
    %v884 = vadd.f32 %v832, %v855
    %v885 = vadd.f32 %v833, %v855
    %v886 = vadd.f32 %v834, %v855
    %v887 = vadd.f32 %v835, %v855
    %v888 = vadd.f32 %v836, %v855
    %v889 = vadd.f32 %v837, %v855
    %v890 = vadd.f32 %v838, %v855
    %v891 = vadd.f32 %v839, %v855
    %v892 = vadd.f32 %v840, %v855
    %v893 = vadd.f32 %v841, %v855
    %v894 = vadd.f32 %v842, %v855
    %v895 = vadd.f32 %v843, %v855
    %v896 = vadd.f32 %v844, %v855
    %v897 = vadd.f32 %v845, %v855
    %v898 = vadd.f32 %v846, %v855
    %v899 = vadd.f32 %v847, %v855
    %v900 = vadd.f32 %v848, %v855
    %v901 = vadd.f32 %v849, %v855
    %v902 = vadd.f32 %v850, %v855
    %v903 = vadd.f32 %v851, %v855
    %v904 = vadd.f32 %v852, %v855
    %v905 = vadd.f32 %v853, %v855
    %v906 = vmax.f32 %v857, 0.0
    %v907 = vmax.f32 %v858, 0.0
    %v908 = vmax.f32 %v859, 0.0
    %v909 = vmax.f32 %v860, 0.0
    %v910 = vmax.f32 %v861, 0.0
    %v911 = vmax.f32 %v862, 0.0
    %v912 = vmax.f32 %v863, 0.0
    %v913 = vmax.f32 %v864, 0.0
    %v914 = vmax.f32 %v865, 0.0
    %v915 = vmax.f32 %v866, 0.0
    %v916 = vmax.f32 %v867, 0.0
    %v917 = vmax.f32 %v868, 0.0
    %v918 = vmax.f32 %v869, 0.0
    %v919 = vmax.f32 %v870, 0.0
    %v920 = vmax.f32 %v871, 0.0
    %v921 = vmax.f32 %v872, 0.0
    %v922 = vmax.f32 %v873, 0.0
    %v923 = vmax.f32 %v874, 0.0
    %v924 = vmax.f32 %v875, 0.0
    %v925 = vmax.f32 %v876, 0.0
    %v926 = vmax.f32 %v877, 0.0
    %v927 = vmax.f32 %v878, 0.0
    %v928 = vmax.f32 %v879, 0.0
    %v929 = vmax.f32 %v880, 0.0
    %v930 = vmax.f32 %v881, 0.0
    %v931 = vmax.f32 %v882, 0.0
    %v932 = vmax.f32 %v883, 0.0
    %v933 = vmax.f32 %v884, 0.0
    %v934 = vmax.f32 %v885, 0.0
    %v935 = vmax.f32 %v886, 0.0
    %v936 = vmax.f32 %v887, 0.0
    %v937 = vmax.f32 %v888, 0.0
    %v938 = vmax.f32 %v889, 0.0
    %v939 = vmax.f32 %v890, 0.0
    %v940 = vmax.f32 %v891, 0.0
    %v941 = vmax.f32 %v892, 0.0
    %v942 = vmax.f32 %v893, 0.0
    %v943 = vmax.f32 %v894, 0.0
    %v944 = vmax.f32 %v895, 0.0
    %v945 = vmax.f32 %v896, 0.0
    %v946 = vmax.f32 %v897, 0.0
    %v947 = vmax.f32 %v898, 0.0
    %v948 = vmax.f32 %v899, 0.0
    %v949 = vmax.f32 %v900, 0.0
    %v950 = vmax.f32 %v901, 0.0
    %v951 = vmax.f32 %v902, 0.0
    %v952 = vmax.f32 %v903, 0.0
    %v953 = vmax.f32 %v904, 0.0
    %v954 = vmax.f32 %v905, 0.0
    %955 = vst.msk [vmem:[#allocation2] sm:$0xff] %vm428, %v906
    %956 = vst.msk [vmem:[#allocation2 + $0x8] sm:$0xff] %vm428, %v907
    %957 = vst.msk [vmem:[#allocation2 + $0x10] sm:$0xff] %vm428, %v908
    %958 = vst.msk [vmem:[#allocation2 + $0x18] sm:$0xff] %vm428, %v909
    %959 = vst.msk [vmem:[#allocation2 + $0x20] sm:$0xff] %vm428, %v910
    %960 = vst.msk [vmem:[#allocation2 + $0x28] sm:$0xff] %vm428, %v911
    %961 = vst.msk [vmem:[#allocation2 + $0x30] sm:$0xff] %vm428, %v912
    %962 = vst.msk [vmem:[#allocation2 + $0x38] sm:$0xff] %vm428, %v913
    %963 = vst.msk [vmem:[#allocation2 + $0x40] sm:$0xff] %vm428, %v914
    %964 = vst.msk [vmem:[#allocation2 + $0x48] sm:$0xff] %vm428, %v915
    %965 = vst.msk [vmem:[#allocation2 + $0x50] sm:$0xff] %vm428, %v916
    %966 = vst.msk [vmem:[#allocation2 + $0x58] sm:$0xff] %vm428, %v917
    %967 = vst.msk [vmem:[#allocation2 + $0x60] sm:$0xff] %vm428, %v918
    %968 = vst.msk [vmem:[#allocation2 + $0x68] sm:$0xff] %vm428, %v919
    %969 = vst.msk [vmem:[#allocation2 + $0x70] sm:$0xff] %vm428, %v920
    %970 = vst.msk [vmem:[#allocation2 + $0x78] sm:$0xff] %vm428, %v921
    %971 = vst.msk [vmem:[#allocation2 + $0x80] sm:$0xff] %vm428, %v922
    %972 = vst.msk [vmem:[#allocation2 + $0x88] sm:$0xff] %vm428, %v923
    %973 = vst.msk [vmem:[#allocation2 + $0x90] sm:$0xff] %vm428, %v924
    %974 = vst.msk [vmem:[#allocation2 + $0x98] sm:$0xff] %vm428, %v925
    %975 = vst.msk [vmem:[#allocation2 + $0xa0] sm:$0xff] %vm428, %v926
    %976 = vst.msk [vmem:[#allocation2 + $0xa8] sm:$0xff] %vm428, %v927
    %977 = vst.msk [vmem:[#allocation2 + $0xb0] sm:$0xff] %vm428, %v928
    %978 = vst.msk [vmem:[#allocation2 + $0xb8] sm:$0xff] %vm428, %v929
    %979 = vst.msk [vmem:[#allocation2 + $0xc0] sm:$0xff] %vm428, %v930
    %980 = vst.msk [vmem:[#allocation2 + $0xc8] sm:$0xff] %vm428, %v931
    %981 = vst.msk [vmem:[#allocation2 + $0xd0] sm:$0xff] %vm428, %v932
    %982 = vst.msk [vmem:[#allocation2 + $0xd8] sm:$0xff] %vm428, %v933
    %983 = vst.msk [vmem:[#allocation2 + $0xe0] sm:$0xff] %vm428, %v934
    %984 = vst.msk [vmem:[#allocation2 + $0xe8] sm:$0xff] %vm428, %v935
    %985 = vst.msk [vmem:[#allocation2 + $0xf0] sm:$0xff] %vm428, %v936
    %986 = vst.msk [vmem:[#allocation2 + $0xf8] sm:$0xff] %vm428, %v937
    %987 = vst.msk [vmem:[#allocation2 + $0x100] sm:$0xff] %vm428, %v938
    %988 = vst.msk [vmem:[#allocation2 + $0x108] sm:$0xff] %vm428, %v939
    %989 = vst.msk [vmem:[#allocation2 + $0x110] sm:$0xff] %vm428, %v940
    %990 = vst.msk [vmem:[#allocation2 + $0x118] sm:$0xff] %vm428, %v941
    %991 = vst.msk [vmem:[#allocation2 + $0x120] sm:$0xff] %vm428, %v942
    %992 = vst.msk [vmem:[#allocation2 + $0x128] sm:$0xff] %vm428, %v943
    %993 = vst.msk [vmem:[#allocation2 + $0x130] sm:$0xff] %vm428, %v944
    %994 = vst.msk [vmem:[#allocation2 + $0x138] sm:$0xff] %vm428, %v945
    %995 = vst.msk [vmem:[#allocation2 + $0x140] sm:$0xff] %vm428, %v946
    %996 = vst.msk [vmem:[#allocation2 + $0x148] sm:$0xff] %vm428, %v947
    %997 = vst.msk [vmem:[#allocation2 + $0x150] sm:$0xff] %vm428, %v948
    %998 = vst.msk [vmem:[#allocation2 + $0x158] sm:$0xff] %vm428, %v949
    %999 = vst.msk [vmem:[#allocation2 + $0x160] sm:$0xff] %vm428, %v950
    %1000 = vst.msk [vmem:[#allocation2 + $0x168] sm:$0xff] %vm428, %v951
    %1001 = vst.msk [vmem:[#allocation2 + $0x170] sm:$0xff] %vm428, %v952
    %1002 = vst.msk [vmem:[#allocation2 + $0x178] sm:$0xff] %vm428, %v953
    %1003 = vst.msk [vmem:[#allocation2 + $0x180] sm:$0xff] %vm428, %v954
    %v1004 = vld [vmem:[%s4] sm:$0xff]
    %v1005 = vld [vmem:[%s4 + $0x8] sm:$0xff]
    %v1006 = vld [vmem:[%s4 + $0x10] sm:$0xff]
    %v1007 = vld [vmem:[%s4 + $0x18] sm:$0xff]
    %v1008 = vld [vmem:[%s4 + $0x20] sm:$0xff]
    %v1009 = vld [vmem:[%s4 + $0x28] sm:$0xff]
    %v1010 = vld [vmem:[%s4 + $0x30] sm:$0xff]
    %v1011 = vld [vmem:[%s4 + $0x38] sm:$0xff]
    %v1012 = vld [vmem:[%s4 + $0x40] sm:$0xff]
    %v1013 = vld [vmem:[%s4 + $0x48] sm:$0xff]
    %v1014 = vld [vmem:[%s4 + $0x50] sm:$0xff]
    %v1015 = vld [vmem:[%s4 + $0x58] sm:$0xff]
    %v1016 = vld [vmem:[%s4 + $0x60] sm:$0xff]
    %v1017 = vld [vmem:[%s4 + $0x68] sm:$0xff]
    %v1018 = vld [vmem:[%s4 + $0x70] sm:$0xff]
    %v1019 = vld [vmem:[%s4 + $0x78] sm:$0xff]
    %v1020 = vld [vmem:[%s4 + $0x80] sm:$0xff]
    %v1021 = vld [vmem:[%s4 + $0x88] sm:$0xff]
    %v1022 = vld [vmem:[%s4 + $0x90] sm:$0xff]
    %v1023 = vld [vmem:[%s4 + $0x98] sm:$0xff]
    %v1024 = vld [vmem:[%s4 + $0xa0] sm:$0xff]
    %v1025 = vld [vmem:[%s4 + $0xa8] sm:$0xff]
    %v1026 = vld [vmem:[%s4 + $0xb0] sm:$0xff]
    %v1027 = vld [vmem:[%s4 + $0xb8] sm:$0xff]
    %v1028 = vld [vmem:[%s4 + $0xc0] sm:$0x3]
    %v1029 = vld [vmem:[%s4 + $0xc8] sm:$0x3]
    %v1030 = vld [vmem:[%s4 + $0xd0] sm:$0x3]
    %v1031 = vld [vmem:[%s4 + $0xd8] sm:$0x3]
    %v1032 = vld [vmem:[#allocation2] sm:$0xff]
    %v1033 = vld [vmem:[#allocation2 + $0x8] sm:$0xff]
    %v1034 = vld [vmem:[#allocation2 + $0x10] sm:$0xff]
    %v1035 = vld [vmem:[#allocation2 + $0x18] sm:$0xff]
    %v1036 = vld [vmem:[#allocation2 + $0x20] sm:$0xff]
    %v1037 = vld [vmem:[#allocation2 + $0x28] sm:$0xff]
    %v1038 = vld [vmem:[#allocation2 + $0x30] sm:$0xff]
    %v1039 = vld [vmem:[#allocation2 + $0x38] sm:$0xff]
    %v1040 = vld [vmem:[#allocation2 + $0x40] sm:$0xff]
    %v1041 = vld [vmem:[#allocation2 + $0x48] sm:$0xff]
    %v1042 = vld [vmem:[#allocation2 + $0x50] sm:$0xff]
    %v1043 = vld [vmem:[#allocation2 + $0x58] sm:$0xff]
    %v1044 = vld [vmem:[#allocation2 + $0x60] sm:$0xff]
    %v1045 = vld [vmem:[#allocation2 + $0x68] sm:$0xff]
    %v1046 = vld [vmem:[#allocation2 + $0x70] sm:$0xff]
    %v1047 = vld [vmem:[#allocation2 + $0x78] sm:$0xff]
    %v1048 = vld [vmem:[#allocation2 + $0x80] sm:$0xff]
    %v1049 = vld [vmem:[#allocation2 + $0x88] sm:$0xff]
    %v1050 = vld [vmem:[#allocation2 + $0x90] sm:$0xff]
    %v1051 = vld [vmem:[#allocation2 + $0x98] sm:$0xff]
    %v1052 = vld [vmem:[#allocation2 + $0xa0] sm:$0xff]
    %v1053 = vld [vmem:[#allocation2 + $0xa8] sm:$0xff]
    %v1054 = vld [vmem:[#allocation2 + $0xb0] sm:$0xff]
    %v1055 = vld [vmem:[#allocation2 + $0xb8] sm:$0xff]
    %v1056 = vld [vmem:[#allocation2 + $0xc0] sm:$0xff]
    %v1057 = vld [vmem:[#allocation2 + $0xc8] sm:$0xff]
    %v1058 = vld [vmem:[#allocation2 + $0xd0] sm:$0xff]
    %v1059 = vld [vmem:[#allocation2 + $0xd8] sm:$0xff]
    %v1060 = vld [vmem:[#allocation2 + $0xe0] sm:$0xff]
    %v1061 = vld [vmem:[#allocation2 + $0xe8] sm:$0xff]
    %v1062 = vld [vmem:[#allocation2 + $0xf0] sm:$0xff]
    %v1063 = vld [vmem:[#allocation2 + $0xf8] sm:$0xff]
    %v1064 = vld [vmem:[#allocation2 + $0x100] sm:$0xff]
    %v1065 = vld [vmem:[#allocation2 + $0x108] sm:$0xff]
    %v1066 = vld [vmem:[#allocation2 + $0x110] sm:$0xff]
    %v1067 = vld [vmem:[#allocation2 + $0x118] sm:$0xff]
    %v1068 = vld [vmem:[#allocation2 + $0x120] sm:$0xff]
    %v1069 = vld [vmem:[#allocation2 + $0x128] sm:$0xff]
    %v1070 = vld [vmem:[#allocation2 + $0x130] sm:$0xff]
    %v1071 = vld [vmem:[#allocation2 + $0x138] sm:$0xff]
    %v1072 = vld [vmem:[#allocation2 + $0x140] sm:$0xff]
    %v1073 = vld [vmem:[#allocation2 + $0x148] sm:$0xff]
    %v1074 = vld [vmem:[#allocation2 + $0x150] sm:$0xff]
    %v1075 = vld [vmem:[#allocation2 + $0x158] sm:$0xff]
    %v1076 = vld [vmem:[#allocation2 + $0x160] sm:$0xff]
    %v1077 = vld [vmem:[#allocation2 + $0x168] sm:$0xff]
    %v1078 = vld [vmem:[#allocation2 + $0x170] sm:$0xff]
    %v1079 = vld [vmem:[#allocation2 + $0x178] sm:$0xff]
    %v1080 = vld [vmem:[#allocation2 + $0x180] sm:$0xff]
    %vm1081 = vcmask 64512
    %v1083 = vsel %vm1081, %v1007, 0
    %v1086 = vsel %vm1081, %v1011, 0
    %v1089 = vsel %vm1081, %v1015, 0
    %v1092 = vsel %vm1081, %v1019, 0
    %v1095 = vsel %vm1081, %v1023, 0
    %v1098 = vsel %vm1081, %v1027, 0
    %v1101 = vsel %vm1081, %v1031, 0
    %1103 = vmatpush.msra.mxu0 %v1047
    %1104 = vmatpush.msra.mxu0 %v1046
    %1105 = vmatpush.msra.mxu0 %v1045
    %1106 = vmatpush.msra.mxu0 %v1044
    %1107 = vmatpush.msra.mxu0 %v1043
    %1108 = vmatpush.msra.mxu0 %v1042
    %1109 = vmatpush.msra.mxu0 %v1041
    %1110 = vmatpush.msra.mxu0 %v1040
    %1111 = vmatpush.msra.mxu0 %v1039
    %1112 = vmatpush.msra.mxu0 %v1038
    %1113 = vmatpush.msra.mxu0 %v1037
    %1114 = vmatpush.msra.mxu0 %v1036
    %1115 = vmatpush.msra.mxu0 %v1035
    %1116 = vmatpush.msra.mxu0 %v1034
    %1117 = vmatpush.msra.mxu0 %v1033
    %1118 = vmatpush.msra.mxu0 %v1032
    %1119 = vmatmul.f32.gmra.mxu0 %v1004
    %v1120 = vpop.f32.mrf.mxu0
    %v1121 = vadd.f32 0.0, %v1120
    %1122 = vmatmul.f32.gmra.mxu0 %v1008
    %v1123 = vpop.f32.mrf.mxu0
    %v1124 = vadd.f32 0.0, %v1123
    %1125 = vmatmul.f32.gmra.mxu0 %v1012
    %v1126 = vpop.f32.mrf.mxu0
    %v1127 = vadd.f32 0.0, %v1126
    %1128 = vmatmul.f32.gmra.mxu0 %v1016
    %v1129 = vpop.f32.mrf.mxu0
    %v1130 = vadd.f32 0.0, %v1129
    %1131 = vmatmul.f32.gmra.mxu0 %v1020
    %v1132 = vpop.f32.mrf.mxu0
    %v1133 = vadd.f32 0.0, %v1132
    %1134 = vmatmul.f32.gmra.mxu0 %v1024
    %v1135 = vpop.f32.mrf.mxu0
    %v1136 = vadd.f32 0.0, %v1135
    %1137 = vmatmul.f32.gmra.mxu0 %v1028
    %v1138 = vpop.f32.mrf.mxu0
    %v1139 = vadd.f32 0.0, %v1138
    %1140 = vdwg.mxu0
    %1141 = vmatpush.msra.mxu0 %v1063
    %1142 = vmatpush.msra.mxu0 %v1062
    %1143 = vmatpush.msra.mxu0 %v1061
    %1144 = vmatpush.msra.mxu0 %v1060
    %1145 = vmatpush.msra.mxu0 %v1059
    %1146 = vmatpush.msra.mxu0 %v1058
    %1147 = vmatpush.msra.mxu0 %v1057
    %1148 = vmatpush.msra.mxu0 %v1056
    %1149 = vmatpush.msra.mxu0 %v1055
    %1150 = vmatpush.msra.mxu0 %v1054
    %1151 = vmatpush.msra.mxu0 %v1053
    %1152 = vmatpush.msra.mxu0 %v1052
    %1153 = vmatpush.msra.mxu0 %v1051
    %1154 = vmatpush.msra.mxu0 %v1050
    %1155 = vmatpush.msra.mxu0 %v1049
    %1156 = vmatpush.msra.mxu0 %v1048
    %1157 = vmatmul.f32.gmra.mxu0 %v1005
    %v1158 = vpop.f32.mrf.mxu0
    %v1159 = vadd.f32 %v1121, %v1158
    %1160 = vmatmul.f32.gmra.mxu0 %v1009
    %v1161 = vpop.f32.mrf.mxu0
    %v1162 = vadd.f32 %v1124, %v1161
    %1163 = vmatmul.f32.gmra.mxu0 %v1013
    %v1164 = vpop.f32.mrf.mxu0
    %v1165 = vadd.f32 %v1127, %v1164
    %1166 = vmatmul.f32.gmra.mxu0 %v1017
    %v1167 = vpop.f32.mrf.mxu0
    %v1168 = vadd.f32 %v1130, %v1167
    %1169 = vmatmul.f32.gmra.mxu0 %v1021
    %v1170 = vpop.f32.mrf.mxu0
    %v1171 = vadd.f32 %v1133, %v1170
    %1172 = vmatmul.f32.gmra.mxu0 %v1025
    %v1173 = vpop.f32.mrf.mxu0
    %v1174 = vadd.f32 %v1136, %v1173
    %1175 = vmatmul.f32.gmra.mxu0 %v1029
    %v1176 = vpop.f32.mrf.mxu0
    %v1177 = vadd.f32 %v1139, %v1176
    %1178 = vdwg.mxu0
    %1179 = vmatpush.msra.mxu0 %v1079
    %1180 = vmatpush.msra.mxu0 %v1078
    %1181 = vmatpush.msra.mxu0 %v1077
    %1182 = vmatpush.msra.mxu0 %v1076
    %1183 = vmatpush.msra.mxu0 %v1075
    %1184 = vmatpush.msra.mxu0 %v1074
    %1185 = vmatpush.msra.mxu0 %v1073
    %1186 = vmatpush.msra.mxu0 %v1072
    %1187 = vmatpush.msra.mxu0 %v1071
    %1188 = vmatpush.msra.mxu0 %v1070
    %1189 = vmatpush.msra.mxu0 %v1069
    %1190 = vmatpush.msra.mxu0 %v1068
    %1191 = vmatpush.msra.mxu0 %v1067
    %1192 = vmatpush.msra.mxu0 %v1066
    %1193 = vmatpush.msra.mxu0 %v1065
    %1194 = vmatpush.msra.mxu0 %v1064
    %1195 = vmatmul.f32.gmra.mxu0 %v1006
    %v1196 = vpop.f32.mrf.mxu0
    %v1197 = vadd.f32 %v1159, %v1196
    %1198 = vmatmul.f32.gmra.mxu0 %v1010
    %v1199 = vpop.f32.mrf.mxu0
    %v1200 = vadd.f32 %v1162, %v1199
    %1201 = vmatmul.f32.gmra.mxu0 %v1014
    %v1202 = vpop.f32.mrf.mxu0
    %v1203 = vadd.f32 %v1165, %v1202
    %1204 = vmatmul.f32.gmra.mxu0 %v1018
    %v1205 = vpop.f32.mrf.mxu0
    %v1206 = vadd.f32 %v1168, %v1205
    %1207 = vmatmul.f32.gmra.mxu0 %v1022
    %v1208 = vpop.f32.mrf.mxu0
    %v1209 = vadd.f32 %v1171, %v1208
    %1210 = vmatmul.f32.gmra.mxu0 %v1026
    %v1211 = vpop.f32.mrf.mxu0
    %v1212 = vadd.f32 %v1174, %v1211
    %1213 = vmatmul.f32.gmra.mxu0 %v1030
    %v1214 = vpop.f32.mrf.mxu0
    %v1215 = vadd.f32 %v1177, %v1214
    %1216 = vdwg.mxu0
    %1217 = vmatpush.msra.mxu0 0.0
    %1218 = vmatpush.msra.mxu0 0.0
    %1219 = vmatpush.msra.mxu0 0.0
    %1220 = vmatpush.msra.mxu0 0.0
    %1221 = vmatpush.msra.mxu0 0.0
    %1222 = vmatpush.msra.mxu0 0.0
    %1223 = vmatpush.msra.mxu0 0.0
    %1224 = vmatpush.msra.mxu0 0.0
    %1225 = vmatpush.msra.mxu0 0.0
    %1226 = vmatpush.msra.mxu0 0.0
    %1227 = vmatpush.msra.mxu0 0.0
    %1228 = vmatpush.msra.mxu0 0.0
    %1229 = vmatpush.msra.mxu0 0.0
    %1230 = vmatpush.msra.mxu0 0.0
    %1231 = vmatpush.msra.mxu0 0.0
    %1232 = vmatpush.msra.mxu0 %v1080
    %1233 = vmatmul.f32.gmra.mxu0 %v1083
    %v1234 = vpop.f32.mrf.mxu0
    %v1235 = vadd.f32 %v1197, %v1234
    %1236 = vmatmul.f32.gmra.mxu0 %v1086
    %v1237 = vpop.f32.mrf.mxu0
    %v1238 = vadd.f32 %v1200, %v1237
    %1239 = vmatmul.f32.gmra.mxu0 %v1089
    %v1240 = vpop.f32.mrf.mxu0
    %v1241 = vadd.f32 %v1203, %v1240
    %1242 = vmatmul.f32.gmra.mxu0 %v1092
    %v1243 = vpop.f32.mrf.mxu0
    %v1244 = vadd.f32 %v1206, %v1243
    %1245 = vmatmul.f32.gmra.mxu0 %v1095
    %v1246 = vpop.f32.mrf.mxu0
    %v1247 = vadd.f32 %v1209, %v1246
    %1248 = vmatmul.f32.gmra.mxu0 %v1098
    %v1249 = vpop.f32.mrf.mxu0
    %v1250 = vadd.f32 %v1212, %v1249
    %1251 = vmatmul.f32.gmra.mxu0 %v1101
    %v1252 = vpop.f32.mrf.mxu0
    %v1253 = vadd.f32 %v1215, %v1252
    %1254 = vdwg.mxu0
    %v1255 = vld [vmem:[%s5] sm:$0xff]
    %v1256 = vld [vmem:[%s5 + $0x8] sm:$0xff]
    %s1257 = scalar_lea.vmem %s4, 224
    %v1258 = vld [vmem:[%s1257] sm:$0xff]
    %v1259 = vld [vmem:[%s1257 + $0x8] sm:$0xff]
    %v1260 = vld [vmem:[%s1257 + $0x10] sm:$0xff]
    %v1261 = vld [vmem:[%s1257 + $0x18] sm:$0xff]
    %v1262 = vld [vmem:[%s1257 + $0x20] sm:$0xff]
    %v1263 = vld [vmem:[%s1257 + $0x28] sm:$0xff]
    %v1264 = vld [vmem:[%s1257 + $0x30] sm:$0xff]
    %v1265 = vld [vmem:[%s1257 + $0x38] sm:$0xff]
    %v1266 = vld [vmem:[%s1257 + $0x40] sm:$0xff]
    %v1267 = vld [vmem:[%s1257 + $0x48] sm:$0xff]
    %v1268 = vld [vmem:[%s1257 + $0x50] sm:$0xff]
    %v1269 = vld [vmem:[%s1257 + $0x58] sm:$0xff]
    %v1270 = vld [vmem:[%s1257 + $0x60] sm:$0xff]
    %v1271 = vld [vmem:[%s1257 + $0x68] sm:$0xff]
    %v1272 = vld [vmem:[%s1257 + $0x70] sm:$0xff]
    %v1273 = vld [vmem:[%s1257 + $0x78] sm:$0xff]
    %v1274 = vld [vmem:[%s1257 + $0x80] sm:$0xff]
    %v1275 = vld [vmem:[%s1257 + $0x88] sm:$0xff]
    %v1276 = vld [vmem:[%s1257 + $0x90] sm:$0xff]
    %v1277 = vld [vmem:[%s1257 + $0x98] sm:$0xff]
    %v1278 = vld [vmem:[%s1257 + $0xa0] sm:$0xff]
    %v1279 = vld [vmem:[%s1257 + $0xa8] sm:$0xff]
    %v1280 = vld [vmem:[%s1257 + $0xb0] sm:$0xff]
    %v1281 = vld [vmem:[%s1257 + $0xb8] sm:$0xff]
    %v1282 = vld [vmem:[%s1257 + $0xc0] sm:$0x3]
    %v1283 = vld [vmem:[%s1257 + $0xc8] sm:$0x3]
    %v1284 = vld [vmem:[%s1257 + $0xd0] sm:$0x3]
    %v1285 = vld [vmem:[%s1257 + $0xd8] sm:$0x3]
    %v1287 = vsel %vm1081, %v1261, 0
    %v1290 = vsel %vm1081, %v1265, 0
    %v1293 = vsel %vm1081, %v1269, 0
    %v1296 = vsel %vm1081, %v1273, 0
    %v1299 = vsel %vm1081, %v1277, 0
    %v1302 = vsel %vm1081, %v1281, 0
    %v1305 = vsel %vm1081, %v1285, 0
    %1307 = vmatpush.msra.mxu0 %v1047
    %1308 = vmatpush.msra.mxu0 %v1046
    %1309 = vmatpush.msra.mxu0 %v1045
    %1310 = vmatpush.msra.mxu0 %v1044
    %1311 = vmatpush.msra.mxu0 %v1043
    %1312 = vmatpush.msra.mxu0 %v1042
    %1313 = vmatpush.msra.mxu0 %v1041
    %1314 = vmatpush.msra.mxu0 %v1040
    %1315 = vmatpush.msra.mxu0 %v1039
    %1316 = vmatpush.msra.mxu0 %v1038
    %1317 = vmatpush.msra.mxu0 %v1037
    %1318 = vmatpush.msra.mxu0 %v1036
    %1319 = vmatpush.msra.mxu0 %v1035
    %1320 = vmatpush.msra.mxu0 %v1034
    %1321 = vmatpush.msra.mxu0 %v1033
    %1322 = vmatpush.msra.mxu0 %v1032
    %1323 = vmatmul.f32.gmra.mxu0 %v1258
    %v1324 = vpop.f32.mrf.mxu0
    %v1325 = vadd.f32 0.0, %v1324
    %1326 = vmatmul.f32.gmra.mxu0 %v1262
    %v1327 = vpop.f32.mrf.mxu0
    %v1328 = vadd.f32 0.0, %v1327
    %1329 = vmatmul.f32.gmra.mxu0 %v1266
    %v1330 = vpop.f32.mrf.mxu0
    %v1331 = vadd.f32 0.0, %v1330
    %1332 = vmatmul.f32.gmra.mxu0 %v1270
    %v1333 = vpop.f32.mrf.mxu0
    %v1334 = vadd.f32 0.0, %v1333
    %1335 = vmatmul.f32.gmra.mxu0 %v1274
    %v1336 = vpop.f32.mrf.mxu0
    %v1337 = vadd.f32 0.0, %v1336
    %1338 = vmatmul.f32.gmra.mxu0 %v1278
    %v1339 = vpop.f32.mrf.mxu0
    %v1340 = vadd.f32 0.0, %v1339
    %1341 = vmatmul.f32.gmra.mxu0 %v1282
    %v1342 = vpop.f32.mrf.mxu0
    %v1343 = vadd.f32 0.0, %v1342
    %1344 = vdwg.mxu0
    %1345 = vmatpush.msra.mxu0 %v1063
    %1346 = vmatpush.msra.mxu0 %v1062
    %1347 = vmatpush.msra.mxu0 %v1061
    %1348 = vmatpush.msra.mxu0 %v1060
    %1349 = vmatpush.msra.mxu0 %v1059
    %1350 = vmatpush.msra.mxu0 %v1058
    %1351 = vmatpush.msra.mxu0 %v1057
    %1352 = vmatpush.msra.mxu0 %v1056
    %1353 = vmatpush.msra.mxu0 %v1055
    %1354 = vmatpush.msra.mxu0 %v1054
    %1355 = vmatpush.msra.mxu0 %v1053
    %1356 = vmatpush.msra.mxu0 %v1052
    %1357 = vmatpush.msra.mxu0 %v1051
    %1358 = vmatpush.msra.mxu0 %v1050
    %1359 = vmatpush.msra.mxu0 %v1049
    %1360 = vmatpush.msra.mxu0 %v1048
    %1361 = vmatmul.f32.gmra.mxu0 %v1259
    %v1362 = vpop.f32.mrf.mxu0
    %v1363 = vadd.f32 %v1325, %v1362
    %1364 = vmatmul.f32.gmra.mxu0 %v1263
    %v1365 = vpop.f32.mrf.mxu0
    %v1366 = vadd.f32 %v1328, %v1365
    %1367 = vmatmul.f32.gmra.mxu0 %v1267
    %v1368 = vpop.f32.mrf.mxu0
    %v1369 = vadd.f32 %v1331, %v1368
    %1370 = vmatmul.f32.gmra.mxu0 %v1271
    %v1371 = vpop.f32.mrf.mxu0
    %v1372 = vadd.f32 %v1334, %v1371
    %1373 = vmatmul.f32.gmra.mxu0 %v1275
    %v1374 = vpop.f32.mrf.mxu0
    %v1375 = vadd.f32 %v1337, %v1374
    %1376 = vmatmul.f32.gmra.mxu0 %v1279
    %v1377 = vpop.f32.mrf.mxu0
    %v1378 = vadd.f32 %v1340, %v1377
    %1379 = vmatmul.f32.gmra.mxu0 %v1283
    %v1380 = vpop.f32.mrf.mxu0
    %v1381 = vadd.f32 %v1343, %v1380
    %1382 = vdwg.mxu0
    %1383 = vmatpush.msra.mxu0 %v1079
    %1384 = vmatpush.msra.mxu0 %v1078
    %1385 = vmatpush.msra.mxu0 %v1077
    %1386 = vmatpush.msra.mxu0 %v1076
    %1387 = vmatpush.msra.mxu0 %v1075
    %1388 = vmatpush.msra.mxu0 %v1074
    %1389 = vmatpush.msra.mxu0 %v1073
    %1390 = vmatpush.msra.mxu0 %v1072
    %1391 = vmatpush.msra.mxu0 %v1071
    %1392 = vmatpush.msra.mxu0 %v1070
    %1393 = vmatpush.msra.mxu0 %v1069
    %1394 = vmatpush.msra.mxu0 %v1068
    %1395 = vmatpush.msra.mxu0 %v1067
    %1396 = vmatpush.msra.mxu0 %v1066
    %1397 = vmatpush.msra.mxu0 %v1065
    %1398 = vmatpush.msra.mxu0 %v1064
    %1399 = vmatmul.f32.gmra.mxu0 %v1260
    %v1400 = vpop.f32.mrf.mxu0
    %v1401 = vadd.f32 %v1363, %v1400
    %1402 = vmatmul.f32.gmra.mxu0 %v1264
    %v1403 = vpop.f32.mrf.mxu0
    %v1404 = vadd.f32 %v1366, %v1403
    %1405 = vmatmul.f32.gmra.mxu0 %v1268
    %v1406 = vpop.f32.mrf.mxu0
    %v1407 = vadd.f32 %v1369, %v1406
    %1408 = vmatmul.f32.gmra.mxu0 %v1272
    %v1409 = vpop.f32.mrf.mxu0
    %v1410 = vadd.f32 %v1372, %v1409
    %1411 = vmatmul.f32.gmra.mxu0 %v1276
    %v1412 = vpop.f32.mrf.mxu0
    %v1413 = vadd.f32 %v1375, %v1412
    %1414 = vmatmul.f32.gmra.mxu0 %v1280
    %v1415 = vpop.f32.mrf.mxu0
    %v1416 = vadd.f32 %v1378, %v1415
    %1417 = vmatmul.f32.gmra.mxu0 %v1284
    %v1418 = vpop.f32.mrf.mxu0
    %v1419 = vadd.f32 %v1381, %v1418
    %1420 = vdwg.mxu0
    %1421 = vmatpush.msra.mxu0 0.0
    %1422 = vmatpush.msra.mxu0 0.0
    %1423 = vmatpush.msra.mxu0 0.0
    %1424 = vmatpush.msra.mxu0 0.0
    %1425 = vmatpush.msra.mxu0 0.0
    %1426 = vmatpush.msra.mxu0 0.0
    %1427 = vmatpush.msra.mxu0 0.0
    %1428 = vmatpush.msra.mxu0 0.0
    %1429 = vmatpush.msra.mxu0 0.0
    %1430 = vmatpush.msra.mxu0 0.0
    %1431 = vmatpush.msra.mxu0 0.0
    %1432 = vmatpush.msra.mxu0 0.0
    %1433 = vmatpush.msra.mxu0 0.0
    %1434 = vmatpush.msra.mxu0 0.0
    %1435 = vmatpush.msra.mxu0 0.0
    %1436 = vmatpush.msra.mxu0 %v1080
    %1437 = vmatmul.f32.gmra.mxu0 %v1287
    %v1438 = vpop.f32.mrf.mxu0
    %v1439 = vadd.f32 %v1401, %v1438
    %1440 = vmatmul.f32.gmra.mxu0 %v1290
    %v1441 = vpop.f32.mrf.mxu0
    %v1442 = vadd.f32 %v1404, %v1441
    %1443 = vmatmul.f32.gmra.mxu0 %v1293
    %v1444 = vpop.f32.mrf.mxu0
    %v1445 = vadd.f32 %v1407, %v1444
    %1446 = vmatmul.f32.gmra.mxu0 %v1296
    %v1447 = vpop.f32.mrf.mxu0
    %v1448 = vadd.f32 %v1410, %v1447
    %1449 = vmatmul.f32.gmra.mxu0 %v1299
    %v1450 = vpop.f32.mrf.mxu0
    %v1451 = vadd.f32 %v1413, %v1450
    %1452 = vmatmul.f32.gmra.mxu0 %v1302
    %v1453 = vpop.f32.mrf.mxu0
    %v1454 = vadd.f32 %v1416, %v1453
    %1455 = vmatmul.f32.gmra.mxu0 %v1305
    %v1456 = vpop.f32.mrf.mxu0
    %v1457 = vadd.f32 %v1419, %v1456
    %1458 = vdwg.mxu0
    %s1459 = scalar_lea.vmem %s5, 16
    %v1460 = vld [vmem:[%s1459] sm:$0xff]
    %v1461 = vld [vmem:[%s1459 + $0x8] sm:$0xff]
    %v1463 = vsel %vm428, %v1439, 0
    %v1466 = vsel %vm428, %v1442, 0
    %v1469 = vsel %vm428, %v1445, 0
    %v1472 = vsel %vm428, %v1448, 0
    %v1475 = vsel %vm428, %v1451, 0
    %v1478 = vsel %vm428, %v1454, 0
    %v1481 = vsel %vm428, %v1457, 0
    %1483 = vmatpush.msra.mxu0 0.0
    %1484 = vmatpush.msra.mxu0 0.0
    %1485 = vmatpush.msra.mxu0 0.0
    %1486 = vmatpush.msra.mxu0 0.0
    %1487 = vmatpush.msra.mxu0 0.0
    %1488 = vmatpush.msra.mxu0 0.0
    %1489 = vmatpush.msra.mxu0 0.0
    %1490 = vmatpush.msra.mxu0 0.0
    %1491 = vmatpush.msra.mxu0 0.0
    %1492 = vmatpush.msra.mxu0 0.0
    %1493 = vmatpush.msra.mxu0 0.0
    %1494 = vmatpush.msra.mxu0 0.0
    %1495 = vmatpush.msra.mxu0 0.0
    %1496 = vmatpush.msra.mxu0 0.0
    %1497 = vmatpush.msra.mxu0 %v1461
    %1498 = vmatpush.msra.mxu0 %v1460
    %1499 = vmatmul.f32.gmra.mxu0 %v1463
    %v1500 = vpop.f32.mrf.mxu0
    %v1501 = vadd.f32 0.0, %v1500
    %1502 = vmatmul.f32.gmra.mxu0 %v1466
    %v1503 = vpop.f32.mrf.mxu0
    %v1504 = vadd.f32 0.0, %v1503
    %1505 = vmatmul.f32.gmra.mxu0 %v1469
    %v1506 = vpop.f32.mrf.mxu0
    %v1507 = vadd.f32 0.0, %v1506
    %1508 = vmatmul.f32.gmra.mxu0 %v1472
    %v1509 = vpop.f32.mrf.mxu0
    %v1510 = vadd.f32 0.0, %v1509
    %1511 = vmatmul.f32.gmra.mxu0 %v1475
    %v1512 = vpop.f32.mrf.mxu0
    %v1513 = vadd.f32 0.0, %v1512
    %1514 = vmatmul.f32.gmra.mxu0 %v1478
    %v1515 = vpop.f32.mrf.mxu0
    %v1516 = vadd.f32 0.0, %v1515
    %1517 = vmatmul.f32.gmra.mxu0 %v1481
    %v1518 = vpop.f32.mrf.mxu0
    %v1519 = vadd.f32 0.0, %v1518
    %1520 = vdwg.mxu0
    %v1522 = vsel %vm428, %v1235, 0
    %v1525 = vsel %vm428, %v1238, 0
    %v1528 = vsel %vm428, %v1241, 0
    %v1531 = vsel %vm428, %v1244, 0
    %v1534 = vsel %vm428, %v1247, 0
    %v1537 = vsel %vm428, %v1250, 0
    %v1540 = vsel %vm428, %v1253, 0
    %1542 = vmatpush.msra.mxu0 0.0
    %1543 = vmatpush.msra.mxu0 0.0
    %1544 = vmatpush.msra.mxu0 0.0
    %1545 = vmatpush.msra.mxu0 0.0
    %1546 = vmatpush.msra.mxu0 0.0
    %1547 = vmatpush.msra.mxu0 0.0
    %1548 = vmatpush.msra.mxu0 0.0
    %1549 = vmatpush.msra.mxu0 0.0
    %1550 = vmatpush.msra.mxu0 0.0
    %1551 = vmatpush.msra.mxu0 0.0
    %1552 = vmatpush.msra.mxu0 0.0
    %1553 = vmatpush.msra.mxu0 0.0
    %1554 = vmatpush.msra.mxu0 0.0
    %1555 = vmatpush.msra.mxu0 0.0
    %1556 = vmatpush.msra.mxu0 %v1256
    %1557 = vmatpush.msra.mxu0 %v1255
    %1558 = vmatmul.f32.gmra.mxu0 %v1522
    %v1559 = vpop.f32.mrf.mxu0
    %v1560 = vadd.f32 %v1501, %v1559
    %1561 = vmatmul.f32.gmra.mxu0 %v1525
    %v1562 = vpop.f32.mrf.mxu0
    %v1563 = vadd.f32 %v1504, %v1562
    %1564 = vmatmul.f32.gmra.mxu0 %v1528
    %v1565 = vpop.f32.mrf.mxu0
    %v1566 = vadd.f32 %v1507, %v1565
    %1567 = vmatmul.f32.gmra.mxu0 %v1531
    %v1568 = vpop.f32.mrf.mxu0
    %v1569 = vadd.f32 %v1510, %v1568
    %1570 = vmatmul.f32.gmra.mxu0 %v1534
    %v1571 = vpop.f32.mrf.mxu0
    %v1572 = vadd.f32 %v1513, %v1571
    %1573 = vmatmul.f32.gmra.mxu0 %v1537
    %v1574 = vpop.f32.mrf.mxu0
    %v1575 = vadd.f32 %v1516, %v1574
    %1576 = vmatmul.f32.gmra.mxu0 %v1540
    %v1577 = vpop.f32.mrf.mxu0
    %v1578 = vadd.f32 %v1519, %v1577
    %1579 = vdwg.mxu0
    %s1580 = scalar_lea.vmem %s4, 448
    %v1581 = vld [vmem:[%s1580] sm:$0xff]
    %v1582 = vld [vmem:[%s1580 + $0x8] sm:$0xff]
    %v1583 = vld [vmem:[%s1580 + $0x10] sm:$0xff]
    %v1584 = vld [vmem:[%s1580 + $0x18] sm:$0xff]
    %v1585 = vld [vmem:[%s1580 + $0x20] sm:$0xff]
    %v1586 = vld [vmem:[%s1580 + $0x28] sm:$0xff]
    %v1587 = vld [vmem:[%s1580 + $0x30] sm:$0xff]
    %v1588 = vld [vmem:[%s1580 + $0x38] sm:$0xff]
    %v1589 = vld [vmem:[%s1580 + $0x40] sm:$0xff]
    %v1590 = vld [vmem:[%s1580 + $0x48] sm:$0xff]
    %v1591 = vld [vmem:[%s1580 + $0x50] sm:$0xff]
    %v1592 = vld [vmem:[%s1580 + $0x58] sm:$0xff]
    %v1593 = vld [vmem:[%s1580 + $0x60] sm:$0xff]
    %v1594 = vld [vmem:[%s1580 + $0x68] sm:$0xff]
    %v1595 = vld [vmem:[%s1580 + $0x70] sm:$0xff]
    %v1596 = vld [vmem:[%s1580 + $0x78] sm:$0xff]
    %v1597 = vld [vmem:[%s1580 + $0x80] sm:$0xff]
    %v1598 = vld [vmem:[%s1580 + $0x88] sm:$0xff]
    %v1599 = vld [vmem:[%s1580 + $0x90] sm:$0xff]
    %v1600 = vld [vmem:[%s1580 + $0x98] sm:$0xff]
    %v1601 = vld [vmem:[%s1580 + $0xa0] sm:$0xff]
    %v1602 = vld [vmem:[%s1580 + $0xa8] sm:$0xff]
    %v1603 = vld [vmem:[%s1580 + $0xb0] sm:$0xff]
    %v1604 = vld [vmem:[%s1580 + $0xb8] sm:$0xff]
    %v1605 = vld [vmem:[%s1580 + $0xc0] sm:$0x3]
    %v1606 = vld [vmem:[%s1580 + $0xc8] sm:$0x3]
    %v1607 = vld [vmem:[%s1580 + $0xd0] sm:$0x3]
    %v1608 = vld [vmem:[%s1580 + $0xd8] sm:$0x3]
    %v1610 = vsel %vm1081, %v1584, 0
    %v1613 = vsel %vm1081, %v1588, 0
    %v1616 = vsel %vm1081, %v1592, 0
    %v1619 = vsel %vm1081, %v1596, 0
    %v1622 = vsel %vm1081, %v1600, 0
    %v1625 = vsel %vm1081, %v1604, 0
    %v1628 = vsel %vm1081, %v1608, 0
    %1630 = vmatpush.msra.mxu0 %v1047
    %1631 = vmatpush.msra.mxu0 %v1046
    %1632 = vmatpush.msra.mxu0 %v1045
    %1633 = vmatpush.msra.mxu0 %v1044
    %1634 = vmatpush.msra.mxu0 %v1043
    %1635 = vmatpush.msra.mxu0 %v1042
    %1636 = vmatpush.msra.mxu0 %v1041
    %1637 = vmatpush.msra.mxu0 %v1040
    %1638 = vmatpush.msra.mxu0 %v1039
    %1639 = vmatpush.msra.mxu0 %v1038
    %1640 = vmatpush.msra.mxu0 %v1037
    %1641 = vmatpush.msra.mxu0 %v1036
    %1642 = vmatpush.msra.mxu0 %v1035
    %1643 = vmatpush.msra.mxu0 %v1034
    %1644 = vmatpush.msra.mxu0 %v1033
    %1645 = vmatpush.msra.mxu0 %v1032
    %1646 = vmatmul.f32.gmra.mxu0 %v1581
    %v1647 = vpop.f32.mrf.mxu0
    %v1648 = vadd.f32 0.0, %v1647
    %1649 = vmatmul.f32.gmra.mxu0 %v1585
    %v1650 = vpop.f32.mrf.mxu0
    %v1651 = vadd.f32 0.0, %v1650
    %1652 = vmatmul.f32.gmra.mxu0 %v1589
    %v1653 = vpop.f32.mrf.mxu0
    %v1654 = vadd.f32 0.0, %v1653
    %1655 = vmatmul.f32.gmra.mxu0 %v1593
    %v1656 = vpop.f32.mrf.mxu0
    %v1657 = vadd.f32 0.0, %v1656
    %1658 = vmatmul.f32.gmra.mxu0 %v1597
    %v1659 = vpop.f32.mrf.mxu0
    %v1660 = vadd.f32 0.0, %v1659
    %1661 = vmatmul.f32.gmra.mxu0 %v1601
    %v1662 = vpop.f32.mrf.mxu0
    %v1663 = vadd.f32 0.0, %v1662
    %1664 = vmatmul.f32.gmra.mxu0 %v1605
    %v1665 = vpop.f32.mrf.mxu0
    %v1666 = vadd.f32 0.0, %v1665
    %1667 = vdwg.mxu0
    %1668 = vmatpush.msra.mxu0 %v1063
    %1669 = vmatpush.msra.mxu0 %v1062
    %1670 = vmatpush.msra.mxu0 %v1061
    %1671 = vmatpush.msra.mxu0 %v1060
    %1672 = vmatpush.msra.mxu0 %v1059
    %1673 = vmatpush.msra.mxu0 %v1058
    %1674 = vmatpush.msra.mxu0 %v1057
    %1675 = vmatpush.msra.mxu0 %v1056
    %1676 = vmatpush.msra.mxu0 %v1055
    %1677 = vmatpush.msra.mxu0 %v1054
    %1678 = vmatpush.msra.mxu0 %v1053
    %1679 = vmatpush.msra.mxu0 %v1052
    %1680 = vmatpush.msra.mxu0 %v1051
    %1681 = vmatpush.msra.mxu0 %v1050
    %1682 = vmatpush.msra.mxu0 %v1049
    %1683 = vmatpush.msra.mxu0 %v1048
    %1684 = vmatmul.f32.gmra.mxu0 %v1582
    %v1685 = vpop.f32.mrf.mxu0
    %v1686 = vadd.f32 %v1648, %v1685
    %1687 = vmatmul.f32.gmra.mxu0 %v1586
    %v1688 = vpop.f32.mrf.mxu0
    %v1689 = vadd.f32 %v1651, %v1688
    %1690 = vmatmul.f32.gmra.mxu0 %v1590
    %v1691 = vpop.f32.mrf.mxu0
    %v1692 = vadd.f32 %v1654, %v1691
    %1693 = vmatmul.f32.gmra.mxu0 %v1594
    %v1694 = vpop.f32.mrf.mxu0
    %v1695 = vadd.f32 %v1657, %v1694
    %1696 = vmatmul.f32.gmra.mxu0 %v1598
    %v1697 = vpop.f32.mrf.mxu0
    %v1698 = vadd.f32 %v1660, %v1697
    %1699 = vmatmul.f32.gmra.mxu0 %v1602
    %v1700 = vpop.f32.mrf.mxu0
    %v1701 = vadd.f32 %v1663, %v1700
    %1702 = vmatmul.f32.gmra.mxu0 %v1606
    %v1703 = vpop.f32.mrf.mxu0
    %v1704 = vadd.f32 %v1666, %v1703
    %1705 = vdwg.mxu0
    %1706 = vmatpush.msra.mxu0 %v1079
    %1707 = vmatpush.msra.mxu0 %v1078
    %1708 = vmatpush.msra.mxu0 %v1077
    %1709 = vmatpush.msra.mxu0 %v1076
    %1710 = vmatpush.msra.mxu0 %v1075
    %1711 = vmatpush.msra.mxu0 %v1074
    %1712 = vmatpush.msra.mxu0 %v1073
    %1713 = vmatpush.msra.mxu0 %v1072
    %1714 = vmatpush.msra.mxu0 %v1071
    %1715 = vmatpush.msra.mxu0 %v1070
    %1716 = vmatpush.msra.mxu0 %v1069
    %1717 = vmatpush.msra.mxu0 %v1068
    %1718 = vmatpush.msra.mxu0 %v1067
    %1719 = vmatpush.msra.mxu0 %v1066
    %1720 = vmatpush.msra.mxu0 %v1065
    %1721 = vmatpush.msra.mxu0 %v1064
    %1722 = vmatmul.f32.gmra.mxu0 %v1583
    %v1723 = vpop.f32.mrf.mxu0
    %v1724 = vadd.f32 %v1686, %v1723
    %1725 = vmatmul.f32.gmra.mxu0 %v1587
    %v1726 = vpop.f32.mrf.mxu0
    %v1727 = vadd.f32 %v1689, %v1726
    %1728 = vmatmul.f32.gmra.mxu0 %v1591
    %v1729 = vpop.f32.mrf.mxu0
    %v1730 = vadd.f32 %v1692, %v1729
    %1731 = vmatmul.f32.gmra.mxu0 %v1595
    %v1732 = vpop.f32.mrf.mxu0
    %v1733 = vadd.f32 %v1695, %v1732
    %1734 = vmatmul.f32.gmra.mxu0 %v1599
    %v1735 = vpop.f32.mrf.mxu0
    %v1736 = vadd.f32 %v1698, %v1735
    %1737 = vmatmul.f32.gmra.mxu0 %v1603
    %v1738 = vpop.f32.mrf.mxu0
    %v1739 = vadd.f32 %v1701, %v1738
    %1740 = vmatmul.f32.gmra.mxu0 %v1607
    %v1741 = vpop.f32.mrf.mxu0
    %v1742 = vadd.f32 %v1704, %v1741
    %1743 = vdwg.mxu0
    %1744 = vmatpush.msra.mxu0 0.0
    %1745 = vmatpush.msra.mxu0 0.0
    %1746 = vmatpush.msra.mxu0 0.0
    %1747 = vmatpush.msra.mxu0 0.0
    %1748 = vmatpush.msra.mxu0 0.0
    %1749 = vmatpush.msra.mxu0 0.0
    %1750 = vmatpush.msra.mxu0 0.0
    %1751 = vmatpush.msra.mxu0 0.0
    %1752 = vmatpush.msra.mxu0 0.0
    %1753 = vmatpush.msra.mxu0 0.0
    %1754 = vmatpush.msra.mxu0 0.0
    %1755 = vmatpush.msra.mxu0 0.0
    %1756 = vmatpush.msra.mxu0 0.0
    %1757 = vmatpush.msra.mxu0 0.0
    %1758 = vmatpush.msra.mxu0 0.0
    %1759 = vmatpush.msra.mxu0 %v1080
    %1760 = vmatmul.f32.gmra.mxu0 %v1610
    %v1761 = vpop.f32.mrf.mxu0
    %v1762 = vadd.f32 %v1724, %v1761
    %1763 = vmatmul.f32.gmra.mxu0 %v1613
    %v1764 = vpop.f32.mrf.mxu0
    %v1765 = vadd.f32 %v1727, %v1764
    %1766 = vmatmul.f32.gmra.mxu0 %v1616
    %v1767 = vpop.f32.mrf.mxu0
    %v1768 = vadd.f32 %v1730, %v1767
    %1769 = vmatmul.f32.gmra.mxu0 %v1619
    %v1770 = vpop.f32.mrf.mxu0
    %v1771 = vadd.f32 %v1733, %v1770
    %1772 = vmatmul.f32.gmra.mxu0 %v1622
    %v1773 = vpop.f32.mrf.mxu0
    %v1774 = vadd.f32 %v1736, %v1773
    %1775 = vmatmul.f32.gmra.mxu0 %v1625
    %v1776 = vpop.f32.mrf.mxu0
    %v1777 = vadd.f32 %v1739, %v1776
    %1778 = vmatmul.f32.gmra.mxu0 %v1628
    %v1779 = vpop.f32.mrf.mxu0
    %v1780 = vadd.f32 %v1742, %v1779
    %1781 = vdwg.mxu0
    %s1782 = scalar_lea.vmem %s5, 32
    %v1783 = vld [vmem:[%s1782] sm:$0xff]
    %v1784 = vld [vmem:[%s1782 + $0x8] sm:$0xff]
    %v1786 = vsel %vm428, %v1762, 0
    %v1789 = vsel %vm428, %v1765, 0
    %v1792 = vsel %vm428, %v1768, 0
    %v1795 = vsel %vm428, %v1771, 0
    %v1798 = vsel %vm428, %v1774, 0
    %v1801 = vsel %vm428, %v1777, 0
    %v1804 = vsel %vm428, %v1780, 0
    %1806 = vmatpush.msra.mxu0 0.0
    %1807 = vmatpush.msra.mxu0 0.0
    %1808 = vmatpush.msra.mxu0 0.0
    %1809 = vmatpush.msra.mxu0 0.0
    %1810 = vmatpush.msra.mxu0 0.0
    %1811 = vmatpush.msra.mxu0 0.0
    %1812 = vmatpush.msra.mxu0 0.0
    %1813 = vmatpush.msra.mxu0 0.0
    %1814 = vmatpush.msra.mxu0 0.0
    %1815 = vmatpush.msra.mxu0 0.0
    %1816 = vmatpush.msra.mxu0 0.0
    %1817 = vmatpush.msra.mxu0 0.0
    %1818 = vmatpush.msra.mxu0 0.0
    %1819 = vmatpush.msra.mxu0 0.0
    %1820 = vmatpush.msra.mxu0 %v1784
    %1821 = vmatpush.msra.mxu0 %v1783
    %1822 = vmatmul.f32.gmra.mxu0 %v1786
    %v1823 = vpop.f32.mrf.mxu0
    %v1824 = vadd.f32 0.0, %v1823
    %1825 = vmatmul.f32.gmra.mxu0 %v1789
    %v1826 = vpop.f32.mrf.mxu0
    %v1827 = vadd.f32 0.0, %v1826
    %1828 = vmatmul.f32.gmra.mxu0 %v1792
    %v1829 = vpop.f32.mrf.mxu0
    %v1830 = vadd.f32 0.0, %v1829
    %1831 = vmatmul.f32.gmra.mxu0 %v1795
    %v1832 = vpop.f32.mrf.mxu0
    %v1833 = vadd.f32 0.0, %v1832
    %1834 = vmatmul.f32.gmra.mxu0 %v1798
    %v1835 = vpop.f32.mrf.mxu0
    %v1836 = vadd.f32 0.0, %v1835
    %1837 = vmatmul.f32.gmra.mxu0 %v1801
    %v1838 = vpop.f32.mrf.mxu0
    %v1839 = vadd.f32 0.0, %v1838
    %1840 = vmatmul.f32.gmra.mxu0 %v1804
    %v1841 = vpop.f32.mrf.mxu0
    %v1842 = vadd.f32 0.0, %v1841
    %1843 = vdwg.mxu0
    %v1844 = vadd.f32 %v1560, %v1824
    %v1845 = vadd.f32 %v1563, %v1827
    %v1846 = vadd.f32 %v1566, %v1830
    %v1847 = vadd.f32 %v1569, %v1833
    %v1848 = vadd.f32 %v1572, %v1836
    %v1849 = vadd.f32 %v1575, %v1839
    %v1850 = vadd.f32 %v1578, %v1842
    %s1851 = scalar_lea.vmem %s4, 672
    %v1852 = vld [vmem:[%s1851] sm:$0xff]
    %v1853 = vld [vmem:[%s1851 + $0x8] sm:$0xff]
    %v1854 = vld [vmem:[%s1851 + $0x10] sm:$0xff]
    %v1855 = vld [vmem:[%s1851 + $0x18] sm:$0xff]
    %v1856 = vld [vmem:[%s1851 + $0x20] sm:$0xff]
    %v1857 = vld [vmem:[%s1851 + $0x28] sm:$0xff]
    %v1858 = vld [vmem:[%s1851 + $0x30] sm:$0xff]
    %v1859 = vld [vmem:[%s1851 + $0x38] sm:$0xff]
    %v1860 = vld [vmem:[%s1851 + $0x40] sm:$0xff]
    %v1861 = vld [vmem:[%s1851 + $0x48] sm:$0xff]
    %v1862 = vld [vmem:[%s1851 + $0x50] sm:$0xff]
    %v1863 = vld [vmem:[%s1851 + $0x58] sm:$0xff]
    %v1864 = vld [vmem:[%s1851 + $0x60] sm:$0xff]
    %v1865 = vld [vmem:[%s1851 + $0x68] sm:$0xff]
    %v1866 = vld [vmem:[%s1851 + $0x70] sm:$0xff]
    %v1867 = vld [vmem:[%s1851 + $0x78] sm:$0xff]
    %v1868 = vld [vmem:[%s1851 + $0x80] sm:$0xff]
    %v1869 = vld [vmem:[%s1851 + $0x88] sm:$0xff]
    %v1870 = vld [vmem:[%s1851 + $0x90] sm:$0xff]
    %v1871 = vld [vmem:[%s1851 + $0x98] sm:$0xff]
    %v1872 = vld [vmem:[%s1851 + $0xa0] sm:$0xff]
    %v1873 = vld [vmem:[%s1851 + $0xa8] sm:$0xff]
    %v1874 = vld [vmem:[%s1851 + $0xb0] sm:$0xff]
    %v1875 = vld [vmem:[%s1851 + $0xb8] sm:$0xff]
    %v1876 = vld [vmem:[%s1851 + $0xc0] sm:$0x3]
    %v1877 = vld [vmem:[%s1851 + $0xc8] sm:$0x3]
    %v1878 = vld [vmem:[%s1851 + $0xd0] sm:$0x3]
    %v1879 = vld [vmem:[%s1851 + $0xd8] sm:$0x3]
    %v1881 = vsel %vm1081, %v1855, 0
    %v1884 = vsel %vm1081, %v1859, 0
    %v1887 = vsel %vm1081, %v1863, 0
    %v1890 = vsel %vm1081, %v1867, 0
    %v1893 = vsel %vm1081, %v1871, 0
    %v1896 = vsel %vm1081, %v1875, 0
    %v1899 = vsel %vm1081, %v1879, 0
    %1901 = vmatpush.msra.mxu0 %v1047
    %1902 = vmatpush.msra.mxu0 %v1046
    %1903 = vmatpush.msra.mxu0 %v1045
    %1904 = vmatpush.msra.mxu0 %v1044
    %1905 = vmatpush.msra.mxu0 %v1043
    %1906 = vmatpush.msra.mxu0 %v1042
    %1907 = vmatpush.msra.mxu0 %v1041
    %1908 = vmatpush.msra.mxu0 %v1040
    %1909 = vmatpush.msra.mxu0 %v1039
    %1910 = vmatpush.msra.mxu0 %v1038
    %1911 = vmatpush.msra.mxu0 %v1037
    %1912 = vmatpush.msra.mxu0 %v1036
    %1913 = vmatpush.msra.mxu0 %v1035
    %1914 = vmatpush.msra.mxu0 %v1034
    %1915 = vmatpush.msra.mxu0 %v1033
    %1916 = vmatpush.msra.mxu0 %v1032
    %1917 = vmatmul.f32.gmra.mxu0 %v1852
    %v1918 = vpop.f32.mrf.mxu0
    %v1919 = vadd.f32 0.0, %v1918
    %1920 = vmatmul.f32.gmra.mxu0 %v1856
    %v1921 = vpop.f32.mrf.mxu0
    %v1922 = vadd.f32 0.0, %v1921
    %1923 = vmatmul.f32.gmra.mxu0 %v1860
    %v1924 = vpop.f32.mrf.mxu0
    %v1925 = vadd.f32 0.0, %v1924
    %1926 = vmatmul.f32.gmra.mxu0 %v1864
    %v1927 = vpop.f32.mrf.mxu0
    %v1928 = vadd.f32 0.0, %v1927
    %1929 = vmatmul.f32.gmra.mxu0 %v1868
    %v1930 = vpop.f32.mrf.mxu0
    %v1931 = vadd.f32 0.0, %v1930
    %1932 = vmatmul.f32.gmra.mxu0 %v1872
    %v1933 = vpop.f32.mrf.mxu0
    %v1934 = vadd.f32 0.0, %v1933
    %1935 = vmatmul.f32.gmra.mxu0 %v1876
    %v1936 = vpop.f32.mrf.mxu0
    %v1937 = vadd.f32 0.0, %v1936
    %1938 = vdwg.mxu0
    %1939 = vmatpush.msra.mxu0 %v1063
    %1940 = vmatpush.msra.mxu0 %v1062
    %1941 = vmatpush.msra.mxu0 %v1061
    %1942 = vmatpush.msra.mxu0 %v1060
    %1943 = vmatpush.msra.mxu0 %v1059
    %1944 = vmatpush.msra.mxu0 %v1058
    %1945 = vmatpush.msra.mxu0 %v1057
    %1946 = vmatpush.msra.mxu0 %v1056
    %1947 = vmatpush.msra.mxu0 %v1055
    %1948 = vmatpush.msra.mxu0 %v1054
    %1949 = vmatpush.msra.mxu0 %v1053
    %1950 = vmatpush.msra.mxu0 %v1052
    %1951 = vmatpush.msra.mxu0 %v1051
    %1952 = vmatpush.msra.mxu0 %v1050
    %1953 = vmatpush.msra.mxu0 %v1049
    %1954 = vmatpush.msra.mxu0 %v1048
    %1955 = vmatmul.f32.gmra.mxu0 %v1853
    %v1956 = vpop.f32.mrf.mxu0
    %v1957 = vadd.f32 %v1919, %v1956
    %1958 = vmatmul.f32.gmra.mxu0 %v1857
    %v1959 = vpop.f32.mrf.mxu0
    %v1960 = vadd.f32 %v1922, %v1959
    %1961 = vmatmul.f32.gmra.mxu0 %v1861
    %v1962 = vpop.f32.mrf.mxu0
    %v1963 = vadd.f32 %v1925, %v1962
    %1964 = vmatmul.f32.gmra.mxu0 %v1865
    %v1965 = vpop.f32.mrf.mxu0
    %v1966 = vadd.f32 %v1928, %v1965
    %1967 = vmatmul.f32.gmra.mxu0 %v1869
    %v1968 = vpop.f32.mrf.mxu0
    %v1969 = vadd.f32 %v1931, %v1968
    %1970 = vmatmul.f32.gmra.mxu0 %v1873
    %v1971 = vpop.f32.mrf.mxu0
    %v1972 = vadd.f32 %v1934, %v1971
    %1973 = vmatmul.f32.gmra.mxu0 %v1877
    %v1974 = vpop.f32.mrf.mxu0
    %v1975 = vadd.f32 %v1937, %v1974
    %1976 = vdwg.mxu0
    %1977 = vmatpush.msra.mxu0 %v1079
    %1978 = vmatpush.msra.mxu0 %v1078
    %1979 = vmatpush.msra.mxu0 %v1077
    %1980 = vmatpush.msra.mxu0 %v1076
    %1981 = vmatpush.msra.mxu0 %v1075
    %1982 = vmatpush.msra.mxu0 %v1074
    %1983 = vmatpush.msra.mxu0 %v1073
    %1984 = vmatpush.msra.mxu0 %v1072
    %1985 = vmatpush.msra.mxu0 %v1071
    %1986 = vmatpush.msra.mxu0 %v1070
    %1987 = vmatpush.msra.mxu0 %v1069
    %1988 = vmatpush.msra.mxu0 %v1068
    %1989 = vmatpush.msra.mxu0 %v1067
    %1990 = vmatpush.msra.mxu0 %v1066
    %1991 = vmatpush.msra.mxu0 %v1065
    %1992 = vmatpush.msra.mxu0 %v1064
    %1993 = vmatmul.f32.gmra.mxu0 %v1854
    %v1994 = vpop.f32.mrf.mxu0
    %v1995 = vadd.f32 %v1957, %v1994
    %1996 = vmatmul.f32.gmra.mxu0 %v1858
    %v1997 = vpop.f32.mrf.mxu0
    %v1998 = vadd.f32 %v1960, %v1997
    %1999 = vmatmul.f32.gmra.mxu0 %v1862
    %v2000 = vpop.f32.mrf.mxu0
    %v2001 = vadd.f32 %v1963, %v2000
    %2002 = vmatmul.f32.gmra.mxu0 %v1866
    %v2003 = vpop.f32.mrf.mxu0
    %v2004 = vadd.f32 %v1966, %v2003
    %2005 = vmatmul.f32.gmra.mxu0 %v1870
    %v2006 = vpop.f32.mrf.mxu0
    %v2007 = vadd.f32 %v1969, %v2006
    %2008 = vmatmul.f32.gmra.mxu0 %v1874
    %v2009 = vpop.f32.mrf.mxu0
    %v2010 = vadd.f32 %v1972, %v2009
    %2011 = vmatmul.f32.gmra.mxu0 %v1878
    %v2012 = vpop.f32.mrf.mxu0
    %v2013 = vadd.f32 %v1975, %v2012
    %2014 = vdwg.mxu0
    %2015 = vmatpush.msra.mxu0 0.0
    %2016 = vmatpush.msra.mxu0 0.0
    %2017 = vmatpush.msra.mxu0 0.0
    %2018 = vmatpush.msra.mxu0 0.0
    %2019 = vmatpush.msra.mxu0 0.0
    %2020 = vmatpush.msra.mxu0 0.0
    %2021 = vmatpush.msra.mxu0 0.0
    %2022 = vmatpush.msra.mxu0 0.0
    %2023 = vmatpush.msra.mxu0 0.0
    %2024 = vmatpush.msra.mxu0 0.0
    %2025 = vmatpush.msra.mxu0 0.0
    %2026 = vmatpush.msra.mxu0 0.0
    %2027 = vmatpush.msra.mxu0 0.0
    %2028 = vmatpush.msra.mxu0 0.0
    %2029 = vmatpush.msra.mxu0 0.0
    %2030 = vmatpush.msra.mxu0 %v1080
    %2031 = vmatmul.f32.gmra.mxu0 %v1881
    %v2032 = vpop.f32.mrf.mxu0
    %v2033 = vadd.f32 %v1995, %v2032
    %2034 = vmatmul.f32.gmra.mxu0 %v1884
    %v2035 = vpop.f32.mrf.mxu0
    %v2036 = vadd.f32 %v1998, %v2035
    %2037 = vmatmul.f32.gmra.mxu0 %v1887
    %v2038 = vpop.f32.mrf.mxu0
    %v2039 = vadd.f32 %v2001, %v2038
    %2040 = vmatmul.f32.gmra.mxu0 %v1890
    %v2041 = vpop.f32.mrf.mxu0
    %v2042 = vadd.f32 %v2004, %v2041
    %2043 = vmatmul.f32.gmra.mxu0 %v1893
    %v2044 = vpop.f32.mrf.mxu0
    %v2045 = vadd.f32 %v2007, %v2044
    %2046 = vmatmul.f32.gmra.mxu0 %v1896
    %v2047 = vpop.f32.mrf.mxu0
    %v2048 = vadd.f32 %v2010, %v2047
    %2049 = vmatmul.f32.gmra.mxu0 %v1899
    %v2050 = vpop.f32.mrf.mxu0
    %v2051 = vadd.f32 %v2013, %v2050
    %2052 = vdwg.mxu0
    %s2053 = scalar_lea.vmem %s5, 48
    %v2054 = vld [vmem:[%s2053] sm:$0xff]
    %v2055 = vld [vmem:[%s2053 + $0x8] sm:$0xff]
    %v2057 = vsel %vm428, %v2033, 0
    %v2060 = vsel %vm428, %v2036, 0
    %v2063 = vsel %vm428, %v2039, 0
    %v2066 = vsel %vm428, %v2042, 0
    %v2069 = vsel %vm428, %v2045, 0
    %v2072 = vsel %vm428, %v2048, 0
    %v2075 = vsel %vm428, %v2051, 0
    %2077 = vmatpush.msra.mxu0 0.0
    %2078 = vmatpush.msra.mxu0 0.0
    %2079 = vmatpush.msra.mxu0 0.0
    %2080 = vmatpush.msra.mxu0 0.0
    %2081 = vmatpush.msra.mxu0 0.0
    %2082 = vmatpush.msra.mxu0 0.0
    %2083 = vmatpush.msra.mxu0 0.0
    %2084 = vmatpush.msra.mxu0 0.0
    %2085 = vmatpush.msra.mxu0 0.0
    %2086 = vmatpush.msra.mxu0 0.0
    %2087 = vmatpush.msra.mxu0 0.0
    %2088 = vmatpush.msra.mxu0 0.0
    %2089 = vmatpush.msra.mxu0 0.0
    %2090 = vmatpush.msra.mxu0 0.0
    %2091 = vmatpush.msra.mxu0 %v2055
    %2092 = vmatpush.msra.mxu0 %v2054
    %2093 = vmatmul.f32.gmra.mxu0 %v2057
    %v2094 = vpop.f32.mrf.mxu0
    %v2095 = vadd.f32 0.0, %v2094
    %2096 = vmatmul.f32.gmra.mxu0 %v2060
    %v2097 = vpop.f32.mrf.mxu0
    %v2098 = vadd.f32 0.0, %v2097
    %2099 = vmatmul.f32.gmra.mxu0 %v2063
    %v2100 = vpop.f32.mrf.mxu0
    %v2101 = vadd.f32 0.0, %v2100
    %2102 = vmatmul.f32.gmra.mxu0 %v2066
    %v2103 = vpop.f32.mrf.mxu0
    %v2104 = vadd.f32 0.0, %v2103
    %2105 = vmatmul.f32.gmra.mxu0 %v2069
    %v2106 = vpop.f32.mrf.mxu0
    %v2107 = vadd.f32 0.0, %v2106
    %2108 = vmatmul.f32.gmra.mxu0 %v2072
    %v2109 = vpop.f32.mrf.mxu0
    %v2110 = vadd.f32 0.0, %v2109
    %2111 = vmatmul.f32.gmra.mxu0 %v2075
    %v2112 = vpop.f32.mrf.mxu0
    %v2113 = vadd.f32 0.0, %v2112
    %2114 = vdwg.mxu0
    %v2115 = vadd.f32 %v1844, %v2095
    %v2116 = vadd.f32 %v1845, %v2098
    %v2117 = vadd.f32 %v1846, %v2101
    %v2118 = vadd.f32 %v1847, %v2104
    %v2119 = vadd.f32 %v1848, %v2107
    %v2120 = vadd.f32 %v1849, %v2110
    %v2121 = vadd.f32 %v1850, %v2113
    %s2122 = scalar_lea.vmem %s4, 896
    %v2123 = vld [vmem:[%s2122] sm:$0xff]
    %v2124 = vld [vmem:[%s2122 + $0x8] sm:$0xff]
    %v2125 = vld [vmem:[%s2122 + $0x10] sm:$0xff]
    %v2126 = vld [vmem:[%s2122 + $0x18] sm:$0xff]
    %v2127 = vld [vmem:[%s2122 + $0x20] sm:$0xff]
    %v2128 = vld [vmem:[%s2122 + $0x28] sm:$0xff]
    %v2129 = vld [vmem:[%s2122 + $0x30] sm:$0xff]
    %v2130 = vld [vmem:[%s2122 + $0x38] sm:$0xff]
    %v2131 = vld [vmem:[%s2122 + $0x40] sm:$0xff]
    %v2132 = vld [vmem:[%s2122 + $0x48] sm:$0xff]
    %v2133 = vld [vmem:[%s2122 + $0x50] sm:$0xff]
    %v2134 = vld [vmem:[%s2122 + $0x58] sm:$0xff]
    %v2135 = vld [vmem:[%s2122 + $0x60] sm:$0xff]
    %v2136 = vld [vmem:[%s2122 + $0x68] sm:$0xff]
    %v2137 = vld [vmem:[%s2122 + $0x70] sm:$0xff]
    %v2138 = vld [vmem:[%s2122 + $0x78] sm:$0xff]
    %v2139 = vld [vmem:[%s2122 + $0x80] sm:$0xff]
    %v2140 = vld [vmem:[%s2122 + $0x88] sm:$0xff]
    %v2141 = vld [vmem:[%s2122 + $0x90] sm:$0xff]
    %v2142 = vld [vmem:[%s2122 + $0x98] sm:$0xff]
    %v2143 = vld [vmem:[%s2122 + $0xa0] sm:$0xff]
    %v2144 = vld [vmem:[%s2122 + $0xa8] sm:$0xff]
    %v2145 = vld [vmem:[%s2122 + $0xb0] sm:$0xff]
    %v2146 = vld [vmem:[%s2122 + $0xb8] sm:$0xff]
    %v2147 = vld [vmem:[%s2122 + $0xc0] sm:$0x3]
    %v2148 = vld [vmem:[%s2122 + $0xc8] sm:$0x3]
    %v2149 = vld [vmem:[%s2122 + $0xd0] sm:$0x3]
    %v2150 = vld [vmem:[%s2122 + $0xd8] sm:$0x3]
    %v2152 = vsel %vm1081, %v2126, 0
    %v2155 = vsel %vm1081, %v2130, 0
    %v2158 = vsel %vm1081, %v2134, 0
    %v2161 = vsel %vm1081, %v2138, 0
    %v2164 = vsel %vm1081, %v2142, 0
    %v2167 = vsel %vm1081, %v2146, 0
    %v2170 = vsel %vm1081, %v2150, 0
    %2172 = vmatpush.msra.mxu0 %v1047
    %2173 = vmatpush.msra.mxu0 %v1046
    %2174 = vmatpush.msra.mxu0 %v1045
    %2175 = vmatpush.msra.mxu0 %v1044
    %2176 = vmatpush.msra.mxu0 %v1043
    %2177 = vmatpush.msra.mxu0 %v1042
    %2178 = vmatpush.msra.mxu0 %v1041
    %2179 = vmatpush.msra.mxu0 %v1040
    %2180 = vmatpush.msra.mxu0 %v1039
    %2181 = vmatpush.msra.mxu0 %v1038
    %2182 = vmatpush.msra.mxu0 %v1037
    %2183 = vmatpush.msra.mxu0 %v1036
    %2184 = vmatpush.msra.mxu0 %v1035
    %2185 = vmatpush.msra.mxu0 %v1034
    %2186 = vmatpush.msra.mxu0 %v1033
    %2187 = vmatpush.msra.mxu0 %v1032
    %2188 = vmatmul.f32.gmra.mxu0 %v2123
    %v2189 = vpop.f32.mrf.mxu0
    %v2190 = vadd.f32 0.0, %v2189
    %2191 = vmatmul.f32.gmra.mxu0 %v2127
    %v2192 = vpop.f32.mrf.mxu0
    %v2193 = vadd.f32 0.0, %v2192
    %2194 = vmatmul.f32.gmra.mxu0 %v2131
    %v2195 = vpop.f32.mrf.mxu0
    %v2196 = vadd.f32 0.0, %v2195
    %2197 = vmatmul.f32.gmra.mxu0 %v2135
    %v2198 = vpop.f32.mrf.mxu0
    %v2199 = vadd.f32 0.0, %v2198
    %2200 = vmatmul.f32.gmra.mxu0 %v2139
    %v2201 = vpop.f32.mrf.mxu0
    %v2202 = vadd.f32 0.0, %v2201
    %2203 = vmatmul.f32.gmra.mxu0 %v2143
    %v2204 = vpop.f32.mrf.mxu0
    %v2205 = vadd.f32 0.0, %v2204
    %2206 = vmatmul.f32.gmra.mxu0 %v2147
    %v2207 = vpop.f32.mrf.mxu0
    %v2208 = vadd.f32 0.0, %v2207
    %2209 = vdwg.mxu0
    %2210 = vmatpush.msra.mxu0 %v1063
    %2211 = vmatpush.msra.mxu0 %v1062
    %2212 = vmatpush.msra.mxu0 %v1061
    %2213 = vmatpush.msra.mxu0 %v1060
    %2214 = vmatpush.msra.mxu0 %v1059
    %2215 = vmatpush.msra.mxu0 %v1058
    %2216 = vmatpush.msra.mxu0 %v1057
    %2217 = vmatpush.msra.mxu0 %v1056
    %2218 = vmatpush.msra.mxu0 %v1055
    %2219 = vmatpush.msra.mxu0 %v1054
    %2220 = vmatpush.msra.mxu0 %v1053
    %2221 = vmatpush.msra.mxu0 %v1052
    %2222 = vmatpush.msra.mxu0 %v1051
    %2223 = vmatpush.msra.mxu0 %v1050
    %2224 = vmatpush.msra.mxu0 %v1049
    %2225 = vmatpush.msra.mxu0 %v1048
    %2226 = vmatmul.f32.gmra.mxu0 %v2124
    %v2227 = vpop.f32.mrf.mxu0
    %v2228 = vadd.f32 %v2190, %v2227
    %2229 = vmatmul.f32.gmra.mxu0 %v2128
    %v2230 = vpop.f32.mrf.mxu0
    %v2231 = vadd.f32 %v2193, %v2230
    %2232 = vmatmul.f32.gmra.mxu0 %v2132
    %v2233 = vpop.f32.mrf.mxu0
    %v2234 = vadd.f32 %v2196, %v2233
    %2235 = vmatmul.f32.gmra.mxu0 %v2136
    %v2236 = vpop.f32.mrf.mxu0
    %v2237 = vadd.f32 %v2199, %v2236
    %2238 = vmatmul.f32.gmra.mxu0 %v2140
    %v2239 = vpop.f32.mrf.mxu0
    %v2240 = vadd.f32 %v2202, %v2239
    %2241 = vmatmul.f32.gmra.mxu0 %v2144
    %v2242 = vpop.f32.mrf.mxu0
    %v2243 = vadd.f32 %v2205, %v2242
    %2244 = vmatmul.f32.gmra.mxu0 %v2148
    %v2245 = vpop.f32.mrf.mxu0
    %v2246 = vadd.f32 %v2208, %v2245
    %2247 = vdwg.mxu0
    %2248 = vmatpush.msra.mxu0 %v1079
    %2249 = vmatpush.msra.mxu0 %v1078
    %2250 = vmatpush.msra.mxu0 %v1077
    %2251 = vmatpush.msra.mxu0 %v1076
    %2252 = vmatpush.msra.mxu0 %v1075
    %2253 = vmatpush.msra.mxu0 %v1074
    %2254 = vmatpush.msra.mxu0 %v1073
    %2255 = vmatpush.msra.mxu0 %v1072
    %2256 = vmatpush.msra.mxu0 %v1071
    %2257 = vmatpush.msra.mxu0 %v1070
    %2258 = vmatpush.msra.mxu0 %v1069
    %2259 = vmatpush.msra.mxu0 %v1068
    %2260 = vmatpush.msra.mxu0 %v1067
    %2261 = vmatpush.msra.mxu0 %v1066
    %2262 = vmatpush.msra.mxu0 %v1065
    %2263 = vmatpush.msra.mxu0 %v1064
    %2264 = vmatmul.f32.gmra.mxu0 %v2125
    %v2265 = vpop.f32.mrf.mxu0
    %v2266 = vadd.f32 %v2228, %v2265
    %2267 = vmatmul.f32.gmra.mxu0 %v2129
    %v2268 = vpop.f32.mrf.mxu0
    %v2269 = vadd.f32 %v2231, %v2268
    %2270 = vmatmul.f32.gmra.mxu0 %v2133
    %v2271 = vpop.f32.mrf.mxu0
    %v2272 = vadd.f32 %v2234, %v2271
    %2273 = vmatmul.f32.gmra.mxu0 %v2137
    %v2274 = vpop.f32.mrf.mxu0
    %v2275 = vadd.f32 %v2237, %v2274
    %2276 = vmatmul.f32.gmra.mxu0 %v2141
    %v2277 = vpop.f32.mrf.mxu0
    %v2278 = vadd.f32 %v2240, %v2277
    %2279 = vmatmul.f32.gmra.mxu0 %v2145
    %v2280 = vpop.f32.mrf.mxu0
    %v2281 = vadd.f32 %v2243, %v2280
    %2282 = vmatmul.f32.gmra.mxu0 %v2149
    %v2283 = vpop.f32.mrf.mxu0
    %v2284 = vadd.f32 %v2246, %v2283
    %2285 = vdwg.mxu0
    %2286 = vmatpush.msra.mxu0 0.0
    %2287 = vmatpush.msra.mxu0 0.0
    %2288 = vmatpush.msra.mxu0 0.0
    %2289 = vmatpush.msra.mxu0 0.0
    %2290 = vmatpush.msra.mxu0 0.0
    %2291 = vmatpush.msra.mxu0 0.0
    %2292 = vmatpush.msra.mxu0 0.0
    %2293 = vmatpush.msra.mxu0 0.0
    %2294 = vmatpush.msra.mxu0 0.0
    %2295 = vmatpush.msra.mxu0 0.0
    %2296 = vmatpush.msra.mxu0 0.0
    %2297 = vmatpush.msra.mxu0 0.0
    %2298 = vmatpush.msra.mxu0 0.0
    %2299 = vmatpush.msra.mxu0 0.0
    %2300 = vmatpush.msra.mxu0 0.0
    %2301 = vmatpush.msra.mxu0 %v1080
    %2302 = vmatmul.f32.gmra.mxu0 %v2152
    %v2303 = vpop.f32.mrf.mxu0
    %v2304 = vadd.f32 %v2266, %v2303
    %2305 = vmatmul.f32.gmra.mxu0 %v2155
    %v2306 = vpop.f32.mrf.mxu0
    %v2307 = vadd.f32 %v2269, %v2306
    %2308 = vmatmul.f32.gmra.mxu0 %v2158
    %v2309 = vpop.f32.mrf.mxu0
    %v2310 = vadd.f32 %v2272, %v2309
    %2311 = vmatmul.f32.gmra.mxu0 %v2161
    %v2312 = vpop.f32.mrf.mxu0
    %v2313 = vadd.f32 %v2275, %v2312
    %2314 = vmatmul.f32.gmra.mxu0 %v2164
    %v2315 = vpop.f32.mrf.mxu0
    %v2316 = vadd.f32 %v2278, %v2315
    %2317 = vmatmul.f32.gmra.mxu0 %v2167
    %v2318 = vpop.f32.mrf.mxu0
    %v2319 = vadd.f32 %v2281, %v2318
    %2320 = vmatmul.f32.gmra.mxu0 %v2170
    %v2321 = vpop.f32.mrf.mxu0
    %v2322 = vadd.f32 %v2284, %v2321
    %2323 = vdwg.mxu0
    %s2324 = scalar_lea.vmem %s5, 64
    %v2325 = vld [vmem:[%s2324] sm:$0xff]
    %v2326 = vld [vmem:[%s2324 + $0x8] sm:$0xff]
    %v2328 = vsel %vm428, %v2304, 0
    %v2331 = vsel %vm428, %v2307, 0
    %v2334 = vsel %vm428, %v2310, 0
    %v2337 = vsel %vm428, %v2313, 0
    %v2340 = vsel %vm428, %v2316, 0
    %v2343 = vsel %vm428, %v2319, 0
    %v2346 = vsel %vm428, %v2322, 0
    %2348 = vmatpush.msra.mxu0 0.0
    %2349 = vmatpush.msra.mxu0 0.0
    %2350 = vmatpush.msra.mxu0 0.0
    %2351 = vmatpush.msra.mxu0 0.0
    %2352 = vmatpush.msra.mxu0 0.0
    %2353 = vmatpush.msra.mxu0 0.0
    %2354 = vmatpush.msra.mxu0 0.0
    %2355 = vmatpush.msra.mxu0 0.0
    %2356 = vmatpush.msra.mxu0 0.0
    %2357 = vmatpush.msra.mxu0 0.0
    %2358 = vmatpush.msra.mxu0 0.0
    %2359 = vmatpush.msra.mxu0 0.0
    %2360 = vmatpush.msra.mxu0 0.0
    %2361 = vmatpush.msra.mxu0 0.0
    %2362 = vmatpush.msra.mxu0 %v2326
    %2363 = vmatpush.msra.mxu0 %v2325
    %2364 = vmatmul.f32.gmra.mxu0 %v2328
    %v2365 = vpop.f32.mrf.mxu0
    %v2366 = vadd.f32 0.0, %v2365
    %2367 = vmatmul.f32.gmra.mxu0 %v2331
    %v2368 = vpop.f32.mrf.mxu0
    %v2369 = vadd.f32 0.0, %v2368
    %2370 = vmatmul.f32.gmra.mxu0 %v2334
    %v2371 = vpop.f32.mrf.mxu0
    %v2372 = vadd.f32 0.0, %v2371
    %2373 = vmatmul.f32.gmra.mxu0 %v2337
    %v2374 = vpop.f32.mrf.mxu0
    %v2375 = vadd.f32 0.0, %v2374
    %2376 = vmatmul.f32.gmra.mxu0 %v2340
    %v2377 = vpop.f32.mrf.mxu0
    %v2378 = vadd.f32 0.0, %v2377
    %2379 = vmatmul.f32.gmra.mxu0 %v2343
    %v2380 = vpop.f32.mrf.mxu0
    %v2381 = vadd.f32 0.0, %v2380
    %2382 = vmatmul.f32.gmra.mxu0 %v2346
    %v2383 = vpop.f32.mrf.mxu0
    %v2384 = vadd.f32 0.0, %v2383
    %2385 = vdwg.mxu0
    %v2386 = vadd.f32 %v2115, %v2366
    %v2387 = vadd.f32 %v2116, %v2369
    %v2388 = vadd.f32 %v2117, %v2372
    %v2389 = vadd.f32 %v2118, %v2375
    %v2390 = vadd.f32 %v2119, %v2378
    %v2391 = vadd.f32 %v2120, %v2381
    %v2392 = vadd.f32 %v2121, %v2384
    %s2393 = scalar_lea.vmem %s4, 1120
    %v2394 = vld [vmem:[%s2393] sm:$0xff]
    %v2395 = vld [vmem:[%s2393 + $0x8] sm:$0xff]
    %v2396 = vld [vmem:[%s2393 + $0x10] sm:$0xff]
    %v2397 = vld [vmem:[%s2393 + $0x18] sm:$0xff]
    %v2398 = vld [vmem:[%s2393 + $0x20] sm:$0xff]
    %v2399 = vld [vmem:[%s2393 + $0x28] sm:$0xff]
    %v2400 = vld [vmem:[%s2393 + $0x30] sm:$0xff]
    %v2401 = vld [vmem:[%s2393 + $0x38] sm:$0xff]
    %v2402 = vld [vmem:[%s2393 + $0x40] sm:$0xff]
    %v2403 = vld [vmem:[%s2393 + $0x48] sm:$0xff]
    %v2404 = vld [vmem:[%s2393 + $0x50] sm:$0xff]
    %v2405 = vld [vmem:[%s2393 + $0x58] sm:$0xff]
    %v2406 = vld [vmem:[%s2393 + $0x60] sm:$0xff]
    %v2407 = vld [vmem:[%s2393 + $0x68] sm:$0xff]
    %v2408 = vld [vmem:[%s2393 + $0x70] sm:$0xff]
    %v2409 = vld [vmem:[%s2393 + $0x78] sm:$0xff]
    %v2410 = vld [vmem:[%s2393 + $0x80] sm:$0xff]
    %v2411 = vld [vmem:[%s2393 + $0x88] sm:$0xff]
    %v2412 = vld [vmem:[%s2393 + $0x90] sm:$0xff]
    %v2413 = vld [vmem:[%s2393 + $0x98] sm:$0xff]
    %v2414 = vld [vmem:[%s2393 + $0xa0] sm:$0xff]
    %v2415 = vld [vmem:[%s2393 + $0xa8] sm:$0xff]
    %v2416 = vld [vmem:[%s2393 + $0xb0] sm:$0xff]
    %v2417 = vld [vmem:[%s2393 + $0xb8] sm:$0xff]
    %v2418 = vld [vmem:[%s2393 + $0xc0] sm:$0x3]
    %v2419 = vld [vmem:[%s2393 + $0xc8] sm:$0x3]
    %v2420 = vld [vmem:[%s2393 + $0xd0] sm:$0x3]
    %v2421 = vld [vmem:[%s2393 + $0xd8] sm:$0x3]
    %v2423 = vsel %vm1081, %v2397, 0
    %v2426 = vsel %vm1081, %v2401, 0
    %v2429 = vsel %vm1081, %v2405, 0
    %v2432 = vsel %vm1081, %v2409, 0
    %v2435 = vsel %vm1081, %v2413, 0
    %v2438 = vsel %vm1081, %v2417, 0
    %v2441 = vsel %vm1081, %v2421, 0
    %2443 = vmatpush.msra.mxu0 %v1047
    %2444 = vmatpush.msra.mxu0 %v1046
    %2445 = vmatpush.msra.mxu0 %v1045
    %2446 = vmatpush.msra.mxu0 %v1044
    %2447 = vmatpush.msra.mxu0 %v1043
    %2448 = vmatpush.msra.mxu0 %v1042
    %2449 = vmatpush.msra.mxu0 %v1041
    %2450 = vmatpush.msra.mxu0 %v1040
    %2451 = vmatpush.msra.mxu0 %v1039
    %2452 = vmatpush.msra.mxu0 %v1038
    %2453 = vmatpush.msra.mxu0 %v1037
    %2454 = vmatpush.msra.mxu0 %v1036
    %2455 = vmatpush.msra.mxu0 %v1035
    %2456 = vmatpush.msra.mxu0 %v1034
    %2457 = vmatpush.msra.mxu0 %v1033
    %2458 = vmatpush.msra.mxu0 %v1032
    %2459 = vmatmul.f32.gmra.mxu0 %v2394
    %v2460 = vpop.f32.mrf.mxu0
    %v2461 = vadd.f32 0.0, %v2460
    %2462 = vmatmul.f32.gmra.mxu0 %v2398
    %v2463 = vpop.f32.mrf.mxu0
    %v2464 = vadd.f32 0.0, %v2463
    %2465 = vmatmul.f32.gmra.mxu0 %v2402
    %v2466 = vpop.f32.mrf.mxu0
    %v2467 = vadd.f32 0.0, %v2466
    %2468 = vmatmul.f32.gmra.mxu0 %v2406
    %v2469 = vpop.f32.mrf.mxu0
    %v2470 = vadd.f32 0.0, %v2469
    %2471 = vmatmul.f32.gmra.mxu0 %v2410
    %v2472 = vpop.f32.mrf.mxu0
    %v2473 = vadd.f32 0.0, %v2472
    %2474 = vmatmul.f32.gmra.mxu0 %v2414
    %v2475 = vpop.f32.mrf.mxu0
    %v2476 = vadd.f32 0.0, %v2475
    %2477 = vmatmul.f32.gmra.mxu0 %v2418
    %v2478 = vpop.f32.mrf.mxu0
    %v2479 = vadd.f32 0.0, %v2478
    %2480 = vdwg.mxu0
    %2481 = vmatpush.msra.mxu0 %v1063
    %2482 = vmatpush.msra.mxu0 %v1062
    %2483 = vmatpush.msra.mxu0 %v1061
    %2484 = vmatpush.msra.mxu0 %v1060
    %2485 = vmatpush.msra.mxu0 %v1059
    %2486 = vmatpush.msra.mxu0 %v1058
    %2487 = vmatpush.msra.mxu0 %v1057
    %2488 = vmatpush.msra.mxu0 %v1056
    %2489 = vmatpush.msra.mxu0 %v1055
    %2490 = vmatpush.msra.mxu0 %v1054
    %2491 = vmatpush.msra.mxu0 %v1053
    %2492 = vmatpush.msra.mxu0 %v1052
    %2493 = vmatpush.msra.mxu0 %v1051
    %2494 = vmatpush.msra.mxu0 %v1050
    %2495 = vmatpush.msra.mxu0 %v1049
    %2496 = vmatpush.msra.mxu0 %v1048
    %2497 = vmatmul.f32.gmra.mxu0 %v2395
    %v2498 = vpop.f32.mrf.mxu0
    %v2499 = vadd.f32 %v2461, %v2498
    %2500 = vmatmul.f32.gmra.mxu0 %v2399
    %v2501 = vpop.f32.mrf.mxu0
    %v2502 = vadd.f32 %v2464, %v2501
    %2503 = vmatmul.f32.gmra.mxu0 %v2403
    %v2504 = vpop.f32.mrf.mxu0
    %v2505 = vadd.f32 %v2467, %v2504
    %2506 = vmatmul.f32.gmra.mxu0 %v2407
    %v2507 = vpop.f32.mrf.mxu0
    %v2508 = vadd.f32 %v2470, %v2507
    %2509 = vmatmul.f32.gmra.mxu0 %v2411
    %v2510 = vpop.f32.mrf.mxu0
    %v2511 = vadd.f32 %v2473, %v2510
    %2512 = vmatmul.f32.gmra.mxu0 %v2415
    %v2513 = vpop.f32.mrf.mxu0
    %v2514 = vadd.f32 %v2476, %v2513
    %2515 = vmatmul.f32.gmra.mxu0 %v2419
    %v2516 = vpop.f32.mrf.mxu0
    %v2517 = vadd.f32 %v2479, %v2516
    %2518 = vdwg.mxu0
    %2519 = vmatpush.msra.mxu0 %v1079
    %2520 = vmatpush.msra.mxu0 %v1078
    %2521 = vmatpush.msra.mxu0 %v1077
    %2522 = vmatpush.msra.mxu0 %v1076
    %2523 = vmatpush.msra.mxu0 %v1075
    %2524 = vmatpush.msra.mxu0 %v1074
    %2525 = vmatpush.msra.mxu0 %v1073
    %2526 = vmatpush.msra.mxu0 %v1072
    %2527 = vmatpush.msra.mxu0 %v1071
    %2528 = vmatpush.msra.mxu0 %v1070
    %2529 = vmatpush.msra.mxu0 %v1069
    %2530 = vmatpush.msra.mxu0 %v1068
    %2531 = vmatpush.msra.mxu0 %v1067
    %2532 = vmatpush.msra.mxu0 %v1066
    %2533 = vmatpush.msra.mxu0 %v1065
    %2534 = vmatpush.msra.mxu0 %v1064
    %2535 = vmatmul.f32.gmra.mxu0 %v2396
    %v2536 = vpop.f32.mrf.mxu0
    %v2537 = vadd.f32 %v2499, %v2536
    %2538 = vmatmul.f32.gmra.mxu0 %v2400
    %v2539 = vpop.f32.mrf.mxu0
    %v2540 = vadd.f32 %v2502, %v2539
    %2541 = vmatmul.f32.gmra.mxu0 %v2404
    %v2542 = vpop.f32.mrf.mxu0
    %v2543 = vadd.f32 %v2505, %v2542
    %2544 = vmatmul.f32.gmra.mxu0 %v2408
    %v2545 = vpop.f32.mrf.mxu0
    %v2546 = vadd.f32 %v2508, %v2545
    %2547 = vmatmul.f32.gmra.mxu0 %v2412
    %v2548 = vpop.f32.mrf.mxu0
    %v2549 = vadd.f32 %v2511, %v2548
    %2550 = vmatmul.f32.gmra.mxu0 %v2416
    %v2551 = vpop.f32.mrf.mxu0
    %v2552 = vadd.f32 %v2514, %v2551
    %2553 = vmatmul.f32.gmra.mxu0 %v2420
    %v2554 = vpop.f32.mrf.mxu0
    %v2555 = vadd.f32 %v2517, %v2554
    %2556 = vdwg.mxu0
    %2557 = vmatpush.msra.mxu0 0.0
    %2558 = vmatpush.msra.mxu0 0.0
    %2559 = vmatpush.msra.mxu0 0.0
    %2560 = vmatpush.msra.mxu0 0.0
    %2561 = vmatpush.msra.mxu0 0.0
    %2562 = vmatpush.msra.mxu0 0.0
    %2563 = vmatpush.msra.mxu0 0.0
    %2564 = vmatpush.msra.mxu0 0.0
    %2565 = vmatpush.msra.mxu0 0.0
    %2566 = vmatpush.msra.mxu0 0.0
    %2567 = vmatpush.msra.mxu0 0.0
    %2568 = vmatpush.msra.mxu0 0.0
    %2569 = vmatpush.msra.mxu0 0.0
    %2570 = vmatpush.msra.mxu0 0.0
    %2571 = vmatpush.msra.mxu0 0.0
    %2572 = vmatpush.msra.mxu0 %v1080
    %2573 = vmatmul.f32.gmra.mxu0 %v2423
    %v2574 = vpop.f32.mrf.mxu0
    %v2575 = vadd.f32 %v2537, %v2574
    %2576 = vmatmul.f32.gmra.mxu0 %v2426
    %v2577 = vpop.f32.mrf.mxu0
    %v2578 = vadd.f32 %v2540, %v2577
    %2579 = vmatmul.f32.gmra.mxu0 %v2429
    %v2580 = vpop.f32.mrf.mxu0
    %v2581 = vadd.f32 %v2543, %v2580
    %2582 = vmatmul.f32.gmra.mxu0 %v2432
    %v2583 = vpop.f32.mrf.mxu0
    %v2584 = vadd.f32 %v2546, %v2583
    %2585 = vmatmul.f32.gmra.mxu0 %v2435
    %v2586 = vpop.f32.mrf.mxu0
    %v2587 = vadd.f32 %v2549, %v2586
    %2588 = vmatmul.f32.gmra.mxu0 %v2438
    %v2589 = vpop.f32.mrf.mxu0
    %v2590 = vadd.f32 %v2552, %v2589
    %2591 = vmatmul.f32.gmra.mxu0 %v2441
    %v2592 = vpop.f32.mrf.mxu0
    %v2593 = vadd.f32 %v2555, %v2592
    %2594 = vdwg.mxu0
    %s2595 = scalar_lea.vmem %s5, 80
    %v2596 = vld [vmem:[%s2595] sm:$0xff]
    %v2597 = vld [vmem:[%s2595 + $0x8] sm:$0xff]
    %v2599 = vsel %vm428, %v2575, 0
    %v2602 = vsel %vm428, %v2578, 0
    %v2605 = vsel %vm428, %v2581, 0
    %v2608 = vsel %vm428, %v2584, 0
    %v2611 = vsel %vm428, %v2587, 0
    %v2614 = vsel %vm428, %v2590, 0
    %v2617 = vsel %vm428, %v2593, 0
    %2619 = vmatpush.msra.mxu0 0.0
    %2620 = vmatpush.msra.mxu0 0.0
    %2621 = vmatpush.msra.mxu0 0.0
    %2622 = vmatpush.msra.mxu0 0.0
    %2623 = vmatpush.msra.mxu0 0.0
    %2624 = vmatpush.msra.mxu0 0.0
    %2625 = vmatpush.msra.mxu0 0.0
    %2626 = vmatpush.msra.mxu0 0.0
    %2627 = vmatpush.msra.mxu0 0.0
    %2628 = vmatpush.msra.mxu0 0.0
    %2629 = vmatpush.msra.mxu0 0.0
    %2630 = vmatpush.msra.mxu0 0.0
    %2631 = vmatpush.msra.mxu0 0.0
    %2632 = vmatpush.msra.mxu0 0.0
    %2633 = vmatpush.msra.mxu0 %v2597
    %2634 = vmatpush.msra.mxu0 %v2596
    %2635 = vmatmul.f32.gmra.mxu0 %v2599
    %v2636 = vpop.f32.mrf.mxu0
    %v2637 = vadd.f32 0.0, %v2636
    %2638 = vmatmul.f32.gmra.mxu0 %v2602
    %v2639 = vpop.f32.mrf.mxu0
    %v2640 = vadd.f32 0.0, %v2639
    %2641 = vmatmul.f32.gmra.mxu0 %v2605
    %v2642 = vpop.f32.mrf.mxu0
    %v2643 = vadd.f32 0.0, %v2642
    %2644 = vmatmul.f32.gmra.mxu0 %v2608
    %v2645 = vpop.f32.mrf.mxu0
    %v2646 = vadd.f32 0.0, %v2645
    %2647 = vmatmul.f32.gmra.mxu0 %v2611
    %v2648 = vpop.f32.mrf.mxu0
    %v2649 = vadd.f32 0.0, %v2648
    %2650 = vmatmul.f32.gmra.mxu0 %v2614
    %v2651 = vpop.f32.mrf.mxu0
    %v2652 = vadd.f32 0.0, %v2651
    %2653 = vmatmul.f32.gmra.mxu0 %v2617
    %v2654 = vpop.f32.mrf.mxu0
    %v2655 = vadd.f32 0.0, %v2654
    %2656 = vdwg.mxu0
    %v2657 = vadd.f32 %v2386, %v2637
    %v2658 = vadd.f32 %v2387, %v2640
    %v2659 = vadd.f32 %v2388, %v2643
    %v2660 = vadd.f32 %v2389, %v2646
    %v2661 = vadd.f32 %v2390, %v2649
    %v2662 = vadd.f32 %v2391, %v2652
    %v2663 = vadd.f32 %v2392, %v2655
    %s2664 = scalar_lea.vmem %s4, 1344
    %v2665 = vld [vmem:[%s2664] sm:$0xff]
    %v2666 = vld [vmem:[%s2664 + $0x8] sm:$0xff]
    %v2667 = vld [vmem:[%s2664 + $0x10] sm:$0xff]
    %v2668 = vld [vmem:[%s2664 + $0x18] sm:$0xff]
    %v2669 = vld [vmem:[%s2664 + $0x20] sm:$0xff]
    %v2670 = vld [vmem:[%s2664 + $0x28] sm:$0xff]
    %v2671 = vld [vmem:[%s2664 + $0x30] sm:$0xff]
    %v2672 = vld [vmem:[%s2664 + $0x38] sm:$0xff]
    %v2673 = vld [vmem:[%s2664 + $0x40] sm:$0xff]
    %v2674 = vld [vmem:[%s2664 + $0x48] sm:$0xff]
    %v2675 = vld [vmem:[%s2664 + $0x50] sm:$0xff]
    %v2676 = vld [vmem:[%s2664 + $0x58] sm:$0xff]
    %v2677 = vld [vmem:[%s2664 + $0x60] sm:$0xff]
    %v2678 = vld [vmem:[%s2664 + $0x68] sm:$0xff]
    %v2679 = vld [vmem:[%s2664 + $0x70] sm:$0xff]
    %v2680 = vld [vmem:[%s2664 + $0x78] sm:$0xff]
    %v2681 = vld [vmem:[%s2664 + $0x80] sm:$0xff]
    %v2682 = vld [vmem:[%s2664 + $0x88] sm:$0xff]
    %v2683 = vld [vmem:[%s2664 + $0x90] sm:$0xff]
    %v2684 = vld [vmem:[%s2664 + $0x98] sm:$0xff]
    %v2685 = vld [vmem:[%s2664 + $0xa0] sm:$0xff]
    %v2686 = vld [vmem:[%s2664 + $0xa8] sm:$0xff]
    %v2687 = vld [vmem:[%s2664 + $0xb0] sm:$0xff]
    %v2688 = vld [vmem:[%s2664 + $0xb8] sm:$0xff]
    %v2689 = vld [vmem:[%s2664 + $0xc0] sm:$0x3]
    %v2690 = vld [vmem:[%s2664 + $0xc8] sm:$0x3]
    %v2691 = vld [vmem:[%s2664 + $0xd0] sm:$0x3]
    %v2692 = vld [vmem:[%s2664 + $0xd8] sm:$0x3]
    %v2694 = vsel %vm1081, %v2668, 0
    %v2697 = vsel %vm1081, %v2672, 0
    %v2700 = vsel %vm1081, %v2676, 0
    %v2703 = vsel %vm1081, %v2680, 0
    %v2706 = vsel %vm1081, %v2684, 0
    %v2709 = vsel %vm1081, %v2688, 0
    %v2712 = vsel %vm1081, %v2692, 0
    %2714 = vmatpush.msra.mxu0 %v1047
    %2715 = vmatpush.msra.mxu0 %v1046
    %2716 = vmatpush.msra.mxu0 %v1045
    %2717 = vmatpush.msra.mxu0 %v1044
    %2718 = vmatpush.msra.mxu0 %v1043
    %2719 = vmatpush.msra.mxu0 %v1042
    %2720 = vmatpush.msra.mxu0 %v1041
    %2721 = vmatpush.msra.mxu0 %v1040
    %2722 = vmatpush.msra.mxu0 %v1039
    %2723 = vmatpush.msra.mxu0 %v1038
    %2724 = vmatpush.msra.mxu0 %v1037
    %2725 = vmatpush.msra.mxu0 %v1036
    %2726 = vmatpush.msra.mxu0 %v1035
    %2727 = vmatpush.msra.mxu0 %v1034
    %2728 = vmatpush.msra.mxu0 %v1033
    %2729 = vmatpush.msra.mxu0 %v1032
    %2730 = vmatmul.f32.gmra.mxu0 %v2665
    %v2731 = vpop.f32.mrf.mxu0
    %v2732 = vadd.f32 0.0, %v2731
    %2733 = vmatmul.f32.gmra.mxu0 %v2669
    %v2734 = vpop.f32.mrf.mxu0
    %v2735 = vadd.f32 0.0, %v2734
    %2736 = vmatmul.f32.gmra.mxu0 %v2673
    %v2737 = vpop.f32.mrf.mxu0
    %v2738 = vadd.f32 0.0, %v2737
    %2739 = vmatmul.f32.gmra.mxu0 %v2677
    %v2740 = vpop.f32.mrf.mxu0
    %v2741 = vadd.f32 0.0, %v2740
    %2742 = vmatmul.f32.gmra.mxu0 %v2681
    %v2743 = vpop.f32.mrf.mxu0
    %v2744 = vadd.f32 0.0, %v2743
    %2745 = vmatmul.f32.gmra.mxu0 %v2685
    %v2746 = vpop.f32.mrf.mxu0
    %v2747 = vadd.f32 0.0, %v2746
    %2748 = vmatmul.f32.gmra.mxu0 %v2689
    %v2749 = vpop.f32.mrf.mxu0
    %v2750 = vadd.f32 0.0, %v2749
    %2751 = vdwg.mxu0
    %2752 = vmatpush.msra.mxu0 %v1063
    %2753 = vmatpush.msra.mxu0 %v1062
    %2754 = vmatpush.msra.mxu0 %v1061
    %2755 = vmatpush.msra.mxu0 %v1060
    %2756 = vmatpush.msra.mxu0 %v1059
    %2757 = vmatpush.msra.mxu0 %v1058
    %2758 = vmatpush.msra.mxu0 %v1057
    %2759 = vmatpush.msra.mxu0 %v1056
    %2760 = vmatpush.msra.mxu0 %v1055
    %2761 = vmatpush.msra.mxu0 %v1054
    %2762 = vmatpush.msra.mxu0 %v1053
    %2763 = vmatpush.msra.mxu0 %v1052
    %2764 = vmatpush.msra.mxu0 %v1051
    %2765 = vmatpush.msra.mxu0 %v1050
    %2766 = vmatpush.msra.mxu0 %v1049
    %2767 = vmatpush.msra.mxu0 %v1048
    %2768 = vmatmul.f32.gmra.mxu0 %v2666
    %v2769 = vpop.f32.mrf.mxu0
    %v2770 = vadd.f32 %v2732, %v2769
    %2771 = vmatmul.f32.gmra.mxu0 %v2670
    %v2772 = vpop.f32.mrf.mxu0
    %v2773 = vadd.f32 %v2735, %v2772
    %2774 = vmatmul.f32.gmra.mxu0 %v2674
    %v2775 = vpop.f32.mrf.mxu0
    %v2776 = vadd.f32 %v2738, %v2775
    %2777 = vmatmul.f32.gmra.mxu0 %v2678
    %v2778 = vpop.f32.mrf.mxu0
    %v2779 = vadd.f32 %v2741, %v2778
    %2780 = vmatmul.f32.gmra.mxu0 %v2682
    %v2781 = vpop.f32.mrf.mxu0
    %v2782 = vadd.f32 %v2744, %v2781
    %2783 = vmatmul.f32.gmra.mxu0 %v2686
    %v2784 = vpop.f32.mrf.mxu0
    %v2785 = vadd.f32 %v2747, %v2784
    %2786 = vmatmul.f32.gmra.mxu0 %v2690
    %v2787 = vpop.f32.mrf.mxu0
    %v2788 = vadd.f32 %v2750, %v2787
    %2789 = vdwg.mxu0
    %2790 = vmatpush.msra.mxu0 %v1079
    %2791 = vmatpush.msra.mxu0 %v1078
    %2792 = vmatpush.msra.mxu0 %v1077
    %2793 = vmatpush.msra.mxu0 %v1076
    %2794 = vmatpush.msra.mxu0 %v1075
    %2795 = vmatpush.msra.mxu0 %v1074
    %2796 = vmatpush.msra.mxu0 %v1073
    %2797 = vmatpush.msra.mxu0 %v1072
    %2798 = vmatpush.msra.mxu0 %v1071
    %2799 = vmatpush.msra.mxu0 %v1070
    %2800 = vmatpush.msra.mxu0 %v1069
    %2801 = vmatpush.msra.mxu0 %v1068
    %2802 = vmatpush.msra.mxu0 %v1067
    %2803 = vmatpush.msra.mxu0 %v1066
    %2804 = vmatpush.msra.mxu0 %v1065
    %2805 = vmatpush.msra.mxu0 %v1064
    %2806 = vmatmul.f32.gmra.mxu0 %v2667
    %v2807 = vpop.f32.mrf.mxu0
    %v2808 = vadd.f32 %v2770, %v2807
    %2809 = vmatmul.f32.gmra.mxu0 %v2671
    %v2810 = vpop.f32.mrf.mxu0
    %v2811 = vadd.f32 %v2773, %v2810
    %2812 = vmatmul.f32.gmra.mxu0 %v2675
    %v2813 = vpop.f32.mrf.mxu0
    %v2814 = vadd.f32 %v2776, %v2813
    %2815 = vmatmul.f32.gmra.mxu0 %v2679
    %v2816 = vpop.f32.mrf.mxu0
    %v2817 = vadd.f32 %v2779, %v2816
    %2818 = vmatmul.f32.gmra.mxu0 %v2683
    %v2819 = vpop.f32.mrf.mxu0
    %v2820 = vadd.f32 %v2782, %v2819
    %2821 = vmatmul.f32.gmra.mxu0 %v2687
    %v2822 = vpop.f32.mrf.mxu0
    %v2823 = vadd.f32 %v2785, %v2822
    %2824 = vmatmul.f32.gmra.mxu0 %v2691
    %v2825 = vpop.f32.mrf.mxu0
    %v2826 = vadd.f32 %v2788, %v2825
    %2827 = vdwg.mxu0
    %2828 = vmatpush.msra.mxu0 0.0
    %2829 = vmatpush.msra.mxu0 0.0
    %2830 = vmatpush.msra.mxu0 0.0
    %2831 = vmatpush.msra.mxu0 0.0
    %2832 = vmatpush.msra.mxu0 0.0
    %2833 = vmatpush.msra.mxu0 0.0
    %2834 = vmatpush.msra.mxu0 0.0
    %2835 = vmatpush.msra.mxu0 0.0
    %2836 = vmatpush.msra.mxu0 0.0
    %2837 = vmatpush.msra.mxu0 0.0
    %2838 = vmatpush.msra.mxu0 0.0
    %2839 = vmatpush.msra.mxu0 0.0
    %2840 = vmatpush.msra.mxu0 0.0
    %2841 = vmatpush.msra.mxu0 0.0
    %2842 = vmatpush.msra.mxu0 0.0
    %2843 = vmatpush.msra.mxu0 %v1080
    %2844 = vmatmul.f32.gmra.mxu0 %v2694
    %v2845 = vpop.f32.mrf.mxu0
    %v2846 = vadd.f32 %v2808, %v2845
    %2847 = vmatmul.f32.gmra.mxu0 %v2697
    %v2848 = vpop.f32.mrf.mxu0
    %v2849 = vadd.f32 %v2811, %v2848
    %2850 = vmatmul.f32.gmra.mxu0 %v2700
    %v2851 = vpop.f32.mrf.mxu0
    %v2852 = vadd.f32 %v2814, %v2851
    %2853 = vmatmul.f32.gmra.mxu0 %v2703
    %v2854 = vpop.f32.mrf.mxu0
    %v2855 = vadd.f32 %v2817, %v2854
    %2856 = vmatmul.f32.gmra.mxu0 %v2706
    %v2857 = vpop.f32.mrf.mxu0
    %v2858 = vadd.f32 %v2820, %v2857
    %2859 = vmatmul.f32.gmra.mxu0 %v2709
    %v2860 = vpop.f32.mrf.mxu0
    %v2861 = vadd.f32 %v2823, %v2860
    %2862 = vmatmul.f32.gmra.mxu0 %v2712
    %v2863 = vpop.f32.mrf.mxu0
    %v2864 = vadd.f32 %v2826, %v2863
    %2865 = vdwg.mxu0
    %s2866 = scalar_lea.vmem %s5, 96
    %v2867 = vld [vmem:[%s2866] sm:$0xff]
    %v2868 = vld [vmem:[%s2866 + $0x8] sm:$0xff]
    %v2870 = vsel %vm428, %v2846, 0
    %v2873 = vsel %vm428, %v2849, 0
    %v2876 = vsel %vm428, %v2852, 0
    %v2879 = vsel %vm428, %v2855, 0
    %v2882 = vsel %vm428, %v2858, 0
    %v2885 = vsel %vm428, %v2861, 0
    %v2888 = vsel %vm428, %v2864, 0
    %2890 = vmatpush.msra.mxu0 0.0
    %2891 = vmatpush.msra.mxu0 0.0
    %2892 = vmatpush.msra.mxu0 0.0
    %2893 = vmatpush.msra.mxu0 0.0
    %2894 = vmatpush.msra.mxu0 0.0
    %2895 = vmatpush.msra.mxu0 0.0
    %2896 = vmatpush.msra.mxu0 0.0
    %2897 = vmatpush.msra.mxu0 0.0
    %2898 = vmatpush.msra.mxu0 0.0
    %2899 = vmatpush.msra.mxu0 0.0
    %2900 = vmatpush.msra.mxu0 0.0
    %2901 = vmatpush.msra.mxu0 0.0
    %2902 = vmatpush.msra.mxu0 0.0
    %2903 = vmatpush.msra.mxu0 0.0
    %2904 = vmatpush.msra.mxu0 %v2868
    %2905 = vmatpush.msra.mxu0 %v2867
    %2906 = vmatmul.f32.gmra.mxu0 %v2870
    %v2907 = vpop.f32.mrf.mxu0
    %v2908 = vadd.f32 0.0, %v2907
    %2909 = vmatmul.f32.gmra.mxu0 %v2873
    %v2910 = vpop.f32.mrf.mxu0
    %v2911 = vadd.f32 0.0, %v2910
    %2912 = vmatmul.f32.gmra.mxu0 %v2876
    %v2913 = vpop.f32.mrf.mxu0
    %v2914 = vadd.f32 0.0, %v2913
    %2915 = vmatmul.f32.gmra.mxu0 %v2879
    %v2916 = vpop.f32.mrf.mxu0
    %v2917 = vadd.f32 0.0, %v2916
    %2918 = vmatmul.f32.gmra.mxu0 %v2882
    %v2919 = vpop.f32.mrf.mxu0
    %v2920 = vadd.f32 0.0, %v2919
    %2921 = vmatmul.f32.gmra.mxu0 %v2885
    %v2922 = vpop.f32.mrf.mxu0
    %v2923 = vadd.f32 0.0, %v2922
    %2924 = vmatmul.f32.gmra.mxu0 %v2888
    %v2925 = vpop.f32.mrf.mxu0
    %v2926 = vadd.f32 0.0, %v2925
    %2927 = vdwg.mxu0
    %v2928 = vadd.f32 %v2657, %v2908
    %v2929 = vadd.f32 %v2658, %v2911
    %v2930 = vadd.f32 %v2659, %v2914
    %v2931 = vadd.f32 %v2660, %v2917
    %v2932 = vadd.f32 %v2661, %v2920
    %v2933 = vadd.f32 %v2662, %v2923
    %v2934 = vadd.f32 %v2663, %v2926
    %s2935 = scalar_lea.vmem %s4, 1568
    %v2936 = vld [vmem:[%s2935] sm:$0xff]
    %v2937 = vld [vmem:[%s2935 + $0x8] sm:$0xff]
    %v2938 = vld [vmem:[%s2935 + $0x10] sm:$0xff]
    %v2939 = vld [vmem:[%s2935 + $0x18] sm:$0xff]
    %v2940 = vld [vmem:[%s2935 + $0x20] sm:$0xff]
    %v2941 = vld [vmem:[%s2935 + $0x28] sm:$0xff]
    %v2942 = vld [vmem:[%s2935 + $0x30] sm:$0xff]
    %v2943 = vld [vmem:[%s2935 + $0x38] sm:$0xff]
    %v2944 = vld [vmem:[%s2935 + $0x40] sm:$0xff]
    %v2945 = vld [vmem:[%s2935 + $0x48] sm:$0xff]
    %v2946 = vld [vmem:[%s2935 + $0x50] sm:$0xff]
    %v2947 = vld [vmem:[%s2935 + $0x58] sm:$0xff]
    %v2948 = vld [vmem:[%s2935 + $0x60] sm:$0xff]
    %v2949 = vld [vmem:[%s2935 + $0x68] sm:$0xff]
    %v2950 = vld [vmem:[%s2935 + $0x70] sm:$0xff]
    %v2951 = vld [vmem:[%s2935 + $0x78] sm:$0xff]
    %v2952 = vld [vmem:[%s2935 + $0x80] sm:$0xff]
    %v2953 = vld [vmem:[%s2935 + $0x88] sm:$0xff]
    %v2954 = vld [vmem:[%s2935 + $0x90] sm:$0xff]
    %v2955 = vld [vmem:[%s2935 + $0x98] sm:$0xff]
    %v2956 = vld [vmem:[%s2935 + $0xa0] sm:$0xff]
    %v2957 = vld [vmem:[%s2935 + $0xa8] sm:$0xff]
    %v2958 = vld [vmem:[%s2935 + $0xb0] sm:$0xff]
    %v2959 = vld [vmem:[%s2935 + $0xb8] sm:$0xff]
    %v2960 = vld [vmem:[%s2935 + $0xc0] sm:$0x3]
    %v2961 = vld [vmem:[%s2935 + $0xc8] sm:$0x3]
    %v2962 = vld [vmem:[%s2935 + $0xd0] sm:$0x3]
    %v2963 = vld [vmem:[%s2935 + $0xd8] sm:$0x3]
    %v2965 = vsel %vm1081, %v2939, 0
    %v2968 = vsel %vm1081, %v2943, 0
    %v2971 = vsel %vm1081, %v2947, 0
    %v2974 = vsel %vm1081, %v2951, 0
    %v2977 = vsel %vm1081, %v2955, 0
    %v2980 = vsel %vm1081, %v2959, 0
    %v2983 = vsel %vm1081, %v2963, 0
    %2985 = vmatpush.msra.mxu0 %v1047
    %2986 = vmatpush.msra.mxu0 %v1046
    %2987 = vmatpush.msra.mxu0 %v1045
    %2988 = vmatpush.msra.mxu0 %v1044
    %2989 = vmatpush.msra.mxu0 %v1043
    %2990 = vmatpush.msra.mxu0 %v1042
    %2991 = vmatpush.msra.mxu0 %v1041
    %2992 = vmatpush.msra.mxu0 %v1040
    %2993 = vmatpush.msra.mxu0 %v1039
    %2994 = vmatpush.msra.mxu0 %v1038
    %2995 = vmatpush.msra.mxu0 %v1037
    %2996 = vmatpush.msra.mxu0 %v1036
    %2997 = vmatpush.msra.mxu0 %v1035
    %2998 = vmatpush.msra.mxu0 %v1034
    %2999 = vmatpush.msra.mxu0 %v1033
    %3000 = vmatpush.msra.mxu0 %v1032
    %3001 = vmatmul.f32.gmra.mxu0 %v2936
    %v3002 = vpop.f32.mrf.mxu0
    %v3003 = vadd.f32 0.0, %v3002
    %3004 = vmatmul.f32.gmra.mxu0 %v2940
    %v3005 = vpop.f32.mrf.mxu0
    %v3006 = vadd.f32 0.0, %v3005
    %3007 = vmatmul.f32.gmra.mxu0 %v2944
    %v3008 = vpop.f32.mrf.mxu0
    %v3009 = vadd.f32 0.0, %v3008
    %3010 = vmatmul.f32.gmra.mxu0 %v2948
    %v3011 = vpop.f32.mrf.mxu0
    %v3012 = vadd.f32 0.0, %v3011
    %3013 = vmatmul.f32.gmra.mxu0 %v2952
    %v3014 = vpop.f32.mrf.mxu0
    %v3015 = vadd.f32 0.0, %v3014
    %3016 = vmatmul.f32.gmra.mxu0 %v2956
    %v3017 = vpop.f32.mrf.mxu0
    %v3018 = vadd.f32 0.0, %v3017
    %3019 = vmatmul.f32.gmra.mxu0 %v2960
    %v3020 = vpop.f32.mrf.mxu0
    %v3021 = vadd.f32 0.0, %v3020
    %3022 = vdwg.mxu0
    %3023 = vmatpush.msra.mxu0 %v1063
    %3024 = vmatpush.msra.mxu0 %v1062
    %3025 = vmatpush.msra.mxu0 %v1061
    %3026 = vmatpush.msra.mxu0 %v1060
    %3027 = vmatpush.msra.mxu0 %v1059
    %3028 = vmatpush.msra.mxu0 %v1058
    %3029 = vmatpush.msra.mxu0 %v1057
    %3030 = vmatpush.msra.mxu0 %v1056
    %3031 = vmatpush.msra.mxu0 %v1055
    %3032 = vmatpush.msra.mxu0 %v1054
    %3033 = vmatpush.msra.mxu0 %v1053
    %3034 = vmatpush.msra.mxu0 %v1052
    %3035 = vmatpush.msra.mxu0 %v1051
    %3036 = vmatpush.msra.mxu0 %v1050
    %3037 = vmatpush.msra.mxu0 %v1049
    %3038 = vmatpush.msra.mxu0 %v1048
    %3039 = vmatmul.f32.gmra.mxu0 %v2937
    %v3040 = vpop.f32.mrf.mxu0
    %v3041 = vadd.f32 %v3003, %v3040
    %3042 = vmatmul.f32.gmra.mxu0 %v2941
    %v3043 = vpop.f32.mrf.mxu0
    %v3044 = vadd.f32 %v3006, %v3043
    %3045 = vmatmul.f32.gmra.mxu0 %v2945
    %v3046 = vpop.f32.mrf.mxu0
    %v3047 = vadd.f32 %v3009, %v3046
    %3048 = vmatmul.f32.gmra.mxu0 %v2949
    %v3049 = vpop.f32.mrf.mxu0
    %v3050 = vadd.f32 %v3012, %v3049
    %3051 = vmatmul.f32.gmra.mxu0 %v2953
    %v3052 = vpop.f32.mrf.mxu0
    %v3053 = vadd.f32 %v3015, %v3052
    %3054 = vmatmul.f32.gmra.mxu0 %v2957
    %v3055 = vpop.f32.mrf.mxu0
    %v3056 = vadd.f32 %v3018, %v3055
    %3057 = vmatmul.f32.gmra.mxu0 %v2961
    %v3058 = vpop.f32.mrf.mxu0
    %v3059 = vadd.f32 %v3021, %v3058
    %3060 = vdwg.mxu0
    %3061 = vmatpush.msra.mxu0 %v1079
    %3062 = vmatpush.msra.mxu0 %v1078
    %3063 = vmatpush.msra.mxu0 %v1077
    %3064 = vmatpush.msra.mxu0 %v1076
    %3065 = vmatpush.msra.mxu0 %v1075
    %3066 = vmatpush.msra.mxu0 %v1074
    %3067 = vmatpush.msra.mxu0 %v1073
    %3068 = vmatpush.msra.mxu0 %v1072
    %3069 = vmatpush.msra.mxu0 %v1071
    %3070 = vmatpush.msra.mxu0 %v1070
    %3071 = vmatpush.msra.mxu0 %v1069
    %3072 = vmatpush.msra.mxu0 %v1068
    %3073 = vmatpush.msra.mxu0 %v1067
    %3074 = vmatpush.msra.mxu0 %v1066
    %3075 = vmatpush.msra.mxu0 %v1065
    %3076 = vmatpush.msra.mxu0 %v1064
    %3077 = vmatmul.f32.gmra.mxu0 %v2938
    %v3078 = vpop.f32.mrf.mxu0
    %v3079 = vadd.f32 %v3041, %v3078
    %3080 = vmatmul.f32.gmra.mxu0 %v2942
    %v3081 = vpop.f32.mrf.mxu0
    %v3082 = vadd.f32 %v3044, %v3081
    %3083 = vmatmul.f32.gmra.mxu0 %v2946
    %v3084 = vpop.f32.mrf.mxu0
    %v3085 = vadd.f32 %v3047, %v3084
    %3086 = vmatmul.f32.gmra.mxu0 %v2950
    %v3087 = vpop.f32.mrf.mxu0
    %v3088 = vadd.f32 %v3050, %v3087
    %3089 = vmatmul.f32.gmra.mxu0 %v2954
    %v3090 = vpop.f32.mrf.mxu0
    %v3091 = vadd.f32 %v3053, %v3090
    %3092 = vmatmul.f32.gmra.mxu0 %v2958
    %v3093 = vpop.f32.mrf.mxu0
    %v3094 = vadd.f32 %v3056, %v3093
    %3095 = vmatmul.f32.gmra.mxu0 %v2962
    %v3096 = vpop.f32.mrf.mxu0
    %v3097 = vadd.f32 %v3059, %v3096
    %3098 = vdwg.mxu0
    %3099 = vmatpush.msra.mxu0 0.0
    %3100 = vmatpush.msra.mxu0 0.0
    %3101 = vmatpush.msra.mxu0 0.0
    %3102 = vmatpush.msra.mxu0 0.0
    %3103 = vmatpush.msra.mxu0 0.0
    %3104 = vmatpush.msra.mxu0 0.0
    %3105 = vmatpush.msra.mxu0 0.0
    %3106 = vmatpush.msra.mxu0 0.0
    %3107 = vmatpush.msra.mxu0 0.0
    %3108 = vmatpush.msra.mxu0 0.0
    %3109 = vmatpush.msra.mxu0 0.0
    %3110 = vmatpush.msra.mxu0 0.0
    %3111 = vmatpush.msra.mxu0 0.0
    %3112 = vmatpush.msra.mxu0 0.0
    %3113 = vmatpush.msra.mxu0 0.0
    %3114 = vmatpush.msra.mxu0 %v1080
    %3115 = vmatmul.f32.gmra.mxu0 %v2965
    %v3116 = vpop.f32.mrf.mxu0
    %v3117 = vadd.f32 %v3079, %v3116
    %3118 = vmatmul.f32.gmra.mxu0 %v2968
    %v3119 = vpop.f32.mrf.mxu0
    %v3120 = vadd.f32 %v3082, %v3119
    %3121 = vmatmul.f32.gmra.mxu0 %v2971
    %v3122 = vpop.f32.mrf.mxu0
    %v3123 = vadd.f32 %v3085, %v3122
    %3124 = vmatmul.f32.gmra.mxu0 %v2974
    %v3125 = vpop.f32.mrf.mxu0
    %v3126 = vadd.f32 %v3088, %v3125
    %3127 = vmatmul.f32.gmra.mxu0 %v2977
    %v3128 = vpop.f32.mrf.mxu0
    %v3129 = vadd.f32 %v3091, %v3128
    %3130 = vmatmul.f32.gmra.mxu0 %v2980
    %v3131 = vpop.f32.mrf.mxu0
    %v3132 = vadd.f32 %v3094, %v3131
    %3133 = vmatmul.f32.gmra.mxu0 %v2983
    %v3134 = vpop.f32.mrf.mxu0
    %v3135 = vadd.f32 %v3097, %v3134
    %3136 = vdwg.mxu0
    %s3137 = scalar_lea.vmem %s5, 112
    %v3138 = vld [vmem:[%s3137] sm:$0xff]
    %v3139 = vld [vmem:[%s3137 + $0x8] sm:$0xff]
    %v3141 = vsel %vm428, %v3117, 0
    %v3144 = vsel %vm428, %v3120, 0
    %v3147 = vsel %vm428, %v3123, 0
    %v3150 = vsel %vm428, %v3126, 0
    %v3153 = vsel %vm428, %v3129, 0
    %v3156 = vsel %vm428, %v3132, 0
    %v3159 = vsel %vm428, %v3135, 0
    %3161 = vmatpush.msra.mxu0 0.0
    %3162 = vmatpush.msra.mxu0 0.0
    %3163 = vmatpush.msra.mxu0 0.0
    %3164 = vmatpush.msra.mxu0 0.0
    %3165 = vmatpush.msra.mxu0 0.0
    %3166 = vmatpush.msra.mxu0 0.0
    %3167 = vmatpush.msra.mxu0 0.0
    %3168 = vmatpush.msra.mxu0 0.0
    %3169 = vmatpush.msra.mxu0 0.0
    %3170 = vmatpush.msra.mxu0 0.0
    %3171 = vmatpush.msra.mxu0 0.0
    %3172 = vmatpush.msra.mxu0 0.0
    %3173 = vmatpush.msra.mxu0 0.0
    %3174 = vmatpush.msra.mxu0 0.0
    %3175 = vmatpush.msra.mxu0 %v3139
    %3176 = vmatpush.msra.mxu0 %v3138
    %3177 = vmatmul.f32.gmra.mxu0 %v3141
    %v3178 = vpop.f32.mrf.mxu0
    %v3179 = vadd.f32 0.0, %v3178
    %3180 = vmatmul.f32.gmra.mxu0 %v3144
    %v3181 = vpop.f32.mrf.mxu0
    %v3182 = vadd.f32 0.0, %v3181
    %3183 = vmatmul.f32.gmra.mxu0 %v3147
    %v3184 = vpop.f32.mrf.mxu0
    %v3185 = vadd.f32 0.0, %v3184
    %3186 = vmatmul.f32.gmra.mxu0 %v3150
    %v3187 = vpop.f32.mrf.mxu0
    %v3188 = vadd.f32 0.0, %v3187
    %3189 = vmatmul.f32.gmra.mxu0 %v3153
    %v3190 = vpop.f32.mrf.mxu0
    %v3191 = vadd.f32 0.0, %v3190
    %3192 = vmatmul.f32.gmra.mxu0 %v3156
    %v3193 = vpop.f32.mrf.mxu0
    %v3194 = vadd.f32 0.0, %v3193
    %3195 = vmatmul.f32.gmra.mxu0 %v3159
    %v3196 = vpop.f32.mrf.mxu0
    %v3197 = vadd.f32 0.0, %v3196
    %3198 = vdwg.mxu0
    %v3199 = vadd.f32 %v2928, %v3179
    %v3200 = vadd.f32 %v2929, %v3182
    %v3201 = vadd.f32 %v2930, %v3185
    %v3202 = vadd.f32 %v2931, %v3188
    %v3203 = vadd.f32 %v2932, %v3191
    %v3204 = vadd.f32 %v2933, %v3194
    %v3205 = vadd.f32 %v2934, %v3197
    %s3206 = scalar_lea.vmem %s4, 1792
    %v3207 = vld [vmem:[%s3206] sm:$0xff]
    %v3208 = vld [vmem:[%s3206 + $0x8] sm:$0xff]
    %v3209 = vld [vmem:[%s3206 + $0x10] sm:$0xff]
    %v3210 = vld [vmem:[%s3206 + $0x18] sm:$0xff]
    %v3211 = vld [vmem:[%s3206 + $0x20] sm:$0xff]
    %v3212 = vld [vmem:[%s3206 + $0x28] sm:$0xff]
    %v3213 = vld [vmem:[%s3206 + $0x30] sm:$0xff]
    %v3214 = vld [vmem:[%s3206 + $0x38] sm:$0xff]
    %v3215 = vld [vmem:[%s3206 + $0x40] sm:$0xff]
    %v3216 = vld [vmem:[%s3206 + $0x48] sm:$0xff]
    %v3217 = vld [vmem:[%s3206 + $0x50] sm:$0xff]
    %v3218 = vld [vmem:[%s3206 + $0x58] sm:$0xff]
    %v3219 = vld [vmem:[%s3206 + $0x60] sm:$0xff]
    %v3220 = vld [vmem:[%s3206 + $0x68] sm:$0xff]
    %v3221 = vld [vmem:[%s3206 + $0x70] sm:$0xff]
    %v3222 = vld [vmem:[%s3206 + $0x78] sm:$0xff]
    %v3223 = vld [vmem:[%s3206 + $0x80] sm:$0xff]
    %v3224 = vld [vmem:[%s3206 + $0x88] sm:$0xff]
    %v3225 = vld [vmem:[%s3206 + $0x90] sm:$0xff]
    %v3226 = vld [vmem:[%s3206 + $0x98] sm:$0xff]
    %v3227 = vld [vmem:[%s3206 + $0xa0] sm:$0xff]
    %v3228 = vld [vmem:[%s3206 + $0xa8] sm:$0xff]
    %v3229 = vld [vmem:[%s3206 + $0xb0] sm:$0xff]
    %v3230 = vld [vmem:[%s3206 + $0xb8] sm:$0xff]
    %v3231 = vld [vmem:[%s3206 + $0xc0] sm:$0x3]
    %v3232 = vld [vmem:[%s3206 + $0xc8] sm:$0x3]
    %v3233 = vld [vmem:[%s3206 + $0xd0] sm:$0x3]
    %v3234 = vld [vmem:[%s3206 + $0xd8] sm:$0x3]
    %v3236 = vsel %vm1081, %v3210, 0
    %v3239 = vsel %vm1081, %v3214, 0
    %v3242 = vsel %vm1081, %v3218, 0
    %v3245 = vsel %vm1081, %v3222, 0
    %v3248 = vsel %vm1081, %v3226, 0
    %v3251 = vsel %vm1081, %v3230, 0
    %v3254 = vsel %vm1081, %v3234, 0
    %3256 = vmatpush.msra.mxu0 %v1047
    %3257 = vmatpush.msra.mxu0 %v1046
    %3258 = vmatpush.msra.mxu0 %v1045
    %3259 = vmatpush.msra.mxu0 %v1044
    %3260 = vmatpush.msra.mxu0 %v1043
    %3261 = vmatpush.msra.mxu0 %v1042
    %3262 = vmatpush.msra.mxu0 %v1041
    %3263 = vmatpush.msra.mxu0 %v1040
    %3264 = vmatpush.msra.mxu0 %v1039
    %3265 = vmatpush.msra.mxu0 %v1038
    %3266 = vmatpush.msra.mxu0 %v1037
    %3267 = vmatpush.msra.mxu0 %v1036
    %3268 = vmatpush.msra.mxu0 %v1035
    %3269 = vmatpush.msra.mxu0 %v1034
    %3270 = vmatpush.msra.mxu0 %v1033
    %3271 = vmatpush.msra.mxu0 %v1032
    %3272 = vmatmul.f32.gmra.mxu0 %v3207
    %v3273 = vpop.f32.mrf.mxu0
    %v3274 = vadd.f32 0.0, %v3273
    %3275 = vmatmul.f32.gmra.mxu0 %v3211
    %v3276 = vpop.f32.mrf.mxu0
    %v3277 = vadd.f32 0.0, %v3276
    %3278 = vmatmul.f32.gmra.mxu0 %v3215
    %v3279 = vpop.f32.mrf.mxu0
    %v3280 = vadd.f32 0.0, %v3279
    %3281 = vmatmul.f32.gmra.mxu0 %v3219
    %v3282 = vpop.f32.mrf.mxu0
    %v3283 = vadd.f32 0.0, %v3282
    %3284 = vmatmul.f32.gmra.mxu0 %v3223
    %v3285 = vpop.f32.mrf.mxu0
    %v3286 = vadd.f32 0.0, %v3285
    %3287 = vmatmul.f32.gmra.mxu0 %v3227
    %v3288 = vpop.f32.mrf.mxu0
    %v3289 = vadd.f32 0.0, %v3288
    %3290 = vmatmul.f32.gmra.mxu0 %v3231
    %v3291 = vpop.f32.mrf.mxu0
    %v3292 = vadd.f32 0.0, %v3291
    %3293 = vdwg.mxu0
    %3294 = vmatpush.msra.mxu0 %v1063
    %3295 = vmatpush.msra.mxu0 %v1062
    %3296 = vmatpush.msra.mxu0 %v1061
    %3297 = vmatpush.msra.mxu0 %v1060
    %3298 = vmatpush.msra.mxu0 %v1059
    %3299 = vmatpush.msra.mxu0 %v1058
    %3300 = vmatpush.msra.mxu0 %v1057
    %3301 = vmatpush.msra.mxu0 %v1056
    %3302 = vmatpush.msra.mxu0 %v1055
    %3303 = vmatpush.msra.mxu0 %v1054
    %3304 = vmatpush.msra.mxu0 %v1053
    %3305 = vmatpush.msra.mxu0 %v1052
    %3306 = vmatpush.msra.mxu0 %v1051
    %3307 = vmatpush.msra.mxu0 %v1050
    %3308 = vmatpush.msra.mxu0 %v1049
    %3309 = vmatpush.msra.mxu0 %v1048
    %3310 = vmatmul.f32.gmra.mxu0 %v3208
    %v3311 = vpop.f32.mrf.mxu0
    %v3312 = vadd.f32 %v3274, %v3311
    %3313 = vmatmul.f32.gmra.mxu0 %v3212
    %v3314 = vpop.f32.mrf.mxu0
    %v3315 = vadd.f32 %v3277, %v3314
    %3316 = vmatmul.f32.gmra.mxu0 %v3216
    %v3317 = vpop.f32.mrf.mxu0
    %v3318 = vadd.f32 %v3280, %v3317
    %3319 = vmatmul.f32.gmra.mxu0 %v3220
    %v3320 = vpop.f32.mrf.mxu0
    %v3321 = vadd.f32 %v3283, %v3320
    %3322 = vmatmul.f32.gmra.mxu0 %v3224
    %v3323 = vpop.f32.mrf.mxu0
    %v3324 = vadd.f32 %v3286, %v3323
    %3325 = vmatmul.f32.gmra.mxu0 %v3228
    %v3326 = vpop.f32.mrf.mxu0
    %v3327 = vadd.f32 %v3289, %v3326
    %3328 = vmatmul.f32.gmra.mxu0 %v3232
    %v3329 = vpop.f32.mrf.mxu0
    %v3330 = vadd.f32 %v3292, %v3329
    %3331 = vdwg.mxu0
    %3332 = vmatpush.msra.mxu0 %v1079
    %3333 = vmatpush.msra.mxu0 %v1078
    %3334 = vmatpush.msra.mxu0 %v1077
    %3335 = vmatpush.msra.mxu0 %v1076
    %3336 = vmatpush.msra.mxu0 %v1075
    %3337 = vmatpush.msra.mxu0 %v1074
    %3338 = vmatpush.msra.mxu0 %v1073
    %3339 = vmatpush.msra.mxu0 %v1072
    %3340 = vmatpush.msra.mxu0 %v1071
    %3341 = vmatpush.msra.mxu0 %v1070
    %3342 = vmatpush.msra.mxu0 %v1069
    %3343 = vmatpush.msra.mxu0 %v1068
    %3344 = vmatpush.msra.mxu0 %v1067
    %3345 = vmatpush.msra.mxu0 %v1066
    %3346 = vmatpush.msra.mxu0 %v1065
    %3347 = vmatpush.msra.mxu0 %v1064
    %3348 = vmatmul.f32.gmra.mxu0 %v3209
    %v3349 = vpop.f32.mrf.mxu0
    %v3350 = vadd.f32 %v3312, %v3349
    %3351 = vmatmul.f32.gmra.mxu0 %v3213
    %v3352 = vpop.f32.mrf.mxu0
    %v3353 = vadd.f32 %v3315, %v3352
    %3354 = vmatmul.f32.gmra.mxu0 %v3217
    %v3355 = vpop.f32.mrf.mxu0
    %v3356 = vadd.f32 %v3318, %v3355
    %3357 = vmatmul.f32.gmra.mxu0 %v3221
    %v3358 = vpop.f32.mrf.mxu0
    %v3359 = vadd.f32 %v3321, %v3358
    %3360 = vmatmul.f32.gmra.mxu0 %v3225
    %v3361 = vpop.f32.mrf.mxu0
    %v3362 = vadd.f32 %v3324, %v3361
    %3363 = vmatmul.f32.gmra.mxu0 %v3229
    %v3364 = vpop.f32.mrf.mxu0
    %v3365 = vadd.f32 %v3327, %v3364
    %3366 = vmatmul.f32.gmra.mxu0 %v3233
    %v3367 = vpop.f32.mrf.mxu0
    %v3368 = vadd.f32 %v3330, %v3367
    %3369 = vdwg.mxu0
    %3370 = vmatpush.msra.mxu0 0.0
    %3371 = vmatpush.msra.mxu0 0.0
    %3372 = vmatpush.msra.mxu0 0.0
    %3373 = vmatpush.msra.mxu0 0.0
    %3374 = vmatpush.msra.mxu0 0.0
    %3375 = vmatpush.msra.mxu0 0.0
    %3376 = vmatpush.msra.mxu0 0.0
    %3377 = vmatpush.msra.mxu0 0.0
    %3378 = vmatpush.msra.mxu0 0.0
    %3379 = vmatpush.msra.mxu0 0.0
    %3380 = vmatpush.msra.mxu0 0.0
    %3381 = vmatpush.msra.mxu0 0.0
    %3382 = vmatpush.msra.mxu0 0.0
    %3383 = vmatpush.msra.mxu0 0.0
    %3384 = vmatpush.msra.mxu0 0.0
    %3385 = vmatpush.msra.mxu0 %v1080
    %3386 = vmatmul.f32.gmra.mxu0 %v3236
    %v3387 = vpop.f32.mrf.mxu0
    %v3388 = vadd.f32 %v3350, %v3387
    %3389 = vmatmul.f32.gmra.mxu0 %v3239
    %v3390 = vpop.f32.mrf.mxu0
    %v3391 = vadd.f32 %v3353, %v3390
    %3392 = vmatmul.f32.gmra.mxu0 %v3242
    %v3393 = vpop.f32.mrf.mxu0
    %v3394 = vadd.f32 %v3356, %v3393
    %3395 = vmatmul.f32.gmra.mxu0 %v3245
    %v3396 = vpop.f32.mrf.mxu0
    %v3397 = vadd.f32 %v3359, %v3396
    %3398 = vmatmul.f32.gmra.mxu0 %v3248
    %v3399 = vpop.f32.mrf.mxu0
    %v3400 = vadd.f32 %v3362, %v3399
    %3401 = vmatmul.f32.gmra.mxu0 %v3251
    %v3402 = vpop.f32.mrf.mxu0
    %v3403 = vadd.f32 %v3365, %v3402
    %3404 = vmatmul.f32.gmra.mxu0 %v3254
    %v3405 = vpop.f32.mrf.mxu0
    %v3406 = vadd.f32 %v3368, %v3405
    %3407 = vdwg.mxu0
    %s3408 = scalar_lea.vmem %s5, 128
    %v3409 = vld [vmem:[%s3408] sm:$0xff]
    %v3410 = vld [vmem:[%s3408 + $0x8] sm:$0xff]
    %v3412 = vsel %vm428, %v3388, 0
    %v3415 = vsel %vm428, %v3391, 0
    %v3418 = vsel %vm428, %v3394, 0
    %v3421 = vsel %vm428, %v3397, 0
    %v3424 = vsel %vm428, %v3400, 0
    %v3427 = vsel %vm428, %v3403, 0
    %v3430 = vsel %vm428, %v3406, 0
    %3432 = vmatpush.msra.mxu0 0.0
    %3433 = vmatpush.msra.mxu0 0.0
    %3434 = vmatpush.msra.mxu0 0.0
    %3435 = vmatpush.msra.mxu0 0.0
    %3436 = vmatpush.msra.mxu0 0.0
    %3437 = vmatpush.msra.mxu0 0.0
    %3438 = vmatpush.msra.mxu0 0.0
    %3439 = vmatpush.msra.mxu0 0.0
    %3440 = vmatpush.msra.mxu0 0.0
    %3441 = vmatpush.msra.mxu0 0.0
    %3442 = vmatpush.msra.mxu0 0.0
    %3443 = vmatpush.msra.mxu0 0.0
    %3444 = vmatpush.msra.mxu0 0.0
    %3445 = vmatpush.msra.mxu0 0.0
    %3446 = vmatpush.msra.mxu0 %v3410
    %3447 = vmatpush.msra.mxu0 %v3409
    %3448 = vmatmul.f32.gmra.mxu0 %v3412
    %v3449 = vpop.f32.mrf.mxu0
    %v3450 = vadd.f32 0.0, %v3449
    %3451 = vmatmul.f32.gmra.mxu0 %v3415
    %v3452 = vpop.f32.mrf.mxu0
    %v3453 = vadd.f32 0.0, %v3452
    %3454 = vmatmul.f32.gmra.mxu0 %v3418
    %v3455 = vpop.f32.mrf.mxu0
    %v3456 = vadd.f32 0.0, %v3455
    %3457 = vmatmul.f32.gmra.mxu0 %v3421
    %v3458 = vpop.f32.mrf.mxu0
    %v3459 = vadd.f32 0.0, %v3458
    %3460 = vmatmul.f32.gmra.mxu0 %v3424
    %v3461 = vpop.f32.mrf.mxu0
    %v3462 = vadd.f32 0.0, %v3461
    %3463 = vmatmul.f32.gmra.mxu0 %v3427
    %v3464 = vpop.f32.mrf.mxu0
    %v3465 = vadd.f32 0.0, %v3464
    %3466 = vmatmul.f32.gmra.mxu0 %v3430
    %v3467 = vpop.f32.mrf.mxu0
    %v3468 = vadd.f32 0.0, %v3467
    %3469 = vdwg.mxu0
    %v3470 = vadd.f32 %v3199, %v3450
    %v3471 = vadd.f32 %v3200, %v3453
    %v3472 = vadd.f32 %v3201, %v3456
    %v3473 = vadd.f32 %v3202, %v3459
    %v3474 = vadd.f32 %v3203, %v3462
    %v3475 = vadd.f32 %v3204, %v3465
    %v3476 = vadd.f32 %v3205, %v3468
    %s3477 = scalar_lea.vmem %s4, 2016
    %v3478 = vld [vmem:[%s3477] sm:$0xff]
    %v3479 = vld [vmem:[%s3477 + $0x8] sm:$0xff]
    %v3480 = vld [vmem:[%s3477 + $0x10] sm:$0xff]
    %v3481 = vld [vmem:[%s3477 + $0x18] sm:$0xff]
    %v3482 = vld [vmem:[%s3477 + $0x20] sm:$0xff]
    %v3483 = vld [vmem:[%s3477 + $0x28] sm:$0xff]
    %v3484 = vld [vmem:[%s3477 + $0x30] sm:$0xff]
    %v3485 = vld [vmem:[%s3477 + $0x38] sm:$0xff]
    %v3486 = vld [vmem:[%s3477 + $0x40] sm:$0xff]
    %v3487 = vld [vmem:[%s3477 + $0x48] sm:$0xff]
    %v3488 = vld [vmem:[%s3477 + $0x50] sm:$0xff]
    %v3489 = vld [vmem:[%s3477 + $0x58] sm:$0xff]
    %v3490 = vld [vmem:[%s3477 + $0x60] sm:$0xff]
    %v3491 = vld [vmem:[%s3477 + $0x68] sm:$0xff]
    %v3492 = vld [vmem:[%s3477 + $0x70] sm:$0xff]
    %v3493 = vld [vmem:[%s3477 + $0x78] sm:$0xff]
    %v3494 = vld [vmem:[%s3477 + $0x80] sm:$0xff]
    %v3495 = vld [vmem:[%s3477 + $0x88] sm:$0xff]
    %v3496 = vld [vmem:[%s3477 + $0x90] sm:$0xff]
    %v3497 = vld [vmem:[%s3477 + $0x98] sm:$0xff]
    %v3498 = vld [vmem:[%s3477 + $0xa0] sm:$0xff]
    %v3499 = vld [vmem:[%s3477 + $0xa8] sm:$0xff]
    %v3500 = vld [vmem:[%s3477 + $0xb0] sm:$0xff]
    %v3501 = vld [vmem:[%s3477 + $0xb8] sm:$0xff]
    %v3502 = vld [vmem:[%s3477 + $0xc0] sm:$0x3]
    %v3503 = vld [vmem:[%s3477 + $0xc8] sm:$0x3]
    %v3504 = vld [vmem:[%s3477 + $0xd0] sm:$0x3]
    %v3505 = vld [vmem:[%s3477 + $0xd8] sm:$0x3]
    %v3507 = vsel %vm1081, %v3481, 0
    %v3510 = vsel %vm1081, %v3485, 0
    %v3513 = vsel %vm1081, %v3489, 0
    %v3516 = vsel %vm1081, %v3493, 0
    %v3519 = vsel %vm1081, %v3497, 0
    %v3522 = vsel %vm1081, %v3501, 0
    %v3525 = vsel %vm1081, %v3505, 0
    %3527 = vmatpush.msra.mxu0 %v1047
    %3528 = vmatpush.msra.mxu0 %v1046
    %3529 = vmatpush.msra.mxu0 %v1045
    %3530 = vmatpush.msra.mxu0 %v1044
    %3531 = vmatpush.msra.mxu0 %v1043
    %3532 = vmatpush.msra.mxu0 %v1042
    %3533 = vmatpush.msra.mxu0 %v1041
    %3534 = vmatpush.msra.mxu0 %v1040
    %3535 = vmatpush.msra.mxu0 %v1039
    %3536 = vmatpush.msra.mxu0 %v1038
    %3537 = vmatpush.msra.mxu0 %v1037
    %3538 = vmatpush.msra.mxu0 %v1036
    %3539 = vmatpush.msra.mxu0 %v1035
    %3540 = vmatpush.msra.mxu0 %v1034
    %3541 = vmatpush.msra.mxu0 %v1033
    %3542 = vmatpush.msra.mxu0 %v1032
    %3543 = vmatmul.f32.gmra.mxu0 %v3478
    %v3544 = vpop.f32.mrf.mxu0
    %v3545 = vadd.f32 0.0, %v3544
    %3546 = vmatmul.f32.gmra.mxu0 %v3482
    %v3547 = vpop.f32.mrf.mxu0
    %v3548 = vadd.f32 0.0, %v3547
    %3549 = vmatmul.f32.gmra.mxu0 %v3486
    %v3550 = vpop.f32.mrf.mxu0
    %v3551 = vadd.f32 0.0, %v3550
    %3552 = vmatmul.f32.gmra.mxu0 %v3490
    %v3553 = vpop.f32.mrf.mxu0
    %v3554 = vadd.f32 0.0, %v3553
    %3555 = vmatmul.f32.gmra.mxu0 %v3494
    %v3556 = vpop.f32.mrf.mxu0
    %v3557 = vadd.f32 0.0, %v3556
    %3558 = vmatmul.f32.gmra.mxu0 %v3498
    %v3559 = vpop.f32.mrf.mxu0
    %v3560 = vadd.f32 0.0, %v3559
    %3561 = vmatmul.f32.gmra.mxu0 %v3502
    %v3562 = vpop.f32.mrf.mxu0
    %v3563 = vadd.f32 0.0, %v3562
    %3564 = vdwg.mxu0
    %3565 = vmatpush.msra.mxu0 %v1063
    %3566 = vmatpush.msra.mxu0 %v1062
    %3567 = vmatpush.msra.mxu0 %v1061
    %3568 = vmatpush.msra.mxu0 %v1060
    %3569 = vmatpush.msra.mxu0 %v1059
    %3570 = vmatpush.msra.mxu0 %v1058
    %3571 = vmatpush.msra.mxu0 %v1057
    %3572 = vmatpush.msra.mxu0 %v1056
    %3573 = vmatpush.msra.mxu0 %v1055
    %3574 = vmatpush.msra.mxu0 %v1054
    %3575 = vmatpush.msra.mxu0 %v1053
    %3576 = vmatpush.msra.mxu0 %v1052
    %3577 = vmatpush.msra.mxu0 %v1051
    %3578 = vmatpush.msra.mxu0 %v1050
    %3579 = vmatpush.msra.mxu0 %v1049
    %3580 = vmatpush.msra.mxu0 %v1048
    %3581 = vmatmul.f32.gmra.mxu0 %v3479
    %v3582 = vpop.f32.mrf.mxu0
    %v3583 = vadd.f32 %v3545, %v3582
    %3584 = vmatmul.f32.gmra.mxu0 %v3483
    %v3585 = vpop.f32.mrf.mxu0
    %v3586 = vadd.f32 %v3548, %v3585
    %3587 = vmatmul.f32.gmra.mxu0 %v3487
    %v3588 = vpop.f32.mrf.mxu0
    %v3589 = vadd.f32 %v3551, %v3588
    %3590 = vmatmul.f32.gmra.mxu0 %v3491
    %v3591 = vpop.f32.mrf.mxu0
    %v3592 = vadd.f32 %v3554, %v3591
    %3593 = vmatmul.f32.gmra.mxu0 %v3495
    %v3594 = vpop.f32.mrf.mxu0
    %v3595 = vadd.f32 %v3557, %v3594
    %3596 = vmatmul.f32.gmra.mxu0 %v3499
    %v3597 = vpop.f32.mrf.mxu0
    %v3598 = vadd.f32 %v3560, %v3597
    %3599 = vmatmul.f32.gmra.mxu0 %v3503
    %v3600 = vpop.f32.mrf.mxu0
    %v3601 = vadd.f32 %v3563, %v3600
    %3602 = vdwg.mxu0
    %3603 = vmatpush.msra.mxu0 %v1079
    %3604 = vmatpush.msra.mxu0 %v1078
    %3605 = vmatpush.msra.mxu0 %v1077
    %3606 = vmatpush.msra.mxu0 %v1076
    %3607 = vmatpush.msra.mxu0 %v1075
    %3608 = vmatpush.msra.mxu0 %v1074
    %3609 = vmatpush.msra.mxu0 %v1073
    %3610 = vmatpush.msra.mxu0 %v1072
    %3611 = vmatpush.msra.mxu0 %v1071
    %3612 = vmatpush.msra.mxu0 %v1070
    %3613 = vmatpush.msra.mxu0 %v1069
    %3614 = vmatpush.msra.mxu0 %v1068
    %3615 = vmatpush.msra.mxu0 %v1067
    %3616 = vmatpush.msra.mxu0 %v1066
    %3617 = vmatpush.msra.mxu0 %v1065
    %3618 = vmatpush.msra.mxu0 %v1064
    %3619 = vmatmul.f32.gmra.mxu0 %v3480
    %v3620 = vpop.f32.mrf.mxu0
    %v3621 = vadd.f32 %v3583, %v3620
    %3622 = vmatmul.f32.gmra.mxu0 %v3484
    %v3623 = vpop.f32.mrf.mxu0
    %v3624 = vadd.f32 %v3586, %v3623
    %3625 = vmatmul.f32.gmra.mxu0 %v3488
    %v3626 = vpop.f32.mrf.mxu0
    %v3627 = vadd.f32 %v3589, %v3626
    %3628 = vmatmul.f32.gmra.mxu0 %v3492
    %v3629 = vpop.f32.mrf.mxu0
    %v3630 = vadd.f32 %v3592, %v3629
    %3631 = vmatmul.f32.gmra.mxu0 %v3496
    %v3632 = vpop.f32.mrf.mxu0
    %v3633 = vadd.f32 %v3595, %v3632
    %3634 = vmatmul.f32.gmra.mxu0 %v3500
    %v3635 = vpop.f32.mrf.mxu0
    %v3636 = vadd.f32 %v3598, %v3635
    %3637 = vmatmul.f32.gmra.mxu0 %v3504
    %v3638 = vpop.f32.mrf.mxu0
    %v3639 = vadd.f32 %v3601, %v3638
    %3640 = vdwg.mxu0
    %3641 = vmatpush.msra.mxu0 0.0
    %3642 = vmatpush.msra.mxu0 0.0
    %3643 = vmatpush.msra.mxu0 0.0
    %3644 = vmatpush.msra.mxu0 0.0
    %3645 = vmatpush.msra.mxu0 0.0
    %3646 = vmatpush.msra.mxu0 0.0
    %3647 = vmatpush.msra.mxu0 0.0
    %3648 = vmatpush.msra.mxu0 0.0
    %3649 = vmatpush.msra.mxu0 0.0
    %3650 = vmatpush.msra.mxu0 0.0
    %3651 = vmatpush.msra.mxu0 0.0
    %3652 = vmatpush.msra.mxu0 0.0
    %3653 = vmatpush.msra.mxu0 0.0
    %3654 = vmatpush.msra.mxu0 0.0
    %3655 = vmatpush.msra.mxu0 0.0
    %3656 = vmatpush.msra.mxu0 %v1080
    %3657 = vmatmul.f32.gmra.mxu0 %v3507
    %v3658 = vpop.f32.mrf.mxu0
    %v3659 = vadd.f32 %v3621, %v3658
    %3660 = vmatmul.f32.gmra.mxu0 %v3510
    %v3661 = vpop.f32.mrf.mxu0
    %v3662 = vadd.f32 %v3624, %v3661
    %3663 = vmatmul.f32.gmra.mxu0 %v3513
    %v3664 = vpop.f32.mrf.mxu0
    %v3665 = vadd.f32 %v3627, %v3664
    %3666 = vmatmul.f32.gmra.mxu0 %v3516
    %v3667 = vpop.f32.mrf.mxu0
    %v3668 = vadd.f32 %v3630, %v3667
    %3669 = vmatmul.f32.gmra.mxu0 %v3519
    %v3670 = vpop.f32.mrf.mxu0
    %v3671 = vadd.f32 %v3633, %v3670
    %3672 = vmatmul.f32.gmra.mxu0 %v3522
    %v3673 = vpop.f32.mrf.mxu0
    %v3674 = vadd.f32 %v3636, %v3673
    %3675 = vmatmul.f32.gmra.mxu0 %v3525
    %v3676 = vpop.f32.mrf.mxu0
    %v3677 = vadd.f32 %v3639, %v3676
    %3678 = vdwg.mxu0
    %s3679 = scalar_lea.vmem %s5, 144
    %v3680 = vld [vmem:[%s3679] sm:$0xff]
    %v3681 = vld [vmem:[%s3679 + $0x8] sm:$0xff]
    %v3683 = vsel %vm428, %v3659, 0
    %v3686 = vsel %vm428, %v3662, 0
    %v3689 = vsel %vm428, %v3665, 0
    %v3692 = vsel %vm428, %v3668, 0
    %v3695 = vsel %vm428, %v3671, 0
    %v3698 = vsel %vm428, %v3674, 0
    %v3701 = vsel %vm428, %v3677, 0
    %3703 = vmatpush.msra.mxu0 0.0
    %3704 = vmatpush.msra.mxu0 0.0
    %3705 = vmatpush.msra.mxu0 0.0
    %3706 = vmatpush.msra.mxu0 0.0
    %3707 = vmatpush.msra.mxu0 0.0
    %3708 = vmatpush.msra.mxu0 0.0
    %3709 = vmatpush.msra.mxu0 0.0
    %3710 = vmatpush.msra.mxu0 0.0
    %3711 = vmatpush.msra.mxu0 0.0
    %3712 = vmatpush.msra.mxu0 0.0
    %3713 = vmatpush.msra.mxu0 0.0
    %3714 = vmatpush.msra.mxu0 0.0
    %3715 = vmatpush.msra.mxu0 0.0
    %3716 = vmatpush.msra.mxu0 0.0
    %3717 = vmatpush.msra.mxu0 %v3681
    %3718 = vmatpush.msra.mxu0 %v3680
    %3719 = vmatmul.f32.gmra.mxu0 %v3683
    %v3720 = vpop.f32.mrf.mxu0
    %v3721 = vadd.f32 0.0, %v3720
    %3722 = vmatmul.f32.gmra.mxu0 %v3686
    %v3723 = vpop.f32.mrf.mxu0
    %v3724 = vadd.f32 0.0, %v3723
    %3725 = vmatmul.f32.gmra.mxu0 %v3689
    %v3726 = vpop.f32.mrf.mxu0
    %v3727 = vadd.f32 0.0, %v3726
    %3728 = vmatmul.f32.gmra.mxu0 %v3692
    %v3729 = vpop.f32.mrf.mxu0
    %v3730 = vadd.f32 0.0, %v3729
    %3731 = vmatmul.f32.gmra.mxu0 %v3695
    %v3732 = vpop.f32.mrf.mxu0
    %v3733 = vadd.f32 0.0, %v3732
    %3734 = vmatmul.f32.gmra.mxu0 %v3698
    %v3735 = vpop.f32.mrf.mxu0
    %v3736 = vadd.f32 0.0, %v3735
    %3737 = vmatmul.f32.gmra.mxu0 %v3701
    %v3738 = vpop.f32.mrf.mxu0
    %v3739 = vadd.f32 0.0, %v3738
    %3740 = vdwg.mxu0
    %v3741 = vadd.f32 %v3470, %v3721
    %v3742 = vadd.f32 %v3471, %v3724
    %v3743 = vadd.f32 %v3472, %v3727
    %v3744 = vadd.f32 %v3473, %v3730
    %v3745 = vadd.f32 %v3474, %v3733
    %v3746 = vadd.f32 %v3475, %v3736
    %v3747 = vadd.f32 %v3476, %v3739
    %s3748 = scalar_lea.vmem %s4, 2240
    %v3749 = vld [vmem:[%s3748] sm:$0xff]
    %v3750 = vld [vmem:[%s3748 + $0x8] sm:$0xff]
    %v3751 = vld [vmem:[%s3748 + $0x10] sm:$0xff]
    %v3752 = vld [vmem:[%s3748 + $0x18] sm:$0xff]
    %v3753 = vld [vmem:[%s3748 + $0x20] sm:$0xff]
    %v3754 = vld [vmem:[%s3748 + $0x28] sm:$0xff]
    %v3755 = vld [vmem:[%s3748 + $0x30] sm:$0xff]
    %v3756 = vld [vmem:[%s3748 + $0x38] sm:$0xff]
    %v3757 = vld [vmem:[%s3748 + $0x40] sm:$0xff]
    %v3758 = vld [vmem:[%s3748 + $0x48] sm:$0xff]
    %v3759 = vld [vmem:[%s3748 + $0x50] sm:$0xff]
    %v3760 = vld [vmem:[%s3748 + $0x58] sm:$0xff]
    %v3761 = vld [vmem:[%s3748 + $0x60] sm:$0xff]
    %v3762 = vld [vmem:[%s3748 + $0x68] sm:$0xff]
    %v3763 = vld [vmem:[%s3748 + $0x70] sm:$0xff]
    %v3764 = vld [vmem:[%s3748 + $0x78] sm:$0xff]
    %v3765 = vld [vmem:[%s3748 + $0x80] sm:$0xff]
    %v3766 = vld [vmem:[%s3748 + $0x88] sm:$0xff]
    %v3767 = vld [vmem:[%s3748 + $0x90] sm:$0xff]
    %v3768 = vld [vmem:[%s3748 + $0x98] sm:$0xff]
    %v3769 = vld [vmem:[%s3748 + $0xa0] sm:$0xff]
    %v3770 = vld [vmem:[%s3748 + $0xa8] sm:$0xff]
    %v3771 = vld [vmem:[%s3748 + $0xb0] sm:$0xff]
    %v3772 = vld [vmem:[%s3748 + $0xb8] sm:$0xff]
    %v3773 = vld [vmem:[%s3748 + $0xc0] sm:$0x3]
    %v3774 = vld [vmem:[%s3748 + $0xc8] sm:$0x3]
    %v3775 = vld [vmem:[%s3748 + $0xd0] sm:$0x3]
    %v3776 = vld [vmem:[%s3748 + $0xd8] sm:$0x3]
    %v3778 = vsel %vm1081, %v3752, 0
    %v3781 = vsel %vm1081, %v3756, 0
    %v3784 = vsel %vm1081, %v3760, 0
    %v3787 = vsel %vm1081, %v3764, 0
    %v3790 = vsel %vm1081, %v3768, 0
    %v3793 = vsel %vm1081, %v3772, 0
    %v3796 = vsel %vm1081, %v3776, 0
    %3798 = vmatpush.msra.mxu0 %v1047
    %3799 = vmatpush.msra.mxu0 %v1046
    %3800 = vmatpush.msra.mxu0 %v1045
    %3801 = vmatpush.msra.mxu0 %v1044
    %3802 = vmatpush.msra.mxu0 %v1043
    %3803 = vmatpush.msra.mxu0 %v1042
    %3804 = vmatpush.msra.mxu0 %v1041
    %3805 = vmatpush.msra.mxu0 %v1040
    %3806 = vmatpush.msra.mxu0 %v1039
    %3807 = vmatpush.msra.mxu0 %v1038
    %3808 = vmatpush.msra.mxu0 %v1037
    %3809 = vmatpush.msra.mxu0 %v1036
    %3810 = vmatpush.msra.mxu0 %v1035
    %3811 = vmatpush.msra.mxu0 %v1034
    %3812 = vmatpush.msra.mxu0 %v1033
    %3813 = vmatpush.msra.mxu0 %v1032
    %3814 = vmatmul.f32.gmra.mxu0 %v3749
    %v3815 = vpop.f32.mrf.mxu0
    %v3816 = vadd.f32 0.0, %v3815
    %3817 = vmatmul.f32.gmra.mxu0 %v3753
    %v3818 = vpop.f32.mrf.mxu0
    %v3819 = vadd.f32 0.0, %v3818
    %3820 = vmatmul.f32.gmra.mxu0 %v3757
    %v3821 = vpop.f32.mrf.mxu0
    %v3822 = vadd.f32 0.0, %v3821
    %3823 = vmatmul.f32.gmra.mxu0 %v3761
    %v3824 = vpop.f32.mrf.mxu0
    %v3825 = vadd.f32 0.0, %v3824
    %3826 = vmatmul.f32.gmra.mxu0 %v3765
    %v3827 = vpop.f32.mrf.mxu0
    %v3828 = vadd.f32 0.0, %v3827
    %3829 = vmatmul.f32.gmra.mxu0 %v3769
    %v3830 = vpop.f32.mrf.mxu0
    %v3831 = vadd.f32 0.0, %v3830
    %3832 = vmatmul.f32.gmra.mxu0 %v3773
    %v3833 = vpop.f32.mrf.mxu0
    %v3834 = vadd.f32 0.0, %v3833
    %3835 = vdwg.mxu0
    %3836 = vmatpush.msra.mxu0 %v1063
    %3837 = vmatpush.msra.mxu0 %v1062
    %3838 = vmatpush.msra.mxu0 %v1061
    %3839 = vmatpush.msra.mxu0 %v1060
    %3840 = vmatpush.msra.mxu0 %v1059
    %3841 = vmatpush.msra.mxu0 %v1058
    %3842 = vmatpush.msra.mxu0 %v1057
    %3843 = vmatpush.msra.mxu0 %v1056
    %3844 = vmatpush.msra.mxu0 %v1055
    %3845 = vmatpush.msra.mxu0 %v1054
    %3846 = vmatpush.msra.mxu0 %v1053
    %3847 = vmatpush.msra.mxu0 %v1052
    %3848 = vmatpush.msra.mxu0 %v1051
    %3849 = vmatpush.msra.mxu0 %v1050
    %3850 = vmatpush.msra.mxu0 %v1049
    %3851 = vmatpush.msra.mxu0 %v1048
    %3852 = vmatmul.f32.gmra.mxu0 %v3750
    %v3853 = vpop.f32.mrf.mxu0
    %v3854 = vadd.f32 %v3816, %v3853
    %3855 = vmatmul.f32.gmra.mxu0 %v3754
    %v3856 = vpop.f32.mrf.mxu0
    %v3857 = vadd.f32 %v3819, %v3856
    %3858 = vmatmul.f32.gmra.mxu0 %v3758
    %v3859 = vpop.f32.mrf.mxu0
    %v3860 = vadd.f32 %v3822, %v3859
    %3861 = vmatmul.f32.gmra.mxu0 %v3762
    %v3862 = vpop.f32.mrf.mxu0
    %v3863 = vadd.f32 %v3825, %v3862
    %3864 = vmatmul.f32.gmra.mxu0 %v3766
    %v3865 = vpop.f32.mrf.mxu0
    %v3866 = vadd.f32 %v3828, %v3865
    %3867 = vmatmul.f32.gmra.mxu0 %v3770
    %v3868 = vpop.f32.mrf.mxu0
    %v3869 = vadd.f32 %v3831, %v3868
    %3870 = vmatmul.f32.gmra.mxu0 %v3774
    %v3871 = vpop.f32.mrf.mxu0
    %v3872 = vadd.f32 %v3834, %v3871
    %3873 = vdwg.mxu0
    %3874 = vmatpush.msra.mxu0 %v1079
    %3875 = vmatpush.msra.mxu0 %v1078
    %3876 = vmatpush.msra.mxu0 %v1077
    %3877 = vmatpush.msra.mxu0 %v1076
    %3878 = vmatpush.msra.mxu0 %v1075
    %3879 = vmatpush.msra.mxu0 %v1074
    %3880 = vmatpush.msra.mxu0 %v1073
    %3881 = vmatpush.msra.mxu0 %v1072
    %3882 = vmatpush.msra.mxu0 %v1071
    %3883 = vmatpush.msra.mxu0 %v1070
    %3884 = vmatpush.msra.mxu0 %v1069
    %3885 = vmatpush.msra.mxu0 %v1068
    %3886 = vmatpush.msra.mxu0 %v1067
    %3887 = vmatpush.msra.mxu0 %v1066
    %3888 = vmatpush.msra.mxu0 %v1065
    %3889 = vmatpush.msra.mxu0 %v1064
    %3890 = vmatmul.f32.gmra.mxu0 %v3751
    %v3891 = vpop.f32.mrf.mxu0
    %v3892 = vadd.f32 %v3854, %v3891
    %3893 = vmatmul.f32.gmra.mxu0 %v3755
    %v3894 = vpop.f32.mrf.mxu0
    %v3895 = vadd.f32 %v3857, %v3894
    %3896 = vmatmul.f32.gmra.mxu0 %v3759
    %v3897 = vpop.f32.mrf.mxu0
    %v3898 = vadd.f32 %v3860, %v3897
    %3899 = vmatmul.f32.gmra.mxu0 %v3763
    %v3900 = vpop.f32.mrf.mxu0
    %v3901 = vadd.f32 %v3863, %v3900
    %3902 = vmatmul.f32.gmra.mxu0 %v3767
    %v3903 = vpop.f32.mrf.mxu0
    %v3904 = vadd.f32 %v3866, %v3903
    %3905 = vmatmul.f32.gmra.mxu0 %v3771
    %v3906 = vpop.f32.mrf.mxu0
    %v3907 = vadd.f32 %v3869, %v3906
    %3908 = vmatmul.f32.gmra.mxu0 %v3775
    %v3909 = vpop.f32.mrf.mxu0
    %v3910 = vadd.f32 %v3872, %v3909
    %3911 = vdwg.mxu0
    %3912 = vmatpush.msra.mxu0 0.0
    %3913 = vmatpush.msra.mxu0 0.0
    %3914 = vmatpush.msra.mxu0 0.0
    %3915 = vmatpush.msra.mxu0 0.0
    %3916 = vmatpush.msra.mxu0 0.0
    %3917 = vmatpush.msra.mxu0 0.0
    %3918 = vmatpush.msra.mxu0 0.0
    %3919 = vmatpush.msra.mxu0 0.0
    %3920 = vmatpush.msra.mxu0 0.0
    %3921 = vmatpush.msra.mxu0 0.0
    %3922 = vmatpush.msra.mxu0 0.0
    %3923 = vmatpush.msra.mxu0 0.0
    %3924 = vmatpush.msra.mxu0 0.0
    %3925 = vmatpush.msra.mxu0 0.0
    %3926 = vmatpush.msra.mxu0 0.0
    %3927 = vmatpush.msra.mxu0 %v1080
    %3928 = vmatmul.f32.gmra.mxu0 %v3778
    %v3929 = vpop.f32.mrf.mxu0
    %v3930 = vadd.f32 %v3892, %v3929
    %3931 = vmatmul.f32.gmra.mxu0 %v3781
    %v3932 = vpop.f32.mrf.mxu0
    %v3933 = vadd.f32 %v3895, %v3932
    %3934 = vmatmul.f32.gmra.mxu0 %v3784
    %v3935 = vpop.f32.mrf.mxu0
    %v3936 = vadd.f32 %v3898, %v3935
    %3937 = vmatmul.f32.gmra.mxu0 %v3787
    %v3938 = vpop.f32.mrf.mxu0
    %v3939 = vadd.f32 %v3901, %v3938
    %3940 = vmatmul.f32.gmra.mxu0 %v3790
    %v3941 = vpop.f32.mrf.mxu0
    %v3942 = vadd.f32 %v3904, %v3941
    %3943 = vmatmul.f32.gmra.mxu0 %v3793
    %v3944 = vpop.f32.mrf.mxu0
    %v3945 = vadd.f32 %v3907, %v3944
    %3946 = vmatmul.f32.gmra.mxu0 %v3796
    %v3947 = vpop.f32.mrf.mxu0
    %v3948 = vadd.f32 %v3910, %v3947
    %3949 = vdwg.mxu0
    %s3950 = scalar_lea.vmem %s5, 160
    %v3951 = vld [vmem:[%s3950] sm:$0xff]
    %v3952 = vld [vmem:[%s3950 + $0x8] sm:$0xff]
    %v3954 = vsel %vm428, %v3930, 0
    %v3957 = vsel %vm428, %v3933, 0
    %v3960 = vsel %vm428, %v3936, 0
    %v3963 = vsel %vm428, %v3939, 0
    %v3966 = vsel %vm428, %v3942, 0
    %v3969 = vsel %vm428, %v3945, 0
    %v3972 = vsel %vm428, %v3948, 0
    %3974 = vmatpush.msra.mxu0 0.0
    %3975 = vmatpush.msra.mxu0 0.0
    %3976 = vmatpush.msra.mxu0 0.0
    %3977 = vmatpush.msra.mxu0 0.0
    %3978 = vmatpush.msra.mxu0 0.0
    %3979 = vmatpush.msra.mxu0 0.0
    %3980 = vmatpush.msra.mxu0 0.0
    %3981 = vmatpush.msra.mxu0 0.0
    %3982 = vmatpush.msra.mxu0 0.0
    %3983 = vmatpush.msra.mxu0 0.0
    %3984 = vmatpush.msra.mxu0 0.0
    %3985 = vmatpush.msra.mxu0 0.0
    %3986 = vmatpush.msra.mxu0 0.0
    %3987 = vmatpush.msra.mxu0 0.0
    %3988 = vmatpush.msra.mxu0 %v3952
    %3989 = vmatpush.msra.mxu0 %v3951
    %3990 = vmatmul.f32.gmra.mxu0 %v3954
    %v3991 = vpop.f32.mrf.mxu0
    %v3992 = vadd.f32 0.0, %v3991
    %3993 = vmatmul.f32.gmra.mxu0 %v3957
    %v3994 = vpop.f32.mrf.mxu0
    %v3995 = vadd.f32 0.0, %v3994
    %3996 = vmatmul.f32.gmra.mxu0 %v3960
    %v3997 = vpop.f32.mrf.mxu0
    %v3998 = vadd.f32 0.0, %v3997
    %3999 = vmatmul.f32.gmra.mxu0 %v3963
    %v4000 = vpop.f32.mrf.mxu0
    %v4001 = vadd.f32 0.0, %v4000
    %4002 = vmatmul.f32.gmra.mxu0 %v3966
    %v4003 = vpop.f32.mrf.mxu0
    %v4004 = vadd.f32 0.0, %v4003
    %4005 = vmatmul.f32.gmra.mxu0 %v3969
    %v4006 = vpop.f32.mrf.mxu0
    %v4007 = vadd.f32 0.0, %v4006
    %4008 = vmatmul.f32.gmra.mxu0 %v3972
    %v4009 = vpop.f32.mrf.mxu0
    %v4010 = vadd.f32 0.0, %v4009
    %4011 = vdwg.mxu0
    %v4012 = vadd.f32 %v3741, %v3992
    %v4013 = vadd.f32 %v3742, %v3995
    %v4014 = vadd.f32 %v3743, %v3998
    %v4015 = vadd.f32 %v3744, %v4001
    %v4016 = vadd.f32 %v3745, %v4004
    %v4017 = vadd.f32 %v3746, %v4007
    %v4018 = vadd.f32 %v3747, %v4010
    %s4019 = scalar_lea.vmem %s4, 2464
    %v4020 = vld [vmem:[%s4019] sm:$0xff]
    %v4021 = vld [vmem:[%s4019 + $0x8] sm:$0xff]
    %v4022 = vld [vmem:[%s4019 + $0x10] sm:$0xff]
    %v4023 = vld [vmem:[%s4019 + $0x18] sm:$0xff]
    %v4024 = vld [vmem:[%s4019 + $0x20] sm:$0xff]
    %v4025 = vld [vmem:[%s4019 + $0x28] sm:$0xff]
    %v4026 = vld [vmem:[%s4019 + $0x30] sm:$0xff]
    %v4027 = vld [vmem:[%s4019 + $0x38] sm:$0xff]
    %v4028 = vld [vmem:[%s4019 + $0x40] sm:$0xff]
    %v4029 = vld [vmem:[%s4019 + $0x48] sm:$0xff]
    %v4030 = vld [vmem:[%s4019 + $0x50] sm:$0xff]
    %v4031 = vld [vmem:[%s4019 + $0x58] sm:$0xff]
    %v4032 = vld [vmem:[%s4019 + $0x60] sm:$0xff]
    %v4033 = vld [vmem:[%s4019 + $0x68] sm:$0xff]
    %v4034 = vld [vmem:[%s4019 + $0x70] sm:$0xff]
    %v4035 = vld [vmem:[%s4019 + $0x78] sm:$0xff]
    %v4036 = vld [vmem:[%s4019 + $0x80] sm:$0xff]
    %v4037 = vld [vmem:[%s4019 + $0x88] sm:$0xff]
    %v4038 = vld [vmem:[%s4019 + $0x90] sm:$0xff]
    %v4039 = vld [vmem:[%s4019 + $0x98] sm:$0xff]
    %v4040 = vld [vmem:[%s4019 + $0xa0] sm:$0xff]
    %v4041 = vld [vmem:[%s4019 + $0xa8] sm:$0xff]
    %v4042 = vld [vmem:[%s4019 + $0xb0] sm:$0xff]
    %v4043 = vld [vmem:[%s4019 + $0xb8] sm:$0xff]
    %v4044 = vld [vmem:[%s4019 + $0xc0] sm:$0x3]
    %v4045 = vld [vmem:[%s4019 + $0xc8] sm:$0x3]
    %v4046 = vld [vmem:[%s4019 + $0xd0] sm:$0x3]
    %v4047 = vld [vmem:[%s4019 + $0xd8] sm:$0x3]
    %v4049 = vsel %vm1081, %v4023, 0
    %v4052 = vsel %vm1081, %v4027, 0
    %v4055 = vsel %vm1081, %v4031, 0
    %v4058 = vsel %vm1081, %v4035, 0
    %v4061 = vsel %vm1081, %v4039, 0
    %v4064 = vsel %vm1081, %v4043, 0
    %v4067 = vsel %vm1081, %v4047, 0
    %4069 = vmatpush.msra.mxu0 %v1047
    %4070 = vmatpush.msra.mxu0 %v1046
    %4071 = vmatpush.msra.mxu0 %v1045
    %4072 = vmatpush.msra.mxu0 %v1044
    %4073 = vmatpush.msra.mxu0 %v1043
    %4074 = vmatpush.msra.mxu0 %v1042
    %4075 = vmatpush.msra.mxu0 %v1041
    %4076 = vmatpush.msra.mxu0 %v1040
    %4077 = vmatpush.msra.mxu0 %v1039
    %4078 = vmatpush.msra.mxu0 %v1038
    %4079 = vmatpush.msra.mxu0 %v1037
    %4080 = vmatpush.msra.mxu0 %v1036
    %4081 = vmatpush.msra.mxu0 %v1035
    %4082 = vmatpush.msra.mxu0 %v1034
    %4083 = vmatpush.msra.mxu0 %v1033
    %4084 = vmatpush.msra.mxu0 %v1032
    %4085 = vmatmul.f32.gmra.mxu0 %v4020
    %v4086 = vpop.f32.mrf.mxu0
    %v4087 = vadd.f32 0.0, %v4086
    %4088 = vmatmul.f32.gmra.mxu0 %v4024
    %v4089 = vpop.f32.mrf.mxu0
    %v4090 = vadd.f32 0.0, %v4089
    %4091 = vmatmul.f32.gmra.mxu0 %v4028
    %v4092 = vpop.f32.mrf.mxu0
    %v4093 = vadd.f32 0.0, %v4092
    %4094 = vmatmul.f32.gmra.mxu0 %v4032
    %v4095 = vpop.f32.mrf.mxu0
    %v4096 = vadd.f32 0.0, %v4095
    %4097 = vmatmul.f32.gmra.mxu0 %v4036
    %v4098 = vpop.f32.mrf.mxu0
    %v4099 = vadd.f32 0.0, %v4098
    %4100 = vmatmul.f32.gmra.mxu0 %v4040
    %v4101 = vpop.f32.mrf.mxu0
    %v4102 = vadd.f32 0.0, %v4101
    %4103 = vmatmul.f32.gmra.mxu0 %v4044
    %v4104 = vpop.f32.mrf.mxu0
    %v4105 = vadd.f32 0.0, %v4104
    %4106 = vdwg.mxu0
    %4107 = vmatpush.msra.mxu0 %v1063
    %4108 = vmatpush.msra.mxu0 %v1062
    %4109 = vmatpush.msra.mxu0 %v1061
    %4110 = vmatpush.msra.mxu0 %v1060
    %4111 = vmatpush.msra.mxu0 %v1059
    %4112 = vmatpush.msra.mxu0 %v1058
    %4113 = vmatpush.msra.mxu0 %v1057
    %4114 = vmatpush.msra.mxu0 %v1056
    %4115 = vmatpush.msra.mxu0 %v1055
    %4116 = vmatpush.msra.mxu0 %v1054
    %4117 = vmatpush.msra.mxu0 %v1053
    %4118 = vmatpush.msra.mxu0 %v1052
    %4119 = vmatpush.msra.mxu0 %v1051
    %4120 = vmatpush.msra.mxu0 %v1050
    %4121 = vmatpush.msra.mxu0 %v1049
    %4122 = vmatpush.msra.mxu0 %v1048
    %4123 = vmatmul.f32.gmra.mxu0 %v4021
    %v4124 = vpop.f32.mrf.mxu0
    %v4125 = vadd.f32 %v4087, %v4124
    %4126 = vmatmul.f32.gmra.mxu0 %v4025
    %v4127 = vpop.f32.mrf.mxu0
    %v4128 = vadd.f32 %v4090, %v4127
    %4129 = vmatmul.f32.gmra.mxu0 %v4029
    %v4130 = vpop.f32.mrf.mxu0
    %v4131 = vadd.f32 %v4093, %v4130
    %4132 = vmatmul.f32.gmra.mxu0 %v4033
    %v4133 = vpop.f32.mrf.mxu0
    %v4134 = vadd.f32 %v4096, %v4133
    %4135 = vmatmul.f32.gmra.mxu0 %v4037
    %v4136 = vpop.f32.mrf.mxu0
    %v4137 = vadd.f32 %v4099, %v4136
    %4138 = vmatmul.f32.gmra.mxu0 %v4041
    %v4139 = vpop.f32.mrf.mxu0
    %v4140 = vadd.f32 %v4102, %v4139
    %4141 = vmatmul.f32.gmra.mxu0 %v4045
    %v4142 = vpop.f32.mrf.mxu0
    %v4143 = vadd.f32 %v4105, %v4142
    %4144 = vdwg.mxu0
    %4145 = vmatpush.msra.mxu0 %v1079
    %4146 = vmatpush.msra.mxu0 %v1078
    %4147 = vmatpush.msra.mxu0 %v1077
    %4148 = vmatpush.msra.mxu0 %v1076
    %4149 = vmatpush.msra.mxu0 %v1075
    %4150 = vmatpush.msra.mxu0 %v1074
    %4151 = vmatpush.msra.mxu0 %v1073
    %4152 = vmatpush.msra.mxu0 %v1072
    %4153 = vmatpush.msra.mxu0 %v1071
    %4154 = vmatpush.msra.mxu0 %v1070
    %4155 = vmatpush.msra.mxu0 %v1069
    %4156 = vmatpush.msra.mxu0 %v1068
    %4157 = vmatpush.msra.mxu0 %v1067
    %4158 = vmatpush.msra.mxu0 %v1066
    %4159 = vmatpush.msra.mxu0 %v1065
    %4160 = vmatpush.msra.mxu0 %v1064
    %4161 = vmatmul.f32.gmra.mxu0 %v4022
    %v4162 = vpop.f32.mrf.mxu0
    %v4163 = vadd.f32 %v4125, %v4162
    %4164 = vmatmul.f32.gmra.mxu0 %v4026
    %v4165 = vpop.f32.mrf.mxu0
    %v4166 = vadd.f32 %v4128, %v4165
    %4167 = vmatmul.f32.gmra.mxu0 %v4030
    %v4168 = vpop.f32.mrf.mxu0
    %v4169 = vadd.f32 %v4131, %v4168
    %4170 = vmatmul.f32.gmra.mxu0 %v4034
    %v4171 = vpop.f32.mrf.mxu0
    %v4172 = vadd.f32 %v4134, %v4171
    %4173 = vmatmul.f32.gmra.mxu0 %v4038
    %v4174 = vpop.f32.mrf.mxu0
    %v4175 = vadd.f32 %v4137, %v4174
    %4176 = vmatmul.f32.gmra.mxu0 %v4042
    %v4177 = vpop.f32.mrf.mxu0
    %v4178 = vadd.f32 %v4140, %v4177
    %4179 = vmatmul.f32.gmra.mxu0 %v4046
    %v4180 = vpop.f32.mrf.mxu0
    %v4181 = vadd.f32 %v4143, %v4180
    %4182 = vdwg.mxu0
    %4183 = vmatpush.msra.mxu0 0.0
    %4184 = vmatpush.msra.mxu0 0.0
    %4185 = vmatpush.msra.mxu0 0.0
    %4186 = vmatpush.msra.mxu0 0.0
    %4187 = vmatpush.msra.mxu0 0.0
    %4188 = vmatpush.msra.mxu0 0.0
    %4189 = vmatpush.msra.mxu0 0.0
    %4190 = vmatpush.msra.mxu0 0.0
    %4191 = vmatpush.msra.mxu0 0.0
    %4192 = vmatpush.msra.mxu0 0.0
    %4193 = vmatpush.msra.mxu0 0.0
    %4194 = vmatpush.msra.mxu0 0.0
    %4195 = vmatpush.msra.mxu0 0.0
    %4196 = vmatpush.msra.mxu0 0.0
    %4197 = vmatpush.msra.mxu0 0.0
    %4198 = vmatpush.msra.mxu0 %v1080
    %4199 = vmatmul.f32.gmra.mxu0 %v4049
    %v4200 = vpop.f32.mrf.mxu0
    %v4201 = vadd.f32 %v4163, %v4200
    %4202 = vmatmul.f32.gmra.mxu0 %v4052
    %v4203 = vpop.f32.mrf.mxu0
    %v4204 = vadd.f32 %v4166, %v4203
    %4205 = vmatmul.f32.gmra.mxu0 %v4055
    %v4206 = vpop.f32.mrf.mxu0
    %v4207 = vadd.f32 %v4169, %v4206
    %4208 = vmatmul.f32.gmra.mxu0 %v4058
    %v4209 = vpop.f32.mrf.mxu0
    %v4210 = vadd.f32 %v4172, %v4209
    %4211 = vmatmul.f32.gmra.mxu0 %v4061
    %v4212 = vpop.f32.mrf.mxu0
    %v4213 = vadd.f32 %v4175, %v4212
    %4214 = vmatmul.f32.gmra.mxu0 %v4064
    %v4215 = vpop.f32.mrf.mxu0
    %v4216 = vadd.f32 %v4178, %v4215
    %4217 = vmatmul.f32.gmra.mxu0 %v4067
    %v4218 = vpop.f32.mrf.mxu0
    %v4219 = vadd.f32 %v4181, %v4218
    %4220 = vdwg.mxu0
    %s4221 = scalar_lea.vmem %s5, 176
    %v4222 = vld [vmem:[%s4221] sm:$0xff]
    %v4223 = vld [vmem:[%s4221 + $0x8] sm:$0xff]
    %v4225 = vsel %vm428, %v4201, 0
    %v4228 = vsel %vm428, %v4204, 0
    %v4231 = vsel %vm428, %v4207, 0
    %v4234 = vsel %vm428, %v4210, 0
    %v4237 = vsel %vm428, %v4213, 0
    %v4240 = vsel %vm428, %v4216, 0
    %v4243 = vsel %vm428, %v4219, 0
    %4245 = vmatpush.msra.mxu0 0.0
    %4246 = vmatpush.msra.mxu0 0.0
    %4247 = vmatpush.msra.mxu0 0.0
    %4248 = vmatpush.msra.mxu0 0.0
    %4249 = vmatpush.msra.mxu0 0.0
    %4250 = vmatpush.msra.mxu0 0.0
    %4251 = vmatpush.msra.mxu0 0.0
    %4252 = vmatpush.msra.mxu0 0.0
    %4253 = vmatpush.msra.mxu0 0.0
    %4254 = vmatpush.msra.mxu0 0.0
    %4255 = vmatpush.msra.mxu0 0.0
    %4256 = vmatpush.msra.mxu0 0.0
    %4257 = vmatpush.msra.mxu0 0.0
    %4258 = vmatpush.msra.mxu0 0.0
    %4259 = vmatpush.msra.mxu0 %v4223
    %4260 = vmatpush.msra.mxu0 %v4222
    %4261 = vmatmul.f32.gmra.mxu0 %v4225
    %v4262 = vpop.f32.mrf.mxu0
    %v4263 = vadd.f32 0.0, %v4262
    %4264 = vmatmul.f32.gmra.mxu0 %v4228
    %v4265 = vpop.f32.mrf.mxu0
    %v4266 = vadd.f32 0.0, %v4265
    %4267 = vmatmul.f32.gmra.mxu0 %v4231
    %v4268 = vpop.f32.mrf.mxu0
    %v4269 = vadd.f32 0.0, %v4268
    %4270 = vmatmul.f32.gmra.mxu0 %v4234
    %v4271 = vpop.f32.mrf.mxu0
    %v4272 = vadd.f32 0.0, %v4271
    %4273 = vmatmul.f32.gmra.mxu0 %v4237
    %v4274 = vpop.f32.mrf.mxu0
    %v4275 = vadd.f32 0.0, %v4274
    %4276 = vmatmul.f32.gmra.mxu0 %v4240
    %v4277 = vpop.f32.mrf.mxu0
    %v4278 = vadd.f32 0.0, %v4277
    %4279 = vmatmul.f32.gmra.mxu0 %v4243
    %v4280 = vpop.f32.mrf.mxu0
    %v4281 = vadd.f32 0.0, %v4280
    %4282 = vdwg.mxu0
    %v4283 = vadd.f32 %v4012, %v4263
    %v4284 = vadd.f32 %v4013, %v4266
    %v4285 = vadd.f32 %v4014, %v4269
    %v4286 = vadd.f32 %v4015, %v4272
    %v4287 = vadd.f32 %v4016, %v4275
    %v4288 = vadd.f32 %v4017, %v4278
    %v4289 = vadd.f32 %v4018, %v4281
    %s4290 = scalar_lea.vmem %s4, 2688
    %v4291 = vld [vmem:[%s4290] sm:$0xff]
    %v4292 = vld [vmem:[%s4290 + $0x8] sm:$0xff]
    %v4293 = vld [vmem:[%s4290 + $0x10] sm:$0xff]
    %v4294 = vld [vmem:[%s4290 + $0x18] sm:$0xff]
    %v4295 = vld [vmem:[%s4290 + $0x20] sm:$0xff]
    %v4296 = vld [vmem:[%s4290 + $0x28] sm:$0xff]
    %v4297 = vld [vmem:[%s4290 + $0x30] sm:$0xff]
    %v4298 = vld [vmem:[%s4290 + $0x38] sm:$0xff]
    %v4299 = vld [vmem:[%s4290 + $0x40] sm:$0xff]
    %v4300 = vld [vmem:[%s4290 + $0x48] sm:$0xff]
    %v4301 = vld [vmem:[%s4290 + $0x50] sm:$0xff]
    %v4302 = vld [vmem:[%s4290 + $0x58] sm:$0xff]
    %v4303 = vld [vmem:[%s4290 + $0x60] sm:$0xff]
    %v4304 = vld [vmem:[%s4290 + $0x68] sm:$0xff]
    %v4305 = vld [vmem:[%s4290 + $0x70] sm:$0xff]
    %v4306 = vld [vmem:[%s4290 + $0x78] sm:$0xff]
    %v4307 = vld [vmem:[%s4290 + $0x80] sm:$0xff]
    %v4308 = vld [vmem:[%s4290 + $0x88] sm:$0xff]
    %v4309 = vld [vmem:[%s4290 + $0x90] sm:$0xff]
    %v4310 = vld [vmem:[%s4290 + $0x98] sm:$0xff]
    %v4311 = vld [vmem:[%s4290 + $0xa0] sm:$0xff]
    %v4312 = vld [vmem:[%s4290 + $0xa8] sm:$0xff]
    %v4313 = vld [vmem:[%s4290 + $0xb0] sm:$0xff]
    %v4314 = vld [vmem:[%s4290 + $0xb8] sm:$0xff]
    %v4315 = vld [vmem:[%s4290 + $0xc0] sm:$0x3]
    %v4316 = vld [vmem:[%s4290 + $0xc8] sm:$0x3]
    %v4317 = vld [vmem:[%s4290 + $0xd0] sm:$0x3]
    %v4318 = vld [vmem:[%s4290 + $0xd8] sm:$0x3]
    %v4320 = vsel %vm1081, %v4294, 0
    %v4323 = vsel %vm1081, %v4298, 0
    %v4326 = vsel %vm1081, %v4302, 0
    %v4329 = vsel %vm1081, %v4306, 0
    %v4332 = vsel %vm1081, %v4310, 0
    %v4335 = vsel %vm1081, %v4314, 0
    %v4338 = vsel %vm1081, %v4318, 0
    %4340 = vmatpush.msra.mxu0 %v1047
    %4341 = vmatpush.msra.mxu0 %v1046
    %4342 = vmatpush.msra.mxu0 %v1045
    %4343 = vmatpush.msra.mxu0 %v1044
    %4344 = vmatpush.msra.mxu0 %v1043
    %4345 = vmatpush.msra.mxu0 %v1042
    %4346 = vmatpush.msra.mxu0 %v1041
    %4347 = vmatpush.msra.mxu0 %v1040
    %4348 = vmatpush.msra.mxu0 %v1039
    %4349 = vmatpush.msra.mxu0 %v1038
    %4350 = vmatpush.msra.mxu0 %v1037
    %4351 = vmatpush.msra.mxu0 %v1036
    %4352 = vmatpush.msra.mxu0 %v1035
    %4353 = vmatpush.msra.mxu0 %v1034
    %4354 = vmatpush.msra.mxu0 %v1033
    %4355 = vmatpush.msra.mxu0 %v1032
    %4356 = vmatmul.f32.gmra.mxu0 %v4291
    %v4357 = vpop.f32.mrf.mxu0
    %v4358 = vadd.f32 0.0, %v4357
    %4359 = vmatmul.f32.gmra.mxu0 %v4295
    %v4360 = vpop.f32.mrf.mxu0
    %v4361 = vadd.f32 0.0, %v4360
    %4362 = vmatmul.f32.gmra.mxu0 %v4299
    %v4363 = vpop.f32.mrf.mxu0
    %v4364 = vadd.f32 0.0, %v4363
    %4365 = vmatmul.f32.gmra.mxu0 %v4303
    %v4366 = vpop.f32.mrf.mxu0
    %v4367 = vadd.f32 0.0, %v4366
    %4368 = vmatmul.f32.gmra.mxu0 %v4307
    %v4369 = vpop.f32.mrf.mxu0
    %v4370 = vadd.f32 0.0, %v4369
    %4371 = vmatmul.f32.gmra.mxu0 %v4311
    %v4372 = vpop.f32.mrf.mxu0
    %v4373 = vadd.f32 0.0, %v4372
    %4374 = vmatmul.f32.gmra.mxu0 %v4315
    %v4375 = vpop.f32.mrf.mxu0
    %v4376 = vadd.f32 0.0, %v4375
    %4377 = vdwg.mxu0
    %4378 = vmatpush.msra.mxu0 %v1063
    %4379 = vmatpush.msra.mxu0 %v1062
    %4380 = vmatpush.msra.mxu0 %v1061
    %4381 = vmatpush.msra.mxu0 %v1060
    %4382 = vmatpush.msra.mxu0 %v1059
    %4383 = vmatpush.msra.mxu0 %v1058
    %4384 = vmatpush.msra.mxu0 %v1057
    %4385 = vmatpush.msra.mxu0 %v1056
    %4386 = vmatpush.msra.mxu0 %v1055
    %4387 = vmatpush.msra.mxu0 %v1054
    %4388 = vmatpush.msra.mxu0 %v1053
    %4389 = vmatpush.msra.mxu0 %v1052
    %4390 = vmatpush.msra.mxu0 %v1051
    %4391 = vmatpush.msra.mxu0 %v1050
    %4392 = vmatpush.msra.mxu0 %v1049
    %4393 = vmatpush.msra.mxu0 %v1048
    %4394 = vmatmul.f32.gmra.mxu0 %v4292
    %v4395 = vpop.f32.mrf.mxu0
    %v4396 = vadd.f32 %v4358, %v4395
    %4397 = vmatmul.f32.gmra.mxu0 %v4296
    %v4398 = vpop.f32.mrf.mxu0
    %v4399 = vadd.f32 %v4361, %v4398
    %4400 = vmatmul.f32.gmra.mxu0 %v4300
    %v4401 = vpop.f32.mrf.mxu0
    %v4402 = vadd.f32 %v4364, %v4401
    %4403 = vmatmul.f32.gmra.mxu0 %v4304
    %v4404 = vpop.f32.mrf.mxu0
    %v4405 = vadd.f32 %v4367, %v4404
    %4406 = vmatmul.f32.gmra.mxu0 %v4308
    %v4407 = vpop.f32.mrf.mxu0
    %v4408 = vadd.f32 %v4370, %v4407
    %4409 = vmatmul.f32.gmra.mxu0 %v4312
    %v4410 = vpop.f32.mrf.mxu0
    %v4411 = vadd.f32 %v4373, %v4410
    %4412 = vmatmul.f32.gmra.mxu0 %v4316
    %v4413 = vpop.f32.mrf.mxu0
    %v4414 = vadd.f32 %v4376, %v4413
    %4415 = vdwg.mxu0
    %4416 = vmatpush.msra.mxu0 %v1079
    %4417 = vmatpush.msra.mxu0 %v1078
    %4418 = vmatpush.msra.mxu0 %v1077
    %4419 = vmatpush.msra.mxu0 %v1076
    %4420 = vmatpush.msra.mxu0 %v1075
    %4421 = vmatpush.msra.mxu0 %v1074
    %4422 = vmatpush.msra.mxu0 %v1073
    %4423 = vmatpush.msra.mxu0 %v1072
    %4424 = vmatpush.msra.mxu0 %v1071
    %4425 = vmatpush.msra.mxu0 %v1070
    %4426 = vmatpush.msra.mxu0 %v1069
    %4427 = vmatpush.msra.mxu0 %v1068
    %4428 = vmatpush.msra.mxu0 %v1067
    %4429 = vmatpush.msra.mxu0 %v1066
    %4430 = vmatpush.msra.mxu0 %v1065
    %4431 = vmatpush.msra.mxu0 %v1064
    %4432 = vmatmul.f32.gmra.mxu0 %v4293
    %v4433 = vpop.f32.mrf.mxu0
    %v4434 = vadd.f32 %v4396, %v4433
    %4435 = vmatmul.f32.gmra.mxu0 %v4297
    %v4436 = vpop.f32.mrf.mxu0
    %v4437 = vadd.f32 %v4399, %v4436
    %4438 = vmatmul.f32.gmra.mxu0 %v4301
    %v4439 = vpop.f32.mrf.mxu0
    %v4440 = vadd.f32 %v4402, %v4439
    %4441 = vmatmul.f32.gmra.mxu0 %v4305
    %v4442 = vpop.f32.mrf.mxu0
    %v4443 = vadd.f32 %v4405, %v4442
    %4444 = vmatmul.f32.gmra.mxu0 %v4309
    %v4445 = vpop.f32.mrf.mxu0
    %v4446 = vadd.f32 %v4408, %v4445
    %4447 = vmatmul.f32.gmra.mxu0 %v4313
    %v4448 = vpop.f32.mrf.mxu0
    %v4449 = vadd.f32 %v4411, %v4448
    %4450 = vmatmul.f32.gmra.mxu0 %v4317
    %v4451 = vpop.f32.mrf.mxu0
    %v4452 = vadd.f32 %v4414, %v4451
    %4453 = vdwg.mxu0
    %4454 = vmatpush.msra.mxu0 0.0
    %4455 = vmatpush.msra.mxu0 0.0
    %4456 = vmatpush.msra.mxu0 0.0
    %4457 = vmatpush.msra.mxu0 0.0
    %4458 = vmatpush.msra.mxu0 0.0
    %4459 = vmatpush.msra.mxu0 0.0
    %4460 = vmatpush.msra.mxu0 0.0
    %4461 = vmatpush.msra.mxu0 0.0
    %4462 = vmatpush.msra.mxu0 0.0
    %4463 = vmatpush.msra.mxu0 0.0
    %4464 = vmatpush.msra.mxu0 0.0
    %4465 = vmatpush.msra.mxu0 0.0
    %4466 = vmatpush.msra.mxu0 0.0
    %4467 = vmatpush.msra.mxu0 0.0
    %4468 = vmatpush.msra.mxu0 0.0
    %4469 = vmatpush.msra.mxu0 %v1080
    %4470 = vmatmul.f32.gmra.mxu0 %v4320
    %v4471 = vpop.f32.mrf.mxu0
    %v4472 = vadd.f32 %v4434, %v4471
    %4473 = vmatmul.f32.gmra.mxu0 %v4323
    %v4474 = vpop.f32.mrf.mxu0
    %v4475 = vadd.f32 %v4437, %v4474
    %4476 = vmatmul.f32.gmra.mxu0 %v4326
    %v4477 = vpop.f32.mrf.mxu0
    %v4478 = vadd.f32 %v4440, %v4477
    %4479 = vmatmul.f32.gmra.mxu0 %v4329
    %v4480 = vpop.f32.mrf.mxu0
    %v4481 = vadd.f32 %v4443, %v4480
    %4482 = vmatmul.f32.gmra.mxu0 %v4332
    %v4483 = vpop.f32.mrf.mxu0
    %v4484 = vadd.f32 %v4446, %v4483
    %4485 = vmatmul.f32.gmra.mxu0 %v4335
    %v4486 = vpop.f32.mrf.mxu0
    %v4487 = vadd.f32 %v4449, %v4486
    %4488 = vmatmul.f32.gmra.mxu0 %v4338
    %v4489 = vpop.f32.mrf.mxu0
    %v4490 = vadd.f32 %v4452, %v4489
    %4491 = vdwg.mxu0
    %s4492 = scalar_lea.vmem %s5, 192
    %v4493 = vld [vmem:[%s4492] sm:$0xff]
    %v4494 = vld [vmem:[%s4492 + $0x8] sm:$0xff]
    %v4496 = vsel %vm428, %v4472, 0
    %v4499 = vsel %vm428, %v4475, 0
    %v4502 = vsel %vm428, %v4478, 0
    %v4505 = vsel %vm428, %v4481, 0
    %v4508 = vsel %vm428, %v4484, 0
    %v4511 = vsel %vm428, %v4487, 0
    %v4514 = vsel %vm428, %v4490, 0
    %4516 = vmatpush.msra.mxu0 0.0
    %4517 = vmatpush.msra.mxu0 0.0
    %4518 = vmatpush.msra.mxu0 0.0
    %4519 = vmatpush.msra.mxu0 0.0
    %4520 = vmatpush.msra.mxu0 0.0
    %4521 = vmatpush.msra.mxu0 0.0
    %4522 = vmatpush.msra.mxu0 0.0
    %4523 = vmatpush.msra.mxu0 0.0
    %4524 = vmatpush.msra.mxu0 0.0
    %4525 = vmatpush.msra.mxu0 0.0
    %4526 = vmatpush.msra.mxu0 0.0
    %4527 = vmatpush.msra.mxu0 0.0
    %4528 = vmatpush.msra.mxu0 0.0
    %4529 = vmatpush.msra.mxu0 0.0
    %4530 = vmatpush.msra.mxu0 %v4494
    %4531 = vmatpush.msra.mxu0 %v4493
    %4532 = vmatmul.f32.gmra.mxu0 %v4496
    %v4533 = vpop.f32.mrf.mxu0
    %v4534 = vadd.f32 0.0, %v4533
    %4535 = vmatmul.f32.gmra.mxu0 %v4499
    %v4536 = vpop.f32.mrf.mxu0
    %v4537 = vadd.f32 0.0, %v4536
    %4538 = vmatmul.f32.gmra.mxu0 %v4502
    %v4539 = vpop.f32.mrf.mxu0
    %v4540 = vadd.f32 0.0, %v4539
    %4541 = vmatmul.f32.gmra.mxu0 %v4505
    %v4542 = vpop.f32.mrf.mxu0
    %v4543 = vadd.f32 0.0, %v4542
    %4544 = vmatmul.f32.gmra.mxu0 %v4508
    %v4545 = vpop.f32.mrf.mxu0
    %v4546 = vadd.f32 0.0, %v4545
    %4547 = vmatmul.f32.gmra.mxu0 %v4511
    %v4548 = vpop.f32.mrf.mxu0
    %v4549 = vadd.f32 0.0, %v4548
    %4550 = vmatmul.f32.gmra.mxu0 %v4514
    %v4551 = vpop.f32.mrf.mxu0
    %v4552 = vadd.f32 0.0, %v4551
    %4553 = vdwg.mxu0
    %v4554 = vadd.f32 %v4283, %v4534
    %v4555 = vadd.f32 %v4284, %v4537
    %v4556 = vadd.f32 %v4285, %v4540
    %v4557 = vadd.f32 %v4286, %v4543
    %v4558 = vadd.f32 %v4287, %v4546
    %v4559 = vadd.f32 %v4288, %v4549
    %v4560 = vadd.f32 %v4289, %v4552
    %s4561 = scalar_lea.vmem %s4, 2912
    %v4562 = vld [vmem:[%s4561] sm:$0xff]
    %v4563 = vld [vmem:[%s4561 + $0x8] sm:$0xff]
    %v4564 = vld [vmem:[%s4561 + $0x10] sm:$0xff]
    %v4565 = vld [vmem:[%s4561 + $0x18] sm:$0xff]
    %v4566 = vld [vmem:[%s4561 + $0x20] sm:$0xff]
    %v4567 = vld [vmem:[%s4561 + $0x28] sm:$0xff]
    %v4568 = vld [vmem:[%s4561 + $0x30] sm:$0xff]
    %v4569 = vld [vmem:[%s4561 + $0x38] sm:$0xff]
    %v4570 = vld [vmem:[%s4561 + $0x40] sm:$0xff]
    %v4571 = vld [vmem:[%s4561 + $0x48] sm:$0xff]
    %v4572 = vld [vmem:[%s4561 + $0x50] sm:$0xff]
    %v4573 = vld [vmem:[%s4561 + $0x58] sm:$0xff]
    %v4574 = vld [vmem:[%s4561 + $0x60] sm:$0xff]
    %v4575 = vld [vmem:[%s4561 + $0x68] sm:$0xff]
    %v4576 = vld [vmem:[%s4561 + $0x70] sm:$0xff]
    %v4577 = vld [vmem:[%s4561 + $0x78] sm:$0xff]
    %v4578 = vld [vmem:[%s4561 + $0x80] sm:$0xff]
    %v4579 = vld [vmem:[%s4561 + $0x88] sm:$0xff]
    %v4580 = vld [vmem:[%s4561 + $0x90] sm:$0xff]
    %v4581 = vld [vmem:[%s4561 + $0x98] sm:$0xff]
    %v4582 = vld [vmem:[%s4561 + $0xa0] sm:$0xff]
    %v4583 = vld [vmem:[%s4561 + $0xa8] sm:$0xff]
    %v4584 = vld [vmem:[%s4561 + $0xb0] sm:$0xff]
    %v4585 = vld [vmem:[%s4561 + $0xb8] sm:$0xff]
    %v4586 = vld [vmem:[%s4561 + $0xc0] sm:$0x3]
    %v4587 = vld [vmem:[%s4561 + $0xc8] sm:$0x3]
    %v4588 = vld [vmem:[%s4561 + $0xd0] sm:$0x3]
    %v4589 = vld [vmem:[%s4561 + $0xd8] sm:$0x3]
    %v4591 = vsel %vm1081, %v4565, 0
    %v4594 = vsel %vm1081, %v4569, 0
    %v4597 = vsel %vm1081, %v4573, 0
    %v4600 = vsel %vm1081, %v4577, 0
    %v4603 = vsel %vm1081, %v4581, 0
    %v4606 = vsel %vm1081, %v4585, 0
    %v4609 = vsel %vm1081, %v4589, 0
    %4611 = vmatpush.msra.mxu0 %v1047
    %4612 = vmatpush.msra.mxu0 %v1046
    %4613 = vmatpush.msra.mxu0 %v1045
    %4614 = vmatpush.msra.mxu0 %v1044
    %4615 = vmatpush.msra.mxu0 %v1043
    %4616 = vmatpush.msra.mxu0 %v1042
    %4617 = vmatpush.msra.mxu0 %v1041
    %4618 = vmatpush.msra.mxu0 %v1040
    %4619 = vmatpush.msra.mxu0 %v1039
    %4620 = vmatpush.msra.mxu0 %v1038
    %4621 = vmatpush.msra.mxu0 %v1037
    %4622 = vmatpush.msra.mxu0 %v1036
    %4623 = vmatpush.msra.mxu0 %v1035
    %4624 = vmatpush.msra.mxu0 %v1034
    %4625 = vmatpush.msra.mxu0 %v1033
    %4626 = vmatpush.msra.mxu0 %v1032
    %4627 = vmatmul.f32.gmra.mxu0 %v4562
    %v4628 = vpop.f32.mrf.mxu0
    %v4629 = vadd.f32 0.0, %v4628
    %4630 = vmatmul.f32.gmra.mxu0 %v4566
    %v4631 = vpop.f32.mrf.mxu0
    %v4632 = vadd.f32 0.0, %v4631
    %4633 = vmatmul.f32.gmra.mxu0 %v4570
    %v4634 = vpop.f32.mrf.mxu0
    %v4635 = vadd.f32 0.0, %v4634
    %4636 = vmatmul.f32.gmra.mxu0 %v4574
    %v4637 = vpop.f32.mrf.mxu0
    %v4638 = vadd.f32 0.0, %v4637
    %4639 = vmatmul.f32.gmra.mxu0 %v4578
    %v4640 = vpop.f32.mrf.mxu0
    %v4641 = vadd.f32 0.0, %v4640
    %4642 = vmatmul.f32.gmra.mxu0 %v4582
    %v4643 = vpop.f32.mrf.mxu0
    %v4644 = vadd.f32 0.0, %v4643
    %4645 = vmatmul.f32.gmra.mxu0 %v4586
    %v4646 = vpop.f32.mrf.mxu0
    %v4647 = vadd.f32 0.0, %v4646
    %4648 = vdwg.mxu0
    %4649 = vmatpush.msra.mxu0 %v1063
    %4650 = vmatpush.msra.mxu0 %v1062
    %4651 = vmatpush.msra.mxu0 %v1061
    %4652 = vmatpush.msra.mxu0 %v1060
    %4653 = vmatpush.msra.mxu0 %v1059
    %4654 = vmatpush.msra.mxu0 %v1058
    %4655 = vmatpush.msra.mxu0 %v1057
    %4656 = vmatpush.msra.mxu0 %v1056
    %4657 = vmatpush.msra.mxu0 %v1055
    %4658 = vmatpush.msra.mxu0 %v1054
    %4659 = vmatpush.msra.mxu0 %v1053
    %4660 = vmatpush.msra.mxu0 %v1052
    %4661 = vmatpush.msra.mxu0 %v1051
    %4662 = vmatpush.msra.mxu0 %v1050
    %4663 = vmatpush.msra.mxu0 %v1049
    %4664 = vmatpush.msra.mxu0 %v1048
    %4665 = vmatmul.f32.gmra.mxu0 %v4563
    %v4666 = vpop.f32.mrf.mxu0
    %v4667 = vadd.f32 %v4629, %v4666
    %4668 = vmatmul.f32.gmra.mxu0 %v4567
    %v4669 = vpop.f32.mrf.mxu0
    %v4670 = vadd.f32 %v4632, %v4669
    %4671 = vmatmul.f32.gmra.mxu0 %v4571
    %v4672 = vpop.f32.mrf.mxu0
    %v4673 = vadd.f32 %v4635, %v4672
    %4674 = vmatmul.f32.gmra.mxu0 %v4575
    %v4675 = vpop.f32.mrf.mxu0
    %v4676 = vadd.f32 %v4638, %v4675
    %4677 = vmatmul.f32.gmra.mxu0 %v4579
    %v4678 = vpop.f32.mrf.mxu0
    %v4679 = vadd.f32 %v4641, %v4678
    %4680 = vmatmul.f32.gmra.mxu0 %v4583
    %v4681 = vpop.f32.mrf.mxu0
    %v4682 = vadd.f32 %v4644, %v4681
    %4683 = vmatmul.f32.gmra.mxu0 %v4587
    %v4684 = vpop.f32.mrf.mxu0
    %v4685 = vadd.f32 %v4647, %v4684
    %4686 = vdwg.mxu0
    %4687 = vmatpush.msra.mxu0 %v1079
    %4688 = vmatpush.msra.mxu0 %v1078
    %4689 = vmatpush.msra.mxu0 %v1077
    %4690 = vmatpush.msra.mxu0 %v1076
    %4691 = vmatpush.msra.mxu0 %v1075
    %4692 = vmatpush.msra.mxu0 %v1074
    %4693 = vmatpush.msra.mxu0 %v1073
    %4694 = vmatpush.msra.mxu0 %v1072
    %4695 = vmatpush.msra.mxu0 %v1071
    %4696 = vmatpush.msra.mxu0 %v1070
    %4697 = vmatpush.msra.mxu0 %v1069
    %4698 = vmatpush.msra.mxu0 %v1068
    %4699 = vmatpush.msra.mxu0 %v1067
    %4700 = vmatpush.msra.mxu0 %v1066
    %4701 = vmatpush.msra.mxu0 %v1065
    %4702 = vmatpush.msra.mxu0 %v1064
    %4703 = vmatmul.f32.gmra.mxu0 %v4564
    %v4704 = vpop.f32.mrf.mxu0
    %v4705 = vadd.f32 %v4667, %v4704
    %4706 = vmatmul.f32.gmra.mxu0 %v4568
    %v4707 = vpop.f32.mrf.mxu0
    %v4708 = vadd.f32 %v4670, %v4707
    %4709 = vmatmul.f32.gmra.mxu0 %v4572
    %v4710 = vpop.f32.mrf.mxu0
    %v4711 = vadd.f32 %v4673, %v4710
    %4712 = vmatmul.f32.gmra.mxu0 %v4576
    %v4713 = vpop.f32.mrf.mxu0
    %v4714 = vadd.f32 %v4676, %v4713
    %4715 = vmatmul.f32.gmra.mxu0 %v4580
    %v4716 = vpop.f32.mrf.mxu0
    %v4717 = vadd.f32 %v4679, %v4716
    %4718 = vmatmul.f32.gmra.mxu0 %v4584
    %v4719 = vpop.f32.mrf.mxu0
    %v4720 = vadd.f32 %v4682, %v4719
    %4721 = vmatmul.f32.gmra.mxu0 %v4588
    %v4722 = vpop.f32.mrf.mxu0
    %v4723 = vadd.f32 %v4685, %v4722
    %4724 = vdwg.mxu0
    %4725 = vmatpush.msra.mxu0 0.0
    %4726 = vmatpush.msra.mxu0 0.0
    %4727 = vmatpush.msra.mxu0 0.0
    %4728 = vmatpush.msra.mxu0 0.0
    %4729 = vmatpush.msra.mxu0 0.0
    %4730 = vmatpush.msra.mxu0 0.0
    %4731 = vmatpush.msra.mxu0 0.0
    %4732 = vmatpush.msra.mxu0 0.0
    %4733 = vmatpush.msra.mxu0 0.0
    %4734 = vmatpush.msra.mxu0 0.0
    %4735 = vmatpush.msra.mxu0 0.0
    %4736 = vmatpush.msra.mxu0 0.0
    %4737 = vmatpush.msra.mxu0 0.0
    %4738 = vmatpush.msra.mxu0 0.0
    %4739 = vmatpush.msra.mxu0 0.0
    %4740 = vmatpush.msra.mxu0 %v1080
    %4741 = vmatmul.f32.gmra.mxu0 %v4591
    %v4742 = vpop.f32.mrf.mxu0
    %v4743 = vadd.f32 %v4705, %v4742
    %4744 = vmatmul.f32.gmra.mxu0 %v4594
    %v4745 = vpop.f32.mrf.mxu0
    %v4746 = vadd.f32 %v4708, %v4745
    %4747 = vmatmul.f32.gmra.mxu0 %v4597
    %v4748 = vpop.f32.mrf.mxu0
    %v4749 = vadd.f32 %v4711, %v4748
    %4750 = vmatmul.f32.gmra.mxu0 %v4600
    %v4751 = vpop.f32.mrf.mxu0
    %v4752 = vadd.f32 %v4714, %v4751
    %4753 = vmatmul.f32.gmra.mxu0 %v4603
    %v4754 = vpop.f32.mrf.mxu0
    %v4755 = vadd.f32 %v4717, %v4754
    %4756 = vmatmul.f32.gmra.mxu0 %v4606
    %v4757 = vpop.f32.mrf.mxu0
    %v4758 = vadd.f32 %v4720, %v4757
    %4759 = vmatmul.f32.gmra.mxu0 %v4609
    %v4760 = vpop.f32.mrf.mxu0
    %v4761 = vadd.f32 %v4723, %v4760
    %4762 = vdwg.mxu0
    %s4763 = scalar_lea.vmem %s5, 208
    %v4764 = vld [vmem:[%s4763] sm:$0xff]
    %v4765 = vld [vmem:[%s4763 + $0x8] sm:$0xff]
    %v4767 = vsel %vm428, %v4743, 0
    %v4770 = vsel %vm428, %v4746, 0
    %v4773 = vsel %vm428, %v4749, 0
    %v4776 = vsel %vm428, %v4752, 0
    %v4779 = vsel %vm428, %v4755, 0
    %v4782 = vsel %vm428, %v4758, 0
    %v4785 = vsel %vm428, %v4761, 0
    %4787 = vmatpush.msra.mxu0 0.0
    %4788 = vmatpush.msra.mxu0 0.0
    %4789 = vmatpush.msra.mxu0 0.0
    %4790 = vmatpush.msra.mxu0 0.0
    %4791 = vmatpush.msra.mxu0 0.0
    %4792 = vmatpush.msra.mxu0 0.0
    %4793 = vmatpush.msra.mxu0 0.0
    %4794 = vmatpush.msra.mxu0 0.0
    %4795 = vmatpush.msra.mxu0 0.0
    %4796 = vmatpush.msra.mxu0 0.0
    %4797 = vmatpush.msra.mxu0 0.0
    %4798 = vmatpush.msra.mxu0 0.0
    %4799 = vmatpush.msra.mxu0 0.0
    %4800 = vmatpush.msra.mxu0 0.0
    %4801 = vmatpush.msra.mxu0 %v4765
    %4802 = vmatpush.msra.mxu0 %v4764
    %4803 = vmatmul.f32.gmra.mxu0 %v4767
    %v4804 = vpop.f32.mrf.mxu0
    %v4805 = vadd.f32 0.0, %v4804
    %4806 = vmatmul.f32.gmra.mxu0 %v4770
    %v4807 = vpop.f32.mrf.mxu0
    %v4808 = vadd.f32 0.0, %v4807
    %4809 = vmatmul.f32.gmra.mxu0 %v4773
    %v4810 = vpop.f32.mrf.mxu0
    %v4811 = vadd.f32 0.0, %v4810
    %4812 = vmatmul.f32.gmra.mxu0 %v4776
    %v4813 = vpop.f32.mrf.mxu0
    %v4814 = vadd.f32 0.0, %v4813
    %4815 = vmatmul.f32.gmra.mxu0 %v4779
    %v4816 = vpop.f32.mrf.mxu0
    %v4817 = vadd.f32 0.0, %v4816
    %4818 = vmatmul.f32.gmra.mxu0 %v4782
    %v4819 = vpop.f32.mrf.mxu0
    %v4820 = vadd.f32 0.0, %v4819
    %4821 = vmatmul.f32.gmra.mxu0 %v4785
    %v4822 = vpop.f32.mrf.mxu0
    %v4823 = vadd.f32 0.0, %v4822
    %4824 = vdwg.mxu0
    %v4825 = vadd.f32 %v4554, %v4805
    %v4826 = vadd.f32 %v4555, %v4808
    %v4827 = vadd.f32 %v4556, %v4811
    %v4828 = vadd.f32 %v4557, %v4814
    %v4829 = vadd.f32 %v4558, %v4817
    %v4830 = vadd.f32 %v4559, %v4820
    %v4831 = vadd.f32 %v4560, %v4823
    %s4832 = scalar_lea.vmem %s4, 3136
    %v4833 = vld [vmem:[%s4832] sm:$0xff]
    %v4834 = vld [vmem:[%s4832 + $0x8] sm:$0xff]
    %v4835 = vld [vmem:[%s4832 + $0x10] sm:$0xff]
    %v4836 = vld [vmem:[%s4832 + $0x18] sm:$0xff]
    %v4837 = vld [vmem:[%s4832 + $0x20] sm:$0xff]
    %v4838 = vld [vmem:[%s4832 + $0x28] sm:$0xff]
    %v4839 = vld [vmem:[%s4832 + $0x30] sm:$0xff]
    %v4840 = vld [vmem:[%s4832 + $0x38] sm:$0xff]
    %v4841 = vld [vmem:[%s4832 + $0x40] sm:$0xff]
    %v4842 = vld [vmem:[%s4832 + $0x48] sm:$0xff]
    %v4843 = vld [vmem:[%s4832 + $0x50] sm:$0xff]
    %v4844 = vld [vmem:[%s4832 + $0x58] sm:$0xff]
    %v4845 = vld [vmem:[%s4832 + $0x60] sm:$0xff]
    %v4846 = vld [vmem:[%s4832 + $0x68] sm:$0xff]
    %v4847 = vld [vmem:[%s4832 + $0x70] sm:$0xff]
    %v4848 = vld [vmem:[%s4832 + $0x78] sm:$0xff]
    %v4849 = vld [vmem:[%s4832 + $0x80] sm:$0xff]
    %v4850 = vld [vmem:[%s4832 + $0x88] sm:$0xff]
    %v4851 = vld [vmem:[%s4832 + $0x90] sm:$0xff]
    %v4852 = vld [vmem:[%s4832 + $0x98] sm:$0xff]
    %v4853 = vld [vmem:[%s4832 + $0xa0] sm:$0xff]
    %v4854 = vld [vmem:[%s4832 + $0xa8] sm:$0xff]
    %v4855 = vld [vmem:[%s4832 + $0xb0] sm:$0xff]
    %v4856 = vld [vmem:[%s4832 + $0xb8] sm:$0xff]
    %v4857 = vld [vmem:[%s4832 + $0xc0] sm:$0x3]
    %v4858 = vld [vmem:[%s4832 + $0xc8] sm:$0x3]
    %v4859 = vld [vmem:[%s4832 + $0xd0] sm:$0x3]
    %v4860 = vld [vmem:[%s4832 + $0xd8] sm:$0x3]
    %v4862 = vsel %vm1081, %v4836, 0
    %v4865 = vsel %vm1081, %v4840, 0
    %v4868 = vsel %vm1081, %v4844, 0
    %v4871 = vsel %vm1081, %v4848, 0
    %v4874 = vsel %vm1081, %v4852, 0
    %v4877 = vsel %vm1081, %v4856, 0
    %v4880 = vsel %vm1081, %v4860, 0
    %4882 = vmatpush.msra.mxu0 %v1047
    %4883 = vmatpush.msra.mxu0 %v1046
    %4884 = vmatpush.msra.mxu0 %v1045
    %4885 = vmatpush.msra.mxu0 %v1044
    %4886 = vmatpush.msra.mxu0 %v1043
    %4887 = vmatpush.msra.mxu0 %v1042
    %4888 = vmatpush.msra.mxu0 %v1041
    %4889 = vmatpush.msra.mxu0 %v1040
    %4890 = vmatpush.msra.mxu0 %v1039
    %4891 = vmatpush.msra.mxu0 %v1038
    %4892 = vmatpush.msra.mxu0 %v1037
    %4893 = vmatpush.msra.mxu0 %v1036
    %4894 = vmatpush.msra.mxu0 %v1035
    %4895 = vmatpush.msra.mxu0 %v1034
    %4896 = vmatpush.msra.mxu0 %v1033
    %4897 = vmatpush.msra.mxu0 %v1032
    %4898 = vmatmul.f32.gmra.mxu0 %v4833
    %v4899 = vpop.f32.mrf.mxu0
    %v4900 = vadd.f32 0.0, %v4899
    %4901 = vmatmul.f32.gmra.mxu0 %v4837
    %v4902 = vpop.f32.mrf.mxu0
    %v4903 = vadd.f32 0.0, %v4902
    %4904 = vmatmul.f32.gmra.mxu0 %v4841
    %v4905 = vpop.f32.mrf.mxu0
    %v4906 = vadd.f32 0.0, %v4905
    %4907 = vmatmul.f32.gmra.mxu0 %v4845
    %v4908 = vpop.f32.mrf.mxu0
    %v4909 = vadd.f32 0.0, %v4908
    %4910 = vmatmul.f32.gmra.mxu0 %v4849
    %v4911 = vpop.f32.mrf.mxu0
    %v4912 = vadd.f32 0.0, %v4911
    %4913 = vmatmul.f32.gmra.mxu0 %v4853
    %v4914 = vpop.f32.mrf.mxu0
    %v4915 = vadd.f32 0.0, %v4914
    %4916 = vmatmul.f32.gmra.mxu0 %v4857
    %v4917 = vpop.f32.mrf.mxu0
    %v4918 = vadd.f32 0.0, %v4917
    %4919 = vdwg.mxu0
    %4920 = vmatpush.msra.mxu0 %v1063
    %4921 = vmatpush.msra.mxu0 %v1062
    %4922 = vmatpush.msra.mxu0 %v1061
    %4923 = vmatpush.msra.mxu0 %v1060
    %4924 = vmatpush.msra.mxu0 %v1059
    %4925 = vmatpush.msra.mxu0 %v1058
    %4926 = vmatpush.msra.mxu0 %v1057
    %4927 = vmatpush.msra.mxu0 %v1056
    %4928 = vmatpush.msra.mxu0 %v1055
    %4929 = vmatpush.msra.mxu0 %v1054
    %4930 = vmatpush.msra.mxu0 %v1053
    %4931 = vmatpush.msra.mxu0 %v1052
    %4932 = vmatpush.msra.mxu0 %v1051
    %4933 = vmatpush.msra.mxu0 %v1050
    %4934 = vmatpush.msra.mxu0 %v1049
    %4935 = vmatpush.msra.mxu0 %v1048
    %4936 = vmatmul.f32.gmra.mxu0 %v4834
    %v4937 = vpop.f32.mrf.mxu0
    %v4938 = vadd.f32 %v4900, %v4937
    %4939 = vmatmul.f32.gmra.mxu0 %v4838
    %v4940 = vpop.f32.mrf.mxu0
    %v4941 = vadd.f32 %v4903, %v4940
    %4942 = vmatmul.f32.gmra.mxu0 %v4842
    %v4943 = vpop.f32.mrf.mxu0
    %v4944 = vadd.f32 %v4906, %v4943
    %4945 = vmatmul.f32.gmra.mxu0 %v4846
    %v4946 = vpop.f32.mrf.mxu0
    %v4947 = vadd.f32 %v4909, %v4946
    %4948 = vmatmul.f32.gmra.mxu0 %v4850
    %v4949 = vpop.f32.mrf.mxu0
    %v4950 = vadd.f32 %v4912, %v4949
    %4951 = vmatmul.f32.gmra.mxu0 %v4854
    %v4952 = vpop.f32.mrf.mxu0
    %v4953 = vadd.f32 %v4915, %v4952
    %4954 = vmatmul.f32.gmra.mxu0 %v4858
    %v4955 = vpop.f32.mrf.mxu0
    %v4956 = vadd.f32 %v4918, %v4955
    %4957 = vdwg.mxu0
    %4958 = vmatpush.msra.mxu0 %v1079
    %4959 = vmatpush.msra.mxu0 %v1078
    %4960 = vmatpush.msra.mxu0 %v1077
    %4961 = vmatpush.msra.mxu0 %v1076
    %4962 = vmatpush.msra.mxu0 %v1075
    %4963 = vmatpush.msra.mxu0 %v1074
    %4964 = vmatpush.msra.mxu0 %v1073
    %4965 = vmatpush.msra.mxu0 %v1072
    %4966 = vmatpush.msra.mxu0 %v1071
    %4967 = vmatpush.msra.mxu0 %v1070
    %4968 = vmatpush.msra.mxu0 %v1069
    %4969 = vmatpush.msra.mxu0 %v1068
    %4970 = vmatpush.msra.mxu0 %v1067
    %4971 = vmatpush.msra.mxu0 %v1066
    %4972 = vmatpush.msra.mxu0 %v1065
    %4973 = vmatpush.msra.mxu0 %v1064
    %4974 = vmatmul.f32.gmra.mxu0 %v4835
    %v4975 = vpop.f32.mrf.mxu0
    %v4976 = vadd.f32 %v4938, %v4975
    %4977 = vmatmul.f32.gmra.mxu0 %v4839
    %v4978 = vpop.f32.mrf.mxu0
    %v4979 = vadd.f32 %v4941, %v4978
    %4980 = vmatmul.f32.gmra.mxu0 %v4843
    %v4981 = vpop.f32.mrf.mxu0
    %v4982 = vadd.f32 %v4944, %v4981
    %4983 = vmatmul.f32.gmra.mxu0 %v4847
    %v4984 = vpop.f32.mrf.mxu0
    %v4985 = vadd.f32 %v4947, %v4984
    %4986 = vmatmul.f32.gmra.mxu0 %v4851
    %v4987 = vpop.f32.mrf.mxu0
    %v4988 = vadd.f32 %v4950, %v4987
    %4989 = vmatmul.f32.gmra.mxu0 %v4855
    %v4990 = vpop.f32.mrf.mxu0
    %v4991 = vadd.f32 %v4953, %v4990
    %4992 = vmatmul.f32.gmra.mxu0 %v4859
    %v4993 = vpop.f32.mrf.mxu0
    %v4994 = vadd.f32 %v4956, %v4993
    %4995 = vdwg.mxu0
    %4996 = vmatpush.msra.mxu0 0.0
    %4997 = vmatpush.msra.mxu0 0.0
    %4998 = vmatpush.msra.mxu0 0.0
    %4999 = vmatpush.msra.mxu0 0.0
    %5000 = vmatpush.msra.mxu0 0.0
    %5001 = vmatpush.msra.mxu0 0.0
    %5002 = vmatpush.msra.mxu0 0.0
    %5003 = vmatpush.msra.mxu0 0.0
    %5004 = vmatpush.msra.mxu0 0.0
    %5005 = vmatpush.msra.mxu0 0.0
    %5006 = vmatpush.msra.mxu0 0.0
    %5007 = vmatpush.msra.mxu0 0.0
    %5008 = vmatpush.msra.mxu0 0.0
    %5009 = vmatpush.msra.mxu0 0.0
    %5010 = vmatpush.msra.mxu0 0.0
    %5011 = vmatpush.msra.mxu0 %v1080
    %5012 = vmatmul.f32.gmra.mxu0 %v4862
    %v5013 = vpop.f32.mrf.mxu0
    %v5014 = vadd.f32 %v4976, %v5013
    %5015 = vmatmul.f32.gmra.mxu0 %v4865
    %v5016 = vpop.f32.mrf.mxu0
    %v5017 = vadd.f32 %v4979, %v5016
    %5018 = vmatmul.f32.gmra.mxu0 %v4868
    %v5019 = vpop.f32.mrf.mxu0
    %v5020 = vadd.f32 %v4982, %v5019
    %5021 = vmatmul.f32.gmra.mxu0 %v4871
    %v5022 = vpop.f32.mrf.mxu0
    %v5023 = vadd.f32 %v4985, %v5022
    %5024 = vmatmul.f32.gmra.mxu0 %v4874
    %v5025 = vpop.f32.mrf.mxu0
    %v5026 = vadd.f32 %v4988, %v5025
    %5027 = vmatmul.f32.gmra.mxu0 %v4877
    %v5028 = vpop.f32.mrf.mxu0
    %v5029 = vadd.f32 %v4991, %v5028
    %5030 = vmatmul.f32.gmra.mxu0 %v4880
    %v5031 = vpop.f32.mrf.mxu0
    %v5032 = vadd.f32 %v4994, %v5031
    %5033 = vdwg.mxu0
    %s5034 = scalar_lea.vmem %s5, 224
    %v5035 = vld [vmem:[%s5034] sm:$0xff]
    %v5036 = vld [vmem:[%s5034 + $0x8] sm:$0xff]
    %v5038 = vsel %vm428, %v5014, 0
    %v5041 = vsel %vm428, %v5017, 0
    %v5044 = vsel %vm428, %v5020, 0
    %v5047 = vsel %vm428, %v5023, 0
    %v5050 = vsel %vm428, %v5026, 0
    %v5053 = vsel %vm428, %v5029, 0
    %v5056 = vsel %vm428, %v5032, 0
    %5058 = vmatpush.msra.mxu0 0.0
    %5059 = vmatpush.msra.mxu0 0.0
    %5060 = vmatpush.msra.mxu0 0.0
    %5061 = vmatpush.msra.mxu0 0.0
    %5062 = vmatpush.msra.mxu0 0.0
    %5063 = vmatpush.msra.mxu0 0.0
    %5064 = vmatpush.msra.mxu0 0.0
    %5065 = vmatpush.msra.mxu0 0.0
    %5066 = vmatpush.msra.mxu0 0.0
    %5067 = vmatpush.msra.mxu0 0.0
    %5068 = vmatpush.msra.mxu0 0.0
    %5069 = vmatpush.msra.mxu0 0.0
    %5070 = vmatpush.msra.mxu0 0.0
    %5071 = vmatpush.msra.mxu0 0.0
    %5072 = vmatpush.msra.mxu0 %v5036
    %5073 = vmatpush.msra.mxu0 %v5035
    %5074 = vmatmul.f32.gmra.mxu0 %v5038
    %v5075 = vpop.f32.mrf.mxu0
    %v5076 = vadd.f32 0.0, %v5075
    %5077 = vmatmul.f32.gmra.mxu0 %v5041
    %v5078 = vpop.f32.mrf.mxu0
    %v5079 = vadd.f32 0.0, %v5078
    %5080 = vmatmul.f32.gmra.mxu0 %v5044
    %v5081 = vpop.f32.mrf.mxu0
    %v5082 = vadd.f32 0.0, %v5081
    %5083 = vmatmul.f32.gmra.mxu0 %v5047
    %v5084 = vpop.f32.mrf.mxu0
    %v5085 = vadd.f32 0.0, %v5084
    %5086 = vmatmul.f32.gmra.mxu0 %v5050
    %v5087 = vpop.f32.mrf.mxu0
    %v5088 = vadd.f32 0.0, %v5087
    %5089 = vmatmul.f32.gmra.mxu0 %v5053
    %v5090 = vpop.f32.mrf.mxu0
    %v5091 = vadd.f32 0.0, %v5090
    %5092 = vmatmul.f32.gmra.mxu0 %v5056
    %v5093 = vpop.f32.mrf.mxu0
    %v5094 = vadd.f32 0.0, %v5093
    %5095 = vdwg.mxu0
    %v5096 = vadd.f32 %v4825, %v5076
    %v5097 = vadd.f32 %v4826, %v5079
    %v5098 = vadd.f32 %v4827, %v5082
    %v5099 = vadd.f32 %v4828, %v5085
    %v5100 = vadd.f32 %v4829, %v5088
    %v5101 = vadd.f32 %v4830, %v5091
    %v5102 = vadd.f32 %v4831, %v5094
    %s5103 = scalar_lea.vmem %s4, 3360
    %v5104 = vld [vmem:[%s5103] sm:$0xff]
    %v5105 = vld [vmem:[%s5103 + $0x8] sm:$0xff]
    %v5106 = vld [vmem:[%s5103 + $0x10] sm:$0xff]
    %v5107 = vld [vmem:[%s5103 + $0x18] sm:$0xff]
    %v5108 = vld [vmem:[%s5103 + $0x20] sm:$0xff]
    %v5109 = vld [vmem:[%s5103 + $0x28] sm:$0xff]
    %v5110 = vld [vmem:[%s5103 + $0x30] sm:$0xff]
    %v5111 = vld [vmem:[%s5103 + $0x38] sm:$0xff]
    %v5112 = vld [vmem:[%s5103 + $0x40] sm:$0xff]
    %v5113 = vld [vmem:[%s5103 + $0x48] sm:$0xff]
    %v5114 = vld [vmem:[%s5103 + $0x50] sm:$0xff]
    %v5115 = vld [vmem:[%s5103 + $0x58] sm:$0xff]
    %v5116 = vld [vmem:[%s5103 + $0x60] sm:$0xff]
    %v5117 = vld [vmem:[%s5103 + $0x68] sm:$0xff]
    %v5118 = vld [vmem:[%s5103 + $0x70] sm:$0xff]
    %v5119 = vld [vmem:[%s5103 + $0x78] sm:$0xff]
    %v5120 = vld [vmem:[%s5103 + $0x80] sm:$0xff]
    %v5121 = vld [vmem:[%s5103 + $0x88] sm:$0xff]
    %v5122 = vld [vmem:[%s5103 + $0x90] sm:$0xff]
    %v5123 = vld [vmem:[%s5103 + $0x98] sm:$0xff]
    %v5124 = vld [vmem:[%s5103 + $0xa0] sm:$0xff]
    %v5125 = vld [vmem:[%s5103 + $0xa8] sm:$0xff]
    %v5126 = vld [vmem:[%s5103 + $0xb0] sm:$0xff]
    %v5127 = vld [vmem:[%s5103 + $0xb8] sm:$0xff]
    %v5128 = vld [vmem:[%s5103 + $0xc0] sm:$0x3]
    %v5129 = vld [vmem:[%s5103 + $0xc8] sm:$0x3]
    %v5130 = vld [vmem:[%s5103 + $0xd0] sm:$0x3]
    %v5131 = vld [vmem:[%s5103 + $0xd8] sm:$0x3]
    %v5133 = vsel %vm1081, %v5107, 0
    %v5136 = vsel %vm1081, %v5111, 0
    %v5139 = vsel %vm1081, %v5115, 0
    %v5142 = vsel %vm1081, %v5119, 0
    %v5145 = vsel %vm1081, %v5123, 0
    %v5148 = vsel %vm1081, %v5127, 0
    %v5151 = vsel %vm1081, %v5131, 0
    %5153 = vmatpush.msra.mxu0 %v1047
    %5154 = vmatpush.msra.mxu0 %v1046
    %5155 = vmatpush.msra.mxu0 %v1045
    %5156 = vmatpush.msra.mxu0 %v1044
    %5157 = vmatpush.msra.mxu0 %v1043
    %5158 = vmatpush.msra.mxu0 %v1042
    %5159 = vmatpush.msra.mxu0 %v1041
    %5160 = vmatpush.msra.mxu0 %v1040
    %5161 = vmatpush.msra.mxu0 %v1039
    %5162 = vmatpush.msra.mxu0 %v1038
    %5163 = vmatpush.msra.mxu0 %v1037
    %5164 = vmatpush.msra.mxu0 %v1036
    %5165 = vmatpush.msra.mxu0 %v1035
    %5166 = vmatpush.msra.mxu0 %v1034
    %5167 = vmatpush.msra.mxu0 %v1033
    %5168 = vmatpush.msra.mxu0 %v1032
    %5169 = vmatmul.f32.gmra.mxu0 %v5104
    %v5170 = vpop.f32.mrf.mxu0
    %v5171 = vadd.f32 0.0, %v5170
    %5172 = vmatmul.f32.gmra.mxu0 %v5108
    %v5173 = vpop.f32.mrf.mxu0
    %v5174 = vadd.f32 0.0, %v5173
    %5175 = vmatmul.f32.gmra.mxu0 %v5112
    %v5176 = vpop.f32.mrf.mxu0
    %v5177 = vadd.f32 0.0, %v5176
    %5178 = vmatmul.f32.gmra.mxu0 %v5116
    %v5179 = vpop.f32.mrf.mxu0
    %v5180 = vadd.f32 0.0, %v5179
    %5181 = vmatmul.f32.gmra.mxu0 %v5120
    %v5182 = vpop.f32.mrf.mxu0
    %v5183 = vadd.f32 0.0, %v5182
    %5184 = vmatmul.f32.gmra.mxu0 %v5124
    %v5185 = vpop.f32.mrf.mxu0
    %v5186 = vadd.f32 0.0, %v5185
    %5187 = vmatmul.f32.gmra.mxu0 %v5128
    %v5188 = vpop.f32.mrf.mxu0
    %v5189 = vadd.f32 0.0, %v5188
    %5190 = vdwg.mxu0
    %5191 = vmatpush.msra.mxu0 %v1063
    %5192 = vmatpush.msra.mxu0 %v1062
    %5193 = vmatpush.msra.mxu0 %v1061
    %5194 = vmatpush.msra.mxu0 %v1060
    %5195 = vmatpush.msra.mxu0 %v1059
    %5196 = vmatpush.msra.mxu0 %v1058
    %5197 = vmatpush.msra.mxu0 %v1057
    %5198 = vmatpush.msra.mxu0 %v1056
    %5199 = vmatpush.msra.mxu0 %v1055
    %5200 = vmatpush.msra.mxu0 %v1054
    %5201 = vmatpush.msra.mxu0 %v1053
    %5202 = vmatpush.msra.mxu0 %v1052
    %5203 = vmatpush.msra.mxu0 %v1051
    %5204 = vmatpush.msra.mxu0 %v1050
    %5205 = vmatpush.msra.mxu0 %v1049
    %5206 = vmatpush.msra.mxu0 %v1048
    %5207 = vmatmul.f32.gmra.mxu0 %v5105
    %v5208 = vpop.f32.mrf.mxu0
    %v5209 = vadd.f32 %v5171, %v5208
    %5210 = vmatmul.f32.gmra.mxu0 %v5109
    %v5211 = vpop.f32.mrf.mxu0
    %v5212 = vadd.f32 %v5174, %v5211
    %5213 = vmatmul.f32.gmra.mxu0 %v5113
    %v5214 = vpop.f32.mrf.mxu0
    %v5215 = vadd.f32 %v5177, %v5214
    %5216 = vmatmul.f32.gmra.mxu0 %v5117
    %v5217 = vpop.f32.mrf.mxu0
    %v5218 = vadd.f32 %v5180, %v5217
    %5219 = vmatmul.f32.gmra.mxu0 %v5121
    %v5220 = vpop.f32.mrf.mxu0
    %v5221 = vadd.f32 %v5183, %v5220
    %5222 = vmatmul.f32.gmra.mxu0 %v5125
    %v5223 = vpop.f32.mrf.mxu0
    %v5224 = vadd.f32 %v5186, %v5223
    %5225 = vmatmul.f32.gmra.mxu0 %v5129
    %v5226 = vpop.f32.mrf.mxu0
    %v5227 = vadd.f32 %v5189, %v5226
    %5228 = vdwg.mxu0
    %5229 = vmatpush.msra.mxu0 %v1079
    %5230 = vmatpush.msra.mxu0 %v1078
    %5231 = vmatpush.msra.mxu0 %v1077
    %5232 = vmatpush.msra.mxu0 %v1076
    %5233 = vmatpush.msra.mxu0 %v1075
    %5234 = vmatpush.msra.mxu0 %v1074
    %5235 = vmatpush.msra.mxu0 %v1073
    %5236 = vmatpush.msra.mxu0 %v1072
    %5237 = vmatpush.msra.mxu0 %v1071
    %5238 = vmatpush.msra.mxu0 %v1070
    %5239 = vmatpush.msra.mxu0 %v1069
    %5240 = vmatpush.msra.mxu0 %v1068
    %5241 = vmatpush.msra.mxu0 %v1067
    %5242 = vmatpush.msra.mxu0 %v1066
    %5243 = vmatpush.msra.mxu0 %v1065
    %5244 = vmatpush.msra.mxu0 %v1064
    %5245 = vmatmul.f32.gmra.mxu0 %v5106
    %v5246 = vpop.f32.mrf.mxu0
    %v5247 = vadd.f32 %v5209, %v5246
    %5248 = vmatmul.f32.gmra.mxu0 %v5110
    %v5249 = vpop.f32.mrf.mxu0
    %v5250 = vadd.f32 %v5212, %v5249
    %5251 = vmatmul.f32.gmra.mxu0 %v5114
    %v5252 = vpop.f32.mrf.mxu0
    %v5253 = vadd.f32 %v5215, %v5252
    %5254 = vmatmul.f32.gmra.mxu0 %v5118
    %v5255 = vpop.f32.mrf.mxu0
    %v5256 = vadd.f32 %v5218, %v5255
    %5257 = vmatmul.f32.gmra.mxu0 %v5122
    %v5258 = vpop.f32.mrf.mxu0
    %v5259 = vadd.f32 %v5221, %v5258
    %5260 = vmatmul.f32.gmra.mxu0 %v5126
    %v5261 = vpop.f32.mrf.mxu0
    %v5262 = vadd.f32 %v5224, %v5261
    %5263 = vmatmul.f32.gmra.mxu0 %v5130
    %v5264 = vpop.f32.mrf.mxu0
    %v5265 = vadd.f32 %v5227, %v5264
    %5266 = vdwg.mxu0
    %5267 = vmatpush.msra.mxu0 0.0
    %5268 = vmatpush.msra.mxu0 0.0
    %5269 = vmatpush.msra.mxu0 0.0
    %5270 = vmatpush.msra.mxu0 0.0
    %5271 = vmatpush.msra.mxu0 0.0
    %5272 = vmatpush.msra.mxu0 0.0
    %5273 = vmatpush.msra.mxu0 0.0
    %5274 = vmatpush.msra.mxu0 0.0
    %5275 = vmatpush.msra.mxu0 0.0
    %5276 = vmatpush.msra.mxu0 0.0
    %5277 = vmatpush.msra.mxu0 0.0
    %5278 = vmatpush.msra.mxu0 0.0
    %5279 = vmatpush.msra.mxu0 0.0
    %5280 = vmatpush.msra.mxu0 0.0
    %5281 = vmatpush.msra.mxu0 0.0
    %5282 = vmatpush.msra.mxu0 %v1080
    %5283 = vmatmul.f32.gmra.mxu0 %v5133
    %v5284 = vpop.f32.mrf.mxu0
    %v5285 = vadd.f32 %v5247, %v5284
    %5286 = vmatmul.f32.gmra.mxu0 %v5136
    %v5287 = vpop.f32.mrf.mxu0
    %v5288 = vadd.f32 %v5250, %v5287
    %5289 = vmatmul.f32.gmra.mxu0 %v5139
    %v5290 = vpop.f32.mrf.mxu0
    %v5291 = vadd.f32 %v5253, %v5290
    %5292 = vmatmul.f32.gmra.mxu0 %v5142
    %v5293 = vpop.f32.mrf.mxu0
    %v5294 = vadd.f32 %v5256, %v5293
    %5295 = vmatmul.f32.gmra.mxu0 %v5145
    %v5296 = vpop.f32.mrf.mxu0
    %v5297 = vadd.f32 %v5259, %v5296
    %5298 = vmatmul.f32.gmra.mxu0 %v5148
    %v5299 = vpop.f32.mrf.mxu0
    %v5300 = vadd.f32 %v5262, %v5299
    %5301 = vmatmul.f32.gmra.mxu0 %v5151
    %v5302 = vpop.f32.mrf.mxu0
    %v5303 = vadd.f32 %v5265, %v5302
    %5304 = vdwg.mxu0
    %s5305 = scalar_lea.vmem %s5, 240
    %v5306 = vld [vmem:[%s5305] sm:$0xff]
    %v5307 = vld [vmem:[%s5305 + $0x8] sm:$0xff]
    %v5309 = vsel %vm428, %v5285, 0
    %v5312 = vsel %vm428, %v5288, 0
    %v5315 = vsel %vm428, %v5291, 0
    %v5318 = vsel %vm428, %v5294, 0
    %v5321 = vsel %vm428, %v5297, 0
    %v5324 = vsel %vm428, %v5300, 0
    %v5327 = vsel %vm428, %v5303, 0
    %5329 = vmatpush.msra.mxu0 0.0
    %5330 = vmatpush.msra.mxu0 0.0
    %5331 = vmatpush.msra.mxu0 0.0
    %5332 = vmatpush.msra.mxu0 0.0
    %5333 = vmatpush.msra.mxu0 0.0
    %5334 = vmatpush.msra.mxu0 0.0
    %5335 = vmatpush.msra.mxu0 0.0
    %5336 = vmatpush.msra.mxu0 0.0
    %5337 = vmatpush.msra.mxu0 0.0
    %5338 = vmatpush.msra.mxu0 0.0
    %5339 = vmatpush.msra.mxu0 0.0
    %5340 = vmatpush.msra.mxu0 0.0
    %5341 = vmatpush.msra.mxu0 0.0
    %5342 = vmatpush.msra.mxu0 0.0
    %5343 = vmatpush.msra.mxu0 %v5307
    %5344 = vmatpush.msra.mxu0 %v5306
    %5345 = vmatmul.f32.gmra.mxu0 %v5309
    %v5346 = vpop.f32.mrf.mxu0
    %v5347 = vadd.f32 0.0, %v5346
    %5348 = vmatmul.f32.gmra.mxu0 %v5312
    %v5349 = vpop.f32.mrf.mxu0
    %v5350 = vadd.f32 0.0, %v5349
    %5351 = vmatmul.f32.gmra.mxu0 %v5315
    %v5352 = vpop.f32.mrf.mxu0
    %v5353 = vadd.f32 0.0, %v5352
    %5354 = vmatmul.f32.gmra.mxu0 %v5318
    %v5355 = vpop.f32.mrf.mxu0
    %v5356 = vadd.f32 0.0, %v5355
    %5357 = vmatmul.f32.gmra.mxu0 %v5321
    %v5358 = vpop.f32.mrf.mxu0
    %v5359 = vadd.f32 0.0, %v5358
    %5360 = vmatmul.f32.gmra.mxu0 %v5324
    %v5361 = vpop.f32.mrf.mxu0
    %v5362 = vadd.f32 0.0, %v5361
    %5363 = vmatmul.f32.gmra.mxu0 %v5327
    %v5364 = vpop.f32.mrf.mxu0
    %v5365 = vadd.f32 0.0, %v5364
    %5366 = vdwg.mxu0
    %v5367 = vadd.f32 %v5096, %v5347
    %v5368 = vadd.f32 %v5097, %v5350
    %v5369 = vadd.f32 %v5098, %v5353
    %v5370 = vadd.f32 %v5099, %v5356
    %v5371 = vadd.f32 %v5100, %v5359
    %v5372 = vadd.f32 %v5101, %v5362
    %v5373 = vadd.f32 %v5102, %v5365
    %s5374 = scalar_lea.vmem %s4, 3584
    %v5375 = vld [vmem:[%s5374] sm:$0xff]
    %v5376 = vld [vmem:[%s5374 + $0x8] sm:$0xff]
    %v5377 = vld [vmem:[%s5374 + $0x10] sm:$0xff]
    %v5378 = vld [vmem:[%s5374 + $0x18] sm:$0xff]
    %v5379 = vld [vmem:[%s5374 + $0x20] sm:$0xff]
    %v5380 = vld [vmem:[%s5374 + $0x28] sm:$0xff]
    %v5381 = vld [vmem:[%s5374 + $0x30] sm:$0xff]
    %v5382 = vld [vmem:[%s5374 + $0x38] sm:$0xff]
    %v5383 = vld [vmem:[%s5374 + $0x40] sm:$0xff]
    %v5384 = vld [vmem:[%s5374 + $0x48] sm:$0xff]
    %v5385 = vld [vmem:[%s5374 + $0x50] sm:$0xff]
    %v5386 = vld [vmem:[%s5374 + $0x58] sm:$0xff]
    %v5387 = vld [vmem:[%s5374 + $0x60] sm:$0xff]
    %v5388 = vld [vmem:[%s5374 + $0x68] sm:$0xff]
    %v5389 = vld [vmem:[%s5374 + $0x70] sm:$0xff]
    %v5390 = vld [vmem:[%s5374 + $0x78] sm:$0xff]
    %v5391 = vld [vmem:[%s5374 + $0x80] sm:$0xff]
    %v5392 = vld [vmem:[%s5374 + $0x88] sm:$0xff]
    %v5393 = vld [vmem:[%s5374 + $0x90] sm:$0xff]
    %v5394 = vld [vmem:[%s5374 + $0x98] sm:$0xff]
    %v5395 = vld [vmem:[%s5374 + $0xa0] sm:$0xff]
    %v5396 = vld [vmem:[%s5374 + $0xa8] sm:$0xff]
    %v5397 = vld [vmem:[%s5374 + $0xb0] sm:$0xff]
    %v5398 = vld [vmem:[%s5374 + $0xb8] sm:$0xff]
    %v5399 = vld [vmem:[%s5374 + $0xc0] sm:$0x3]
    %v5400 = vld [vmem:[%s5374 + $0xc8] sm:$0x3]
    %v5401 = vld [vmem:[%s5374 + $0xd0] sm:$0x3]
    %v5402 = vld [vmem:[%s5374 + $0xd8] sm:$0x3]
    %v5404 = vsel %vm1081, %v5378, 0
    %v5407 = vsel %vm1081, %v5382, 0
    %v5410 = vsel %vm1081, %v5386, 0
    %v5413 = vsel %vm1081, %v5390, 0
    %v5416 = vsel %vm1081, %v5394, 0
    %v5419 = vsel %vm1081, %v5398, 0
    %v5422 = vsel %vm1081, %v5402, 0
    %5424 = vmatpush.msra.mxu0 %v1047
    %5425 = vmatpush.msra.mxu0 %v1046
    %5426 = vmatpush.msra.mxu0 %v1045
    %5427 = vmatpush.msra.mxu0 %v1044
    %5428 = vmatpush.msra.mxu0 %v1043
    %5429 = vmatpush.msra.mxu0 %v1042
    %5430 = vmatpush.msra.mxu0 %v1041
    %5431 = vmatpush.msra.mxu0 %v1040
    %5432 = vmatpush.msra.mxu0 %v1039
    %5433 = vmatpush.msra.mxu0 %v1038
    %5434 = vmatpush.msra.mxu0 %v1037
    %5435 = vmatpush.msra.mxu0 %v1036
    %5436 = vmatpush.msra.mxu0 %v1035
    %5437 = vmatpush.msra.mxu0 %v1034
    %5438 = vmatpush.msra.mxu0 %v1033
    %5439 = vmatpush.msra.mxu0 %v1032
    %5440 = vmatmul.f32.gmra.mxu0 %v5375
    %v5441 = vpop.f32.mrf.mxu0
    %v5442 = vadd.f32 0.0, %v5441
    %5443 = vmatmul.f32.gmra.mxu0 %v5379
    %v5444 = vpop.f32.mrf.mxu0
    %v5445 = vadd.f32 0.0, %v5444
    %5446 = vmatmul.f32.gmra.mxu0 %v5383
    %v5447 = vpop.f32.mrf.mxu0
    %v5448 = vadd.f32 0.0, %v5447
    %5449 = vmatmul.f32.gmra.mxu0 %v5387
    %v5450 = vpop.f32.mrf.mxu0
    %v5451 = vadd.f32 0.0, %v5450
    %5452 = vmatmul.f32.gmra.mxu0 %v5391
    %v5453 = vpop.f32.mrf.mxu0
    %v5454 = vadd.f32 0.0, %v5453
    %5455 = vmatmul.f32.gmra.mxu0 %v5395
    %v5456 = vpop.f32.mrf.mxu0
    %v5457 = vadd.f32 0.0, %v5456
    %5458 = vmatmul.f32.gmra.mxu0 %v5399
    %v5459 = vpop.f32.mrf.mxu0
    %v5460 = vadd.f32 0.0, %v5459
    %5461 = vdwg.mxu0
    %5462 = vmatpush.msra.mxu0 %v1063
    %5463 = vmatpush.msra.mxu0 %v1062
    %5464 = vmatpush.msra.mxu0 %v1061
    %5465 = vmatpush.msra.mxu0 %v1060
    %5466 = vmatpush.msra.mxu0 %v1059
    %5467 = vmatpush.msra.mxu0 %v1058
    %5468 = vmatpush.msra.mxu0 %v1057
    %5469 = vmatpush.msra.mxu0 %v1056
    %5470 = vmatpush.msra.mxu0 %v1055
    %5471 = vmatpush.msra.mxu0 %v1054
    %5472 = vmatpush.msra.mxu0 %v1053
    %5473 = vmatpush.msra.mxu0 %v1052
    %5474 = vmatpush.msra.mxu0 %v1051
    %5475 = vmatpush.msra.mxu0 %v1050
    %5476 = vmatpush.msra.mxu0 %v1049
    %5477 = vmatpush.msra.mxu0 %v1048
    %5478 = vmatmul.f32.gmra.mxu0 %v5376
    %v5479 = vpop.f32.mrf.mxu0
    %v5480 = vadd.f32 %v5442, %v5479
    %5481 = vmatmul.f32.gmra.mxu0 %v5380
    %v5482 = vpop.f32.mrf.mxu0
    %v5483 = vadd.f32 %v5445, %v5482
    %5484 = vmatmul.f32.gmra.mxu0 %v5384
    %v5485 = vpop.f32.mrf.mxu0
    %v5486 = vadd.f32 %v5448, %v5485
    %5487 = vmatmul.f32.gmra.mxu0 %v5388
    %v5488 = vpop.f32.mrf.mxu0
    %v5489 = vadd.f32 %v5451, %v5488
    %5490 = vmatmul.f32.gmra.mxu0 %v5392
    %v5491 = vpop.f32.mrf.mxu0
    %v5492 = vadd.f32 %v5454, %v5491
    %5493 = vmatmul.f32.gmra.mxu0 %v5396
    %v5494 = vpop.f32.mrf.mxu0
    %v5495 = vadd.f32 %v5457, %v5494
    %5496 = vmatmul.f32.gmra.mxu0 %v5400
    %v5497 = vpop.f32.mrf.mxu0
    %v5498 = vadd.f32 %v5460, %v5497
    %5499 = vdwg.mxu0
    %5500 = vmatpush.msra.mxu0 %v1079
    %5501 = vmatpush.msra.mxu0 %v1078
    %5502 = vmatpush.msra.mxu0 %v1077
    %5503 = vmatpush.msra.mxu0 %v1076
    %5504 = vmatpush.msra.mxu0 %v1075
    %5505 = vmatpush.msra.mxu0 %v1074
    %5506 = vmatpush.msra.mxu0 %v1073
    %5507 = vmatpush.msra.mxu0 %v1072
    %5508 = vmatpush.msra.mxu0 %v1071
    %5509 = vmatpush.msra.mxu0 %v1070
    %5510 = vmatpush.msra.mxu0 %v1069
    %5511 = vmatpush.msra.mxu0 %v1068
    %5512 = vmatpush.msra.mxu0 %v1067
    %5513 = vmatpush.msra.mxu0 %v1066
    %5514 = vmatpush.msra.mxu0 %v1065
    %5515 = vmatpush.msra.mxu0 %v1064
    %5516 = vmatmul.f32.gmra.mxu0 %v5377
    %v5517 = vpop.f32.mrf.mxu0
    %v5518 = vadd.f32 %v5480, %v5517
    %5519 = vmatmul.f32.gmra.mxu0 %v5381
    %v5520 = vpop.f32.mrf.mxu0
    %v5521 = vadd.f32 %v5483, %v5520
    %5522 = vmatmul.f32.gmra.mxu0 %v5385
    %v5523 = vpop.f32.mrf.mxu0
    %v5524 = vadd.f32 %v5486, %v5523
    %5525 = vmatmul.f32.gmra.mxu0 %v5389
    %v5526 = vpop.f32.mrf.mxu0
    %v5527 = vadd.f32 %v5489, %v5526
    %5528 = vmatmul.f32.gmra.mxu0 %v5393
    %v5529 = vpop.f32.mrf.mxu0
    %v5530 = vadd.f32 %v5492, %v5529
    %5531 = vmatmul.f32.gmra.mxu0 %v5397
    %v5532 = vpop.f32.mrf.mxu0
    %v5533 = vadd.f32 %v5495, %v5532
    %5534 = vmatmul.f32.gmra.mxu0 %v5401
    %v5535 = vpop.f32.mrf.mxu0
    %v5536 = vadd.f32 %v5498, %v5535
    %5537 = vdwg.mxu0
    %5538 = vmatpush.msra.mxu0 0.0
    %5539 = vmatpush.msra.mxu0 0.0
    %5540 = vmatpush.msra.mxu0 0.0
    %5541 = vmatpush.msra.mxu0 0.0
    %5542 = vmatpush.msra.mxu0 0.0
    %5543 = vmatpush.msra.mxu0 0.0
    %5544 = vmatpush.msra.mxu0 0.0
    %5545 = vmatpush.msra.mxu0 0.0
    %5546 = vmatpush.msra.mxu0 0.0
    %5547 = vmatpush.msra.mxu0 0.0
    %5548 = vmatpush.msra.mxu0 0.0
    %5549 = vmatpush.msra.mxu0 0.0
    %5550 = vmatpush.msra.mxu0 0.0
    %5551 = vmatpush.msra.mxu0 0.0
    %5552 = vmatpush.msra.mxu0 0.0
    %5553 = vmatpush.msra.mxu0 %v1080
    %5554 = vmatmul.f32.gmra.mxu0 %v5404
    %v5555 = vpop.f32.mrf.mxu0
    %v5556 = vadd.f32 %v5518, %v5555
    %5557 = vmatmul.f32.gmra.mxu0 %v5407
    %v5558 = vpop.f32.mrf.mxu0
    %v5559 = vadd.f32 %v5521, %v5558
    %5560 = vmatmul.f32.gmra.mxu0 %v5410
    %v5561 = vpop.f32.mrf.mxu0
    %v5562 = vadd.f32 %v5524, %v5561
    %5563 = vmatmul.f32.gmra.mxu0 %v5413
    %v5564 = vpop.f32.mrf.mxu0
    %v5565 = vadd.f32 %v5527, %v5564
    %5566 = vmatmul.f32.gmra.mxu0 %v5416
    %v5567 = vpop.f32.mrf.mxu0
    %v5568 = vadd.f32 %v5530, %v5567
    %5569 = vmatmul.f32.gmra.mxu0 %v5419
    %v5570 = vpop.f32.mrf.mxu0
    %v5571 = vadd.f32 %v5533, %v5570
    %5572 = vmatmul.f32.gmra.mxu0 %v5422
    %v5573 = vpop.f32.mrf.mxu0
    %v5574 = vadd.f32 %v5536, %v5573
    %5575 = vdwg.mxu0
    %s5576 = scalar_lea.vmem %s5, 256
    %v5577 = vld [vmem:[%s5576] sm:$0xff]
    %v5578 = vld [vmem:[%s5576 + $0x8] sm:$0xff]
    %v5580 = vsel %vm428, %v5556, 0
    %v5583 = vsel %vm428, %v5559, 0
    %v5586 = vsel %vm428, %v5562, 0
    %v5589 = vsel %vm428, %v5565, 0
    %v5592 = vsel %vm428, %v5568, 0
    %v5595 = vsel %vm428, %v5571, 0
    %v5598 = vsel %vm428, %v5574, 0
    %5600 = vmatpush.msra.mxu0 0.0
    %5601 = vmatpush.msra.mxu0 0.0
    %5602 = vmatpush.msra.mxu0 0.0
    %5603 = vmatpush.msra.mxu0 0.0
    %5604 = vmatpush.msra.mxu0 0.0
    %5605 = vmatpush.msra.mxu0 0.0
    %5606 = vmatpush.msra.mxu0 0.0
    %5607 = vmatpush.msra.mxu0 0.0
    %5608 = vmatpush.msra.mxu0 0.0
    %5609 = vmatpush.msra.mxu0 0.0
    %5610 = vmatpush.msra.mxu0 0.0
    %5611 = vmatpush.msra.mxu0 0.0
    %5612 = vmatpush.msra.mxu0 0.0
    %5613 = vmatpush.msra.mxu0 0.0
    %5614 = vmatpush.msra.mxu0 %v5578
    %5615 = vmatpush.msra.mxu0 %v5577
    %5616 = vmatmul.f32.gmra.mxu0 %v5580
    %v5617 = vpop.f32.mrf.mxu0
    %v5618 = vadd.f32 0.0, %v5617
    %5619 = vmatmul.f32.gmra.mxu0 %v5583
    %v5620 = vpop.f32.mrf.mxu0
    %v5621 = vadd.f32 0.0, %v5620
    %5622 = vmatmul.f32.gmra.mxu0 %v5586
    %v5623 = vpop.f32.mrf.mxu0
    %v5624 = vadd.f32 0.0, %v5623
    %5625 = vmatmul.f32.gmra.mxu0 %v5589
    %v5626 = vpop.f32.mrf.mxu0
    %v5627 = vadd.f32 0.0, %v5626
    %5628 = vmatmul.f32.gmra.mxu0 %v5592
    %v5629 = vpop.f32.mrf.mxu0
    %v5630 = vadd.f32 0.0, %v5629
    %5631 = vmatmul.f32.gmra.mxu0 %v5595
    %v5632 = vpop.f32.mrf.mxu0
    %v5633 = vadd.f32 0.0, %v5632
    %5634 = vmatmul.f32.gmra.mxu0 %v5598
    %v5635 = vpop.f32.mrf.mxu0
    %v5636 = vadd.f32 0.0, %v5635
    %5637 = vdwg.mxu0
    %v5638 = vadd.f32 %v5367, %v5618
    %v5639 = vadd.f32 %v5368, %v5621
    %v5640 = vadd.f32 %v5369, %v5624
    %v5641 = vadd.f32 %v5370, %v5627
    %v5642 = vadd.f32 %v5371, %v5630
    %v5643 = vadd.f32 %v5372, %v5633
    %v5644 = vadd.f32 %v5373, %v5636
    %s5645 = scalar_lea.vmem %s4, 3808
    %v5646 = vld [vmem:[%s5645] sm:$0xff]
    %v5647 = vld [vmem:[%s5645 + $0x8] sm:$0xff]
    %v5648 = vld [vmem:[%s5645 + $0x10] sm:$0xff]
    %v5649 = vld [vmem:[%s5645 + $0x18] sm:$0xff]
    %v5650 = vld [vmem:[%s5645 + $0x20] sm:$0xff]
    %v5651 = vld [vmem:[%s5645 + $0x28] sm:$0xff]
    %v5652 = vld [vmem:[%s5645 + $0x30] sm:$0xff]
    %v5653 = vld [vmem:[%s5645 + $0x38] sm:$0xff]
    %v5654 = vld [vmem:[%s5645 + $0x40] sm:$0xff]
    %v5655 = vld [vmem:[%s5645 + $0x48] sm:$0xff]
    %v5656 = vld [vmem:[%s5645 + $0x50] sm:$0xff]
    %v5657 = vld [vmem:[%s5645 + $0x58] sm:$0xff]
    %v5658 = vld [vmem:[%s5645 + $0x60] sm:$0xff]
    %v5659 = vld [vmem:[%s5645 + $0x68] sm:$0xff]
    %v5660 = vld [vmem:[%s5645 + $0x70] sm:$0xff]
    %v5661 = vld [vmem:[%s5645 + $0x78] sm:$0xff]
    %v5662 = vld [vmem:[%s5645 + $0x80] sm:$0xff]
    %v5663 = vld [vmem:[%s5645 + $0x88] sm:$0xff]
    %v5664 = vld [vmem:[%s5645 + $0x90] sm:$0xff]
    %v5665 = vld [vmem:[%s5645 + $0x98] sm:$0xff]
    %v5666 = vld [vmem:[%s5645 + $0xa0] sm:$0xff]
    %v5667 = vld [vmem:[%s5645 + $0xa8] sm:$0xff]
    %v5668 = vld [vmem:[%s5645 + $0xb0] sm:$0xff]
    %v5669 = vld [vmem:[%s5645 + $0xb8] sm:$0xff]
    %v5670 = vld [vmem:[%s5645 + $0xc0] sm:$0x3]
    %v5671 = vld [vmem:[%s5645 + $0xc8] sm:$0x3]
    %v5672 = vld [vmem:[%s5645 + $0xd0] sm:$0x3]
    %v5673 = vld [vmem:[%s5645 + $0xd8] sm:$0x3]
    %v5675 = vsel %vm1081, %v5649, 0
    %v5678 = vsel %vm1081, %v5653, 0
    %v5681 = vsel %vm1081, %v5657, 0
    %v5684 = vsel %vm1081, %v5661, 0
    %v5687 = vsel %vm1081, %v5665, 0
    %v5690 = vsel %vm1081, %v5669, 0
    %v5693 = vsel %vm1081, %v5673, 0
    %5695 = vmatpush.msra.mxu0 %v1047
    %5696 = vmatpush.msra.mxu0 %v1046
    %5697 = vmatpush.msra.mxu0 %v1045
    %5698 = vmatpush.msra.mxu0 %v1044
    %5699 = vmatpush.msra.mxu0 %v1043
    %5700 = vmatpush.msra.mxu0 %v1042
    %5701 = vmatpush.msra.mxu0 %v1041
    %5702 = vmatpush.msra.mxu0 %v1040
    %5703 = vmatpush.msra.mxu0 %v1039
    %5704 = vmatpush.msra.mxu0 %v1038
    %5705 = vmatpush.msra.mxu0 %v1037
    %5706 = vmatpush.msra.mxu0 %v1036
    %5707 = vmatpush.msra.mxu0 %v1035
    %5708 = vmatpush.msra.mxu0 %v1034
    %5709 = vmatpush.msra.mxu0 %v1033
    %5710 = vmatpush.msra.mxu0 %v1032
    %5711 = vmatmul.f32.gmra.mxu0 %v5646
    %v5712 = vpop.f32.mrf.mxu0
    %v5713 = vadd.f32 0.0, %v5712
    %5714 = vmatmul.f32.gmra.mxu0 %v5650
    %v5715 = vpop.f32.mrf.mxu0
    %v5716 = vadd.f32 0.0, %v5715
    %5717 = vmatmul.f32.gmra.mxu0 %v5654
    %v5718 = vpop.f32.mrf.mxu0
    %v5719 = vadd.f32 0.0, %v5718
    %5720 = vmatmul.f32.gmra.mxu0 %v5658
    %v5721 = vpop.f32.mrf.mxu0
    %v5722 = vadd.f32 0.0, %v5721
    %5723 = vmatmul.f32.gmra.mxu0 %v5662
    %v5724 = vpop.f32.mrf.mxu0
    %v5725 = vadd.f32 0.0, %v5724
    %5726 = vmatmul.f32.gmra.mxu0 %v5666
    %v5727 = vpop.f32.mrf.mxu0
    %v5728 = vadd.f32 0.0, %v5727
    %5729 = vmatmul.f32.gmra.mxu0 %v5670
    %v5730 = vpop.f32.mrf.mxu0
    %v5731 = vadd.f32 0.0, %v5730
    %5732 = vdwg.mxu0
    %5733 = vmatpush.msra.mxu0 %v1063
    %5734 = vmatpush.msra.mxu0 %v1062
    %5735 = vmatpush.msra.mxu0 %v1061
    %5736 = vmatpush.msra.mxu0 %v1060
    %5737 = vmatpush.msra.mxu0 %v1059
    %5738 = vmatpush.msra.mxu0 %v1058
    %5739 = vmatpush.msra.mxu0 %v1057
    %5740 = vmatpush.msra.mxu0 %v1056
    %5741 = vmatpush.msra.mxu0 %v1055
    %5742 = vmatpush.msra.mxu0 %v1054
    %5743 = vmatpush.msra.mxu0 %v1053
    %5744 = vmatpush.msra.mxu0 %v1052
    %5745 = vmatpush.msra.mxu0 %v1051
    %5746 = vmatpush.msra.mxu0 %v1050
    %5747 = vmatpush.msra.mxu0 %v1049
    %5748 = vmatpush.msra.mxu0 %v1048
    %5749 = vmatmul.f32.gmra.mxu0 %v5647
    %v5750 = vpop.f32.mrf.mxu0
    %v5751 = vadd.f32 %v5713, %v5750
    %5752 = vmatmul.f32.gmra.mxu0 %v5651
    %v5753 = vpop.f32.mrf.mxu0
    %v5754 = vadd.f32 %v5716, %v5753
    %5755 = vmatmul.f32.gmra.mxu0 %v5655
    %v5756 = vpop.f32.mrf.mxu0
    %v5757 = vadd.f32 %v5719, %v5756
    %5758 = vmatmul.f32.gmra.mxu0 %v5659
    %v5759 = vpop.f32.mrf.mxu0
    %v5760 = vadd.f32 %v5722, %v5759
    %5761 = vmatmul.f32.gmra.mxu0 %v5663
    %v5762 = vpop.f32.mrf.mxu0
    %v5763 = vadd.f32 %v5725, %v5762
    %5764 = vmatmul.f32.gmra.mxu0 %v5667
    %v5765 = vpop.f32.mrf.mxu0
    %v5766 = vadd.f32 %v5728, %v5765
    %5767 = vmatmul.f32.gmra.mxu0 %v5671
    %v5768 = vpop.f32.mrf.mxu0
    %v5769 = vadd.f32 %v5731, %v5768
    %5770 = vdwg.mxu0
    %5771 = vmatpush.msra.mxu0 %v1079
    %5772 = vmatpush.msra.mxu0 %v1078
    %5773 = vmatpush.msra.mxu0 %v1077
    %5774 = vmatpush.msra.mxu0 %v1076
    %5775 = vmatpush.msra.mxu0 %v1075
    %5776 = vmatpush.msra.mxu0 %v1074
    %5777 = vmatpush.msra.mxu0 %v1073
    %5778 = vmatpush.msra.mxu0 %v1072
    %5779 = vmatpush.msra.mxu0 %v1071
    %5780 = vmatpush.msra.mxu0 %v1070
    %5781 = vmatpush.msra.mxu0 %v1069
    %5782 = vmatpush.msra.mxu0 %v1068
    %5783 = vmatpush.msra.mxu0 %v1067
    %5784 = vmatpush.msra.mxu0 %v1066
    %5785 = vmatpush.msra.mxu0 %v1065
    %5786 = vmatpush.msra.mxu0 %v1064
    %5787 = vmatmul.f32.gmra.mxu0 %v5648
    %v5788 = vpop.f32.mrf.mxu0
    %v5789 = vadd.f32 %v5751, %v5788
    %5790 = vmatmul.f32.gmra.mxu0 %v5652
    %v5791 = vpop.f32.mrf.mxu0
    %v5792 = vadd.f32 %v5754, %v5791
    %5793 = vmatmul.f32.gmra.mxu0 %v5656
    %v5794 = vpop.f32.mrf.mxu0
    %v5795 = vadd.f32 %v5757, %v5794
    %5796 = vmatmul.f32.gmra.mxu0 %v5660
    %v5797 = vpop.f32.mrf.mxu0
    %v5798 = vadd.f32 %v5760, %v5797
    %5799 = vmatmul.f32.gmra.mxu0 %v5664
    %v5800 = vpop.f32.mrf.mxu0
    %v5801 = vadd.f32 %v5763, %v5800
    %5802 = vmatmul.f32.gmra.mxu0 %v5668
    %v5803 = vpop.f32.mrf.mxu0
    %v5804 = vadd.f32 %v5766, %v5803
    %5805 = vmatmul.f32.gmra.mxu0 %v5672
    %v5806 = vpop.f32.mrf.mxu0
    %v5807 = vadd.f32 %v5769, %v5806
    %5808 = vdwg.mxu0
    %5809 = vmatpush.msra.mxu0 0.0
    %5810 = vmatpush.msra.mxu0 0.0
    %5811 = vmatpush.msra.mxu0 0.0
    %5812 = vmatpush.msra.mxu0 0.0
    %5813 = vmatpush.msra.mxu0 0.0
    %5814 = vmatpush.msra.mxu0 0.0
    %5815 = vmatpush.msra.mxu0 0.0
    %5816 = vmatpush.msra.mxu0 0.0
    %5817 = vmatpush.msra.mxu0 0.0
    %5818 = vmatpush.msra.mxu0 0.0
    %5819 = vmatpush.msra.mxu0 0.0
    %5820 = vmatpush.msra.mxu0 0.0
    %5821 = vmatpush.msra.mxu0 0.0
    %5822 = vmatpush.msra.mxu0 0.0
    %5823 = vmatpush.msra.mxu0 0.0
    %5824 = vmatpush.msra.mxu0 %v1080
    %5825 = vmatmul.f32.gmra.mxu0 %v5675
    %v5826 = vpop.f32.mrf.mxu0
    %v5827 = vadd.f32 %v5789, %v5826
    %5828 = vmatmul.f32.gmra.mxu0 %v5678
    %v5829 = vpop.f32.mrf.mxu0
    %v5830 = vadd.f32 %v5792, %v5829
    %5831 = vmatmul.f32.gmra.mxu0 %v5681
    %v5832 = vpop.f32.mrf.mxu0
    %v5833 = vadd.f32 %v5795, %v5832
    %5834 = vmatmul.f32.gmra.mxu0 %v5684
    %v5835 = vpop.f32.mrf.mxu0
    %v5836 = vadd.f32 %v5798, %v5835
    %5837 = vmatmul.f32.gmra.mxu0 %v5687
    %v5838 = vpop.f32.mrf.mxu0
    %v5839 = vadd.f32 %v5801, %v5838
    %5840 = vmatmul.f32.gmra.mxu0 %v5690
    %v5841 = vpop.f32.mrf.mxu0
    %v5842 = vadd.f32 %v5804, %v5841
    %5843 = vmatmul.f32.gmra.mxu0 %v5693
    %v5844 = vpop.f32.mrf.mxu0
    %v5845 = vadd.f32 %v5807, %v5844
    %5846 = vdwg.mxu0
    %s5847 = scalar_lea.vmem %s5, 272
    %v5848 = vld [vmem:[%s5847] sm:$0xff]
    %v5849 = vld [vmem:[%s5847 + $0x8] sm:$0xff]
    %v5851 = vsel %vm428, %v5827, 0
    %v5854 = vsel %vm428, %v5830, 0
    %v5857 = vsel %vm428, %v5833, 0
    %v5860 = vsel %vm428, %v5836, 0
    %v5863 = vsel %vm428, %v5839, 0
    %v5866 = vsel %vm428, %v5842, 0
    %v5869 = vsel %vm428, %v5845, 0
    %5871 = vmatpush.msra.mxu0 0.0
    %5872 = vmatpush.msra.mxu0 0.0
    %5873 = vmatpush.msra.mxu0 0.0
    %5874 = vmatpush.msra.mxu0 0.0
    %5875 = vmatpush.msra.mxu0 0.0
    %5876 = vmatpush.msra.mxu0 0.0
    %5877 = vmatpush.msra.mxu0 0.0
    %5878 = vmatpush.msra.mxu0 0.0
    %5879 = vmatpush.msra.mxu0 0.0
    %5880 = vmatpush.msra.mxu0 0.0
    %5881 = vmatpush.msra.mxu0 0.0
    %5882 = vmatpush.msra.mxu0 0.0
    %5883 = vmatpush.msra.mxu0 0.0
    %5884 = vmatpush.msra.mxu0 0.0
    %5885 = vmatpush.msra.mxu0 %v5849
    %5886 = vmatpush.msra.mxu0 %v5848
    %5887 = vmatmul.f32.gmra.mxu0 %v5851
    %v5888 = vpop.f32.mrf.mxu0
    %v5889 = vadd.f32 0.0, %v5888
    %5890 = vmatmul.f32.gmra.mxu0 %v5854
    %v5891 = vpop.f32.mrf.mxu0
    %v5892 = vadd.f32 0.0, %v5891
    %5893 = vmatmul.f32.gmra.mxu0 %v5857
    %v5894 = vpop.f32.mrf.mxu0
    %v5895 = vadd.f32 0.0, %v5894
    %5896 = vmatmul.f32.gmra.mxu0 %v5860
    %v5897 = vpop.f32.mrf.mxu0
    %v5898 = vadd.f32 0.0, %v5897
    %5899 = vmatmul.f32.gmra.mxu0 %v5863
    %v5900 = vpop.f32.mrf.mxu0
    %v5901 = vadd.f32 0.0, %v5900
    %5902 = vmatmul.f32.gmra.mxu0 %v5866
    %v5903 = vpop.f32.mrf.mxu0
    %v5904 = vadd.f32 0.0, %v5903
    %5905 = vmatmul.f32.gmra.mxu0 %v5869
    %v5906 = vpop.f32.mrf.mxu0
    %v5907 = vadd.f32 0.0, %v5906
    %5908 = vdwg.mxu0
    %v5909 = vadd.f32 %v5638, %v5889
    %v5910 = vadd.f32 %v5639, %v5892
    %v5911 = vadd.f32 %v5640, %v5895
    %v5912 = vadd.f32 %v5641, %v5898
    %v5913 = vadd.f32 %v5642, %v5901
    %v5914 = vadd.f32 %v5643, %v5904
    %v5915 = vadd.f32 %v5644, %v5907
    %s5916 = scalar_lea.vmem %s4, 4032
    %v5917 = vld [vmem:[%s5916] sm:$0xff]
    %v5918 = vld [vmem:[%s5916 + $0x8] sm:$0xff]
    %v5919 = vld [vmem:[%s5916 + $0x10] sm:$0xff]
    %v5920 = vld [vmem:[%s5916 + $0x18] sm:$0xff]
    %v5921 = vld [vmem:[%s5916 + $0x20] sm:$0xff]
    %v5922 = vld [vmem:[%s5916 + $0x28] sm:$0xff]
    %v5923 = vld [vmem:[%s5916 + $0x30] sm:$0xff]
    %v5924 = vld [vmem:[%s5916 + $0x38] sm:$0xff]
    %v5925 = vld [vmem:[%s5916 + $0x40] sm:$0xff]
    %v5926 = vld [vmem:[%s5916 + $0x48] sm:$0xff]
    %v5927 = vld [vmem:[%s5916 + $0x50] sm:$0xff]
    %v5928 = vld [vmem:[%s5916 + $0x58] sm:$0xff]
    %v5929 = vld [vmem:[%s5916 + $0x60] sm:$0xff]
    %v5930 = vld [vmem:[%s5916 + $0x68] sm:$0xff]
    %v5931 = vld [vmem:[%s5916 + $0x70] sm:$0xff]
    %v5932 = vld [vmem:[%s5916 + $0x78] sm:$0xff]
    %v5933 = vld [vmem:[%s5916 + $0x80] sm:$0xff]
    %v5934 = vld [vmem:[%s5916 + $0x88] sm:$0xff]
    %v5935 = vld [vmem:[%s5916 + $0x90] sm:$0xff]
    %v5936 = vld [vmem:[%s5916 + $0x98] sm:$0xff]
    %v5937 = vld [vmem:[%s5916 + $0xa0] sm:$0xff]
    %v5938 = vld [vmem:[%s5916 + $0xa8] sm:$0xff]
    %v5939 = vld [vmem:[%s5916 + $0xb0] sm:$0xff]
    %v5940 = vld [vmem:[%s5916 + $0xb8] sm:$0xff]
    %v5941 = vld [vmem:[%s5916 + $0xc0] sm:$0x3]
    %v5942 = vld [vmem:[%s5916 + $0xc8] sm:$0x3]
    %v5943 = vld [vmem:[%s5916 + $0xd0] sm:$0x3]
    %v5944 = vld [vmem:[%s5916 + $0xd8] sm:$0x3]
    %v5946 = vsel %vm1081, %v5920, 0
    %v5949 = vsel %vm1081, %v5924, 0
    %v5952 = vsel %vm1081, %v5928, 0
    %v5955 = vsel %vm1081, %v5932, 0
    %v5958 = vsel %vm1081, %v5936, 0
    %v5961 = vsel %vm1081, %v5940, 0
    %v5964 = vsel %vm1081, %v5944, 0
    %5966 = vmatpush.msra.mxu0 %v1047
    %5967 = vmatpush.msra.mxu0 %v1046
    %5968 = vmatpush.msra.mxu0 %v1045
    %5969 = vmatpush.msra.mxu0 %v1044
    %5970 = vmatpush.msra.mxu0 %v1043
    %5971 = vmatpush.msra.mxu0 %v1042
    %5972 = vmatpush.msra.mxu0 %v1041
    %5973 = vmatpush.msra.mxu0 %v1040
    %5974 = vmatpush.msra.mxu0 %v1039
    %5975 = vmatpush.msra.mxu0 %v1038
    %5976 = vmatpush.msra.mxu0 %v1037
    %5977 = vmatpush.msra.mxu0 %v1036
    %5978 = vmatpush.msra.mxu0 %v1035
    %5979 = vmatpush.msra.mxu0 %v1034
    %5980 = vmatpush.msra.mxu0 %v1033
    %5981 = vmatpush.msra.mxu0 %v1032
    %5982 = vmatmul.f32.gmra.mxu0 %v5917
    %v5983 = vpop.f32.mrf.mxu0
    %v5984 = vadd.f32 0.0, %v5983
    %5985 = vmatmul.f32.gmra.mxu0 %v5921
    %v5986 = vpop.f32.mrf.mxu0
    %v5987 = vadd.f32 0.0, %v5986
    %5988 = vmatmul.f32.gmra.mxu0 %v5925
    %v5989 = vpop.f32.mrf.mxu0
    %v5990 = vadd.f32 0.0, %v5989
    %5991 = vmatmul.f32.gmra.mxu0 %v5929
    %v5992 = vpop.f32.mrf.mxu0
    %v5993 = vadd.f32 0.0, %v5992
    %5994 = vmatmul.f32.gmra.mxu0 %v5933
    %v5995 = vpop.f32.mrf.mxu0
    %v5996 = vadd.f32 0.0, %v5995
    %5997 = vmatmul.f32.gmra.mxu0 %v5937
    %v5998 = vpop.f32.mrf.mxu0
    %v5999 = vadd.f32 0.0, %v5998
    %6000 = vmatmul.f32.gmra.mxu0 %v5941
    %v6001 = vpop.f32.mrf.mxu0
    %v6002 = vadd.f32 0.0, %v6001
    %6003 = vdwg.mxu0
    %6004 = vmatpush.msra.mxu0 %v1063
    %6005 = vmatpush.msra.mxu0 %v1062
    %6006 = vmatpush.msra.mxu0 %v1061
    %6007 = vmatpush.msra.mxu0 %v1060
    %6008 = vmatpush.msra.mxu0 %v1059
    %6009 = vmatpush.msra.mxu0 %v1058
    %6010 = vmatpush.msra.mxu0 %v1057
    %6011 = vmatpush.msra.mxu0 %v1056
    %6012 = vmatpush.msra.mxu0 %v1055
    %6013 = vmatpush.msra.mxu0 %v1054
    %6014 = vmatpush.msra.mxu0 %v1053
    %6015 = vmatpush.msra.mxu0 %v1052
    %6016 = vmatpush.msra.mxu0 %v1051
    %6017 = vmatpush.msra.mxu0 %v1050
    %6018 = vmatpush.msra.mxu0 %v1049
    %6019 = vmatpush.msra.mxu0 %v1048
    %6020 = vmatmul.f32.gmra.mxu0 %v5918
    %v6021 = vpop.f32.mrf.mxu0
    %v6022 = vadd.f32 %v5984, %v6021
    %6023 = vmatmul.f32.gmra.mxu0 %v5922
    %v6024 = vpop.f32.mrf.mxu0
    %v6025 = vadd.f32 %v5987, %v6024
    %6026 = vmatmul.f32.gmra.mxu0 %v5926
    %v6027 = vpop.f32.mrf.mxu0
    %v6028 = vadd.f32 %v5990, %v6027
    %6029 = vmatmul.f32.gmra.mxu0 %v5930
    %v6030 = vpop.f32.mrf.mxu0
    %v6031 = vadd.f32 %v5993, %v6030
    %6032 = vmatmul.f32.gmra.mxu0 %v5934
    %v6033 = vpop.f32.mrf.mxu0
    %v6034 = vadd.f32 %v5996, %v6033
    %6035 = vmatmul.f32.gmra.mxu0 %v5938
    %v6036 = vpop.f32.mrf.mxu0
    %v6037 = vadd.f32 %v5999, %v6036
    %6038 = vmatmul.f32.gmra.mxu0 %v5942
    %v6039 = vpop.f32.mrf.mxu0
    %v6040 = vadd.f32 %v6002, %v6039
    %6041 = vdwg.mxu0
    %6042 = vmatpush.msra.mxu0 %v1079
    %6043 = vmatpush.msra.mxu0 %v1078
    %6044 = vmatpush.msra.mxu0 %v1077
    %6045 = vmatpush.msra.mxu0 %v1076
    %6046 = vmatpush.msra.mxu0 %v1075
    %6047 = vmatpush.msra.mxu0 %v1074
    %6048 = vmatpush.msra.mxu0 %v1073
    %6049 = vmatpush.msra.mxu0 %v1072
    %6050 = vmatpush.msra.mxu0 %v1071
    %6051 = vmatpush.msra.mxu0 %v1070
    %6052 = vmatpush.msra.mxu0 %v1069
    %6053 = vmatpush.msra.mxu0 %v1068
    %6054 = vmatpush.msra.mxu0 %v1067
    %6055 = vmatpush.msra.mxu0 %v1066
    %6056 = vmatpush.msra.mxu0 %v1065
    %6057 = vmatpush.msra.mxu0 %v1064
    %6058 = vmatmul.f32.gmra.mxu0 %v5919
    %v6059 = vpop.f32.mrf.mxu0
    %v6060 = vadd.f32 %v6022, %v6059
    %6061 = vmatmul.f32.gmra.mxu0 %v5923
    %v6062 = vpop.f32.mrf.mxu0
    %v6063 = vadd.f32 %v6025, %v6062
    %6064 = vmatmul.f32.gmra.mxu0 %v5927
    %v6065 = vpop.f32.mrf.mxu0
    %v6066 = vadd.f32 %v6028, %v6065
    %6067 = vmatmul.f32.gmra.mxu0 %v5931
    %v6068 = vpop.f32.mrf.mxu0
    %v6069 = vadd.f32 %v6031, %v6068
    %6070 = vmatmul.f32.gmra.mxu0 %v5935
    %v6071 = vpop.f32.mrf.mxu0
    %v6072 = vadd.f32 %v6034, %v6071
    %6073 = vmatmul.f32.gmra.mxu0 %v5939
    %v6074 = vpop.f32.mrf.mxu0
    %v6075 = vadd.f32 %v6037, %v6074
    %6076 = vmatmul.f32.gmra.mxu0 %v5943
    %v6077 = vpop.f32.mrf.mxu0
    %v6078 = vadd.f32 %v6040, %v6077
    %6079 = vdwg.mxu0
    %6080 = vmatpush.msra.mxu0 0.0
    %6081 = vmatpush.msra.mxu0 0.0
    %6082 = vmatpush.msra.mxu0 0.0
    %6083 = vmatpush.msra.mxu0 0.0
    %6084 = vmatpush.msra.mxu0 0.0
    %6085 = vmatpush.msra.mxu0 0.0
    %6086 = vmatpush.msra.mxu0 0.0
    %6087 = vmatpush.msra.mxu0 0.0
    %6088 = vmatpush.msra.mxu0 0.0
    %6089 = vmatpush.msra.mxu0 0.0
    %6090 = vmatpush.msra.mxu0 0.0
    %6091 = vmatpush.msra.mxu0 0.0
    %6092 = vmatpush.msra.mxu0 0.0
    %6093 = vmatpush.msra.mxu0 0.0
    %6094 = vmatpush.msra.mxu0 0.0
    %6095 = vmatpush.msra.mxu0 %v1080
    %6096 = vmatmul.f32.gmra.mxu0 %v5946
    %v6097 = vpop.f32.mrf.mxu0
    %v6098 = vadd.f32 %v6060, %v6097
    %6099 = vmatmul.f32.gmra.mxu0 %v5949
    %v6100 = vpop.f32.mrf.mxu0
    %v6101 = vadd.f32 %v6063, %v6100
    %6102 = vmatmul.f32.gmra.mxu0 %v5952
    %v6103 = vpop.f32.mrf.mxu0
    %v6104 = vadd.f32 %v6066, %v6103
    %6105 = vmatmul.f32.gmra.mxu0 %v5955
    %v6106 = vpop.f32.mrf.mxu0
    %v6107 = vadd.f32 %v6069, %v6106
    %6108 = vmatmul.f32.gmra.mxu0 %v5958
    %v6109 = vpop.f32.mrf.mxu0
    %v6110 = vadd.f32 %v6072, %v6109
    %6111 = vmatmul.f32.gmra.mxu0 %v5961
    %v6112 = vpop.f32.mrf.mxu0
    %v6113 = vadd.f32 %v6075, %v6112
    %6114 = vmatmul.f32.gmra.mxu0 %v5964
    %v6115 = vpop.f32.mrf.mxu0
    %v6116 = vadd.f32 %v6078, %v6115
    %6117 = vdwg.mxu0
    %s6118 = scalar_lea.vmem %s5, 288
    %v6119 = vld [vmem:[%s6118] sm:$0xff]
    %v6120 = vld [vmem:[%s6118 + $0x8] sm:$0xff]
    %v6122 = vsel %vm428, %v6098, 0
    %v6125 = vsel %vm428, %v6101, 0
    %v6128 = vsel %vm428, %v6104, 0
    %v6131 = vsel %vm428, %v6107, 0
    %v6134 = vsel %vm428, %v6110, 0
    %v6137 = vsel %vm428, %v6113, 0
    %v6140 = vsel %vm428, %v6116, 0
    %6142 = vmatpush.msra.mxu0 0.0
    %6143 = vmatpush.msra.mxu0 0.0
    %6144 = vmatpush.msra.mxu0 0.0
    %6145 = vmatpush.msra.mxu0 0.0
    %6146 = vmatpush.msra.mxu0 0.0
    %6147 = vmatpush.msra.mxu0 0.0
    %6148 = vmatpush.msra.mxu0 0.0
    %6149 = vmatpush.msra.mxu0 0.0
    %6150 = vmatpush.msra.mxu0 0.0
    %6151 = vmatpush.msra.mxu0 0.0
    %6152 = vmatpush.msra.mxu0 0.0
    %6153 = vmatpush.msra.mxu0 0.0
    %6154 = vmatpush.msra.mxu0 0.0
    %6155 = vmatpush.msra.mxu0 0.0
    %6156 = vmatpush.msra.mxu0 %v6120
    %6157 = vmatpush.msra.mxu0 %v6119
    %6158 = vmatmul.f32.gmra.mxu0 %v6122
    %v6159 = vpop.f32.mrf.mxu0
    %v6160 = vadd.f32 0.0, %v6159
    %6161 = vmatmul.f32.gmra.mxu0 %v6125
    %v6162 = vpop.f32.mrf.mxu0
    %v6163 = vadd.f32 0.0, %v6162
    %6164 = vmatmul.f32.gmra.mxu0 %v6128
    %v6165 = vpop.f32.mrf.mxu0
    %v6166 = vadd.f32 0.0, %v6165
    %6167 = vmatmul.f32.gmra.mxu0 %v6131
    %v6168 = vpop.f32.mrf.mxu0
    %v6169 = vadd.f32 0.0, %v6168
    %6170 = vmatmul.f32.gmra.mxu0 %v6134
    %v6171 = vpop.f32.mrf.mxu0
    %v6172 = vadd.f32 0.0, %v6171
    %6173 = vmatmul.f32.gmra.mxu0 %v6137
    %v6174 = vpop.f32.mrf.mxu0
    %v6175 = vadd.f32 0.0, %v6174
    %6176 = vmatmul.f32.gmra.mxu0 %v6140
    %v6177 = vpop.f32.mrf.mxu0
    %v6178 = vadd.f32 0.0, %v6177
    %6179 = vdwg.mxu0
    %v6180 = vadd.f32 %v5909, %v6160
    %v6181 = vadd.f32 %v5910, %v6163
    %v6182 = vadd.f32 %v5911, %v6166
    %v6183 = vadd.f32 %v5912, %v6169
    %v6184 = vadd.f32 %v5913, %v6172
    %v6185 = vadd.f32 %v5914, %v6175
    %v6186 = vadd.f32 %v5915, %v6178
    %s6187 = scalar_lea.vmem %s4, 4256
    %v6188 = vld [vmem:[%s6187] sm:$0xff]
    %v6189 = vld [vmem:[%s6187 + $0x8] sm:$0xff]
    %v6190 = vld [vmem:[%s6187 + $0x10] sm:$0xff]
    %v6191 = vld [vmem:[%s6187 + $0x18] sm:$0xff]
    %v6192 = vld [vmem:[%s6187 + $0x20] sm:$0xff]
    %v6193 = vld [vmem:[%s6187 + $0x28] sm:$0xff]
    %v6194 = vld [vmem:[%s6187 + $0x30] sm:$0xff]
    %v6195 = vld [vmem:[%s6187 + $0x38] sm:$0xff]
    %v6196 = vld [vmem:[%s6187 + $0x40] sm:$0xff]
    %v6197 = vld [vmem:[%s6187 + $0x48] sm:$0xff]
    %v6198 = vld [vmem:[%s6187 + $0x50] sm:$0xff]
    %v6199 = vld [vmem:[%s6187 + $0x58] sm:$0xff]
    %v6200 = vld [vmem:[%s6187 + $0x60] sm:$0xff]
    %v6201 = vld [vmem:[%s6187 + $0x68] sm:$0xff]
    %v6202 = vld [vmem:[%s6187 + $0x70] sm:$0xff]
    %v6203 = vld [vmem:[%s6187 + $0x78] sm:$0xff]
    %v6204 = vld [vmem:[%s6187 + $0x80] sm:$0xff]
    %v6205 = vld [vmem:[%s6187 + $0x88] sm:$0xff]
    %v6206 = vld [vmem:[%s6187 + $0x90] sm:$0xff]
    %v6207 = vld [vmem:[%s6187 + $0x98] sm:$0xff]
    %v6208 = vld [vmem:[%s6187 + $0xa0] sm:$0xff]
    %v6209 = vld [vmem:[%s6187 + $0xa8] sm:$0xff]
    %v6210 = vld [vmem:[%s6187 + $0xb0] sm:$0xff]
    %v6211 = vld [vmem:[%s6187 + $0xb8] sm:$0xff]
    %v6212 = vld [vmem:[%s6187 + $0xc0] sm:$0x3]
    %v6213 = vld [vmem:[%s6187 + $0xc8] sm:$0x3]
    %v6214 = vld [vmem:[%s6187 + $0xd0] sm:$0x3]
    %v6215 = vld [vmem:[%s6187 + $0xd8] sm:$0x3]
    %v6217 = vsel %vm1081, %v6191, 0
    %v6220 = vsel %vm1081, %v6195, 0
    %v6223 = vsel %vm1081, %v6199, 0
    %v6226 = vsel %vm1081, %v6203, 0
    %v6229 = vsel %vm1081, %v6207, 0
    %v6232 = vsel %vm1081, %v6211, 0
    %v6235 = vsel %vm1081, %v6215, 0
    %6237 = vmatpush.msra.mxu0 %v1047
    %6238 = vmatpush.msra.mxu0 %v1046
    %6239 = vmatpush.msra.mxu0 %v1045
    %6240 = vmatpush.msra.mxu0 %v1044
    %6241 = vmatpush.msra.mxu0 %v1043
    %6242 = vmatpush.msra.mxu0 %v1042
    %6243 = vmatpush.msra.mxu0 %v1041
    %6244 = vmatpush.msra.mxu0 %v1040
    %6245 = vmatpush.msra.mxu0 %v1039
    %6246 = vmatpush.msra.mxu0 %v1038
    %6247 = vmatpush.msra.mxu0 %v1037
    %6248 = vmatpush.msra.mxu0 %v1036
    %6249 = vmatpush.msra.mxu0 %v1035
    %6250 = vmatpush.msra.mxu0 %v1034
    %6251 = vmatpush.msra.mxu0 %v1033
    %6252 = vmatpush.msra.mxu0 %v1032
    %6253 = vmatmul.f32.gmra.mxu0 %v6188
    %v6254 = vpop.f32.mrf.mxu0
    %v6255 = vadd.f32 0.0, %v6254
    %6256 = vmatmul.f32.gmra.mxu0 %v6192
    %v6257 = vpop.f32.mrf.mxu0
    %v6258 = vadd.f32 0.0, %v6257
    %6259 = vmatmul.f32.gmra.mxu0 %v6196
    %v6260 = vpop.f32.mrf.mxu0
    %v6261 = vadd.f32 0.0, %v6260
    %6262 = vmatmul.f32.gmra.mxu0 %v6200
    %v6263 = vpop.f32.mrf.mxu0
    %v6264 = vadd.f32 0.0, %v6263
    %6265 = vmatmul.f32.gmra.mxu0 %v6204
    %v6266 = vpop.f32.mrf.mxu0
    %v6267 = vadd.f32 0.0, %v6266
    %6268 = vmatmul.f32.gmra.mxu0 %v6208
    %v6269 = vpop.f32.mrf.mxu0
    %v6270 = vadd.f32 0.0, %v6269
    %6271 = vmatmul.f32.gmra.mxu0 %v6212
    %v6272 = vpop.f32.mrf.mxu0
    %v6273 = vadd.f32 0.0, %v6272
    %6274 = vdwg.mxu0
    %6275 = vmatpush.msra.mxu0 %v1063
    %6276 = vmatpush.msra.mxu0 %v1062
    %6277 = vmatpush.msra.mxu0 %v1061
    %6278 = vmatpush.msra.mxu0 %v1060
    %6279 = vmatpush.msra.mxu0 %v1059
    %6280 = vmatpush.msra.mxu0 %v1058
    %6281 = vmatpush.msra.mxu0 %v1057
    %6282 = vmatpush.msra.mxu0 %v1056
    %6283 = vmatpush.msra.mxu0 %v1055
    %6284 = vmatpush.msra.mxu0 %v1054
    %6285 = vmatpush.msra.mxu0 %v1053
    %6286 = vmatpush.msra.mxu0 %v1052
    %6287 = vmatpush.msra.mxu0 %v1051
    %6288 = vmatpush.msra.mxu0 %v1050
    %6289 = vmatpush.msra.mxu0 %v1049
    %6290 = vmatpush.msra.mxu0 %v1048
    %6291 = vmatmul.f32.gmra.mxu0 %v6189
    %v6292 = vpop.f32.mrf.mxu0
    %v6293 = vadd.f32 %v6255, %v6292
    %6294 = vmatmul.f32.gmra.mxu0 %v6193
    %v6295 = vpop.f32.mrf.mxu0
    %v6296 = vadd.f32 %v6258, %v6295
    %6297 = vmatmul.f32.gmra.mxu0 %v6197
    %v6298 = vpop.f32.mrf.mxu0
    %v6299 = vadd.f32 %v6261, %v6298
    %6300 = vmatmul.f32.gmra.mxu0 %v6201
    %v6301 = vpop.f32.mrf.mxu0
    %v6302 = vadd.f32 %v6264, %v6301
    %6303 = vmatmul.f32.gmra.mxu0 %v6205
    %v6304 = vpop.f32.mrf.mxu0
    %v6305 = vadd.f32 %v6267, %v6304
    %6306 = vmatmul.f32.gmra.mxu0 %v6209
    %v6307 = vpop.f32.mrf.mxu0
    %v6308 = vadd.f32 %v6270, %v6307
    %6309 = vmatmul.f32.gmra.mxu0 %v6213
    %v6310 = vpop.f32.mrf.mxu0
    %v6311 = vadd.f32 %v6273, %v6310
    %6312 = vdwg.mxu0
    %6313 = vmatpush.msra.mxu0 %v1079
    %6314 = vmatpush.msra.mxu0 %v1078
    %6315 = vmatpush.msra.mxu0 %v1077
    %6316 = vmatpush.msra.mxu0 %v1076
    %6317 = vmatpush.msra.mxu0 %v1075
    %6318 = vmatpush.msra.mxu0 %v1074
    %6319 = vmatpush.msra.mxu0 %v1073
    %6320 = vmatpush.msra.mxu0 %v1072
    %6321 = vmatpush.msra.mxu0 %v1071
    %6322 = vmatpush.msra.mxu0 %v1070
    %6323 = vmatpush.msra.mxu0 %v1069
    %6324 = vmatpush.msra.mxu0 %v1068
    %6325 = vmatpush.msra.mxu0 %v1067
    %6326 = vmatpush.msra.mxu0 %v1066
    %6327 = vmatpush.msra.mxu0 %v1065
    %6328 = vmatpush.msra.mxu0 %v1064
    %6329 = vmatmul.f32.gmra.mxu0 %v6190
    %v6330 = vpop.f32.mrf.mxu0
    %v6331 = vadd.f32 %v6293, %v6330
    %6332 = vmatmul.f32.gmra.mxu0 %v6194
    %v6333 = vpop.f32.mrf.mxu0
    %v6334 = vadd.f32 %v6296, %v6333
    %6335 = vmatmul.f32.gmra.mxu0 %v6198
    %v6336 = vpop.f32.mrf.mxu0
    %v6337 = vadd.f32 %v6299, %v6336
    %6338 = vmatmul.f32.gmra.mxu0 %v6202
    %v6339 = vpop.f32.mrf.mxu0
    %v6340 = vadd.f32 %v6302, %v6339
    %6341 = vmatmul.f32.gmra.mxu0 %v6206
    %v6342 = vpop.f32.mrf.mxu0
    %v6343 = vadd.f32 %v6305, %v6342
    %6344 = vmatmul.f32.gmra.mxu0 %v6210
    %v6345 = vpop.f32.mrf.mxu0
    %v6346 = vadd.f32 %v6308, %v6345
    %6347 = vmatmul.f32.gmra.mxu0 %v6214
    %v6348 = vpop.f32.mrf.mxu0
    %v6349 = vadd.f32 %v6311, %v6348
    %6350 = vdwg.mxu0
    %6351 = vmatpush.msra.mxu0 0.0
    %6352 = vmatpush.msra.mxu0 0.0
    %6353 = vmatpush.msra.mxu0 0.0
    %6354 = vmatpush.msra.mxu0 0.0
    %6355 = vmatpush.msra.mxu0 0.0
    %6356 = vmatpush.msra.mxu0 0.0
    %6357 = vmatpush.msra.mxu0 0.0
    %6358 = vmatpush.msra.mxu0 0.0
    %6359 = vmatpush.msra.mxu0 0.0
    %6360 = vmatpush.msra.mxu0 0.0
    %6361 = vmatpush.msra.mxu0 0.0
    %6362 = vmatpush.msra.mxu0 0.0
    %6363 = vmatpush.msra.mxu0 0.0
    %6364 = vmatpush.msra.mxu0 0.0
    %6365 = vmatpush.msra.mxu0 0.0
    %6366 = vmatpush.msra.mxu0 %v1080
    %6367 = vmatmul.f32.gmra.mxu0 %v6217
    %v6368 = vpop.f32.mrf.mxu0
    %v6369 = vadd.f32 %v6331, %v6368
    %6370 = vmatmul.f32.gmra.mxu0 %v6220
    %v6371 = vpop.f32.mrf.mxu0
    %v6372 = vadd.f32 %v6334, %v6371
    %6373 = vmatmul.f32.gmra.mxu0 %v6223
    %v6374 = vpop.f32.mrf.mxu0
    %v6375 = vadd.f32 %v6337, %v6374
    %6376 = vmatmul.f32.gmra.mxu0 %v6226
    %v6377 = vpop.f32.mrf.mxu0
    %v6378 = vadd.f32 %v6340, %v6377
    %6379 = vmatmul.f32.gmra.mxu0 %v6229
    %v6380 = vpop.f32.mrf.mxu0
    %v6381 = vadd.f32 %v6343, %v6380
    %6382 = vmatmul.f32.gmra.mxu0 %v6232
    %v6383 = vpop.f32.mrf.mxu0
    %v6384 = vadd.f32 %v6346, %v6383
    %6385 = vmatmul.f32.gmra.mxu0 %v6235
    %v6386 = vpop.f32.mrf.mxu0
    %v6387 = vadd.f32 %v6349, %v6386
    %6388 = vdwg.mxu0
    %s6389 = scalar_lea.vmem %s5, 304
    %v6390 = vld [vmem:[%s6389] sm:$0xff]
    %v6391 = vld [vmem:[%s6389 + $0x8] sm:$0xff]
    %v6393 = vsel %vm428, %v6369, 0
    %v6396 = vsel %vm428, %v6372, 0
    %v6399 = vsel %vm428, %v6375, 0
    %v6402 = vsel %vm428, %v6378, 0
    %v6405 = vsel %vm428, %v6381, 0
    %v6408 = vsel %vm428, %v6384, 0
    %v6411 = vsel %vm428, %v6387, 0
    %6413 = vmatpush.msra.mxu0 0.0
    %6414 = vmatpush.msra.mxu0 0.0
    %6415 = vmatpush.msra.mxu0 0.0
    %6416 = vmatpush.msra.mxu0 0.0
    %6417 = vmatpush.msra.mxu0 0.0
    %6418 = vmatpush.msra.mxu0 0.0
    %6419 = vmatpush.msra.mxu0 0.0
    %6420 = vmatpush.msra.mxu0 0.0
    %6421 = vmatpush.msra.mxu0 0.0
    %6422 = vmatpush.msra.mxu0 0.0
    %6423 = vmatpush.msra.mxu0 0.0
    %6424 = vmatpush.msra.mxu0 0.0
    %6425 = vmatpush.msra.mxu0 0.0
    %6426 = vmatpush.msra.mxu0 0.0
    %6427 = vmatpush.msra.mxu0 %v6391
    %6428 = vmatpush.msra.mxu0 %v6390
    %6429 = vmatmul.f32.gmra.mxu0 %v6393
    %v6430 = vpop.f32.mrf.mxu0
    %v6431 = vadd.f32 0.0, %v6430
    %6432 = vmatmul.f32.gmra.mxu0 %v6396
    %v6433 = vpop.f32.mrf.mxu0
    %v6434 = vadd.f32 0.0, %v6433
    %6435 = vmatmul.f32.gmra.mxu0 %v6399
    %v6436 = vpop.f32.mrf.mxu0
    %v6437 = vadd.f32 0.0, %v6436
    %6438 = vmatmul.f32.gmra.mxu0 %v6402
    %v6439 = vpop.f32.mrf.mxu0
    %v6440 = vadd.f32 0.0, %v6439
    %6441 = vmatmul.f32.gmra.mxu0 %v6405
    %v6442 = vpop.f32.mrf.mxu0
    %v6443 = vadd.f32 0.0, %v6442
    %6444 = vmatmul.f32.gmra.mxu0 %v6408
    %v6445 = vpop.f32.mrf.mxu0
    %v6446 = vadd.f32 0.0, %v6445
    %6447 = vmatmul.f32.gmra.mxu0 %v6411
    %v6448 = vpop.f32.mrf.mxu0
    %v6449 = vadd.f32 0.0, %v6448
    %6450 = vdwg.mxu0
    %v6451 = vadd.f32 %v6180, %v6431
    %v6452 = vadd.f32 %v6181, %v6434
    %v6453 = vadd.f32 %v6182, %v6437
    %v6454 = vadd.f32 %v6183, %v6440
    %v6455 = vadd.f32 %v6184, %v6443
    %v6456 = vadd.f32 %v6185, %v6446
    %v6457 = vadd.f32 %v6186, %v6449
    %s6458 = scalar_lea.vmem %s4, 4480
    %v6459 = vld [vmem:[%s6458] sm:$0xff]
    %v6460 = vld [vmem:[%s6458 + $0x8] sm:$0xff]
    %v6461 = vld [vmem:[%s6458 + $0x10] sm:$0xff]
    %v6462 = vld [vmem:[%s6458 + $0x18] sm:$0xff]
    %v6463 = vld [vmem:[%s6458 + $0x20] sm:$0xff]
    %v6464 = vld [vmem:[%s6458 + $0x28] sm:$0xff]
    %v6465 = vld [vmem:[%s6458 + $0x30] sm:$0xff]
    %v6466 = vld [vmem:[%s6458 + $0x38] sm:$0xff]
    %v6467 = vld [vmem:[%s6458 + $0x40] sm:$0xff]
    %v6468 = vld [vmem:[%s6458 + $0x48] sm:$0xff]
    %v6469 = vld [vmem:[%s6458 + $0x50] sm:$0xff]
    %v6470 = vld [vmem:[%s6458 + $0x58] sm:$0xff]
    %v6471 = vld [vmem:[%s6458 + $0x60] sm:$0xff]
    %v6472 = vld [vmem:[%s6458 + $0x68] sm:$0xff]
    %v6473 = vld [vmem:[%s6458 + $0x70] sm:$0xff]
    %v6474 = vld [vmem:[%s6458 + $0x78] sm:$0xff]
    %v6475 = vld [vmem:[%s6458 + $0x80] sm:$0xff]
    %v6476 = vld [vmem:[%s6458 + $0x88] sm:$0xff]
    %v6477 = vld [vmem:[%s6458 + $0x90] sm:$0xff]
    %v6478 = vld [vmem:[%s6458 + $0x98] sm:$0xff]
    %v6479 = vld [vmem:[%s6458 + $0xa0] sm:$0xff]
    %v6480 = vld [vmem:[%s6458 + $0xa8] sm:$0xff]
    %v6481 = vld [vmem:[%s6458 + $0xb0] sm:$0xff]
    %v6482 = vld [vmem:[%s6458 + $0xb8] sm:$0xff]
    %v6483 = vld [vmem:[%s6458 + $0xc0] sm:$0x3]
    %v6484 = vld [vmem:[%s6458 + $0xc8] sm:$0x3]
    %v6485 = vld [vmem:[%s6458 + $0xd0] sm:$0x3]
    %v6486 = vld [vmem:[%s6458 + $0xd8] sm:$0x3]
    %v6488 = vsel %vm1081, %v6462, 0
    %v6491 = vsel %vm1081, %v6466, 0
    %v6494 = vsel %vm1081, %v6470, 0
    %v6497 = vsel %vm1081, %v6474, 0
    %v6500 = vsel %vm1081, %v6478, 0
    %v6503 = vsel %vm1081, %v6482, 0
    %v6506 = vsel %vm1081, %v6486, 0
    %6508 = vmatpush.msra.mxu0 %v1047
    %6509 = vmatpush.msra.mxu0 %v1046
    %6510 = vmatpush.msra.mxu0 %v1045
    %6511 = vmatpush.msra.mxu0 %v1044
    %6512 = vmatpush.msra.mxu0 %v1043
    %6513 = vmatpush.msra.mxu0 %v1042
    %6514 = vmatpush.msra.mxu0 %v1041
    %6515 = vmatpush.msra.mxu0 %v1040
    %6516 = vmatpush.msra.mxu0 %v1039
    %6517 = vmatpush.msra.mxu0 %v1038
    %6518 = vmatpush.msra.mxu0 %v1037
    %6519 = vmatpush.msra.mxu0 %v1036
    %6520 = vmatpush.msra.mxu0 %v1035
    %6521 = vmatpush.msra.mxu0 %v1034
    %6522 = vmatpush.msra.mxu0 %v1033
    %6523 = vmatpush.msra.mxu0 %v1032
    %6524 = vmatmul.f32.gmra.mxu0 %v6459
    %v6525 = vpop.f32.mrf.mxu0
    %v6526 = vadd.f32 0.0, %v6525
    %6527 = vmatmul.f32.gmra.mxu0 %v6463
    %v6528 = vpop.f32.mrf.mxu0
    %v6529 = vadd.f32 0.0, %v6528
    %6530 = vmatmul.f32.gmra.mxu0 %v6467
    %v6531 = vpop.f32.mrf.mxu0
    %v6532 = vadd.f32 0.0, %v6531
    %6533 = vmatmul.f32.gmra.mxu0 %v6471
    %v6534 = vpop.f32.mrf.mxu0
    %v6535 = vadd.f32 0.0, %v6534
    %6536 = vmatmul.f32.gmra.mxu0 %v6475
    %v6537 = vpop.f32.mrf.mxu0
    %v6538 = vadd.f32 0.0, %v6537
    %6539 = vmatmul.f32.gmra.mxu0 %v6479
    %v6540 = vpop.f32.mrf.mxu0
    %v6541 = vadd.f32 0.0, %v6540
    %6542 = vmatmul.f32.gmra.mxu0 %v6483
    %v6543 = vpop.f32.mrf.mxu0
    %v6544 = vadd.f32 0.0, %v6543
    %6545 = vdwg.mxu0
    %6546 = vmatpush.msra.mxu0 %v1063
    %6547 = vmatpush.msra.mxu0 %v1062
    %6548 = vmatpush.msra.mxu0 %v1061
    %6549 = vmatpush.msra.mxu0 %v1060
    %6550 = vmatpush.msra.mxu0 %v1059
    %6551 = vmatpush.msra.mxu0 %v1058
    %6552 = vmatpush.msra.mxu0 %v1057
    %6553 = vmatpush.msra.mxu0 %v1056
    %6554 = vmatpush.msra.mxu0 %v1055
    %6555 = vmatpush.msra.mxu0 %v1054
    %6556 = vmatpush.msra.mxu0 %v1053
    %6557 = vmatpush.msra.mxu0 %v1052
    %6558 = vmatpush.msra.mxu0 %v1051
    %6559 = vmatpush.msra.mxu0 %v1050
    %6560 = vmatpush.msra.mxu0 %v1049
    %6561 = vmatpush.msra.mxu0 %v1048
    %6562 = vmatmul.f32.gmra.mxu0 %v6460
    %v6563 = vpop.f32.mrf.mxu0
    %v6564 = vadd.f32 %v6526, %v6563
    %6565 = vmatmul.f32.gmra.mxu0 %v6464
    %v6566 = vpop.f32.mrf.mxu0
    %v6567 = vadd.f32 %v6529, %v6566
    %6568 = vmatmul.f32.gmra.mxu0 %v6468
    %v6569 = vpop.f32.mrf.mxu0
    %v6570 = vadd.f32 %v6532, %v6569
    %6571 = vmatmul.f32.gmra.mxu0 %v6472
    %v6572 = vpop.f32.mrf.mxu0
    %v6573 = vadd.f32 %v6535, %v6572
    %6574 = vmatmul.f32.gmra.mxu0 %v6476
    %v6575 = vpop.f32.mrf.mxu0
    %v6576 = vadd.f32 %v6538, %v6575
    %6577 = vmatmul.f32.gmra.mxu0 %v6480
    %v6578 = vpop.f32.mrf.mxu0
    %v6579 = vadd.f32 %v6541, %v6578
    %6580 = vmatmul.f32.gmra.mxu0 %v6484
    %v6581 = vpop.f32.mrf.mxu0
    %v6582 = vadd.f32 %v6544, %v6581
    %6583 = vdwg.mxu0
    %6584 = vmatpush.msra.mxu0 %v1079
    %6585 = vmatpush.msra.mxu0 %v1078
    %6586 = vmatpush.msra.mxu0 %v1077
    %6587 = vmatpush.msra.mxu0 %v1076
    %6588 = vmatpush.msra.mxu0 %v1075
    %6589 = vmatpush.msra.mxu0 %v1074
    %6590 = vmatpush.msra.mxu0 %v1073
    %6591 = vmatpush.msra.mxu0 %v1072
    %6592 = vmatpush.msra.mxu0 %v1071
    %6593 = vmatpush.msra.mxu0 %v1070
    %6594 = vmatpush.msra.mxu0 %v1069
    %6595 = vmatpush.msra.mxu0 %v1068
    %6596 = vmatpush.msra.mxu0 %v1067
    %6597 = vmatpush.msra.mxu0 %v1066
    %6598 = vmatpush.msra.mxu0 %v1065
    %6599 = vmatpush.msra.mxu0 %v1064
    %6600 = vmatmul.f32.gmra.mxu0 %v6461
    %v6601 = vpop.f32.mrf.mxu0
    %v6602 = vadd.f32 %v6564, %v6601
    %6603 = vmatmul.f32.gmra.mxu0 %v6465
    %v6604 = vpop.f32.mrf.mxu0
    %v6605 = vadd.f32 %v6567, %v6604
    %6606 = vmatmul.f32.gmra.mxu0 %v6469
    %v6607 = vpop.f32.mrf.mxu0
    %v6608 = vadd.f32 %v6570, %v6607
    %6609 = vmatmul.f32.gmra.mxu0 %v6473
    %v6610 = vpop.f32.mrf.mxu0
    %v6611 = vadd.f32 %v6573, %v6610
    %6612 = vmatmul.f32.gmra.mxu0 %v6477
    %v6613 = vpop.f32.mrf.mxu0
    %v6614 = vadd.f32 %v6576, %v6613
    %6615 = vmatmul.f32.gmra.mxu0 %v6481
    %v6616 = vpop.f32.mrf.mxu0
    %v6617 = vadd.f32 %v6579, %v6616
    %6618 = vmatmul.f32.gmra.mxu0 %v6485
    %v6619 = vpop.f32.mrf.mxu0
    %v6620 = vadd.f32 %v6582, %v6619
    %6621 = vdwg.mxu0
    %6622 = vmatpush.msra.mxu0 0.0
    %6623 = vmatpush.msra.mxu0 0.0
    %6624 = vmatpush.msra.mxu0 0.0
    %6625 = vmatpush.msra.mxu0 0.0
    %6626 = vmatpush.msra.mxu0 0.0
    %6627 = vmatpush.msra.mxu0 0.0
    %6628 = vmatpush.msra.mxu0 0.0
    %6629 = vmatpush.msra.mxu0 0.0
    %6630 = vmatpush.msra.mxu0 0.0
    %6631 = vmatpush.msra.mxu0 0.0
    %6632 = vmatpush.msra.mxu0 0.0
    %6633 = vmatpush.msra.mxu0 0.0
    %6634 = vmatpush.msra.mxu0 0.0
    %6635 = vmatpush.msra.mxu0 0.0
    %6636 = vmatpush.msra.mxu0 0.0
    %6637 = vmatpush.msra.mxu0 %v1080
    %6638 = vmatmul.f32.gmra.mxu0 %v6488
    %v6639 = vpop.f32.mrf.mxu0
    %v6640 = vadd.f32 %v6602, %v6639
    %6641 = vmatmul.f32.gmra.mxu0 %v6491
    %v6642 = vpop.f32.mrf.mxu0
    %v6643 = vadd.f32 %v6605, %v6642
    %6644 = vmatmul.f32.gmra.mxu0 %v6494
    %v6645 = vpop.f32.mrf.mxu0
    %v6646 = vadd.f32 %v6608, %v6645
    %6647 = vmatmul.f32.gmra.mxu0 %v6497
    %v6648 = vpop.f32.mrf.mxu0
    %v6649 = vadd.f32 %v6611, %v6648
    %6650 = vmatmul.f32.gmra.mxu0 %v6500
    %v6651 = vpop.f32.mrf.mxu0
    %v6652 = vadd.f32 %v6614, %v6651
    %6653 = vmatmul.f32.gmra.mxu0 %v6503
    %v6654 = vpop.f32.mrf.mxu0
    %v6655 = vadd.f32 %v6617, %v6654
    %6656 = vmatmul.f32.gmra.mxu0 %v6506
    %v6657 = vpop.f32.mrf.mxu0
    %v6658 = vadd.f32 %v6620, %v6657
    %6659 = vdwg.mxu0
    %s6660 = scalar_lea.vmem %s5, 320
    %v6661 = vld [vmem:[%s6660] sm:$0xff]
    %v6662 = vld [vmem:[%s6660 + $0x8] sm:$0xff]
    %v6664 = vsel %vm428, %v6640, 0
    %v6667 = vsel %vm428, %v6643, 0
    %v6670 = vsel %vm428, %v6646, 0
    %v6673 = vsel %vm428, %v6649, 0
    %v6676 = vsel %vm428, %v6652, 0
    %v6679 = vsel %vm428, %v6655, 0
    %v6682 = vsel %vm428, %v6658, 0
    %6684 = vmatpush.msra.mxu0 0.0
    %6685 = vmatpush.msra.mxu0 0.0
    %6686 = vmatpush.msra.mxu0 0.0
    %6687 = vmatpush.msra.mxu0 0.0
    %6688 = vmatpush.msra.mxu0 0.0
    %6689 = vmatpush.msra.mxu0 0.0
    %6690 = vmatpush.msra.mxu0 0.0
    %6691 = vmatpush.msra.mxu0 0.0
    %6692 = vmatpush.msra.mxu0 0.0
    %6693 = vmatpush.msra.mxu0 0.0
    %6694 = vmatpush.msra.mxu0 0.0
    %6695 = vmatpush.msra.mxu0 0.0
    %6696 = vmatpush.msra.mxu0 0.0
    %6697 = vmatpush.msra.mxu0 0.0
    %6698 = vmatpush.msra.mxu0 %v6662
    %6699 = vmatpush.msra.mxu0 %v6661
    %6700 = vmatmul.f32.gmra.mxu0 %v6664
    %v6701 = vpop.f32.mrf.mxu0
    %v6702 = vadd.f32 0.0, %v6701
    %6703 = vmatmul.f32.gmra.mxu0 %v6667
    %v6704 = vpop.f32.mrf.mxu0
    %v6705 = vadd.f32 0.0, %v6704
    %6706 = vmatmul.f32.gmra.mxu0 %v6670
    %v6707 = vpop.f32.mrf.mxu0
    %v6708 = vadd.f32 0.0, %v6707
    %6709 = vmatmul.f32.gmra.mxu0 %v6673
    %v6710 = vpop.f32.mrf.mxu0
    %v6711 = vadd.f32 0.0, %v6710
    %6712 = vmatmul.f32.gmra.mxu0 %v6676
    %v6713 = vpop.f32.mrf.mxu0
    %v6714 = vadd.f32 0.0, %v6713
    %6715 = vmatmul.f32.gmra.mxu0 %v6679
    %v6716 = vpop.f32.mrf.mxu0
    %v6717 = vadd.f32 0.0, %v6716
    %6718 = vmatmul.f32.gmra.mxu0 %v6682
    %v6719 = vpop.f32.mrf.mxu0
    %v6720 = vadd.f32 0.0, %v6719
    %6721 = vdwg.mxu0
    %v6722 = vadd.f32 %v6451, %v6702
    %v6723 = vadd.f32 %v6452, %v6705
    %v6724 = vadd.f32 %v6453, %v6708
    %v6725 = vadd.f32 %v6454, %v6711
    %v6726 = vadd.f32 %v6455, %v6714
    %v6727 = vadd.f32 %v6456, %v6717
    %v6728 = vadd.f32 %v6457, %v6720
    %s6729 = scalar_lea.vmem %s4, 4704
    %v6730 = vld [vmem:[%s6729] sm:$0xff]
    %v6731 = vld [vmem:[%s6729 + $0x8] sm:$0xff]
    %v6732 = vld [vmem:[%s6729 + $0x10] sm:$0xff]
    %v6733 = vld [vmem:[%s6729 + $0x18] sm:$0xff]
    %v6734 = vld [vmem:[%s6729 + $0x20] sm:$0xff]
    %v6735 = vld [vmem:[%s6729 + $0x28] sm:$0xff]
    %v6736 = vld [vmem:[%s6729 + $0x30] sm:$0xff]
    %v6737 = vld [vmem:[%s6729 + $0x38] sm:$0xff]
    %v6738 = vld [vmem:[%s6729 + $0x40] sm:$0xff]
    %v6739 = vld [vmem:[%s6729 + $0x48] sm:$0xff]
    %v6740 = vld [vmem:[%s6729 + $0x50] sm:$0xff]
    %v6741 = vld [vmem:[%s6729 + $0x58] sm:$0xff]
    %v6742 = vld [vmem:[%s6729 + $0x60] sm:$0xff]
    %v6743 = vld [vmem:[%s6729 + $0x68] sm:$0xff]
    %v6744 = vld [vmem:[%s6729 + $0x70] sm:$0xff]
    %v6745 = vld [vmem:[%s6729 + $0x78] sm:$0xff]
    %v6746 = vld [vmem:[%s6729 + $0x80] sm:$0xff]
    %v6747 = vld [vmem:[%s6729 + $0x88] sm:$0xff]
    %v6748 = vld [vmem:[%s6729 + $0x90] sm:$0xff]
    %v6749 = vld [vmem:[%s6729 + $0x98] sm:$0xff]
    %v6750 = vld [vmem:[%s6729 + $0xa0] sm:$0xff]
    %v6751 = vld [vmem:[%s6729 + $0xa8] sm:$0xff]
    %v6752 = vld [vmem:[%s6729 + $0xb0] sm:$0xff]
    %v6753 = vld [vmem:[%s6729 + $0xb8] sm:$0xff]
    %v6754 = vld [vmem:[%s6729 + $0xc0] sm:$0x3]
    %v6755 = vld [vmem:[%s6729 + $0xc8] sm:$0x3]
    %v6756 = vld [vmem:[%s6729 + $0xd0] sm:$0x3]
    %v6757 = vld [vmem:[%s6729 + $0xd8] sm:$0x3]
    %v6759 = vsel %vm1081, %v6733, 0
    %v6762 = vsel %vm1081, %v6737, 0
    %v6765 = vsel %vm1081, %v6741, 0
    %v6768 = vsel %vm1081, %v6745, 0
    %v6771 = vsel %vm1081, %v6749, 0
    %v6774 = vsel %vm1081, %v6753, 0
    %v6777 = vsel %vm1081, %v6757, 0
    %6779 = vmatpush.msra.mxu0 %v1047
    %6780 = vmatpush.msra.mxu0 %v1046
    %6781 = vmatpush.msra.mxu0 %v1045
    %6782 = vmatpush.msra.mxu0 %v1044
    %6783 = vmatpush.msra.mxu0 %v1043
    %6784 = vmatpush.msra.mxu0 %v1042
    %6785 = vmatpush.msra.mxu0 %v1041
    %6786 = vmatpush.msra.mxu0 %v1040
    %6787 = vmatpush.msra.mxu0 %v1039
    %6788 = vmatpush.msra.mxu0 %v1038
    %6789 = vmatpush.msra.mxu0 %v1037
    %6790 = vmatpush.msra.mxu0 %v1036
    %6791 = vmatpush.msra.mxu0 %v1035
    %6792 = vmatpush.msra.mxu0 %v1034
    %6793 = vmatpush.msra.mxu0 %v1033
    %6794 = vmatpush.msra.mxu0 %v1032
    %6795 = vmatmul.f32.gmra.mxu0 %v6730
    %v6796 = vpop.f32.mrf.mxu0
    %v6797 = vadd.f32 0.0, %v6796
    %6798 = vmatmul.f32.gmra.mxu0 %v6734
    %v6799 = vpop.f32.mrf.mxu0
    %v6800 = vadd.f32 0.0, %v6799
    %6801 = vmatmul.f32.gmra.mxu0 %v6738
    %v6802 = vpop.f32.mrf.mxu0
    %v6803 = vadd.f32 0.0, %v6802
    %6804 = vmatmul.f32.gmra.mxu0 %v6742
    %v6805 = vpop.f32.mrf.mxu0
    %v6806 = vadd.f32 0.0, %v6805
    %6807 = vmatmul.f32.gmra.mxu0 %v6746
    %v6808 = vpop.f32.mrf.mxu0
    %v6809 = vadd.f32 0.0, %v6808
    %6810 = vmatmul.f32.gmra.mxu0 %v6750
    %v6811 = vpop.f32.mrf.mxu0
    %v6812 = vadd.f32 0.0, %v6811
    %6813 = vmatmul.f32.gmra.mxu0 %v6754
    %v6814 = vpop.f32.mrf.mxu0
    %v6815 = vadd.f32 0.0, %v6814
    %6816 = vdwg.mxu0
    %6817 = vmatpush.msra.mxu0 %v1063
    %6818 = vmatpush.msra.mxu0 %v1062
    %6819 = vmatpush.msra.mxu0 %v1061
    %6820 = vmatpush.msra.mxu0 %v1060
    %6821 = vmatpush.msra.mxu0 %v1059
    %6822 = vmatpush.msra.mxu0 %v1058
    %6823 = vmatpush.msra.mxu0 %v1057
    %6824 = vmatpush.msra.mxu0 %v1056
    %6825 = vmatpush.msra.mxu0 %v1055
    %6826 = vmatpush.msra.mxu0 %v1054
    %6827 = vmatpush.msra.mxu0 %v1053
    %6828 = vmatpush.msra.mxu0 %v1052
    %6829 = vmatpush.msra.mxu0 %v1051
    %6830 = vmatpush.msra.mxu0 %v1050
    %6831 = vmatpush.msra.mxu0 %v1049
    %6832 = vmatpush.msra.mxu0 %v1048
    %6833 = vmatmul.f32.gmra.mxu0 %v6731
    %v6834 = vpop.f32.mrf.mxu0
    %v6835 = vadd.f32 %v6797, %v6834
    %6836 = vmatmul.f32.gmra.mxu0 %v6735
    %v6837 = vpop.f32.mrf.mxu0
    %v6838 = vadd.f32 %v6800, %v6837
    %6839 = vmatmul.f32.gmra.mxu0 %v6739
    %v6840 = vpop.f32.mrf.mxu0
    %v6841 = vadd.f32 %v6803, %v6840
    %6842 = vmatmul.f32.gmra.mxu0 %v6743
    %v6843 = vpop.f32.mrf.mxu0
    %v6844 = vadd.f32 %v6806, %v6843
    %6845 = vmatmul.f32.gmra.mxu0 %v6747
    %v6846 = vpop.f32.mrf.mxu0
    %v6847 = vadd.f32 %v6809, %v6846
    %6848 = vmatmul.f32.gmra.mxu0 %v6751
    %v6849 = vpop.f32.mrf.mxu0
    %v6850 = vadd.f32 %v6812, %v6849
    %6851 = vmatmul.f32.gmra.mxu0 %v6755
    %v6852 = vpop.f32.mrf.mxu0
    %v6853 = vadd.f32 %v6815, %v6852
    %6854 = vdwg.mxu0
    %6855 = vmatpush.msra.mxu0 %v1079
    %6856 = vmatpush.msra.mxu0 %v1078
    %6857 = vmatpush.msra.mxu0 %v1077
    %6858 = vmatpush.msra.mxu0 %v1076
    %6859 = vmatpush.msra.mxu0 %v1075
    %6860 = vmatpush.msra.mxu0 %v1074
    %6861 = vmatpush.msra.mxu0 %v1073
    %6862 = vmatpush.msra.mxu0 %v1072
    %6863 = vmatpush.msra.mxu0 %v1071
    %6864 = vmatpush.msra.mxu0 %v1070
    %6865 = vmatpush.msra.mxu0 %v1069
    %6866 = vmatpush.msra.mxu0 %v1068
    %6867 = vmatpush.msra.mxu0 %v1067
    %6868 = vmatpush.msra.mxu0 %v1066
    %6869 = vmatpush.msra.mxu0 %v1065
    %6870 = vmatpush.msra.mxu0 %v1064
    %6871 = vmatmul.f32.gmra.mxu0 %v6732
    %v6872 = vpop.f32.mrf.mxu0
    %v6873 = vadd.f32 %v6835, %v6872
    %6874 = vmatmul.f32.gmra.mxu0 %v6736
    %v6875 = vpop.f32.mrf.mxu0
    %v6876 = vadd.f32 %v6838, %v6875
    %6877 = vmatmul.f32.gmra.mxu0 %v6740
    %v6878 = vpop.f32.mrf.mxu0
    %v6879 = vadd.f32 %v6841, %v6878
    %6880 = vmatmul.f32.gmra.mxu0 %v6744
    %v6881 = vpop.f32.mrf.mxu0
    %v6882 = vadd.f32 %v6844, %v6881
    %6883 = vmatmul.f32.gmra.mxu0 %v6748
    %v6884 = vpop.f32.mrf.mxu0
    %v6885 = vadd.f32 %v6847, %v6884
    %6886 = vmatmul.f32.gmra.mxu0 %v6752
    %v6887 = vpop.f32.mrf.mxu0
    %v6888 = vadd.f32 %v6850, %v6887
    %6889 = vmatmul.f32.gmra.mxu0 %v6756
    %v6890 = vpop.f32.mrf.mxu0
    %v6891 = vadd.f32 %v6853, %v6890
    %6892 = vdwg.mxu0
    %6893 = vmatpush.msra.mxu0 0.0
    %6894 = vmatpush.msra.mxu0 0.0
    %6895 = vmatpush.msra.mxu0 0.0
    %6896 = vmatpush.msra.mxu0 0.0
    %6897 = vmatpush.msra.mxu0 0.0
    %6898 = vmatpush.msra.mxu0 0.0
    %6899 = vmatpush.msra.mxu0 0.0
    %6900 = vmatpush.msra.mxu0 0.0
    %6901 = vmatpush.msra.mxu0 0.0
    %6902 = vmatpush.msra.mxu0 0.0
    %6903 = vmatpush.msra.mxu0 0.0
    %6904 = vmatpush.msra.mxu0 0.0
    %6905 = vmatpush.msra.mxu0 0.0
    %6906 = vmatpush.msra.mxu0 0.0
    %6907 = vmatpush.msra.mxu0 0.0
    %6908 = vmatpush.msra.mxu0 %v1080
    %6909 = vmatmul.f32.gmra.mxu0 %v6759
    %v6910 = vpop.f32.mrf.mxu0
    %v6911 = vadd.f32 %v6873, %v6910
    %6912 = vmatmul.f32.gmra.mxu0 %v6762
    %v6913 = vpop.f32.mrf.mxu0
    %v6914 = vadd.f32 %v6876, %v6913
    %6915 = vmatmul.f32.gmra.mxu0 %v6765
    %v6916 = vpop.f32.mrf.mxu0
    %v6917 = vadd.f32 %v6879, %v6916
    %6918 = vmatmul.f32.gmra.mxu0 %v6768
    %v6919 = vpop.f32.mrf.mxu0
    %v6920 = vadd.f32 %v6882, %v6919
    %6921 = vmatmul.f32.gmra.mxu0 %v6771
    %v6922 = vpop.f32.mrf.mxu0
    %v6923 = vadd.f32 %v6885, %v6922
    %6924 = vmatmul.f32.gmra.mxu0 %v6774
    %v6925 = vpop.f32.mrf.mxu0
    %v6926 = vadd.f32 %v6888, %v6925
    %6927 = vmatmul.f32.gmra.mxu0 %v6777
    %v6928 = vpop.f32.mrf.mxu0
    %v6929 = vadd.f32 %v6891, %v6928
    %6930 = vdwg.mxu0
    %s6931 = scalar_lea.vmem %s5, 336
    %v6932 = vld [vmem:[%s6931] sm:$0xff]
    %v6933 = vld [vmem:[%s6931 + $0x8] sm:$0xff]
    %v6935 = vsel %vm428, %v6911, 0
    %v6938 = vsel %vm428, %v6914, 0
    %v6941 = vsel %vm428, %v6917, 0
    %v6944 = vsel %vm428, %v6920, 0
    %v6947 = vsel %vm428, %v6923, 0
    %v6950 = vsel %vm428, %v6926, 0
    %v6953 = vsel %vm428, %v6929, 0
    %6955 = vmatpush.msra.mxu0 0.0
    %6956 = vmatpush.msra.mxu0 0.0
    %6957 = vmatpush.msra.mxu0 0.0
    %6958 = vmatpush.msra.mxu0 0.0
    %6959 = vmatpush.msra.mxu0 0.0
    %6960 = vmatpush.msra.mxu0 0.0
    %6961 = vmatpush.msra.mxu0 0.0
    %6962 = vmatpush.msra.mxu0 0.0
    %6963 = vmatpush.msra.mxu0 0.0
    %6964 = vmatpush.msra.mxu0 0.0
    %6965 = vmatpush.msra.mxu0 0.0
    %6966 = vmatpush.msra.mxu0 0.0
    %6967 = vmatpush.msra.mxu0 0.0
    %6968 = vmatpush.msra.mxu0 0.0
    %6969 = vmatpush.msra.mxu0 %v6933
    %6970 = vmatpush.msra.mxu0 %v6932
    %6971 = vmatmul.f32.gmra.mxu0 %v6935
    %v6972 = vpop.f32.mrf.mxu0
    %v6973 = vadd.f32 0.0, %v6972
    %6974 = vmatmul.f32.gmra.mxu0 %v6938
    %v6975 = vpop.f32.mrf.mxu0
    %v6976 = vadd.f32 0.0, %v6975
    %6977 = vmatmul.f32.gmra.mxu0 %v6941
    %v6978 = vpop.f32.mrf.mxu0
    %v6979 = vadd.f32 0.0, %v6978
    %6980 = vmatmul.f32.gmra.mxu0 %v6944
    %v6981 = vpop.f32.mrf.mxu0
    %v6982 = vadd.f32 0.0, %v6981
    %6983 = vmatmul.f32.gmra.mxu0 %v6947
    %v6984 = vpop.f32.mrf.mxu0
    %v6985 = vadd.f32 0.0, %v6984
    %6986 = vmatmul.f32.gmra.mxu0 %v6950
    %v6987 = vpop.f32.mrf.mxu0
    %v6988 = vadd.f32 0.0, %v6987
    %6989 = vmatmul.f32.gmra.mxu0 %v6953
    %v6990 = vpop.f32.mrf.mxu0
    %v6991 = vadd.f32 0.0, %v6990
    %6992 = vdwg.mxu0
    %v6993 = vadd.f32 %v6722, %v6973
    %v6994 = vadd.f32 %v6723, %v6976
    %v6995 = vadd.f32 %v6724, %v6979
    %v6996 = vadd.f32 %v6725, %v6982
    %v6997 = vadd.f32 %v6726, %v6985
    %v6998 = vadd.f32 %v6727, %v6988
    %v6999 = vadd.f32 %v6728, %v6991
    %s7000 = scalar_lea.vmem %s4, 4928
    %v7001 = vld [vmem:[%s7000] sm:$0xff]
    %v7002 = vld [vmem:[%s7000 + $0x8] sm:$0xff]
    %v7003 = vld [vmem:[%s7000 + $0x10] sm:$0xff]
    %v7004 = vld [vmem:[%s7000 + $0x18] sm:$0xff]
    %v7005 = vld [vmem:[%s7000 + $0x20] sm:$0xff]
    %v7006 = vld [vmem:[%s7000 + $0x28] sm:$0xff]
    %v7007 = vld [vmem:[%s7000 + $0x30] sm:$0xff]
    %v7008 = vld [vmem:[%s7000 + $0x38] sm:$0xff]
    %v7009 = vld [vmem:[%s7000 + $0x40] sm:$0xff]
    %v7010 = vld [vmem:[%s7000 + $0x48] sm:$0xff]
    %v7011 = vld [vmem:[%s7000 + $0x50] sm:$0xff]
    %v7012 = vld [vmem:[%s7000 + $0x58] sm:$0xff]
    %v7013 = vld [vmem:[%s7000 + $0x60] sm:$0xff]
    %v7014 = vld [vmem:[%s7000 + $0x68] sm:$0xff]
    %v7015 = vld [vmem:[%s7000 + $0x70] sm:$0xff]
    %v7016 = vld [vmem:[%s7000 + $0x78] sm:$0xff]
    %v7017 = vld [vmem:[%s7000 + $0x80] sm:$0xff]
    %v7018 = vld [vmem:[%s7000 + $0x88] sm:$0xff]
    %v7019 = vld [vmem:[%s7000 + $0x90] sm:$0xff]
    %v7020 = vld [vmem:[%s7000 + $0x98] sm:$0xff]
    %v7021 = vld [vmem:[%s7000 + $0xa0] sm:$0xff]
    %v7022 = vld [vmem:[%s7000 + $0xa8] sm:$0xff]
    %v7023 = vld [vmem:[%s7000 + $0xb0] sm:$0xff]
    %v7024 = vld [vmem:[%s7000 + $0xb8] sm:$0xff]
    %v7025 = vld [vmem:[%s7000 + $0xc0] sm:$0x3]
    %v7026 = vld [vmem:[%s7000 + $0xc8] sm:$0x3]
    %v7027 = vld [vmem:[%s7000 + $0xd0] sm:$0x3]
    %v7028 = vld [vmem:[%s7000 + $0xd8] sm:$0x3]
    %v7030 = vsel %vm1081, %v7004, 0
    %v7033 = vsel %vm1081, %v7008, 0
    %v7036 = vsel %vm1081, %v7012, 0
    %v7039 = vsel %vm1081, %v7016, 0
    %v7042 = vsel %vm1081, %v7020, 0
    %v7045 = vsel %vm1081, %v7024, 0
    %v7048 = vsel %vm1081, %v7028, 0
    %7050 = vmatpush.msra.mxu0 %v1047
    %7051 = vmatpush.msra.mxu0 %v1046
    %7052 = vmatpush.msra.mxu0 %v1045
    %7053 = vmatpush.msra.mxu0 %v1044
    %7054 = vmatpush.msra.mxu0 %v1043
    %7055 = vmatpush.msra.mxu0 %v1042
    %7056 = vmatpush.msra.mxu0 %v1041
    %7057 = vmatpush.msra.mxu0 %v1040
    %7058 = vmatpush.msra.mxu0 %v1039
    %7059 = vmatpush.msra.mxu0 %v1038
    %7060 = vmatpush.msra.mxu0 %v1037
    %7061 = vmatpush.msra.mxu0 %v1036
    %7062 = vmatpush.msra.mxu0 %v1035
    %7063 = vmatpush.msra.mxu0 %v1034
    %7064 = vmatpush.msra.mxu0 %v1033
    %7065 = vmatpush.msra.mxu0 %v1032
    %7066 = vmatmul.f32.gmra.mxu0 %v7001
    %v7067 = vpop.f32.mrf.mxu0
    %v7068 = vadd.f32 0.0, %v7067
    %7069 = vmatmul.f32.gmra.mxu0 %v7005
    %v7070 = vpop.f32.mrf.mxu0
    %v7071 = vadd.f32 0.0, %v7070
    %7072 = vmatmul.f32.gmra.mxu0 %v7009
    %v7073 = vpop.f32.mrf.mxu0
    %v7074 = vadd.f32 0.0, %v7073
    %7075 = vmatmul.f32.gmra.mxu0 %v7013
    %v7076 = vpop.f32.mrf.mxu0
    %v7077 = vadd.f32 0.0, %v7076
    %7078 = vmatmul.f32.gmra.mxu0 %v7017
    %v7079 = vpop.f32.mrf.mxu0
    %v7080 = vadd.f32 0.0, %v7079
    %7081 = vmatmul.f32.gmra.mxu0 %v7021
    %v7082 = vpop.f32.mrf.mxu0
    %v7083 = vadd.f32 0.0, %v7082
    %7084 = vmatmul.f32.gmra.mxu0 %v7025
    %v7085 = vpop.f32.mrf.mxu0
    %v7086 = vadd.f32 0.0, %v7085
    %7087 = vdwg.mxu0
    %7088 = vmatpush.msra.mxu0 %v1063
    %7089 = vmatpush.msra.mxu0 %v1062
    %7090 = vmatpush.msra.mxu0 %v1061
    %7091 = vmatpush.msra.mxu0 %v1060
    %7092 = vmatpush.msra.mxu0 %v1059
    %7093 = vmatpush.msra.mxu0 %v1058
    %7094 = vmatpush.msra.mxu0 %v1057
    %7095 = vmatpush.msra.mxu0 %v1056
    %7096 = vmatpush.msra.mxu0 %v1055
    %7097 = vmatpush.msra.mxu0 %v1054
    %7098 = vmatpush.msra.mxu0 %v1053
    %7099 = vmatpush.msra.mxu0 %v1052
    %7100 = vmatpush.msra.mxu0 %v1051
    %7101 = vmatpush.msra.mxu0 %v1050
    %7102 = vmatpush.msra.mxu0 %v1049
    %7103 = vmatpush.msra.mxu0 %v1048
    %7104 = vmatmul.f32.gmra.mxu0 %v7002
    %v7105 = vpop.f32.mrf.mxu0
    %v7106 = vadd.f32 %v7068, %v7105
    %7107 = vmatmul.f32.gmra.mxu0 %v7006
    %v7108 = vpop.f32.mrf.mxu0
    %v7109 = vadd.f32 %v7071, %v7108
    %7110 = vmatmul.f32.gmra.mxu0 %v7010
    %v7111 = vpop.f32.mrf.mxu0
    %v7112 = vadd.f32 %v7074, %v7111
    %7113 = vmatmul.f32.gmra.mxu0 %v7014
    %v7114 = vpop.f32.mrf.mxu0
    %v7115 = vadd.f32 %v7077, %v7114
    %7116 = vmatmul.f32.gmra.mxu0 %v7018
    %v7117 = vpop.f32.mrf.mxu0
    %v7118 = vadd.f32 %v7080, %v7117
    %7119 = vmatmul.f32.gmra.mxu0 %v7022
    %v7120 = vpop.f32.mrf.mxu0
    %v7121 = vadd.f32 %v7083, %v7120
    %7122 = vmatmul.f32.gmra.mxu0 %v7026
    %v7123 = vpop.f32.mrf.mxu0
    %v7124 = vadd.f32 %v7086, %v7123
    %7125 = vdwg.mxu0
    %7126 = vmatpush.msra.mxu0 %v1079
    %7127 = vmatpush.msra.mxu0 %v1078
    %7128 = vmatpush.msra.mxu0 %v1077
    %7129 = vmatpush.msra.mxu0 %v1076
    %7130 = vmatpush.msra.mxu0 %v1075
    %7131 = vmatpush.msra.mxu0 %v1074
    %7132 = vmatpush.msra.mxu0 %v1073
    %7133 = vmatpush.msra.mxu0 %v1072
    %7134 = vmatpush.msra.mxu0 %v1071
    %7135 = vmatpush.msra.mxu0 %v1070
    %7136 = vmatpush.msra.mxu0 %v1069
    %7137 = vmatpush.msra.mxu0 %v1068
    %7138 = vmatpush.msra.mxu0 %v1067
    %7139 = vmatpush.msra.mxu0 %v1066
    %7140 = vmatpush.msra.mxu0 %v1065
    %7141 = vmatpush.msra.mxu0 %v1064
    %7142 = vmatmul.f32.gmra.mxu0 %v7003
    %v7143 = vpop.f32.mrf.mxu0
    %v7144 = vadd.f32 %v7106, %v7143
    %7145 = vmatmul.f32.gmra.mxu0 %v7007
    %v7146 = vpop.f32.mrf.mxu0
    %v7147 = vadd.f32 %v7109, %v7146
    %7148 = vmatmul.f32.gmra.mxu0 %v7011
    %v7149 = vpop.f32.mrf.mxu0
    %v7150 = vadd.f32 %v7112, %v7149
    %7151 = vmatmul.f32.gmra.mxu0 %v7015
    %v7152 = vpop.f32.mrf.mxu0
    %v7153 = vadd.f32 %v7115, %v7152
    %7154 = vmatmul.f32.gmra.mxu0 %v7019
    %v7155 = vpop.f32.mrf.mxu0
    %v7156 = vadd.f32 %v7118, %v7155
    %7157 = vmatmul.f32.gmra.mxu0 %v7023
    %v7158 = vpop.f32.mrf.mxu0
    %v7159 = vadd.f32 %v7121, %v7158
    %7160 = vmatmul.f32.gmra.mxu0 %v7027
    %v7161 = vpop.f32.mrf.mxu0
    %v7162 = vadd.f32 %v7124, %v7161
    %7163 = vdwg.mxu0
    %7164 = vmatpush.msra.mxu0 0.0
    %7165 = vmatpush.msra.mxu0 0.0
    %7166 = vmatpush.msra.mxu0 0.0
    %7167 = vmatpush.msra.mxu0 0.0
    %7168 = vmatpush.msra.mxu0 0.0
    %7169 = vmatpush.msra.mxu0 0.0
    %7170 = vmatpush.msra.mxu0 0.0
    %7171 = vmatpush.msra.mxu0 0.0
    %7172 = vmatpush.msra.mxu0 0.0
    %7173 = vmatpush.msra.mxu0 0.0
    %7174 = vmatpush.msra.mxu0 0.0
    %7175 = vmatpush.msra.mxu0 0.0
    %7176 = vmatpush.msra.mxu0 0.0
    %7177 = vmatpush.msra.mxu0 0.0
    %7178 = vmatpush.msra.mxu0 0.0
    %7179 = vmatpush.msra.mxu0 %v1080
    %7180 = vmatmul.f32.gmra.mxu0 %v7030
    %v7181 = vpop.f32.mrf.mxu0
    %v7182 = vadd.f32 %v7144, %v7181
    %7183 = vmatmul.f32.gmra.mxu0 %v7033
    %v7184 = vpop.f32.mrf.mxu0
    %v7185 = vadd.f32 %v7147, %v7184
    %7186 = vmatmul.f32.gmra.mxu0 %v7036
    %v7187 = vpop.f32.mrf.mxu0
    %v7188 = vadd.f32 %v7150, %v7187
    %7189 = vmatmul.f32.gmra.mxu0 %v7039
    %v7190 = vpop.f32.mrf.mxu0
    %v7191 = vadd.f32 %v7153, %v7190
    %7192 = vmatmul.f32.gmra.mxu0 %v7042
    %v7193 = vpop.f32.mrf.mxu0
    %v7194 = vadd.f32 %v7156, %v7193
    %7195 = vmatmul.f32.gmra.mxu0 %v7045
    %v7196 = vpop.f32.mrf.mxu0
    %v7197 = vadd.f32 %v7159, %v7196
    %7198 = vmatmul.f32.gmra.mxu0 %v7048
    %v7199 = vpop.f32.mrf.mxu0
    %v7200 = vadd.f32 %v7162, %v7199
    %7201 = vdwg.mxu0
    %s7202 = scalar_lea.vmem %s5, 352
    %v7203 = vld [vmem:[%s7202] sm:$0xff]
    %v7204 = vld [vmem:[%s7202 + $0x8] sm:$0xff]
    %v7206 = vsel %vm428, %v7182, 0
    %v7209 = vsel %vm428, %v7185, 0
    %v7212 = vsel %vm428, %v7188, 0
    %v7215 = vsel %vm428, %v7191, 0
    %v7218 = vsel %vm428, %v7194, 0
    %v7221 = vsel %vm428, %v7197, 0
    %v7224 = vsel %vm428, %v7200, 0
    %7226 = vmatpush.msra.mxu0 0.0
    %7227 = vmatpush.msra.mxu0 0.0
    %7228 = vmatpush.msra.mxu0 0.0
    %7229 = vmatpush.msra.mxu0 0.0
    %7230 = vmatpush.msra.mxu0 0.0
    %7231 = vmatpush.msra.mxu0 0.0
    %7232 = vmatpush.msra.mxu0 0.0
    %7233 = vmatpush.msra.mxu0 0.0
    %7234 = vmatpush.msra.mxu0 0.0
    %7235 = vmatpush.msra.mxu0 0.0
    %7236 = vmatpush.msra.mxu0 0.0
    %7237 = vmatpush.msra.mxu0 0.0
    %7238 = vmatpush.msra.mxu0 0.0
    %7239 = vmatpush.msra.mxu0 0.0
    %7240 = vmatpush.msra.mxu0 %v7204
    %7241 = vmatpush.msra.mxu0 %v7203
    %7242 = vmatmul.f32.gmra.mxu0 %v7206
    %v7243 = vpop.f32.mrf.mxu0
    %v7244 = vadd.f32 0.0, %v7243
    %7245 = vmatmul.f32.gmra.mxu0 %v7209
    %v7246 = vpop.f32.mrf.mxu0
    %v7247 = vadd.f32 0.0, %v7246
    %7248 = vmatmul.f32.gmra.mxu0 %v7212
    %v7249 = vpop.f32.mrf.mxu0
    %v7250 = vadd.f32 0.0, %v7249
    %7251 = vmatmul.f32.gmra.mxu0 %v7215
    %v7252 = vpop.f32.mrf.mxu0
    %v7253 = vadd.f32 0.0, %v7252
    %7254 = vmatmul.f32.gmra.mxu0 %v7218
    %v7255 = vpop.f32.mrf.mxu0
    %v7256 = vadd.f32 0.0, %v7255
    %7257 = vmatmul.f32.gmra.mxu0 %v7221
    %v7258 = vpop.f32.mrf.mxu0
    %v7259 = vadd.f32 0.0, %v7258
    %7260 = vmatmul.f32.gmra.mxu0 %v7224
    %v7261 = vpop.f32.mrf.mxu0
    %v7262 = vadd.f32 0.0, %v7261
    %7263 = vdwg.mxu0
    %v7264 = vadd.f32 %v6993, %v7244
    %v7265 = vadd.f32 %v6994, %v7247
    %v7266 = vadd.f32 %v6995, %v7250
    %v7267 = vadd.f32 %v6996, %v7253
    %v7268 = vadd.f32 %v6997, %v7256
    %v7269 = vadd.f32 %v6998, %v7259
    %v7270 = vadd.f32 %v6999, %v7262
    %s7271 = scalar_lea.vmem %s4, 5152
    %v7272 = vld [vmem:[%s7271] sm:$0xff]
    %v7273 = vld [vmem:[%s7271 + $0x8] sm:$0xff]
    %v7274 = vld [vmem:[%s7271 + $0x10] sm:$0xff]
    %v7275 = vld [vmem:[%s7271 + $0x18] sm:$0xff]
    %v7276 = vld [vmem:[%s7271 + $0x20] sm:$0xff]
    %v7277 = vld [vmem:[%s7271 + $0x28] sm:$0xff]
    %v7278 = vld [vmem:[%s7271 + $0x30] sm:$0xff]
    %v7279 = vld [vmem:[%s7271 + $0x38] sm:$0xff]
    %v7280 = vld [vmem:[%s7271 + $0x40] sm:$0xff]
    %v7281 = vld [vmem:[%s7271 + $0x48] sm:$0xff]
    %v7282 = vld [vmem:[%s7271 + $0x50] sm:$0xff]
    %v7283 = vld [vmem:[%s7271 + $0x58] sm:$0xff]
    %v7284 = vld [vmem:[%s7271 + $0x60] sm:$0xff]
    %v7285 = vld [vmem:[%s7271 + $0x68] sm:$0xff]
    %v7286 = vld [vmem:[%s7271 + $0x70] sm:$0xff]
    %v7287 = vld [vmem:[%s7271 + $0x78] sm:$0xff]
    %v7288 = vld [vmem:[%s7271 + $0x80] sm:$0xff]
    %v7289 = vld [vmem:[%s7271 + $0x88] sm:$0xff]
    %v7290 = vld [vmem:[%s7271 + $0x90] sm:$0xff]
    %v7291 = vld [vmem:[%s7271 + $0x98] sm:$0xff]
    %v7292 = vld [vmem:[%s7271 + $0xa0] sm:$0xff]
    %v7293 = vld [vmem:[%s7271 + $0xa8] sm:$0xff]
    %v7294 = vld [vmem:[%s7271 + $0xb0] sm:$0xff]
    %v7295 = vld [vmem:[%s7271 + $0xb8] sm:$0xff]
    %v7296 = vld [vmem:[%s7271 + $0xc0] sm:$0x3]
    %v7297 = vld [vmem:[%s7271 + $0xc8] sm:$0x3]
    %v7298 = vld [vmem:[%s7271 + $0xd0] sm:$0x3]
    %v7299 = vld [vmem:[%s7271 + $0xd8] sm:$0x3]
    %v7301 = vsel %vm1081, %v7275, 0
    %v7304 = vsel %vm1081, %v7279, 0
    %v7307 = vsel %vm1081, %v7283, 0
    %v7310 = vsel %vm1081, %v7287, 0
    %v7313 = vsel %vm1081, %v7291, 0
    %v7316 = vsel %vm1081, %v7295, 0
    %v7319 = vsel %vm1081, %v7299, 0
    %7321 = vmatpush.msra.mxu0 %v1047
    %7322 = vmatpush.msra.mxu0 %v1046
    %7323 = vmatpush.msra.mxu0 %v1045
    %7324 = vmatpush.msra.mxu0 %v1044
    %7325 = vmatpush.msra.mxu0 %v1043
    %7326 = vmatpush.msra.mxu0 %v1042
    %7327 = vmatpush.msra.mxu0 %v1041
    %7328 = vmatpush.msra.mxu0 %v1040
    %7329 = vmatpush.msra.mxu0 %v1039
    %7330 = vmatpush.msra.mxu0 %v1038
    %7331 = vmatpush.msra.mxu0 %v1037
    %7332 = vmatpush.msra.mxu0 %v1036
    %7333 = vmatpush.msra.mxu0 %v1035
    %7334 = vmatpush.msra.mxu0 %v1034
    %7335 = vmatpush.msra.mxu0 %v1033
    %7336 = vmatpush.msra.mxu0 %v1032
    %7337 = vmatmul.f32.gmra.mxu0 %v7272
    %v7338 = vpop.f32.mrf.mxu0
    %v7339 = vadd.f32 0.0, %v7338
    %7340 = vmatmul.f32.gmra.mxu0 %v7276
    %v7341 = vpop.f32.mrf.mxu0
    %v7342 = vadd.f32 0.0, %v7341
    %7343 = vmatmul.f32.gmra.mxu0 %v7280
    %v7344 = vpop.f32.mrf.mxu0
    %v7345 = vadd.f32 0.0, %v7344
    %7346 = vmatmul.f32.gmra.mxu0 %v7284
    %v7347 = vpop.f32.mrf.mxu0
    %v7348 = vadd.f32 0.0, %v7347
    %7349 = vmatmul.f32.gmra.mxu0 %v7288
    %v7350 = vpop.f32.mrf.mxu0
    %v7351 = vadd.f32 0.0, %v7350
    %7352 = vmatmul.f32.gmra.mxu0 %v7292
    %v7353 = vpop.f32.mrf.mxu0
    %v7354 = vadd.f32 0.0, %v7353
    %7355 = vmatmul.f32.gmra.mxu0 %v7296
    %v7356 = vpop.f32.mrf.mxu0
    %v7357 = vadd.f32 0.0, %v7356
    %7358 = vdwg.mxu0
    %7359 = vmatpush.msra.mxu0 %v1063
    %7360 = vmatpush.msra.mxu0 %v1062
    %7361 = vmatpush.msra.mxu0 %v1061
    %7362 = vmatpush.msra.mxu0 %v1060
    %7363 = vmatpush.msra.mxu0 %v1059
    %7364 = vmatpush.msra.mxu0 %v1058
    %7365 = vmatpush.msra.mxu0 %v1057
    %7366 = vmatpush.msra.mxu0 %v1056
    %7367 = vmatpush.msra.mxu0 %v1055
    %7368 = vmatpush.msra.mxu0 %v1054
    %7369 = vmatpush.msra.mxu0 %v1053
    %7370 = vmatpush.msra.mxu0 %v1052
    %7371 = vmatpush.msra.mxu0 %v1051
    %7372 = vmatpush.msra.mxu0 %v1050
    %7373 = vmatpush.msra.mxu0 %v1049
    %7374 = vmatpush.msra.mxu0 %v1048
    %7375 = vmatmul.f32.gmra.mxu0 %v7273
    %v7376 = vpop.f32.mrf.mxu0
    %v7377 = vadd.f32 %v7339, %v7376
    %7378 = vmatmul.f32.gmra.mxu0 %v7277
    %v7379 = vpop.f32.mrf.mxu0
    %v7380 = vadd.f32 %v7342, %v7379
    %7381 = vmatmul.f32.gmra.mxu0 %v7281
    %v7382 = vpop.f32.mrf.mxu0
    %v7383 = vadd.f32 %v7345, %v7382
    %7384 = vmatmul.f32.gmra.mxu0 %v7285
    %v7385 = vpop.f32.mrf.mxu0
    %v7386 = vadd.f32 %v7348, %v7385
    %7387 = vmatmul.f32.gmra.mxu0 %v7289
    %v7388 = vpop.f32.mrf.mxu0
    %v7389 = vadd.f32 %v7351, %v7388
    %7390 = vmatmul.f32.gmra.mxu0 %v7293
    %v7391 = vpop.f32.mrf.mxu0
    %v7392 = vadd.f32 %v7354, %v7391
    %7393 = vmatmul.f32.gmra.mxu0 %v7297
    %v7394 = vpop.f32.mrf.mxu0
    %v7395 = vadd.f32 %v7357, %v7394
    %7396 = vdwg.mxu0
    %7397 = vmatpush.msra.mxu0 %v1079
    %7398 = vmatpush.msra.mxu0 %v1078
    %7399 = vmatpush.msra.mxu0 %v1077
    %7400 = vmatpush.msra.mxu0 %v1076
    %7401 = vmatpush.msra.mxu0 %v1075
    %7402 = vmatpush.msra.mxu0 %v1074
    %7403 = vmatpush.msra.mxu0 %v1073
    %7404 = vmatpush.msra.mxu0 %v1072
    %7405 = vmatpush.msra.mxu0 %v1071
    %7406 = vmatpush.msra.mxu0 %v1070
    %7407 = vmatpush.msra.mxu0 %v1069
    %7408 = vmatpush.msra.mxu0 %v1068
    %7409 = vmatpush.msra.mxu0 %v1067
    %7410 = vmatpush.msra.mxu0 %v1066
    %7411 = vmatpush.msra.mxu0 %v1065
    %7412 = vmatpush.msra.mxu0 %v1064
    %7413 = vmatmul.f32.gmra.mxu0 %v7274
    %v7414 = vpop.f32.mrf.mxu0
    %v7415 = vadd.f32 %v7377, %v7414
    %7416 = vmatmul.f32.gmra.mxu0 %v7278
    %v7417 = vpop.f32.mrf.mxu0
    %v7418 = vadd.f32 %v7380, %v7417
    %7419 = vmatmul.f32.gmra.mxu0 %v7282
    %v7420 = vpop.f32.mrf.mxu0
    %v7421 = vadd.f32 %v7383, %v7420
    %7422 = vmatmul.f32.gmra.mxu0 %v7286
    %v7423 = vpop.f32.mrf.mxu0
    %v7424 = vadd.f32 %v7386, %v7423
    %7425 = vmatmul.f32.gmra.mxu0 %v7290
    %v7426 = vpop.f32.mrf.mxu0
    %v7427 = vadd.f32 %v7389, %v7426
    %7428 = vmatmul.f32.gmra.mxu0 %v7294
    %v7429 = vpop.f32.mrf.mxu0
    %v7430 = vadd.f32 %v7392, %v7429
    %7431 = vmatmul.f32.gmra.mxu0 %v7298
    %v7432 = vpop.f32.mrf.mxu0
    %v7433 = vadd.f32 %v7395, %v7432
    %7434 = vdwg.mxu0
    %7435 = vmatpush.msra.mxu0 0.0
    %7436 = vmatpush.msra.mxu0 0.0
    %7437 = vmatpush.msra.mxu0 0.0
    %7438 = vmatpush.msra.mxu0 0.0
    %7439 = vmatpush.msra.mxu0 0.0
    %7440 = vmatpush.msra.mxu0 0.0
    %7441 = vmatpush.msra.mxu0 0.0
    %7442 = vmatpush.msra.mxu0 0.0
    %7443 = vmatpush.msra.mxu0 0.0
    %7444 = vmatpush.msra.mxu0 0.0
    %7445 = vmatpush.msra.mxu0 0.0
    %7446 = vmatpush.msra.mxu0 0.0
    %7447 = vmatpush.msra.mxu0 0.0
    %7448 = vmatpush.msra.mxu0 0.0
    %7449 = vmatpush.msra.mxu0 0.0
    %7450 = vmatpush.msra.mxu0 %v1080
    %7451 = vmatmul.f32.gmra.mxu0 %v7301
    %v7452 = vpop.f32.mrf.mxu0
    %v7453 = vadd.f32 %v7415, %v7452
    %7454 = vmatmul.f32.gmra.mxu0 %v7304
    %v7455 = vpop.f32.mrf.mxu0
    %v7456 = vadd.f32 %v7418, %v7455
    %7457 = vmatmul.f32.gmra.mxu0 %v7307
    %v7458 = vpop.f32.mrf.mxu0
    %v7459 = vadd.f32 %v7421, %v7458
    %7460 = vmatmul.f32.gmra.mxu0 %v7310
    %v7461 = vpop.f32.mrf.mxu0
    %v7462 = vadd.f32 %v7424, %v7461
    %7463 = vmatmul.f32.gmra.mxu0 %v7313
    %v7464 = vpop.f32.mrf.mxu0
    %v7465 = vadd.f32 %v7427, %v7464
    %7466 = vmatmul.f32.gmra.mxu0 %v7316
    %v7467 = vpop.f32.mrf.mxu0
    %v7468 = vadd.f32 %v7430, %v7467
    %7469 = vmatmul.f32.gmra.mxu0 %v7319
    %v7470 = vpop.f32.mrf.mxu0
    %v7471 = vadd.f32 %v7433, %v7470
    %7472 = vdwg.mxu0
    %s7473 = scalar_lea.vmem %s5, 368
    %v7474 = vld [vmem:[%s7473] sm:$0xff]
    %v7475 = vld [vmem:[%s7473 + $0x8] sm:$0xff]
    %v7477 = vsel %vm428, %v7453, 0
    %v7480 = vsel %vm428, %v7456, 0
    %v7483 = vsel %vm428, %v7459, 0
    %v7486 = vsel %vm428, %v7462, 0
    %v7489 = vsel %vm428, %v7465, 0
    %v7492 = vsel %vm428, %v7468, 0
    %v7495 = vsel %vm428, %v7471, 0
    %7497 = vmatpush.msra.mxu0 0.0
    %7498 = vmatpush.msra.mxu0 0.0
    %7499 = vmatpush.msra.mxu0 0.0
    %7500 = vmatpush.msra.mxu0 0.0
    %7501 = vmatpush.msra.mxu0 0.0
    %7502 = vmatpush.msra.mxu0 0.0
    %7503 = vmatpush.msra.mxu0 0.0
    %7504 = vmatpush.msra.mxu0 0.0
    %7505 = vmatpush.msra.mxu0 0.0
    %7506 = vmatpush.msra.mxu0 0.0
    %7507 = vmatpush.msra.mxu0 0.0
    %7508 = vmatpush.msra.mxu0 0.0
    %7509 = vmatpush.msra.mxu0 0.0
    %7510 = vmatpush.msra.mxu0 0.0
    %7511 = vmatpush.msra.mxu0 %v7475
    %7512 = vmatpush.msra.mxu0 %v7474
    %7513 = vmatmul.f32.gmra.mxu0 %v7477
    %v7514 = vpop.f32.mrf.mxu0
    %v7515 = vadd.f32 0.0, %v7514
    %7516 = vmatmul.f32.gmra.mxu0 %v7480
    %v7517 = vpop.f32.mrf.mxu0
    %v7518 = vadd.f32 0.0, %v7517
    %7519 = vmatmul.f32.gmra.mxu0 %v7483
    %v7520 = vpop.f32.mrf.mxu0
    %v7521 = vadd.f32 0.0, %v7520
    %7522 = vmatmul.f32.gmra.mxu0 %v7486
    %v7523 = vpop.f32.mrf.mxu0
    %v7524 = vadd.f32 0.0, %v7523
    %7525 = vmatmul.f32.gmra.mxu0 %v7489
    %v7526 = vpop.f32.mrf.mxu0
    %v7527 = vadd.f32 0.0, %v7526
    %7528 = vmatmul.f32.gmra.mxu0 %v7492
    %v7529 = vpop.f32.mrf.mxu0
    %v7530 = vadd.f32 0.0, %v7529
    %7531 = vmatmul.f32.gmra.mxu0 %v7495
    %v7532 = vpop.f32.mrf.mxu0
    %v7533 = vadd.f32 0.0, %v7532
    %7534 = vdwg.mxu0
    %v7535 = vadd.f32 %v7264, %v7515
    %v7536 = vadd.f32 %v7265, %v7518
    %v7537 = vadd.f32 %v7266, %v7521
    %v7538 = vadd.f32 %v7267, %v7524
    %v7539 = vadd.f32 %v7268, %v7527
    %v7540 = vadd.f32 %v7269, %v7530
    %v7541 = vadd.f32 %v7270, %v7533
    %s7542 = scalar_lea.vmem %s4, 5376
    %v7543 = vld [vmem:[%s7542] sm:$0xff]
    %v7544 = vld [vmem:[%s7542 + $0x8] sm:$0xff]
    %v7545 = vld [vmem:[%s7542 + $0x10] sm:$0xff]
    %v7546 = vld [vmem:[%s7542 + $0x18] sm:$0xff]
    %v7547 = vld [vmem:[%s7542 + $0x20] sm:$0xff]
    %v7548 = vld [vmem:[%s7542 + $0x28] sm:$0xff]
    %v7549 = vld [vmem:[%s7542 + $0x30] sm:$0xff]
    %v7550 = vld [vmem:[%s7542 + $0x38] sm:$0xff]
    %v7551 = vld [vmem:[%s7542 + $0x40] sm:$0xff]
    %v7552 = vld [vmem:[%s7542 + $0x48] sm:$0xff]
    %v7553 = vld [vmem:[%s7542 + $0x50] sm:$0xff]
    %v7554 = vld [vmem:[%s7542 + $0x58] sm:$0xff]
    %v7555 = vld [vmem:[%s7542 + $0x60] sm:$0xff]
    %v7556 = vld [vmem:[%s7542 + $0x68] sm:$0xff]
    %v7557 = vld [vmem:[%s7542 + $0x70] sm:$0xff]
    %v7558 = vld [vmem:[%s7542 + $0x78] sm:$0xff]
    %v7559 = vld [vmem:[%s7542 + $0x80] sm:$0xff]
    %v7560 = vld [vmem:[%s7542 + $0x88] sm:$0xff]
    %v7561 = vld [vmem:[%s7542 + $0x90] sm:$0xff]
    %v7562 = vld [vmem:[%s7542 + $0x98] sm:$0xff]
    %v7563 = vld [vmem:[%s7542 + $0xa0] sm:$0xff]
    %v7564 = vld [vmem:[%s7542 + $0xa8] sm:$0xff]
    %v7565 = vld [vmem:[%s7542 + $0xb0] sm:$0xff]
    %v7566 = vld [vmem:[%s7542 + $0xb8] sm:$0xff]
    %v7567 = vld [vmem:[%s7542 + $0xc0] sm:$0x3]
    %v7568 = vld [vmem:[%s7542 + $0xc8] sm:$0x3]
    %v7569 = vld [vmem:[%s7542 + $0xd0] sm:$0x3]
    %v7570 = vld [vmem:[%s7542 + $0xd8] sm:$0x3]
    %v7572 = vsel %vm1081, %v7546, 0
    %v7575 = vsel %vm1081, %v7550, 0
    %v7578 = vsel %vm1081, %v7554, 0
    %v7581 = vsel %vm1081, %v7558, 0
    %v7584 = vsel %vm1081, %v7562, 0
    %v7587 = vsel %vm1081, %v7566, 0
    %v7590 = vsel %vm1081, %v7570, 0
    %7592 = vmatpush.msra.mxu0 %v1047
    %7593 = vmatpush.msra.mxu0 %v1046
    %7594 = vmatpush.msra.mxu0 %v1045
    %7595 = vmatpush.msra.mxu0 %v1044
    %7596 = vmatpush.msra.mxu0 %v1043
    %7597 = vmatpush.msra.mxu0 %v1042
    %7598 = vmatpush.msra.mxu0 %v1041
    %7599 = vmatpush.msra.mxu0 %v1040
    %7600 = vmatpush.msra.mxu0 %v1039
    %7601 = vmatpush.msra.mxu0 %v1038
    %7602 = vmatpush.msra.mxu0 %v1037
    %7603 = vmatpush.msra.mxu0 %v1036
    %7604 = vmatpush.msra.mxu0 %v1035
    %7605 = vmatpush.msra.mxu0 %v1034
    %7606 = vmatpush.msra.mxu0 %v1033
    %7607 = vmatpush.msra.mxu0 %v1032
    %7608 = vmatmul.f32.gmra.mxu0 %v7543
    %v7609 = vpop.f32.mrf.mxu0
    %v7610 = vadd.f32 0.0, %v7609
    %7611 = vmatmul.f32.gmra.mxu0 %v7547
    %v7612 = vpop.f32.mrf.mxu0
    %v7613 = vadd.f32 0.0, %v7612
    %7614 = vmatmul.f32.gmra.mxu0 %v7551
    %v7615 = vpop.f32.mrf.mxu0
    %v7616 = vadd.f32 0.0, %v7615
    %7617 = vmatmul.f32.gmra.mxu0 %v7555
    %v7618 = vpop.f32.mrf.mxu0
    %v7619 = vadd.f32 0.0, %v7618
    %7620 = vmatmul.f32.gmra.mxu0 %v7559
    %v7621 = vpop.f32.mrf.mxu0
    %v7622 = vadd.f32 0.0, %v7621
    %7623 = vmatmul.f32.gmra.mxu0 %v7563
    %v7624 = vpop.f32.mrf.mxu0
    %v7625 = vadd.f32 0.0, %v7624
    %7626 = vmatmul.f32.gmra.mxu0 %v7567
    %v7627 = vpop.f32.mrf.mxu0
    %v7628 = vadd.f32 0.0, %v7627
    %7629 = vdwg.mxu0
    %7630 = vmatpush.msra.mxu0 %v1063
    %7631 = vmatpush.msra.mxu0 %v1062
    %7632 = vmatpush.msra.mxu0 %v1061
    %7633 = vmatpush.msra.mxu0 %v1060
    %7634 = vmatpush.msra.mxu0 %v1059
    %7635 = vmatpush.msra.mxu0 %v1058
    %7636 = vmatpush.msra.mxu0 %v1057
    %7637 = vmatpush.msra.mxu0 %v1056
    %7638 = vmatpush.msra.mxu0 %v1055
    %7639 = vmatpush.msra.mxu0 %v1054
    %7640 = vmatpush.msra.mxu0 %v1053
    %7641 = vmatpush.msra.mxu0 %v1052
    %7642 = vmatpush.msra.mxu0 %v1051
    %7643 = vmatpush.msra.mxu0 %v1050
    %7644 = vmatpush.msra.mxu0 %v1049
    %7645 = vmatpush.msra.mxu0 %v1048
    %7646 = vmatmul.f32.gmra.mxu0 %v7544
    %v7647 = vpop.f32.mrf.mxu0
    %v7648 = vadd.f32 %v7610, %v7647
    %7649 = vmatmul.f32.gmra.mxu0 %v7548
    %v7650 = vpop.f32.mrf.mxu0
    %v7651 = vadd.f32 %v7613, %v7650
    %7652 = vmatmul.f32.gmra.mxu0 %v7552
    %v7653 = vpop.f32.mrf.mxu0
    %v7654 = vadd.f32 %v7616, %v7653
    %7655 = vmatmul.f32.gmra.mxu0 %v7556
    %v7656 = vpop.f32.mrf.mxu0
    %v7657 = vadd.f32 %v7619, %v7656
    %7658 = vmatmul.f32.gmra.mxu0 %v7560
    %v7659 = vpop.f32.mrf.mxu0
    %v7660 = vadd.f32 %v7622, %v7659
    %7661 = vmatmul.f32.gmra.mxu0 %v7564
    %v7662 = vpop.f32.mrf.mxu0
    %v7663 = vadd.f32 %v7625, %v7662
    %7664 = vmatmul.f32.gmra.mxu0 %v7568
    %v7665 = vpop.f32.mrf.mxu0
    %v7666 = vadd.f32 %v7628, %v7665
    %7667 = vdwg.mxu0
    %7668 = vmatpush.msra.mxu0 %v1079
    %7669 = vmatpush.msra.mxu0 %v1078
    %7670 = vmatpush.msra.mxu0 %v1077
    %7671 = vmatpush.msra.mxu0 %v1076
    %7672 = vmatpush.msra.mxu0 %v1075
    %7673 = vmatpush.msra.mxu0 %v1074
    %7674 = vmatpush.msra.mxu0 %v1073
    %7675 = vmatpush.msra.mxu0 %v1072
    %7676 = vmatpush.msra.mxu0 %v1071
    %7677 = vmatpush.msra.mxu0 %v1070
    %7678 = vmatpush.msra.mxu0 %v1069
    %7679 = vmatpush.msra.mxu0 %v1068
    %7680 = vmatpush.msra.mxu0 %v1067
    %7681 = vmatpush.msra.mxu0 %v1066
    %7682 = vmatpush.msra.mxu0 %v1065
    %7683 = vmatpush.msra.mxu0 %v1064
    %7684 = vmatmul.f32.gmra.mxu0 %v7545
    %v7685 = vpop.f32.mrf.mxu0
    %v7686 = vadd.f32 %v7648, %v7685
    %7687 = vmatmul.f32.gmra.mxu0 %v7549
    %v7688 = vpop.f32.mrf.mxu0
    %v7689 = vadd.f32 %v7651, %v7688
    %7690 = vmatmul.f32.gmra.mxu0 %v7553
    %v7691 = vpop.f32.mrf.mxu0
    %v7692 = vadd.f32 %v7654, %v7691
    %7693 = vmatmul.f32.gmra.mxu0 %v7557
    %v7694 = vpop.f32.mrf.mxu0
    %v7695 = vadd.f32 %v7657, %v7694
    %7696 = vmatmul.f32.gmra.mxu0 %v7561
    %v7697 = vpop.f32.mrf.mxu0
    %v7698 = vadd.f32 %v7660, %v7697
    %7699 = vmatmul.f32.gmra.mxu0 %v7565
    %v7700 = vpop.f32.mrf.mxu0
    %v7701 = vadd.f32 %v7663, %v7700
    %7702 = vmatmul.f32.gmra.mxu0 %v7569
    %v7703 = vpop.f32.mrf.mxu0
    %v7704 = vadd.f32 %v7666, %v7703
    %7705 = vdwg.mxu0
    %7706 = vmatpush.msra.mxu0 0.0
    %7707 = vmatpush.msra.mxu0 0.0
    %7708 = vmatpush.msra.mxu0 0.0
    %7709 = vmatpush.msra.mxu0 0.0
    %7710 = vmatpush.msra.mxu0 0.0
    %7711 = vmatpush.msra.mxu0 0.0
    %7712 = vmatpush.msra.mxu0 0.0
    %7713 = vmatpush.msra.mxu0 0.0
    %7714 = vmatpush.msra.mxu0 0.0
    %7715 = vmatpush.msra.mxu0 0.0
    %7716 = vmatpush.msra.mxu0 0.0
    %7717 = vmatpush.msra.mxu0 0.0
    %7718 = vmatpush.msra.mxu0 0.0
    %7719 = vmatpush.msra.mxu0 0.0
    %7720 = vmatpush.msra.mxu0 0.0
    %7721 = vmatpush.msra.mxu0 %v1080
    %7722 = vmatmul.f32.gmra.mxu0 %v7572
    %v7723 = vpop.f32.mrf.mxu0
    %v7724 = vadd.f32 %v7686, %v7723
    %7725 = vmatmul.f32.gmra.mxu0 %v7575
    %v7726 = vpop.f32.mrf.mxu0
    %v7727 = vadd.f32 %v7689, %v7726
    %7728 = vmatmul.f32.gmra.mxu0 %v7578
    %v7729 = vpop.f32.mrf.mxu0
    %v7730 = vadd.f32 %v7692, %v7729
    %7731 = vmatmul.f32.gmra.mxu0 %v7581
    %v7732 = vpop.f32.mrf.mxu0
    %v7733 = vadd.f32 %v7695, %v7732
    %7734 = vmatmul.f32.gmra.mxu0 %v7584
    %v7735 = vpop.f32.mrf.mxu0
    %v7736 = vadd.f32 %v7698, %v7735
    %7737 = vmatmul.f32.gmra.mxu0 %v7587
    %v7738 = vpop.f32.mrf.mxu0
    %v7739 = vadd.f32 %v7701, %v7738
    %7740 = vmatmul.f32.gmra.mxu0 %v7590
    %v7741 = vpop.f32.mrf.mxu0
    %v7742 = vadd.f32 %v7704, %v7741
    %7743 = vdwg.mxu0
    %s7744 = scalar_lea.vmem %s5, 384
    %v7745 = vld [vmem:[%s7744] sm:$0xff]
    %v7746 = vld [vmem:[%s7744 + $0x8] sm:$0xff]
    %v7748 = vsel %vm428, %v7724, 0
    %v7751 = vsel %vm428, %v7727, 0
    %v7754 = vsel %vm428, %v7730, 0
    %v7757 = vsel %vm428, %v7733, 0
    %v7760 = vsel %vm428, %v7736, 0
    %v7763 = vsel %vm428, %v7739, 0
    %v7766 = vsel %vm428, %v7742, 0
    %7768 = vmatpush.msra.mxu0 0.0
    %7769 = vmatpush.msra.mxu0 0.0
    %7770 = vmatpush.msra.mxu0 0.0
    %7771 = vmatpush.msra.mxu0 0.0
    %7772 = vmatpush.msra.mxu0 0.0
    %7773 = vmatpush.msra.mxu0 0.0
    %7774 = vmatpush.msra.mxu0 0.0
    %7775 = vmatpush.msra.mxu0 0.0
    %7776 = vmatpush.msra.mxu0 0.0
    %7777 = vmatpush.msra.mxu0 0.0
    %7778 = vmatpush.msra.mxu0 0.0
    %7779 = vmatpush.msra.mxu0 0.0
    %7780 = vmatpush.msra.mxu0 0.0
    %7781 = vmatpush.msra.mxu0 0.0
    %7782 = vmatpush.msra.mxu0 %v7746
    %7783 = vmatpush.msra.mxu0 %v7745
    %7784 = vmatmul.f32.gmra.mxu0 %v7748
    %v7785 = vpop.f32.mrf.mxu0
    %v7786 = vadd.f32 0.0, %v7785
    %7787 = vmatmul.f32.gmra.mxu0 %v7751
    %v7788 = vpop.f32.mrf.mxu0
    %v7789 = vadd.f32 0.0, %v7788
    %7790 = vmatmul.f32.gmra.mxu0 %v7754
    %v7791 = vpop.f32.mrf.mxu0
    %v7792 = vadd.f32 0.0, %v7791
    %7793 = vmatmul.f32.gmra.mxu0 %v7757
    %v7794 = vpop.f32.mrf.mxu0
    %v7795 = vadd.f32 0.0, %v7794
    %7796 = vmatmul.f32.gmra.mxu0 %v7760
    %v7797 = vpop.f32.mrf.mxu0
    %v7798 = vadd.f32 0.0, %v7797
    %7799 = vmatmul.f32.gmra.mxu0 %v7763
    %v7800 = vpop.f32.mrf.mxu0
    %v7801 = vadd.f32 0.0, %v7800
    %7802 = vmatmul.f32.gmra.mxu0 %v7766
    %v7803 = vpop.f32.mrf.mxu0
    %v7804 = vadd.f32 0.0, %v7803
    %7805 = vdwg.mxu0
    %v7806 = vadd.f32 %v7535, %v7786
    %v7807 = vadd.f32 %v7536, %v7789
    %v7808 = vadd.f32 %v7537, %v7792
    %v7809 = vadd.f32 %v7538, %v7795
    %v7810 = vadd.f32 %v7539, %v7798
    %v7811 = vadd.f32 %v7540, %v7801
    %v7812 = vadd.f32 %v7541, %v7804
    %v7813 = vld [vmem:[%s6] sm:$0x1]
    %v7814 = vld [vmem:[%s7] sm:$0x1]
    %vm7815 = vcmask 261120
    %v7816 = vsel %vm7815, %v7806, 0.0
    %v7817 = vsel %vm7815, %v7807, 0.0
    %v7818 = vadd.f32 %v7816, %v7817
    %v7819 = vsel %vm7815, %v7808, 0.0
    %v7820 = vadd.f32 %v7818, %v7819
    %v7821 = vsel %vm7815, %v7809, 0.0
    %v7822 = vadd.f32 %v7820, %v7821
    %v7823 = vsel %vm7815, %v7810, 0.0
    %v7824 = vadd.f32 %v7822, %v7823
    %v7825 = vsel %vm7815, %v7811, 0.0
    %v7826 = vadd.f32 %v7824, %v7825
    %vm7827 = vcmask 254976
    %v7828 = vsel %vm7827, %v7812, 0.0
    %v7829 = vadd.f32 %v7826, %v7828
    %v7830 = vrot.slane %v7829, 4
    %v7831 = vadd.f32 %v7829, %v7830
    %v7832 = vrot.slane %v7831, 2
    %v7833 = vadd.f32 %v7831, %v7832
    %v7834 = vrot.slane %v7833, 1
    %v7835 = vadd.f32 %v7833, %v7834
    %v7836 = vrcp.pop 50.0
    %v7837 = vmul.f32 50.0, %v7836
    %v7838 = vsub.f32 1.0, %v7837
    %v7839 = vmul.f32 %v7836, %v7838
    %v7840 = vadd.f32 %v7836, %v7839
    %vm7841 = vweird.f32 %v7836
    %v7842 = vsel %vm7841, %v7836, %v7840
    %v7843 = vmul.f32 %v7835, %v7842
    %v7844 = vsub.f32 %v7806, %v7843
    %v7845 = vsub.f32 %v7807, %v7843
    %v7846 = vsub.f32 %v7808, %v7843
    %v7847 = vsub.f32 %v7809, %v7843
    %v7848 = vsub.f32 %v7810, %v7843
    %v7849 = vsub.f32 %v7811, %v7843
    %v7850 = vsub.f32 %v7812, %v7843
    %v7851 = vmul.f32 %v7844, %v7844
    %v7852 = vmul.f32 %v7845, %v7845
    %v7853 = vmul.f32 %v7846, %v7846
    %v7854 = vmul.f32 %v7847, %v7847
    %v7855 = vmul.f32 %v7848, %v7848
    %v7856 = vmul.f32 %v7849, %v7849
    %v7857 = vmul.f32 %v7850, %v7850
    %v7858 = vsel %vm7815, %v7851, 0.0
    %v7859 = vsel %vm7815, %v7852, 0.0
    %v7860 = vadd.f32 %v7858, %v7859
    %v7861 = vsel %vm7815, %v7853, 0.0
    %v7862 = vadd.f32 %v7860, %v7861
    %v7863 = vsel %vm7815, %v7854, 0.0
    %v7864 = vadd.f32 %v7862, %v7863
    %v7865 = vsel %vm7815, %v7855, 0.0
    %v7866 = vadd.f32 %v7864, %v7865
    %v7867 = vsel %vm7815, %v7856, 0.0
    %v7868 = vadd.f32 %v7866, %v7867
    %v7869 = vsel %vm7827, %v7857, 0.0
    %v7870 = vadd.f32 %v7868, %v7869
    %v7871 = vrot.slane %v7870, 4
    %v7872 = vadd.f32 %v7870, %v7871
    %v7873 = vrot.slane %v7872, 2
    %v7874 = vadd.f32 %v7872, %v7873
    %v7875 = vrot.slane %v7874, 1
    %v7876 = vadd.f32 %v7874, %v7875
    %v7877 = vmul.f32 %v7876, %v7842
    %v7878 = vadd.f32 %v7877, 1e-05
    %v7879 = vrsqrt.pop %v7878
    %v7880 = vmul.f32 %v7879, %v7878
    %v7881 = vmul.f32 %v7880, %v7879
    %v7882 = vmul.f32 0.5, %v7881
    %v7883 = vsub.f32 1.5, %v7882
    %v7884 = vmul.f32 %v7879, %v7883
    %vm7885 = vweird.f32 %v7878
    %vm7886 = vweird.f32 %v7879
    %vm7887 = vmor %vm7885, %vm7886
    %v7888 = vsel %vm7887, %v7879, %v7884
    %v7889 = vmul.f32 %v7844, %v7888
    %v7890 = vmul.f32 %v7845, %v7888
    %v7891 = vmul.f32 %v7846, %v7888
    %v7892 = vmul.f32 %v7847, %v7888
    %v7893 = vmul.f32 %v7848, %v7888
    %v7894 = vmul.f32 %v7849, %v7888
    %v7895 = vmul.f32 %v7850, %v7888
    %v7897 = vperm.slane %v7813, 0
    %v7899 = vmul.f32 %v7889, %v7897
    %v7900 = vmul.f32 %v7890, %v7897
    %v7901 = vmul.f32 %v7891, %v7897
    %v7902 = vmul.f32 %v7892, %v7897
    %v7903 = vmul.f32 %v7893, %v7897
    %v7904 = vmul.f32 %v7894, %v7897
    %v7905 = vmul.f32 %v7895, %v7897
    %v7907 = vperm.slane %v7814, 0
    %v7909 = vadd.f32 %v7899, %v7907
    %v7910 = vadd.f32 %v7900, %v7907
    %v7911 = vadd.f32 %v7901, %v7907
    %v7912 = vadd.f32 %v7902, %v7907
    %v7913 = vadd.f32 %v7903, %v7907
    %v7914 = vadd.f32 %v7904, %v7907
    %v7915 = vadd.f32 %v7905, %v7907
    %v7916 = vmax.f32 %v7909, 0.0
    %v7917 = vmax.f32 %v7910, 0.0
    %v7918 = vmax.f32 %v7911, 0.0
    %v7919 = vmax.f32 %v7912, 0.0
    %v7920 = vmax.f32 %v7913, 0.0
    %v7921 = vmax.f32 %v7914, 0.0
    %v7922 = vmax.f32 %v7915, 0.0
    %7923 = vst.msk [vmem:[#allocation3] sm:$0xff] %vm7815, %v7916
    %7924 = vst.msk [vmem:[#allocation3 + $0x8] sm:$0xff] %vm7815, %v7917
    %7925 = vst.msk [vmem:[#allocation3 + $0x10] sm:$0xff] %vm7815, %v7918
    %7926 = vst.msk [vmem:[#allocation3 + $0x18] sm:$0xff] %vm7815, %v7919
    %7927 = vst.msk [vmem:[#allocation3 + $0x20] sm:$0xff] %vm7815, %v7920
    %7928 = vst.msk [vmem:[#allocation3 + $0x28] sm:$0xff] %vm7815, %v7921
    %7929 = vst.msk [vmem:[#allocation3 + $0x30] sm:$0x3] %vm7827, %v7922
    %v7930 = vld [vmem:[%s8] sm:$0x3]
    %v7931 = vld [vmem:[#allocation3] sm:$0xff]
    %v7932 = vld [vmem:[#allocation3 + $0x8] sm:$0xff]
    %v7933 = vld [vmem:[#allocation3 + $0x10] sm:$0xff]
    %v7934 = vld [vmem:[#allocation3 + $0x18] sm:$0xff]
    %v7935 = vld [vmem:[#allocation3 + $0x20] sm:$0xff]
    %v7936 = vld [vmem:[#allocation3 + $0x28] sm:$0xff]
    %v7937 = vld [vmem:[#allocation3 + $0x30] sm:$0x3]
    %vm7938 = vcmask 408576
    %v7940 = vsel %vm7938, %v7930, 0
    %vm7942 = vcmask 1041408
    %v7944 = vsel %vm7942, %v7937, 0
    %7946 = vmatpush.msra.mxu0 0.0
    %7947 = vmatpush.msra.mxu0 0.0
    %7948 = vmatpush.msra.mxu0 0.0
    %7949 = vmatpush.msra.mxu0 0.0
    %7950 = vmatpush.msra.mxu0 0.0
    %7951 = vmatpush.msra.mxu0 0.0
    %7952 = vmatpush.msra.mxu0 0.0
    %7953 = vmatpush.msra.mxu0 0.0
    %7954 = vmatpush.msra.mxu0 0.0
    %7955 = vmatpush.msra.mxu0 %v7944
    %7956 = vmatpush.msra.mxu0 %v7936
    %7957 = vmatpush.msra.mxu0 %v7935
    %7958 = vmatpush.msra.mxu0 %v7934
    %7959 = vmatpush.msra.mxu0 %v7933
    %7960 = vmatpush.msra.mxu0 %v7932
    %7961 = vmatpush.msra.mxu0 %v7931
    %7962 = vmatmul.f32.gmra.mxu0 %v7940
    %v7963 = vpop.f32.mrf.mxu0
    %v7964 = vadd.f32 0.0, %v7963
    %7965 = vdwg.mxu0
    %v7966 = vld [vmem:[%s9] sm:$0xff]
    %v7967 = vld [vmem:[%s9 + $0x8] sm:$0xff]
    %v7968 = vld [vmem:[%s9 + $0x10] sm:$0xff]
    %v7969 = vld [vmem:[%s9 + $0x18] sm:$0xff]
    %s7970 = scalar_lea.vmem %s8, 2
    %v7971 = vld [vmem:[%s7970] sm:$0x3]
    %v7973 = vsel %vm7938, %v7971, 0
    %7975 = vmatpush.msra.mxu0 0.0
    %7976 = vmatpush.msra.mxu0 0.0
    %7977 = vmatpush.msra.mxu0 0.0
    %7978 = vmatpush.msra.mxu0 0.0
    %7979 = vmatpush.msra.mxu0 0.0
    %7980 = vmatpush.msra.mxu0 0.0
    %7981 = vmatpush.msra.mxu0 0.0
    %7982 = vmatpush.msra.mxu0 0.0
    %7983 = vmatpush.msra.mxu0 0.0
    %7984 = vmatpush.msra.mxu0 %v7944
    %7985 = vmatpush.msra.mxu0 %v7936
    %7986 = vmatpush.msra.mxu0 %v7935
    %7987 = vmatpush.msra.mxu0 %v7934
    %7988 = vmatpush.msra.mxu0 %v7933
    %7989 = vmatpush.msra.mxu0 %v7932
    %7990 = vmatpush.msra.mxu0 %v7931
    %7991 = vmatmul.f32.gmra.mxu0 %v7973
    %v7992 = vpop.f32.mrf.mxu0
    %v7993 = vadd.f32 0.0, %v7992
    %7994 = vdwg.mxu0
    %s7995 = scalar_lea.vmem %s9, 32
    %v7996 = vld [vmem:[%s7995] sm:$0xff]
    %v7997 = vld [vmem:[%s7995 + $0x8] sm:$0xff]
    %v7998 = vld [vmem:[%s7995 + $0x10] sm:$0xff]
    %v7999 = vld [vmem:[%s7995 + $0x18] sm:$0xff]
    %v8001 = vsel %vm7815, %v7993, 0
    %8003 = vmatpush.msra.mxu0 0.0
    %8004 = vmatpush.msra.mxu0 0.0
    %8005 = vmatpush.msra.mxu0 0.0
    %8006 = vmatpush.msra.mxu0 0.0
    %8007 = vmatpush.msra.mxu0 0.0
    %8008 = vmatpush.msra.mxu0 0.0
    %8009 = vmatpush.msra.mxu0 0.0
    %8010 = vmatpush.msra.mxu0 0.0
    %8011 = vmatpush.msra.mxu0 0.0
    %8012 = vmatpush.msra.mxu0 0.0
    %8013 = vmatpush.msra.mxu0 0.0
    %8014 = vmatpush.msra.mxu0 0.0
    %8015 = vmatpush.msra.mxu0 %v7999
    %8016 = vmatpush.msra.mxu0 %v7998
    %8017 = vmatpush.msra.mxu0 %v7997
    %8018 = vmatpush.msra.mxu0 %v7996
    %8019 = vmatmul.f32.gmra.mxu0 %v8001
    %v8020 = vpop.f32.mrf.mxu0
    %v8021 = vadd.f32 0.0, %v8020
    %8022 = vdwg.mxu0
    %v8024 = vsel %vm7815, %v7964, 0
    %8026 = vmatpush.msra.mxu0 0.0
    %8027 = vmatpush.msra.mxu0 0.0
    %8028 = vmatpush.msra.mxu0 0.0
    %8029 = vmatpush.msra.mxu0 0.0
    %8030 = vmatpush.msra.mxu0 0.0
    %8031 = vmatpush.msra.mxu0 0.0
    %8032 = vmatpush.msra.mxu0 0.0
    %8033 = vmatpush.msra.mxu0 0.0
    %8034 = vmatpush.msra.mxu0 0.0
    %8035 = vmatpush.msra.mxu0 0.0
    %8036 = vmatpush.msra.mxu0 0.0
    %8037 = vmatpush.msra.mxu0 0.0
    %8038 = vmatpush.msra.mxu0 %v7969
    %8039 = vmatpush.msra.mxu0 %v7968
    %8040 = vmatpush.msra.mxu0 %v7967
    %8041 = vmatpush.msra.mxu0 %v7966
    %8042 = vmatmul.f32.gmra.mxu0 %v8024
    %v8043 = vpop.f32.mrf.mxu0
    %v8044 = vadd.f32 %v8021, %v8043
    %8045 = vdwg.mxu0
    %s8046 = scalar_lea.vmem %s8, 4
    %v8047 = vld [vmem:[%s8046] sm:$0x3]
    %v8049 = vsel %vm7938, %v8047, 0
    %8051 = vmatpush.msra.mxu0 0.0
    %8052 = vmatpush.msra.mxu0 0.0
    %8053 = vmatpush.msra.mxu0 0.0
    %8054 = vmatpush.msra.mxu0 0.0
    %8055 = vmatpush.msra.mxu0 0.0
    %8056 = vmatpush.msra.mxu0 0.0
    %8057 = vmatpush.msra.mxu0 0.0
    %8058 = vmatpush.msra.mxu0 0.0
    %8059 = vmatpush.msra.mxu0 0.0
    %8060 = vmatpush.msra.mxu0 %v7944
    %8061 = vmatpush.msra.mxu0 %v7936
    %8062 = vmatpush.msra.mxu0 %v7935
    %8063 = vmatpush.msra.mxu0 %v7934
    %8064 = vmatpush.msra.mxu0 %v7933
    %8065 = vmatpush.msra.mxu0 %v7932
    %8066 = vmatpush.msra.mxu0 %v7931
    %8067 = vmatmul.f32.gmra.mxu0 %v8049
    %v8068 = vpop.f32.mrf.mxu0
    %v8069 = vadd.f32 0.0, %v8068
    %8070 = vdwg.mxu0
    %s8071 = scalar_lea.vmem %s9, 64
    %v8072 = vld [vmem:[%s8071] sm:$0xff]
    %v8073 = vld [vmem:[%s8071 + $0x8] sm:$0xff]
    %v8074 = vld [vmem:[%s8071 + $0x10] sm:$0xff]
    %v8075 = vld [vmem:[%s8071 + $0x18] sm:$0xff]
    %v8077 = vsel %vm7815, %v8069, 0
    %8079 = vmatpush.msra.mxu0 0.0
    %8080 = vmatpush.msra.mxu0 0.0
    %8081 = vmatpush.msra.mxu0 0.0
    %8082 = vmatpush.msra.mxu0 0.0
    %8083 = vmatpush.msra.mxu0 0.0
    %8084 = vmatpush.msra.mxu0 0.0
    %8085 = vmatpush.msra.mxu0 0.0
    %8086 = vmatpush.msra.mxu0 0.0
    %8087 = vmatpush.msra.mxu0 0.0
    %8088 = vmatpush.msra.mxu0 0.0
    %8089 = vmatpush.msra.mxu0 0.0
    %8090 = vmatpush.msra.mxu0 0.0
    %8091 = vmatpush.msra.mxu0 %v8075
    %8092 = vmatpush.msra.mxu0 %v8074
    %8093 = vmatpush.msra.mxu0 %v8073
    %8094 = vmatpush.msra.mxu0 %v8072
    %8095 = vmatmul.f32.gmra.mxu0 %v8077
    %v8096 = vpop.f32.mrf.mxu0
    %v8097 = vadd.f32 0.0, %v8096
    %8098 = vdwg.mxu0
    %v8099 = vadd.f32 %v8044, %v8097
    %s8100 = scalar_lea.vmem %s8, 6
    %v8101 = vld [vmem:[%s8100] sm:$0x3]
    %v8103 = vsel %vm7938, %v8101, 0
    %8105 = vmatpush.msra.mxu0 0.0
    %8106 = vmatpush.msra.mxu0 0.0
    %8107 = vmatpush.msra.mxu0 0.0
    %8108 = vmatpush.msra.mxu0 0.0
    %8109 = vmatpush.msra.mxu0 0.0
    %8110 = vmatpush.msra.mxu0 0.0
    %8111 = vmatpush.msra.mxu0 0.0
    %8112 = vmatpush.msra.mxu0 0.0
    %8113 = vmatpush.msra.mxu0 0.0
    %8114 = vmatpush.msra.mxu0 %v7944
    %8115 = vmatpush.msra.mxu0 %v7936
    %8116 = vmatpush.msra.mxu0 %v7935
    %8117 = vmatpush.msra.mxu0 %v7934
    %8118 = vmatpush.msra.mxu0 %v7933
    %8119 = vmatpush.msra.mxu0 %v7932
    %8120 = vmatpush.msra.mxu0 %v7931
    %8121 = vmatmul.f32.gmra.mxu0 %v8103
    %v8122 = vpop.f32.mrf.mxu0
    %v8123 = vadd.f32 0.0, %v8122
    %8124 = vdwg.mxu0
    %s8125 = scalar_lea.vmem %s9, 96
    %v8126 = vld [vmem:[%s8125] sm:$0xff]
    %v8127 = vld [vmem:[%s8125 + $0x8] sm:$0xff]
    %v8128 = vld [vmem:[%s8125 + $0x10] sm:$0xff]
    %v8129 = vld [vmem:[%s8125 + $0x18] sm:$0xff]
    %v8131 = vsel %vm7815, %v8123, 0
    %8133 = vmatpush.msra.mxu0 0.0
    %8134 = vmatpush.msra.mxu0 0.0
    %8135 = vmatpush.msra.mxu0 0.0
    %8136 = vmatpush.msra.mxu0 0.0
    %8137 = vmatpush.msra.mxu0 0.0
    %8138 = vmatpush.msra.mxu0 0.0
    %8139 = vmatpush.msra.mxu0 0.0
    %8140 = vmatpush.msra.mxu0 0.0
    %8141 = vmatpush.msra.mxu0 0.0
    %8142 = vmatpush.msra.mxu0 0.0
    %8143 = vmatpush.msra.mxu0 0.0
    %8144 = vmatpush.msra.mxu0 0.0
    %8145 = vmatpush.msra.mxu0 %v8129
    %8146 = vmatpush.msra.mxu0 %v8128
    %8147 = vmatpush.msra.mxu0 %v8127
    %8148 = vmatpush.msra.mxu0 %v8126
    %8149 = vmatmul.f32.gmra.mxu0 %v8131
    %v8150 = vpop.f32.mrf.mxu0
    %v8151 = vadd.f32 0.0, %v8150
    %8152 = vdwg.mxu0
    %v8153 = vadd.f32 %v8099, %v8151
    %s8154 = scalar_lea.vmem %s8, 8
    %v8155 = vld [vmem:[%s8154] sm:$0x3]
    %v8157 = vsel %vm7938, %v8155, 0
    %8159 = vmatpush.msra.mxu0 0.0
    %8160 = vmatpush.msra.mxu0 0.0
    %8161 = vmatpush.msra.mxu0 0.0
    %8162 = vmatpush.msra.mxu0 0.0
    %8163 = vmatpush.msra.mxu0 0.0
    %8164 = vmatpush.msra.mxu0 0.0
    %8165 = vmatpush.msra.mxu0 0.0
    %8166 = vmatpush.msra.mxu0 0.0
    %8167 = vmatpush.msra.mxu0 0.0
    %8168 = vmatpush.msra.mxu0 %v7944
    %8169 = vmatpush.msra.mxu0 %v7936
    %8170 = vmatpush.msra.mxu0 %v7935
    %8171 = vmatpush.msra.mxu0 %v7934
    %8172 = vmatpush.msra.mxu0 %v7933
    %8173 = vmatpush.msra.mxu0 %v7932
    %8174 = vmatpush.msra.mxu0 %v7931
    %8175 = vmatmul.f32.gmra.mxu0 %v8157
    %v8176 = vpop.f32.mrf.mxu0
    %v8177 = vadd.f32 0.0, %v8176
    %8178 = vdwg.mxu0
    %s8179 = scalar_lea.vmem %s9, 128
    %v8180 = vld [vmem:[%s8179] sm:$0xff]
    %v8181 = vld [vmem:[%s8179 + $0x8] sm:$0xff]
    %v8182 = vld [vmem:[%s8179 + $0x10] sm:$0xff]
    %v8183 = vld [vmem:[%s8179 + $0x18] sm:$0xff]
    %v8185 = vsel %vm7815, %v8177, 0
    %8187 = vmatpush.msra.mxu0 0.0
    %8188 = vmatpush.msra.mxu0 0.0
    %8189 = vmatpush.msra.mxu0 0.0
    %8190 = vmatpush.msra.mxu0 0.0
    %8191 = vmatpush.msra.mxu0 0.0
    %8192 = vmatpush.msra.mxu0 0.0
    %8193 = vmatpush.msra.mxu0 0.0
    %8194 = vmatpush.msra.mxu0 0.0
    %8195 = vmatpush.msra.mxu0 0.0
    %8196 = vmatpush.msra.mxu0 0.0
    %8197 = vmatpush.msra.mxu0 0.0
    %8198 = vmatpush.msra.mxu0 0.0
    %8199 = vmatpush.msra.mxu0 %v8183
    %8200 = vmatpush.msra.mxu0 %v8182
    %8201 = vmatpush.msra.mxu0 %v8181
    %8202 = vmatpush.msra.mxu0 %v8180
    %8203 = vmatmul.f32.gmra.mxu0 %v8185
    %v8204 = vpop.f32.mrf.mxu0
    %v8205 = vadd.f32 0.0, %v8204
    %8206 = vdwg.mxu0
    %v8207 = vadd.f32 %v8153, %v8205
    %s8208 = scalar_lea.vmem %s8, 10
    %v8209 = vld [vmem:[%s8208] sm:$0x3]
    %v8211 = vsel %vm7938, %v8209, 0
    %8213 = vmatpush.msra.mxu0 0.0
    %8214 = vmatpush.msra.mxu0 0.0
    %8215 = vmatpush.msra.mxu0 0.0
    %8216 = vmatpush.msra.mxu0 0.0
    %8217 = vmatpush.msra.mxu0 0.0
    %8218 = vmatpush.msra.mxu0 0.0
    %8219 = vmatpush.msra.mxu0 0.0
    %8220 = vmatpush.msra.mxu0 0.0
    %8221 = vmatpush.msra.mxu0 0.0
    %8222 = vmatpush.msra.mxu0 %v7944
    %8223 = vmatpush.msra.mxu0 %v7936
    %8224 = vmatpush.msra.mxu0 %v7935
    %8225 = vmatpush.msra.mxu0 %v7934
    %8226 = vmatpush.msra.mxu0 %v7933
    %8227 = vmatpush.msra.mxu0 %v7932
    %8228 = vmatpush.msra.mxu0 %v7931
    %8229 = vmatmul.f32.gmra.mxu0 %v8211
    %v8230 = vpop.f32.mrf.mxu0
    %v8231 = vadd.f32 0.0, %v8230
    %8232 = vdwg.mxu0
    %s8233 = scalar_lea.vmem %s9, 160
    %v8234 = vld [vmem:[%s8233] sm:$0xff]
    %v8235 = vld [vmem:[%s8233 + $0x8] sm:$0xff]
    %v8236 = vld [vmem:[%s8233 + $0x10] sm:$0xff]
    %v8237 = vld [vmem:[%s8233 + $0x18] sm:$0xff]
    %v8239 = vsel %vm7815, %v8231, 0
    %8241 = vmatpush.msra.mxu0 0.0
    %8242 = vmatpush.msra.mxu0 0.0
    %8243 = vmatpush.msra.mxu0 0.0
    %8244 = vmatpush.msra.mxu0 0.0
    %8245 = vmatpush.msra.mxu0 0.0
    %8246 = vmatpush.msra.mxu0 0.0
    %8247 = vmatpush.msra.mxu0 0.0
    %8248 = vmatpush.msra.mxu0 0.0
    %8249 = vmatpush.msra.mxu0 0.0
    %8250 = vmatpush.msra.mxu0 0.0
    %8251 = vmatpush.msra.mxu0 0.0
    %8252 = vmatpush.msra.mxu0 0.0
    %8253 = vmatpush.msra.mxu0 %v8237
    %8254 = vmatpush.msra.mxu0 %v8236
    %8255 = vmatpush.msra.mxu0 %v8235
    %8256 = vmatpush.msra.mxu0 %v8234
    %8257 = vmatmul.f32.gmra.mxu0 %v8239
    %v8258 = vpop.f32.mrf.mxu0
    %v8259 = vadd.f32 0.0, %v8258
    %8260 = vdwg.mxu0
    %v8261 = vadd.f32 %v8207, %v8259
    %s8262 = scalar_lea.vmem %s8, 12
    %v8263 = vld [vmem:[%s8262] sm:$0x3]
    %v8265 = vsel %vm7938, %v8263, 0
    %8267 = vmatpush.msra.mxu0 0.0
    %8268 = vmatpush.msra.mxu0 0.0
    %8269 = vmatpush.msra.mxu0 0.0
    %8270 = vmatpush.msra.mxu0 0.0
    %8271 = vmatpush.msra.mxu0 0.0
    %8272 = vmatpush.msra.mxu0 0.0
    %8273 = vmatpush.msra.mxu0 0.0
    %8274 = vmatpush.msra.mxu0 0.0
    %8275 = vmatpush.msra.mxu0 0.0
    %8276 = vmatpush.msra.mxu0 %v7944
    %8277 = vmatpush.msra.mxu0 %v7936
    %8278 = vmatpush.msra.mxu0 %v7935
    %8279 = vmatpush.msra.mxu0 %v7934
    %8280 = vmatpush.msra.mxu0 %v7933
    %8281 = vmatpush.msra.mxu0 %v7932
    %8282 = vmatpush.msra.mxu0 %v7931
    %8283 = vmatmul.f32.gmra.mxu0 %v8265
    %v8284 = vpop.f32.mrf.mxu0
    %v8285 = vadd.f32 0.0, %v8284
    %8286 = vdwg.mxu0
    %s8287 = scalar_lea.vmem %s9, 192
    %v8288 = vld [vmem:[%s8287] sm:$0xff]
    %v8289 = vld [vmem:[%s8287 + $0x8] sm:$0xff]
    %v8290 = vld [vmem:[%s8287 + $0x10] sm:$0xff]
    %v8291 = vld [vmem:[%s8287 + $0x18] sm:$0xff]
    %v8293 = vsel %vm7815, %v8285, 0
    %8295 = vmatpush.msra.mxu0 0.0
    %8296 = vmatpush.msra.mxu0 0.0
    %8297 = vmatpush.msra.mxu0 0.0
    %8298 = vmatpush.msra.mxu0 0.0
    %8299 = vmatpush.msra.mxu0 0.0
    %8300 = vmatpush.msra.mxu0 0.0
    %8301 = vmatpush.msra.mxu0 0.0
    %8302 = vmatpush.msra.mxu0 0.0
    %8303 = vmatpush.msra.mxu0 0.0
    %8304 = vmatpush.msra.mxu0 0.0
    %8305 = vmatpush.msra.mxu0 0.0
    %8306 = vmatpush.msra.mxu0 0.0
    %8307 = vmatpush.msra.mxu0 %v8291
    %8308 = vmatpush.msra.mxu0 %v8290
    %8309 = vmatpush.msra.mxu0 %v8289
    %8310 = vmatpush.msra.mxu0 %v8288
    %8311 = vmatmul.f32.gmra.mxu0 %v8293
    %v8312 = vpop.f32.mrf.mxu0
    %v8313 = vadd.f32 0.0, %v8312
    %8314 = vdwg.mxu0
    %v8315 = vadd.f32 %v8261, %v8313
    %s8316 = scalar_lea.vmem %s8, 14
    %v8317 = vld [vmem:[%s8316] sm:$0x3]
    %v8319 = vsel %vm7938, %v8317, 0
    %8321 = vmatpush.msra.mxu0 0.0
    %8322 = vmatpush.msra.mxu0 0.0
    %8323 = vmatpush.msra.mxu0 0.0
    %8324 = vmatpush.msra.mxu0 0.0
    %8325 = vmatpush.msra.mxu0 0.0
    %8326 = vmatpush.msra.mxu0 0.0
    %8327 = vmatpush.msra.mxu0 0.0
    %8328 = vmatpush.msra.mxu0 0.0
    %8329 = vmatpush.msra.mxu0 0.0
    %8330 = vmatpush.msra.mxu0 %v7944
    %8331 = vmatpush.msra.mxu0 %v7936
    %8332 = vmatpush.msra.mxu0 %v7935
    %8333 = vmatpush.msra.mxu0 %v7934
    %8334 = vmatpush.msra.mxu0 %v7933
    %8335 = vmatpush.msra.mxu0 %v7932
    %8336 = vmatpush.msra.mxu0 %v7931
    %8337 = vmatmul.f32.gmra.mxu0 %v8319
    %v8338 = vpop.f32.mrf.mxu0
    %v8339 = vadd.f32 0.0, %v8338
    %8340 = vdwg.mxu0
    %s8341 = scalar_lea.vmem %s9, 224
    %v8342 = vld [vmem:[%s8341] sm:$0xff]
    %v8343 = vld [vmem:[%s8341 + $0x8] sm:$0xff]
    %v8344 = vld [vmem:[%s8341 + $0x10] sm:$0xff]
    %v8345 = vld [vmem:[%s8341 + $0x18] sm:$0xff]
    %v8347 = vsel %vm7815, %v8339, 0
    %8349 = vmatpush.msra.mxu0 0.0
    %8350 = vmatpush.msra.mxu0 0.0
    %8351 = vmatpush.msra.mxu0 0.0
    %8352 = vmatpush.msra.mxu0 0.0
    %8353 = vmatpush.msra.mxu0 0.0
    %8354 = vmatpush.msra.mxu0 0.0
    %8355 = vmatpush.msra.mxu0 0.0
    %8356 = vmatpush.msra.mxu0 0.0
    %8357 = vmatpush.msra.mxu0 0.0
    %8358 = vmatpush.msra.mxu0 0.0
    %8359 = vmatpush.msra.mxu0 0.0
    %8360 = vmatpush.msra.mxu0 0.0
    %8361 = vmatpush.msra.mxu0 %v8345
    %8362 = vmatpush.msra.mxu0 %v8344
    %8363 = vmatpush.msra.mxu0 %v8343
    %8364 = vmatpush.msra.mxu0 %v8342
    %8365 = vmatmul.f32.gmra.mxu0 %v8347
    %v8366 = vpop.f32.mrf.mxu0
    %v8367 = vadd.f32 0.0, %v8366
    %8368 = vdwg.mxu0
    %v8369 = vadd.f32 %v8315, %v8367
    %s8370 = scalar_lea.vmem %s8, 16
    %v8371 = vld [vmem:[%s8370] sm:$0x3]
    %v8373 = vsel %vm7938, %v8371, 0
    %8375 = vmatpush.msra.mxu0 0.0
    %8376 = vmatpush.msra.mxu0 0.0
    %8377 = vmatpush.msra.mxu0 0.0
    %8378 = vmatpush.msra.mxu0 0.0
    %8379 = vmatpush.msra.mxu0 0.0
    %8380 = vmatpush.msra.mxu0 0.0
    %8381 = vmatpush.msra.mxu0 0.0
    %8382 = vmatpush.msra.mxu0 0.0
    %8383 = vmatpush.msra.mxu0 0.0
    %8384 = vmatpush.msra.mxu0 %v7944
    %8385 = vmatpush.msra.mxu0 %v7936
    %8386 = vmatpush.msra.mxu0 %v7935
    %8387 = vmatpush.msra.mxu0 %v7934
    %8388 = vmatpush.msra.mxu0 %v7933
    %8389 = vmatpush.msra.mxu0 %v7932
    %8390 = vmatpush.msra.mxu0 %v7931
    %8391 = vmatmul.f32.gmra.mxu0 %v8373
    %v8392 = vpop.f32.mrf.mxu0
    %v8393 = vadd.f32 0.0, %v8392
    %8394 = vdwg.mxu0
    %s8395 = scalar_lea.vmem %s9, 256
    %v8396 = vld [vmem:[%s8395] sm:$0xff]
    %v8397 = vld [vmem:[%s8395 + $0x8] sm:$0xff]
    %v8398 = vld [vmem:[%s8395 + $0x10] sm:$0xff]
    %v8399 = vld [vmem:[%s8395 + $0x18] sm:$0xff]
    %v8401 = vsel %vm7815, %v8393, 0
    %8403 = vmatpush.msra.mxu0 0.0
    %8404 = vmatpush.msra.mxu0 0.0
    %8405 = vmatpush.msra.mxu0 0.0
    %8406 = vmatpush.msra.mxu0 0.0
    %8407 = vmatpush.msra.mxu0 0.0
    %8408 = vmatpush.msra.mxu0 0.0
    %8409 = vmatpush.msra.mxu0 0.0
    %8410 = vmatpush.msra.mxu0 0.0
    %8411 = vmatpush.msra.mxu0 0.0
    %8412 = vmatpush.msra.mxu0 0.0
    %8413 = vmatpush.msra.mxu0 0.0
    %8414 = vmatpush.msra.mxu0 0.0
    %8415 = vmatpush.msra.mxu0 %v8399
    %8416 = vmatpush.msra.mxu0 %v8398
    %8417 = vmatpush.msra.mxu0 %v8397
    %8418 = vmatpush.msra.mxu0 %v8396
    %8419 = vmatmul.f32.gmra.mxu0 %v8401
    %v8420 = vpop.f32.mrf.mxu0
    %v8421 = vadd.f32 0.0, %v8420
    %8422 = vdwg.mxu0
    %v8423 = vadd.f32 %v8369, %v8421
    %s8424 = scalar_lea.vmem %s8, 18
    %v8425 = vld [vmem:[%s8424] sm:$0x3]
    %v8427 = vsel %vm7938, %v8425, 0
    %8429 = vmatpush.msra.mxu0 0.0
    %8430 = vmatpush.msra.mxu0 0.0
    %8431 = vmatpush.msra.mxu0 0.0
    %8432 = vmatpush.msra.mxu0 0.0
    %8433 = vmatpush.msra.mxu0 0.0
    %8434 = vmatpush.msra.mxu0 0.0
    %8435 = vmatpush.msra.mxu0 0.0
    %8436 = vmatpush.msra.mxu0 0.0
    %8437 = vmatpush.msra.mxu0 0.0
    %8438 = vmatpush.msra.mxu0 %v7944
    %8439 = vmatpush.msra.mxu0 %v7936
    %8440 = vmatpush.msra.mxu0 %v7935
    %8441 = vmatpush.msra.mxu0 %v7934
    %8442 = vmatpush.msra.mxu0 %v7933
    %8443 = vmatpush.msra.mxu0 %v7932
    %8444 = vmatpush.msra.mxu0 %v7931
    %8445 = vmatmul.f32.gmra.mxu0 %v8427
    %v8446 = vpop.f32.mrf.mxu0
    %v8447 = vadd.f32 0.0, %v8446
    %8448 = vdwg.mxu0
    %s8449 = scalar_lea.vmem %s9, 288
    %v8450 = vld [vmem:[%s8449] sm:$0xff]
    %v8451 = vld [vmem:[%s8449 + $0x8] sm:$0xff]
    %v8452 = vld [vmem:[%s8449 + $0x10] sm:$0xff]
    %v8453 = vld [vmem:[%s8449 + $0x18] sm:$0xff]
    %v8455 = vsel %vm7815, %v8447, 0
    %8457 = vmatpush.msra.mxu0 0.0
    %8458 = vmatpush.msra.mxu0 0.0
    %8459 = vmatpush.msra.mxu0 0.0
    %8460 = vmatpush.msra.mxu0 0.0
    %8461 = vmatpush.msra.mxu0 0.0
    %8462 = vmatpush.msra.mxu0 0.0
    %8463 = vmatpush.msra.mxu0 0.0
    %8464 = vmatpush.msra.mxu0 0.0
    %8465 = vmatpush.msra.mxu0 0.0
    %8466 = vmatpush.msra.mxu0 0.0
    %8467 = vmatpush.msra.mxu0 0.0
    %8468 = vmatpush.msra.mxu0 0.0
    %8469 = vmatpush.msra.mxu0 %v8453
    %8470 = vmatpush.msra.mxu0 %v8452
    %8471 = vmatpush.msra.mxu0 %v8451
    %8472 = vmatpush.msra.mxu0 %v8450
    %8473 = vmatmul.f32.gmra.mxu0 %v8455
    %v8474 = vpop.f32.mrf.mxu0
    %v8475 = vadd.f32 0.0, %v8474
    %8476 = vdwg.mxu0
    %v8477 = vadd.f32 %v8423, %v8475
    %s8478 = scalar_lea.vmem %s8, 20
    %v8479 = vld [vmem:[%s8478] sm:$0x3]
    %v8481 = vsel %vm7938, %v8479, 0
    %8483 = vmatpush.msra.mxu0 0.0
    %8484 = vmatpush.msra.mxu0 0.0
    %8485 = vmatpush.msra.mxu0 0.0
    %8486 = vmatpush.msra.mxu0 0.0
    %8487 = vmatpush.msra.mxu0 0.0
    %8488 = vmatpush.msra.mxu0 0.0
    %8489 = vmatpush.msra.mxu0 0.0
    %8490 = vmatpush.msra.mxu0 0.0
    %8491 = vmatpush.msra.mxu0 0.0
    %8492 = vmatpush.msra.mxu0 %v7944
    %8493 = vmatpush.msra.mxu0 %v7936
    %8494 = vmatpush.msra.mxu0 %v7935
    %8495 = vmatpush.msra.mxu0 %v7934
    %8496 = vmatpush.msra.mxu0 %v7933
    %8497 = vmatpush.msra.mxu0 %v7932
    %8498 = vmatpush.msra.mxu0 %v7931
    %8499 = vmatmul.f32.gmra.mxu0 %v8481
    %v8500 = vpop.f32.mrf.mxu0
    %v8501 = vadd.f32 0.0, %v8500
    %8502 = vdwg.mxu0
    %s8503 = scalar_lea.vmem %s9, 320
    %v8504 = vld [vmem:[%s8503] sm:$0xff]
    %v8505 = vld [vmem:[%s8503 + $0x8] sm:$0xff]
    %v8506 = vld [vmem:[%s8503 + $0x10] sm:$0xff]
    %v8507 = vld [vmem:[%s8503 + $0x18] sm:$0xff]
    %v8509 = vsel %vm7815, %v8501, 0
    %8511 = vmatpush.msra.mxu0 0.0
    %8512 = vmatpush.msra.mxu0 0.0
    %8513 = vmatpush.msra.mxu0 0.0
    %8514 = vmatpush.msra.mxu0 0.0
    %8515 = vmatpush.msra.mxu0 0.0
    %8516 = vmatpush.msra.mxu0 0.0
    %8517 = vmatpush.msra.mxu0 0.0
    %8518 = vmatpush.msra.mxu0 0.0
    %8519 = vmatpush.msra.mxu0 0.0
    %8520 = vmatpush.msra.mxu0 0.0
    %8521 = vmatpush.msra.mxu0 0.0
    %8522 = vmatpush.msra.mxu0 0.0
    %8523 = vmatpush.msra.mxu0 %v8507
    %8524 = vmatpush.msra.mxu0 %v8506
    %8525 = vmatpush.msra.mxu0 %v8505
    %8526 = vmatpush.msra.mxu0 %v8504
    %8527 = vmatmul.f32.gmra.mxu0 %v8509
    %v8528 = vpop.f32.mrf.mxu0
    %v8529 = vadd.f32 0.0, %v8528
    %8530 = vdwg.mxu0
    %v8531 = vadd.f32 %v8477, %v8529
    %s8532 = scalar_lea.vmem %s8, 22
    %v8533 = vld [vmem:[%s8532] sm:$0x3]
    %v8535 = vsel %vm7938, %v8533, 0
    %8537 = vmatpush.msra.mxu0 0.0
    %8538 = vmatpush.msra.mxu0 0.0
    %8539 = vmatpush.msra.mxu0 0.0
    %8540 = vmatpush.msra.mxu0 0.0
    %8541 = vmatpush.msra.mxu0 0.0
    %8542 = vmatpush.msra.mxu0 0.0
    %8543 = vmatpush.msra.mxu0 0.0
    %8544 = vmatpush.msra.mxu0 0.0
    %8545 = vmatpush.msra.mxu0 0.0
    %8546 = vmatpush.msra.mxu0 %v7944
    %8547 = vmatpush.msra.mxu0 %v7936
    %8548 = vmatpush.msra.mxu0 %v7935
    %8549 = vmatpush.msra.mxu0 %v7934
    %8550 = vmatpush.msra.mxu0 %v7933
    %8551 = vmatpush.msra.mxu0 %v7932
    %8552 = vmatpush.msra.mxu0 %v7931
    %8553 = vmatmul.f32.gmra.mxu0 %v8535
    %v8554 = vpop.f32.mrf.mxu0
    %v8555 = vadd.f32 0.0, %v8554
    %8556 = vdwg.mxu0
    %s8557 = scalar_lea.vmem %s9, 352
    %v8558 = vld [vmem:[%s8557] sm:$0xff]
    %v8559 = vld [vmem:[%s8557 + $0x8] sm:$0xff]
    %v8560 = vld [vmem:[%s8557 + $0x10] sm:$0xff]
    %v8561 = vld [vmem:[%s8557 + $0x18] sm:$0xff]
    %v8563 = vsel %vm7815, %v8555, 0
    %8565 = vmatpush.msra.mxu0 0.0
    %8566 = vmatpush.msra.mxu0 0.0
    %8567 = vmatpush.msra.mxu0 0.0
    %8568 = vmatpush.msra.mxu0 0.0
    %8569 = vmatpush.msra.mxu0 0.0
    %8570 = vmatpush.msra.mxu0 0.0
    %8571 = vmatpush.msra.mxu0 0.0
    %8572 = vmatpush.msra.mxu0 0.0
    %8573 = vmatpush.msra.mxu0 0.0
    %8574 = vmatpush.msra.mxu0 0.0
    %8575 = vmatpush.msra.mxu0 0.0
    %8576 = vmatpush.msra.mxu0 0.0
    %8577 = vmatpush.msra.mxu0 %v8561
    %8578 = vmatpush.msra.mxu0 %v8560
    %8579 = vmatpush.msra.mxu0 %v8559
    %8580 = vmatpush.msra.mxu0 %v8558
    %8581 = vmatmul.f32.gmra.mxu0 %v8563
    %v8582 = vpop.f32.mrf.mxu0
    %v8583 = vadd.f32 0.0, %v8582
    %8584 = vdwg.mxu0
    %v8585 = vadd.f32 %v8531, %v8583
    %s8586 = scalar_lea.vmem %s8, 24
    %v8587 = vld [vmem:[%s8586] sm:$0x3]
    %v8589 = vsel %vm7938, %v8587, 0
    %8591 = vmatpush.msra.mxu0 0.0
    %8592 = vmatpush.msra.mxu0 0.0
    %8593 = vmatpush.msra.mxu0 0.0
    %8594 = vmatpush.msra.mxu0 0.0
    %8595 = vmatpush.msra.mxu0 0.0
    %8596 = vmatpush.msra.mxu0 0.0
    %8597 = vmatpush.msra.mxu0 0.0
    %8598 = vmatpush.msra.mxu0 0.0
    %8599 = vmatpush.msra.mxu0 0.0
    %8600 = vmatpush.msra.mxu0 %v7944
    %8601 = vmatpush.msra.mxu0 %v7936
    %8602 = vmatpush.msra.mxu0 %v7935
    %8603 = vmatpush.msra.mxu0 %v7934
    %8604 = vmatpush.msra.mxu0 %v7933
    %8605 = vmatpush.msra.mxu0 %v7932
    %8606 = vmatpush.msra.mxu0 %v7931
    %8607 = vmatmul.f32.gmra.mxu0 %v8589
    %v8608 = vpop.f32.mrf.mxu0
    %v8609 = vadd.f32 0.0, %v8608
    %8610 = vdwg.mxu0
    %s8611 = scalar_lea.vmem %s9, 384
    %v8612 = vld [vmem:[%s8611] sm:$0xff]
    %v8613 = vld [vmem:[%s8611 + $0x8] sm:$0xff]
    %v8614 = vld [vmem:[%s8611 + $0x10] sm:$0xff]
    %v8615 = vld [vmem:[%s8611 + $0x18] sm:$0xff]
    %v8617 = vsel %vm7815, %v8609, 0
    %8619 = vmatpush.msra.mxu0 0.0
    %8620 = vmatpush.msra.mxu0 0.0
    %8621 = vmatpush.msra.mxu0 0.0
    %8622 = vmatpush.msra.mxu0 0.0
    %8623 = vmatpush.msra.mxu0 0.0
    %8624 = vmatpush.msra.mxu0 0.0
    %8625 = vmatpush.msra.mxu0 0.0
    %8626 = vmatpush.msra.mxu0 0.0
    %8627 = vmatpush.msra.mxu0 0.0
    %8628 = vmatpush.msra.mxu0 0.0
    %8629 = vmatpush.msra.mxu0 0.0
    %8630 = vmatpush.msra.mxu0 0.0
    %8631 = vmatpush.msra.mxu0 %v8615
    %8632 = vmatpush.msra.mxu0 %v8614
    %8633 = vmatpush.msra.mxu0 %v8613
    %8634 = vmatpush.msra.mxu0 %v8612
    %8635 = vmatmul.f32.gmra.mxu0 %v8617
    %v8636 = vpop.f32.mrf.mxu0
    %v8637 = vadd.f32 0.0, %v8636
    %8638 = vdwg.mxu0
    %v8639 = vadd.f32 %v8585, %v8637
    %s8640 = scalar_lea.vmem %s8, 26
    %v8641 = vld [vmem:[%s8640] sm:$0x3]
    %v8643 = vsel %vm7938, %v8641, 0
    %8645 = vmatpush.msra.mxu0 0.0
    %8646 = vmatpush.msra.mxu0 0.0
    %8647 = vmatpush.msra.mxu0 0.0
    %8648 = vmatpush.msra.mxu0 0.0
    %8649 = vmatpush.msra.mxu0 0.0
    %8650 = vmatpush.msra.mxu0 0.0
    %8651 = vmatpush.msra.mxu0 0.0
    %8652 = vmatpush.msra.mxu0 0.0
    %8653 = vmatpush.msra.mxu0 0.0
    %8654 = vmatpush.msra.mxu0 %v7944
    %8655 = vmatpush.msra.mxu0 %v7936
    %8656 = vmatpush.msra.mxu0 %v7935
    %8657 = vmatpush.msra.mxu0 %v7934
    %8658 = vmatpush.msra.mxu0 %v7933
    %8659 = vmatpush.msra.mxu0 %v7932
    %8660 = vmatpush.msra.mxu0 %v7931
    %8661 = vmatmul.f32.gmra.mxu0 %v8643
    %v8662 = vpop.f32.mrf.mxu0
    %v8663 = vadd.f32 0.0, %v8662
    %8664 = vdwg.mxu0
    %s8665 = scalar_lea.vmem %s9, 416
    %v8666 = vld [vmem:[%s8665] sm:$0xff]
    %v8667 = vld [vmem:[%s8665 + $0x8] sm:$0xff]
    %v8668 = vld [vmem:[%s8665 + $0x10] sm:$0xff]
    %v8669 = vld [vmem:[%s8665 + $0x18] sm:$0xff]
    %v8671 = vsel %vm7815, %v8663, 0
    %8673 = vmatpush.msra.mxu0 0.0
    %8674 = vmatpush.msra.mxu0 0.0
    %8675 = vmatpush.msra.mxu0 0.0
    %8676 = vmatpush.msra.mxu0 0.0
    %8677 = vmatpush.msra.mxu0 0.0
    %8678 = vmatpush.msra.mxu0 0.0
    %8679 = vmatpush.msra.mxu0 0.0
    %8680 = vmatpush.msra.mxu0 0.0
    %8681 = vmatpush.msra.mxu0 0.0
    %8682 = vmatpush.msra.mxu0 0.0
    %8683 = vmatpush.msra.mxu0 0.0
    %8684 = vmatpush.msra.mxu0 0.0
    %8685 = vmatpush.msra.mxu0 %v8669
    %8686 = vmatpush.msra.mxu0 %v8668
    %8687 = vmatpush.msra.mxu0 %v8667
    %8688 = vmatpush.msra.mxu0 %v8666
    %8689 = vmatmul.f32.gmra.mxu0 %v8671
    %v8690 = vpop.f32.mrf.mxu0
    %v8691 = vadd.f32 0.0, %v8690
    %8692 = vdwg.mxu0
    %v8693 = vadd.f32 %v8639, %v8691
    %s8694 = scalar_lea.vmem %s8, 28
    %v8695 = vld [vmem:[%s8694] sm:$0x3]
    %v8697 = vsel %vm7938, %v8695, 0
    %8699 = vmatpush.msra.mxu0 0.0
    %8700 = vmatpush.msra.mxu0 0.0
    %8701 = vmatpush.msra.mxu0 0.0
    %8702 = vmatpush.msra.mxu0 0.0
    %8703 = vmatpush.msra.mxu0 0.0
    %8704 = vmatpush.msra.mxu0 0.0
    %8705 = vmatpush.msra.mxu0 0.0
    %8706 = vmatpush.msra.mxu0 0.0
    %8707 = vmatpush.msra.mxu0 0.0
    %8708 = vmatpush.msra.mxu0 %v7944
    %8709 = vmatpush.msra.mxu0 %v7936
    %8710 = vmatpush.msra.mxu0 %v7935
    %8711 = vmatpush.msra.mxu0 %v7934
    %8712 = vmatpush.msra.mxu0 %v7933
    %8713 = vmatpush.msra.mxu0 %v7932
    %8714 = vmatpush.msra.mxu0 %v7931
    %8715 = vmatmul.f32.gmra.mxu0 %v8697
    %v8716 = vpop.f32.mrf.mxu0
    %v8717 = vadd.f32 0.0, %v8716
    %8718 = vdwg.mxu0
    %s8719 = scalar_lea.vmem %s9, 448
    %v8720 = vld [vmem:[%s8719] sm:$0xff]
    %v8721 = vld [vmem:[%s8719 + $0x8] sm:$0xff]
    %v8722 = vld [vmem:[%s8719 + $0x10] sm:$0xff]
    %v8723 = vld [vmem:[%s8719 + $0x18] sm:$0xff]
    %v8725 = vsel %vm7815, %v8717, 0
    %8727 = vmatpush.msra.mxu0 0.0
    %8728 = vmatpush.msra.mxu0 0.0
    %8729 = vmatpush.msra.mxu0 0.0
    %8730 = vmatpush.msra.mxu0 0.0
    %8731 = vmatpush.msra.mxu0 0.0
    %8732 = vmatpush.msra.mxu0 0.0
    %8733 = vmatpush.msra.mxu0 0.0
    %8734 = vmatpush.msra.mxu0 0.0
    %8735 = vmatpush.msra.mxu0 0.0
    %8736 = vmatpush.msra.mxu0 0.0
    %8737 = vmatpush.msra.mxu0 0.0
    %8738 = vmatpush.msra.mxu0 0.0
    %8739 = vmatpush.msra.mxu0 %v8723
    %8740 = vmatpush.msra.mxu0 %v8722
    %8741 = vmatpush.msra.mxu0 %v8721
    %8742 = vmatpush.msra.mxu0 %v8720
    %8743 = vmatmul.f32.gmra.mxu0 %v8725
    %v8744 = vpop.f32.mrf.mxu0
    %v8745 = vadd.f32 0.0, %v8744
    %8746 = vdwg.mxu0
    %v8747 = vadd.f32 %v8693, %v8745
    %s8748 = scalar_lea.vmem %s8, 30
    %v8749 = vld [vmem:[%s8748] sm:$0x3]
    %v8751 = vsel %vm7938, %v8749, 0
    %8753 = vmatpush.msra.mxu0 0.0
    %8754 = vmatpush.msra.mxu0 0.0
    %8755 = vmatpush.msra.mxu0 0.0
    %8756 = vmatpush.msra.mxu0 0.0
    %8757 = vmatpush.msra.mxu0 0.0
    %8758 = vmatpush.msra.mxu0 0.0
    %8759 = vmatpush.msra.mxu0 0.0
    %8760 = vmatpush.msra.mxu0 0.0
    %8761 = vmatpush.msra.mxu0 0.0
    %8762 = vmatpush.msra.mxu0 %v7944
    %8763 = vmatpush.msra.mxu0 %v7936
    %8764 = vmatpush.msra.mxu0 %v7935
    %8765 = vmatpush.msra.mxu0 %v7934
    %8766 = vmatpush.msra.mxu0 %v7933
    %8767 = vmatpush.msra.mxu0 %v7932
    %8768 = vmatpush.msra.mxu0 %v7931
    %8769 = vmatmul.f32.gmra.mxu0 %v8751
    %v8770 = vpop.f32.mrf.mxu0
    %v8771 = vadd.f32 0.0, %v8770
    %8772 = vdwg.mxu0
    %s8773 = scalar_lea.vmem %s9, 480
    %v8774 = vld [vmem:[%s8773] sm:$0xff]
    %v8775 = vld [vmem:[%s8773 + $0x8] sm:$0xff]
    %v8776 = vld [vmem:[%s8773 + $0x10] sm:$0xff]
    %v8777 = vld [vmem:[%s8773 + $0x18] sm:$0xff]
    %v8779 = vsel %vm7815, %v8771, 0
    %8781 = vmatpush.msra.mxu0 0.0
    %8782 = vmatpush.msra.mxu0 0.0
    %8783 = vmatpush.msra.mxu0 0.0
    %8784 = vmatpush.msra.mxu0 0.0
    %8785 = vmatpush.msra.mxu0 0.0
    %8786 = vmatpush.msra.mxu0 0.0
    %8787 = vmatpush.msra.mxu0 0.0
    %8788 = vmatpush.msra.mxu0 0.0
    %8789 = vmatpush.msra.mxu0 0.0
    %8790 = vmatpush.msra.mxu0 0.0
    %8791 = vmatpush.msra.mxu0 0.0
    %8792 = vmatpush.msra.mxu0 0.0
    %8793 = vmatpush.msra.mxu0 %v8777
    %8794 = vmatpush.msra.mxu0 %v8776
    %8795 = vmatpush.msra.mxu0 %v8775
    %8796 = vmatpush.msra.mxu0 %v8774
    %8797 = vmatmul.f32.gmra.mxu0 %v8779
    %v8798 = vpop.f32.mrf.mxu0
    %v8799 = vadd.f32 0.0, %v8798
    %8800 = vdwg.mxu0
    %v8801 = vadd.f32 %v8747, %v8799
    %s8802 = scalar_lea.vmem %s8, 32
    %v8803 = vld [vmem:[%s8802] sm:$0x3]
    %v8805 = vsel %vm7938, %v8803, 0
    %8807 = vmatpush.msra.mxu0 0.0
    %8808 = vmatpush.msra.mxu0 0.0
    %8809 = vmatpush.msra.mxu0 0.0
    %8810 = vmatpush.msra.mxu0 0.0
    %8811 = vmatpush.msra.mxu0 0.0
    %8812 = vmatpush.msra.mxu0 0.0
    %8813 = vmatpush.msra.mxu0 0.0
    %8814 = vmatpush.msra.mxu0 0.0
    %8815 = vmatpush.msra.mxu0 0.0
    %8816 = vmatpush.msra.mxu0 %v7944
    %8817 = vmatpush.msra.mxu0 %v7936
    %8818 = vmatpush.msra.mxu0 %v7935
    %8819 = vmatpush.msra.mxu0 %v7934
    %8820 = vmatpush.msra.mxu0 %v7933
    %8821 = vmatpush.msra.mxu0 %v7932
    %8822 = vmatpush.msra.mxu0 %v7931
    %8823 = vmatmul.f32.gmra.mxu0 %v8805
    %v8824 = vpop.f32.mrf.mxu0
    %v8825 = vadd.f32 0.0, %v8824
    %8826 = vdwg.mxu0
    %s8827 = scalar_lea.vmem %s9, 512
    %v8828 = vld [vmem:[%s8827] sm:$0xff]
    %v8829 = vld [vmem:[%s8827 + $0x8] sm:$0xff]
    %v8830 = vld [vmem:[%s8827 + $0x10] sm:$0xff]
    %v8831 = vld [vmem:[%s8827 + $0x18] sm:$0xff]
    %v8833 = vsel %vm7815, %v8825, 0
    %8835 = vmatpush.msra.mxu0 0.0
    %8836 = vmatpush.msra.mxu0 0.0
    %8837 = vmatpush.msra.mxu0 0.0
    %8838 = vmatpush.msra.mxu0 0.0
    %8839 = vmatpush.msra.mxu0 0.0
    %8840 = vmatpush.msra.mxu0 0.0
    %8841 = vmatpush.msra.mxu0 0.0
    %8842 = vmatpush.msra.mxu0 0.0
    %8843 = vmatpush.msra.mxu0 0.0
    %8844 = vmatpush.msra.mxu0 0.0
    %8845 = vmatpush.msra.mxu0 0.0
    %8846 = vmatpush.msra.mxu0 0.0
    %8847 = vmatpush.msra.mxu0 %v8831
    %8848 = vmatpush.msra.mxu0 %v8830
    %8849 = vmatpush.msra.mxu0 %v8829
    %8850 = vmatpush.msra.mxu0 %v8828
    %8851 = vmatmul.f32.gmra.mxu0 %v8833
    %v8852 = vpop.f32.mrf.mxu0
    %v8853 = vadd.f32 0.0, %v8852
    %8854 = vdwg.mxu0
    %v8855 = vadd.f32 %v8801, %v8853
    %s8856 = scalar_lea.vmem %s8, 34
    %v8857 = vld [vmem:[%s8856] sm:$0x3]
    %v8859 = vsel %vm7938, %v8857, 0
    %8861 = vmatpush.msra.mxu0 0.0
    %8862 = vmatpush.msra.mxu0 0.0
    %8863 = vmatpush.msra.mxu0 0.0
    %8864 = vmatpush.msra.mxu0 0.0
    %8865 = vmatpush.msra.mxu0 0.0
    %8866 = vmatpush.msra.mxu0 0.0
    %8867 = vmatpush.msra.mxu0 0.0
    %8868 = vmatpush.msra.mxu0 0.0
    %8869 = vmatpush.msra.mxu0 0.0
    %8870 = vmatpush.msra.mxu0 %v7944
    %8871 = vmatpush.msra.mxu0 %v7936
    %8872 = vmatpush.msra.mxu0 %v7935
    %8873 = vmatpush.msra.mxu0 %v7934
    %8874 = vmatpush.msra.mxu0 %v7933
    %8875 = vmatpush.msra.mxu0 %v7932
    %8876 = vmatpush.msra.mxu0 %v7931
    %8877 = vmatmul.f32.gmra.mxu0 %v8859
    %v8878 = vpop.f32.mrf.mxu0
    %v8879 = vadd.f32 0.0, %v8878
    %8880 = vdwg.mxu0
    %s8881 = scalar_lea.vmem %s9, 544
    %v8882 = vld [vmem:[%s8881] sm:$0xff]
    %v8883 = vld [vmem:[%s8881 + $0x8] sm:$0xff]
    %v8884 = vld [vmem:[%s8881 + $0x10] sm:$0xff]
    %v8885 = vld [vmem:[%s8881 + $0x18] sm:$0xff]
    %v8887 = vsel %vm7815, %v8879, 0
    %8889 = vmatpush.msra.mxu0 0.0
    %8890 = vmatpush.msra.mxu0 0.0
    %8891 = vmatpush.msra.mxu0 0.0
    %8892 = vmatpush.msra.mxu0 0.0
    %8893 = vmatpush.msra.mxu0 0.0
    %8894 = vmatpush.msra.mxu0 0.0
    %8895 = vmatpush.msra.mxu0 0.0
    %8896 = vmatpush.msra.mxu0 0.0
    %8897 = vmatpush.msra.mxu0 0.0
    %8898 = vmatpush.msra.mxu0 0.0
    %8899 = vmatpush.msra.mxu0 0.0
    %8900 = vmatpush.msra.mxu0 0.0
    %8901 = vmatpush.msra.mxu0 %v8885
    %8902 = vmatpush.msra.mxu0 %v8884
    %8903 = vmatpush.msra.mxu0 %v8883
    %8904 = vmatpush.msra.mxu0 %v8882
    %8905 = vmatmul.f32.gmra.mxu0 %v8887
    %v8906 = vpop.f32.mrf.mxu0
    %v8907 = vadd.f32 0.0, %v8906
    %8908 = vdwg.mxu0
    %v8909 = vadd.f32 %v8855, %v8907
    %s8910 = scalar_lea.vmem %s8, 36
    %v8911 = vld [vmem:[%s8910] sm:$0x3]
    %v8913 = vsel %vm7938, %v8911, 0
    %8915 = vmatpush.msra.mxu0 0.0
    %8916 = vmatpush.msra.mxu0 0.0
    %8917 = vmatpush.msra.mxu0 0.0
    %8918 = vmatpush.msra.mxu0 0.0
    %8919 = vmatpush.msra.mxu0 0.0
    %8920 = vmatpush.msra.mxu0 0.0
    %8921 = vmatpush.msra.mxu0 0.0
    %8922 = vmatpush.msra.mxu0 0.0
    %8923 = vmatpush.msra.mxu0 0.0
    %8924 = vmatpush.msra.mxu0 %v7944
    %8925 = vmatpush.msra.mxu0 %v7936
    %8926 = vmatpush.msra.mxu0 %v7935
    %8927 = vmatpush.msra.mxu0 %v7934
    %8928 = vmatpush.msra.mxu0 %v7933
    %8929 = vmatpush.msra.mxu0 %v7932
    %8930 = vmatpush.msra.mxu0 %v7931
    %8931 = vmatmul.f32.gmra.mxu0 %v8913
    %v8932 = vpop.f32.mrf.mxu0
    %v8933 = vadd.f32 0.0, %v8932
    %8934 = vdwg.mxu0
    %s8935 = scalar_lea.vmem %s9, 576
    %v8936 = vld [vmem:[%s8935] sm:$0xff]
    %v8937 = vld [vmem:[%s8935 + $0x8] sm:$0xff]
    %v8938 = vld [vmem:[%s8935 + $0x10] sm:$0xff]
    %v8939 = vld [vmem:[%s8935 + $0x18] sm:$0xff]
    %v8941 = vsel %vm7815, %v8933, 0
    %8943 = vmatpush.msra.mxu0 0.0
    %8944 = vmatpush.msra.mxu0 0.0
    %8945 = vmatpush.msra.mxu0 0.0
    %8946 = vmatpush.msra.mxu0 0.0
    %8947 = vmatpush.msra.mxu0 0.0
    %8948 = vmatpush.msra.mxu0 0.0
    %8949 = vmatpush.msra.mxu0 0.0
    %8950 = vmatpush.msra.mxu0 0.0
    %8951 = vmatpush.msra.mxu0 0.0
    %8952 = vmatpush.msra.mxu0 0.0
    %8953 = vmatpush.msra.mxu0 0.0
    %8954 = vmatpush.msra.mxu0 0.0
    %8955 = vmatpush.msra.mxu0 %v8939
    %8956 = vmatpush.msra.mxu0 %v8938
    %8957 = vmatpush.msra.mxu0 %v8937
    %8958 = vmatpush.msra.mxu0 %v8936
    %8959 = vmatmul.f32.gmra.mxu0 %v8941
    %v8960 = vpop.f32.mrf.mxu0
    %v8961 = vadd.f32 0.0, %v8960
    %8962 = vdwg.mxu0
    %v8963 = vadd.f32 %v8909, %v8961
    %s8964 = scalar_lea.vmem %s8, 38
    %v8965 = vld [vmem:[%s8964] sm:$0x3]
    %v8967 = vsel %vm7938, %v8965, 0
    %8969 = vmatpush.msra.mxu0 0.0
    %8970 = vmatpush.msra.mxu0 0.0
    %8971 = vmatpush.msra.mxu0 0.0
    %8972 = vmatpush.msra.mxu0 0.0
    %8973 = vmatpush.msra.mxu0 0.0
    %8974 = vmatpush.msra.mxu0 0.0
    %8975 = vmatpush.msra.mxu0 0.0
    %8976 = vmatpush.msra.mxu0 0.0
    %8977 = vmatpush.msra.mxu0 0.0
    %8978 = vmatpush.msra.mxu0 %v7944
    %8979 = vmatpush.msra.mxu0 %v7936
    %8980 = vmatpush.msra.mxu0 %v7935
    %8981 = vmatpush.msra.mxu0 %v7934
    %8982 = vmatpush.msra.mxu0 %v7933
    %8983 = vmatpush.msra.mxu0 %v7932
    %8984 = vmatpush.msra.mxu0 %v7931
    %8985 = vmatmul.f32.gmra.mxu0 %v8967
    %v8986 = vpop.f32.mrf.mxu0
    %v8987 = vadd.f32 0.0, %v8986
    %8988 = vdwg.mxu0
    %s8989 = scalar_lea.vmem %s9, 608
    %v8990 = vld [vmem:[%s8989] sm:$0xff]
    %v8991 = vld [vmem:[%s8989 + $0x8] sm:$0xff]
    %v8992 = vld [vmem:[%s8989 + $0x10] sm:$0xff]
    %v8993 = vld [vmem:[%s8989 + $0x18] sm:$0xff]
    %v8995 = vsel %vm7815, %v8987, 0
    %8997 = vmatpush.msra.mxu0 0.0
    %8998 = vmatpush.msra.mxu0 0.0
    %8999 = vmatpush.msra.mxu0 0.0
    %9000 = vmatpush.msra.mxu0 0.0
    %9001 = vmatpush.msra.mxu0 0.0
    %9002 = vmatpush.msra.mxu0 0.0
    %9003 = vmatpush.msra.mxu0 0.0
    %9004 = vmatpush.msra.mxu0 0.0
    %9005 = vmatpush.msra.mxu0 0.0
    %9006 = vmatpush.msra.mxu0 0.0
    %9007 = vmatpush.msra.mxu0 0.0
    %9008 = vmatpush.msra.mxu0 0.0
    %9009 = vmatpush.msra.mxu0 %v8993
    %9010 = vmatpush.msra.mxu0 %v8992
    %9011 = vmatpush.msra.mxu0 %v8991
    %9012 = vmatpush.msra.mxu0 %v8990
    %9013 = vmatmul.f32.gmra.mxu0 %v8995
    %v9014 = vpop.f32.mrf.mxu0
    %v9015 = vadd.f32 0.0, %v9014
    %9016 = vdwg.mxu0
    %v9017 = vadd.f32 %v8963, %v9015
    %s9018 = scalar_lea.vmem %s8, 40
    %v9019 = vld [vmem:[%s9018] sm:$0x3]
    %v9021 = vsel %vm7938, %v9019, 0
    %9023 = vmatpush.msra.mxu0 0.0
    %9024 = vmatpush.msra.mxu0 0.0
    %9025 = vmatpush.msra.mxu0 0.0
    %9026 = vmatpush.msra.mxu0 0.0
    %9027 = vmatpush.msra.mxu0 0.0
    %9028 = vmatpush.msra.mxu0 0.0
    %9029 = vmatpush.msra.mxu0 0.0
    %9030 = vmatpush.msra.mxu0 0.0
    %9031 = vmatpush.msra.mxu0 0.0
    %9032 = vmatpush.msra.mxu0 %v7944
    %9033 = vmatpush.msra.mxu0 %v7936
    %9034 = vmatpush.msra.mxu0 %v7935
    %9035 = vmatpush.msra.mxu0 %v7934
    %9036 = vmatpush.msra.mxu0 %v7933
    %9037 = vmatpush.msra.mxu0 %v7932
    %9038 = vmatpush.msra.mxu0 %v7931
    %9039 = vmatmul.f32.gmra.mxu0 %v9021
    %v9040 = vpop.f32.mrf.mxu0
    %v9041 = vadd.f32 0.0, %v9040
    %9042 = vdwg.mxu0
    %s9043 = scalar_lea.vmem %s9, 640
    %v9044 = vld [vmem:[%s9043] sm:$0xff]
    %v9045 = vld [vmem:[%s9043 + $0x8] sm:$0xff]
    %v9046 = vld [vmem:[%s9043 + $0x10] sm:$0xff]
    %v9047 = vld [vmem:[%s9043 + $0x18] sm:$0xff]
    %v9049 = vsel %vm7815, %v9041, 0
    %9051 = vmatpush.msra.mxu0 0.0
    %9052 = vmatpush.msra.mxu0 0.0
    %9053 = vmatpush.msra.mxu0 0.0
    %9054 = vmatpush.msra.mxu0 0.0
    %9055 = vmatpush.msra.mxu0 0.0
    %9056 = vmatpush.msra.mxu0 0.0
    %9057 = vmatpush.msra.mxu0 0.0
    %9058 = vmatpush.msra.mxu0 0.0
    %9059 = vmatpush.msra.mxu0 0.0
    %9060 = vmatpush.msra.mxu0 0.0
    %9061 = vmatpush.msra.mxu0 0.0
    %9062 = vmatpush.msra.mxu0 0.0
    %9063 = vmatpush.msra.mxu0 %v9047
    %9064 = vmatpush.msra.mxu0 %v9046
    %9065 = vmatpush.msra.mxu0 %v9045
    %9066 = vmatpush.msra.mxu0 %v9044
    %9067 = vmatmul.f32.gmra.mxu0 %v9049
    %v9068 = vpop.f32.mrf.mxu0
    %v9069 = vadd.f32 0.0, %v9068
    %9070 = vdwg.mxu0
    %v9071 = vadd.f32 %v9017, %v9069
    %s9072 = scalar_lea.vmem %s8, 42
    %v9073 = vld [vmem:[%s9072] sm:$0x3]
    %v9075 = vsel %vm7938, %v9073, 0
    %9077 = vmatpush.msra.mxu0 0.0
    %9078 = vmatpush.msra.mxu0 0.0
    %9079 = vmatpush.msra.mxu0 0.0
    %9080 = vmatpush.msra.mxu0 0.0
    %9081 = vmatpush.msra.mxu0 0.0
    %9082 = vmatpush.msra.mxu0 0.0
    %9083 = vmatpush.msra.mxu0 0.0
    %9084 = vmatpush.msra.mxu0 0.0
    %9085 = vmatpush.msra.mxu0 0.0
    %9086 = vmatpush.msra.mxu0 %v7944
    %9087 = vmatpush.msra.mxu0 %v7936
    %9088 = vmatpush.msra.mxu0 %v7935
    %9089 = vmatpush.msra.mxu0 %v7934
    %9090 = vmatpush.msra.mxu0 %v7933
    %9091 = vmatpush.msra.mxu0 %v7932
    %9092 = vmatpush.msra.mxu0 %v7931
    %9093 = vmatmul.f32.gmra.mxu0 %v9075
    %v9094 = vpop.f32.mrf.mxu0
    %v9095 = vadd.f32 0.0, %v9094
    %9096 = vdwg.mxu0
    %s9097 = scalar_lea.vmem %s9, 672
    %v9098 = vld [vmem:[%s9097] sm:$0xff]
    %v9099 = vld [vmem:[%s9097 + $0x8] sm:$0xff]
    %v9100 = vld [vmem:[%s9097 + $0x10] sm:$0xff]
    %v9101 = vld [vmem:[%s9097 + $0x18] sm:$0xff]
    %v9103 = vsel %vm7815, %v9095, 0
    %9105 = vmatpush.msra.mxu0 0.0
    %9106 = vmatpush.msra.mxu0 0.0
    %9107 = vmatpush.msra.mxu0 0.0
    %9108 = vmatpush.msra.mxu0 0.0
    %9109 = vmatpush.msra.mxu0 0.0
    %9110 = vmatpush.msra.mxu0 0.0
    %9111 = vmatpush.msra.mxu0 0.0
    %9112 = vmatpush.msra.mxu0 0.0
    %9113 = vmatpush.msra.mxu0 0.0
    %9114 = vmatpush.msra.mxu0 0.0
    %9115 = vmatpush.msra.mxu0 0.0
    %9116 = vmatpush.msra.mxu0 0.0
    %9117 = vmatpush.msra.mxu0 %v9101
    %9118 = vmatpush.msra.mxu0 %v9100
    %9119 = vmatpush.msra.mxu0 %v9099
    %9120 = vmatpush.msra.mxu0 %v9098
    %9121 = vmatmul.f32.gmra.mxu0 %v9103
    %v9122 = vpop.f32.mrf.mxu0
    %v9123 = vadd.f32 0.0, %v9122
    %9124 = vdwg.mxu0
    %v9125 = vadd.f32 %v9071, %v9123
    %s9126 = scalar_lea.vmem %s8, 44
    %v9127 = vld [vmem:[%s9126] sm:$0x3]
    %v9129 = vsel %vm7938, %v9127, 0
    %9131 = vmatpush.msra.mxu0 0.0
    %9132 = vmatpush.msra.mxu0 0.0
    %9133 = vmatpush.msra.mxu0 0.0
    %9134 = vmatpush.msra.mxu0 0.0
    %9135 = vmatpush.msra.mxu0 0.0
    %9136 = vmatpush.msra.mxu0 0.0
    %9137 = vmatpush.msra.mxu0 0.0
    %9138 = vmatpush.msra.mxu0 0.0
    %9139 = vmatpush.msra.mxu0 0.0
    %9140 = vmatpush.msra.mxu0 %v7944
    %9141 = vmatpush.msra.mxu0 %v7936
    %9142 = vmatpush.msra.mxu0 %v7935
    %9143 = vmatpush.msra.mxu0 %v7934
    %9144 = vmatpush.msra.mxu0 %v7933
    %9145 = vmatpush.msra.mxu0 %v7932
    %9146 = vmatpush.msra.mxu0 %v7931
    %9147 = vmatmul.f32.gmra.mxu0 %v9129
    %v9148 = vpop.f32.mrf.mxu0
    %v9149 = vadd.f32 0.0, %v9148
    %9150 = vdwg.mxu0
    %s9151 = scalar_lea.vmem %s9, 704
    %v9152 = vld [vmem:[%s9151] sm:$0xff]
    %v9153 = vld [vmem:[%s9151 + $0x8] sm:$0xff]
    %v9154 = vld [vmem:[%s9151 + $0x10] sm:$0xff]
    %v9155 = vld [vmem:[%s9151 + $0x18] sm:$0xff]
    %v9157 = vsel %vm7815, %v9149, 0
    %9159 = vmatpush.msra.mxu0 0.0
    %9160 = vmatpush.msra.mxu0 0.0
    %9161 = vmatpush.msra.mxu0 0.0
    %9162 = vmatpush.msra.mxu0 0.0
    %9163 = vmatpush.msra.mxu0 0.0
    %9164 = vmatpush.msra.mxu0 0.0
    %9165 = vmatpush.msra.mxu0 0.0
    %9166 = vmatpush.msra.mxu0 0.0
    %9167 = vmatpush.msra.mxu0 0.0
    %9168 = vmatpush.msra.mxu0 0.0
    %9169 = vmatpush.msra.mxu0 0.0
    %9170 = vmatpush.msra.mxu0 0.0
    %9171 = vmatpush.msra.mxu0 %v9155
    %9172 = vmatpush.msra.mxu0 %v9154
    %9173 = vmatpush.msra.mxu0 %v9153
    %9174 = vmatpush.msra.mxu0 %v9152
    %9175 = vmatmul.f32.gmra.mxu0 %v9157
    %v9176 = vpop.f32.mrf.mxu0
    %v9177 = vadd.f32 0.0, %v9176
    %9178 = vdwg.mxu0
    %v9179 = vadd.f32 %v9125, %v9177
    %s9180 = scalar_lea.vmem %s8, 46
    %v9181 = vld [vmem:[%s9180] sm:$0x3]
    %v9183 = vsel %vm7938, %v9181, 0
    %9185 = vmatpush.msra.mxu0 0.0
    %9186 = vmatpush.msra.mxu0 0.0
    %9187 = vmatpush.msra.mxu0 0.0
    %9188 = vmatpush.msra.mxu0 0.0
    %9189 = vmatpush.msra.mxu0 0.0
    %9190 = vmatpush.msra.mxu0 0.0
    %9191 = vmatpush.msra.mxu0 0.0
    %9192 = vmatpush.msra.mxu0 0.0
    %9193 = vmatpush.msra.mxu0 0.0
    %9194 = vmatpush.msra.mxu0 %v7944
    %9195 = vmatpush.msra.mxu0 %v7936
    %9196 = vmatpush.msra.mxu0 %v7935
    %9197 = vmatpush.msra.mxu0 %v7934
    %9198 = vmatpush.msra.mxu0 %v7933
    %9199 = vmatpush.msra.mxu0 %v7932
    %9200 = vmatpush.msra.mxu0 %v7931
    %9201 = vmatmul.f32.gmra.mxu0 %v9183
    %v9202 = vpop.f32.mrf.mxu0
    %v9203 = vadd.f32 0.0, %v9202
    %9204 = vdwg.mxu0
    %s9205 = scalar_lea.vmem %s9, 736
    %v9206 = vld [vmem:[%s9205] sm:$0xff]
    %v9207 = vld [vmem:[%s9205 + $0x8] sm:$0xff]
    %v9208 = vld [vmem:[%s9205 + $0x10] sm:$0xff]
    %v9209 = vld [vmem:[%s9205 + $0x18] sm:$0xff]
    %v9211 = vsel %vm7815, %v9203, 0
    %9213 = vmatpush.msra.mxu0 0.0
    %9214 = vmatpush.msra.mxu0 0.0
    %9215 = vmatpush.msra.mxu0 0.0
    %9216 = vmatpush.msra.mxu0 0.0
    %9217 = vmatpush.msra.mxu0 0.0
    %9218 = vmatpush.msra.mxu0 0.0
    %9219 = vmatpush.msra.mxu0 0.0
    %9220 = vmatpush.msra.mxu0 0.0
    %9221 = vmatpush.msra.mxu0 0.0
    %9222 = vmatpush.msra.mxu0 0.0
    %9223 = vmatpush.msra.mxu0 0.0
    %9224 = vmatpush.msra.mxu0 0.0
    %9225 = vmatpush.msra.mxu0 %v9209
    %9226 = vmatpush.msra.mxu0 %v9208
    %9227 = vmatpush.msra.mxu0 %v9207
    %9228 = vmatpush.msra.mxu0 %v9206
    %9229 = vmatmul.f32.gmra.mxu0 %v9211
    %v9230 = vpop.f32.mrf.mxu0
    %v9231 = vadd.f32 0.0, %v9230
    %9232 = vdwg.mxu0
    %v9233 = vadd.f32 %v9179, %v9231
    %s9234 = scalar_lea.vmem %s8, 48
    %v9235 = vld [vmem:[%s9234] sm:$0x3]
    %v9237 = vsel %vm7938, %v9235, 0
    %9239 = vmatpush.msra.mxu0 0.0
    %9240 = vmatpush.msra.mxu0 0.0
    %9241 = vmatpush.msra.mxu0 0.0
    %9242 = vmatpush.msra.mxu0 0.0
    %9243 = vmatpush.msra.mxu0 0.0
    %9244 = vmatpush.msra.mxu0 0.0
    %9245 = vmatpush.msra.mxu0 0.0
    %9246 = vmatpush.msra.mxu0 0.0
    %9247 = vmatpush.msra.mxu0 0.0
    %9248 = vmatpush.msra.mxu0 %v7944
    %9249 = vmatpush.msra.mxu0 %v7936
    %9250 = vmatpush.msra.mxu0 %v7935
    %9251 = vmatpush.msra.mxu0 %v7934
    %9252 = vmatpush.msra.mxu0 %v7933
    %9253 = vmatpush.msra.mxu0 %v7932
    %9254 = vmatpush.msra.mxu0 %v7931
    %9255 = vmatmul.f32.gmra.mxu0 %v9237
    %v9256 = vpop.f32.mrf.mxu0
    %v9257 = vadd.f32 0.0, %v9256
    %9258 = vdwg.mxu0
    %s9259 = scalar_lea.vmem %s9, 768
    %v9260 = vld [vmem:[%s9259] sm:$0xff]
    %v9261 = vld [vmem:[%s9259 + $0x8] sm:$0xff]
    %v9262 = vld [vmem:[%s9259 + $0x10] sm:$0xff]
    %v9263 = vld [vmem:[%s9259 + $0x18] sm:$0xff]
    %v9265 = vsel %vm7815, %v9257, 0
    %9267 = vmatpush.msra.mxu0 0.0
    %9268 = vmatpush.msra.mxu0 0.0
    %9269 = vmatpush.msra.mxu0 0.0
    %9270 = vmatpush.msra.mxu0 0.0
    %9271 = vmatpush.msra.mxu0 0.0
    %9272 = vmatpush.msra.mxu0 0.0
    %9273 = vmatpush.msra.mxu0 0.0
    %9274 = vmatpush.msra.mxu0 0.0
    %9275 = vmatpush.msra.mxu0 0.0
    %9276 = vmatpush.msra.mxu0 0.0
    %9277 = vmatpush.msra.mxu0 0.0
    %9278 = vmatpush.msra.mxu0 0.0
    %9279 = vmatpush.msra.mxu0 %v9263
    %9280 = vmatpush.msra.mxu0 %v9262
    %9281 = vmatpush.msra.mxu0 %v9261
    %9282 = vmatpush.msra.mxu0 %v9260
    %9283 = vmatmul.f32.gmra.mxu0 %v9265
    %v9284 = vpop.f32.mrf.mxu0
    %v9285 = vadd.f32 0.0, %v9284
    %9286 = vdwg.mxu0
    %v9287 = vadd.f32 %v9233, %v9285
    %v9288 = vld [vmem:[%s10] sm:$0x1]
    %v9289 = vld [vmem:[%s11] sm:$0x1]
    %v9290 = vsel %vm7827, %v9287, 0.0
    %v9291 = vrot.slane %v9290, 4
    %v9292 = vadd.f32 %v9290, %v9291
    %v9293 = vrot.slane %v9292, 2
    %v9294 = vadd.f32 %v9292, %v9293
    %v9295 = vrot.slane %v9294, 1
    %v9296 = vadd.f32 %v9294, %v9295
    %v9297 = vrcp.pop 2.0
    %v9298 = vmul.f32 2.0, %v9297
    %v9299 = vsub.f32 1.0, %v9298
    %v9300 = vmul.f32 %v9297, %v9299
    %v9301 = vadd.f32 %v9297, %v9300
    %vm9302 = vweird.f32 %v9297
    %v9303 = vsel %vm9302, %v9297, %v9301
    %v9304 = vmul.f32 %v9296, %v9303
    %v9305 = vsub.f32 %v9287, %v9304
    %v9306 = vmul.f32 %v9305, %v9305
    %v9307 = vsel %vm7827, %v9306, 0.0
    %v9308 = vrot.slane %v9307, 4
    %v9309 = vadd.f32 %v9307, %v9308
    %v9310 = vrot.slane %v9309, 2
    %v9311 = vadd.f32 %v9309, %v9310
    %v9312 = vrot.slane %v9311, 1
    %v9313 = vadd.f32 %v9311, %v9312
    %v9314 = vmul.f32 %v9313, %v9303
    %v9315 = vadd.f32 %v9314, 1e-05
    %v9316 = vrsqrt.pop %v9315
    %v9317 = vmul.f32 %v9316, %v9315
    %v9318 = vmul.f32 %v9317, %v9316
    %v9319 = vmul.f32 0.5, %v9318
    %v9320 = vsub.f32 1.5, %v9319
    %v9321 = vmul.f32 %v9316, %v9320
    %vm9322 = vweird.f32 %v9315
    %vm9323 = vweird.f32 %v9316
    %vm9324 = vmor %vm9322, %vm9323
    %v9325 = vsel %vm9324, %v9316, %v9321
    %v9326 = vmul.f32 %v9305, %v9325
    %v9328 = vperm.slane %v9288, 0
    %v9330 = vmul.f32 %v9326, %v9328
    %v9332 = vperm.slane %v9289, 0
    %v9334 = vadd.f32 %v9330, %v9332
    %v9335 = vmax.f32 %v9334, 0.0
    %v9336 = vld [vmem:[%s12] sm:$0x3]
    %vm9337 = vcmask 15360
    %v9339 = vsel %vm9337, %v9336, 0
    %v9342 = vsel %vm7942, %v9335, 0
    %9344 = vmatpush.msra.mxu0 0.0
    %9345 = vmatpush.msra.mxu0 0.0
    %9346 = vmatpush.msra.mxu0 0.0
    %9347 = vmatpush.msra.mxu0 0.0
    %9348 = vmatpush.msra.mxu0 0.0
    %9349 = vmatpush.msra.mxu0 0.0
    %9350 = vmatpush.msra.mxu0 0.0
    %9351 = vmatpush.msra.mxu0 0.0
    %9352 = vmatpush.msra.mxu0 0.0
    %9353 = vmatpush.msra.mxu0 0.0
    %9354 = vmatpush.msra.mxu0 0.0
    %9355 = vmatpush.msra.mxu0 0.0
    %9356 = vmatpush.msra.mxu0 0.0
    %9357 = vmatpush.msra.mxu0 0.0
    %9358 = vmatpush.msra.mxu0 0.0
    %9359 = vmatpush.msra.mxu0 %v9342
    %9360 = vmatmul.f32.gmra.mxu0 %v9339
    %v9361 = vpop.f32.mrf.mxu0
    %v9362 = vadd.f32 0.0, %v9361
    %9363 = vdwg.mxu0
    %v9364 = vld [vmem:[%s13] sm:$0xff]
    %v9365 = vld [vmem:[%s13 + $0x8] sm:$0xff]
    %v9366 = vld [vmem:[%s13 + $0x10] sm:$0xff]
    %v9367 = vld [vmem:[%s13 + $0x18] sm:$0xff]
    %v9368 = vld [vmem:[%s14] sm:$0x1]
    %v9370 = vperm.slane %v9368, 0
    %v9373 = vsel %vm7815, %v9362, 0
    %9375 = vmatpush.msra.mxu0 0.0
    %9376 = vmatpush.msra.mxu0 0.0
    %9377 = vmatpush.msra.mxu0 0.0
    %9378 = vmatpush.msra.mxu0 0.0
    %9379 = vmatpush.msra.mxu0 0.0
    %9380 = vmatpush.msra.mxu0 0.0
    %9381 = vmatpush.msra.mxu0 0.0
    %9382 = vmatpush.msra.mxu0 0.0
    %9383 = vmatpush.msra.mxu0 0.0
    %9384 = vmatpush.msra.mxu0 0.0
    %9385 = vmatpush.msra.mxu0 0.0
    %9386 = vmatpush.msra.mxu0 0.0
    %9387 = vmatpush.msra.mxu0 %v9367
    %9388 = vmatpush.msra.mxu0 %v9366
    %9389 = vmatpush.msra.mxu0 %v9365
    %9390 = vmatpush.msra.mxu0 %v9364
    %9391 = vmatmul.f32.gmra.mxu0 %v9373
    %v9392 = vpop.f32.mrf.mxu0
    %v9393 = vadd.f32 %v9370, %v9392
    %9394 = vdwg.mxu0
    %vm9395 = vcmask 74752
    %9396 = vst.msk [vmem:[#allocation4] sm:$0x3] %vm9395, %v9393
    // Predicated region
    $region62: #{imgconvnet_forward.1} parent=1 // pred_check
      _
    $region63: #{imgconvnet_forward.1} parent=1 // pred_check_branch
      %9398 = sbr.rel (0) target = $region65
    $region64: #{imgconvnet_forward.1} parent=1 // pred_region
      %9400 = vsyncadd [#allocation5], 0
      %s9402 = sshll.u32 [#allocation4], 4
      %s9403 = int_to_ptr.vmem [resolvable:$true] %s9402
      %s9404 = sshll.u32 %s15, 4
      %s9405 = int_to_ptr.hbm [resolvable:$true] %s9404
      %9407 = dma.vmem_to_hbm [thread:$0]  %s9403, 32, %s9405, [#allocation5]
    $region65: #{imgconvnet_forward.1} parent=1 // pred_fallthru
      _
    // Predicated region
    $region66: #{imgconvnet_forward.1} parent=1 // pred_check
      _
    $region67: #{imgconvnet_forward.1} parent=1 // pred_check_branch
      %9409 = sbr.rel (0) target = $region69
    $region68: #{imgconvnet_forward.1} parent=1 // pred_region
      %9411 = dma.done [#allocation5], 32
    $region69: #{imgconvnet_forward.1} parent=1 // pred_fallthru
      _
    %9412 = vsyncpa [#allocation5], 1

</llo_original>
